<compile_context>
chip_gen: v6e
topology: v6e:2x2x1
jax: 0.10.0
libtpu: 0.0.40
codegen_flags: <defaults>
</compile_context>

<pallas_src>
import functools

import jax
import jax.numpy as jnp
from jax.experimental import pallas as pl
from jax.experimental.pallas import tpu as pltpu


# ----------------------------------------------------------------------------
# Single fused Pallas kernel: the whole forward pass (both branches) per call.
# ----------------------------------------------------------------------------

def fused_net_kernel(x_ref, l_ref,
                     w10_ref, w11_ref, b1_ref,
                     w20_ref, w21_ref, b2_ref,
                     wl1_ref, bl1_ref, wl2_ref, bl2_ref, wl3_ref, bl3_ref,
                     out1_ref, out2_ref, out_ref, feat_ref,
                     *, n_graphs, n_nodes):
    f32 = jnp.float32
    bf16 = jnp.bfloat16

    X = x_ref[...]                       # (2*B*N, Fin)   bf16, branch-stacked rows
    Lf = l_ref[...]                      # (2*B*N, 2*B*N) bf16, block-diag L_hat

    # --- conv1 (ChebConv K=2) + bn1 + relu; BN folded into W/b ---------------
    LX = jnp.dot(Lf, X, preferred_element_type=f32).astype(bf16)
    h = (jnp.dot(X, w10_ref[...], preferred_element_type=f32)
         + jnp.dot(LX, w11_ref[...], preferred_element_type=f32)
         + b1_ref[...])
    h = jnp.maximum(h, 0.0).astype(bf16)                 # (2BN, 512)

    # --- conv2 (ChebConv K=2) + bn2 + relu -----------------------------------
    LH = jnp.dot(Lf, h, preferred_element_type=f32).astype(bf16)
    h2 = (jnp.dot(h, w20_ref[...], preferred_element_type=f32)
          + jnp.dot(LH, w21_ref[...], preferred_element_type=f32)
          + b2_ref[...])
    h2 = jnp.maximum(h2, 0.0)                            # (2BN, 512) f32

    # --- per-graph global max / mean pool -> lane-dense (2B, 1024) slab ------
    n_total = 2 * n_graphs
    mx_rows, mn_rows = [], []
    for g in range(n_total):                             # static, unrolled
        hg = h2[g * n_nodes:(g + 1) * n_nodes]           # (N, 512), sublane-aligned
        mx_rows.append(jnp.max(hg, axis=0, keepdims=True))
        mn_rows.append(jnp.mean(hg, axis=0, keepdims=True))
    mx = jnp.concatenate(mx_rows, axis=0)                # (2B, 512)
    mn = jnp.concatenate(mn_rows, axis=0)                # (2B, 512)
    pooled = jnp.concatenate([mx, mn], axis=1).astype(bf16)   # (2B, 1024)

    # --- MLP head: lin1+bn5+relu -> lin2+bn6+relu -> lin3+relu -> softmax ----
    y1 = jnp.maximum(jnp.dot(pooled, wl1_ref[...], preferred_element_type=f32)
                     + bl1_ref[...], 0.0).astype(bf16)        # (2B, 512)
    y2 = jnp.maximum(jnp.dot(y1, wl2_ref[...], preferred_element_type=f32)
                     + bl2_ref[...], 0.0)                     # (2B, 256) f32
    z = jnp.maximum(jnp.dot(y2.astype(bf16), wl3_ref[...],
                            preferred_element_type=f32)
                    + bl3_ref[...], 0.0)                      # (2B, 4) f32

    z1 = z[:n_graphs]                                    # branch 1
    z2 = z[n_graphs:]                                    # branch 2

    def _softmax(v):
        m = jnp.max(v, axis=-1, keepdims=True)
        e = jnp.exp(v - m)
        return e / jnp.sum(e, axis=-1, keepdims=True)

    out1_ref[...] = _softmax(z1)
    out2_ref[...] = _softmax(z2)
    out_ref[...] = _softmax(0.5 * (z1 + z2))
    feat_ref[...] = jnp.concatenate([y2[:n_graphs], y2[n_graphs:]], axis=1)


# ----------------------------------------------------------------------------
# Plain-JAX glue: graph construction, parameter init (BN folding), forward.
# ----------------------------------------------------------------------------

def normalized_prop_matrix(adj):
    """ChebConv (K=2, lambda_max=2) scaled Laplacian: L_hat = -D^{-1/2} A D^{-1/2}."""
    deg = jnp.sum(adj, axis=-1)
    dinv = jnp.where(deg > 0, 1.0 / jnp.sqrt(jnp.maximum(deg, 1e-12)), 0.0)
    return -(dinv[..., :, None] * adj * dinv[..., None, :])


def build_adjs(B, N):
    idx = jnp.arange(N)
    a1 = jnp.zeros((N, N), jnp.float32)
    a1 = a1.at[idx, (idx + 1) % N].set(1.0)
    a1 = a1.at[(idx + 1) % N, idx].set(1.0)          # ring graph (edge_index1)
    a2 = jnp.zeros((N, N), jnp.float32)
    a2 = a2.at[idx, (idx + 2) % N].set(1.0)
    a2 = a2.at[(idx + 2) % N, idx].set(1.0)          # "pooled" edge set (edge_index2)
    A1 = jnp.broadcast_to(a1, (B, N, N))
    A2 = jnp.broadcast_to(a2, (B, N, N))
    return A1, A2


def init_params(key):
    ks = jax.random.split(key, 20)

    def w(k, shape, s=0.05):
        return (s * jax.random.normal(k, shape)).astype(jnp.float32)

    def bn(kg, kb, n, eps=1e-5):
        gamma = (1.0 + 0.1 * jax.random.normal(kg, (n,))).astype(jnp.float32)
        beta = (0.1 * jax.random.normal(kb, (n,))).astype(jnp.float32)
        mean = jnp.zeros((n,), jnp.float32)
        var = jnp.ones((n,), jnp.float32)
        scale = gamma / jnp.sqrt(var + eps)
        shift = beta - mean * scale
        return scale, shift

    p = {}
    # ChebConv(1025, 512, K=2) + BatchNorm1d(512)  (bn3 reuses bn1, see TODO)
    s1, h1 = bn(ks[12], ks[13], 512)
    p["c1_w0"] = (w(ks[0], (1025, 512)) * s1[None, :]).astype(jnp.bfloat16)
    p["c1_w1"] = (w(ks[1], (1025, 512)) * s1[None, :]).astype(jnp.bfloat16)
    p["c1_b"] = (w(ks[2], (512,)) * s1 + h1).reshape(1, 512)
    # ChebConv(512, 512, K=2) + BatchNorm1d(512)   (bn4 reuses bn2, see TODO)
    s2, h2 = bn(ks[14], ks[15], 512)
    p["c2_w0"] = (w(ks[3], (512, 512)) * s2[None, :]).astype(jnp.bfloat16)
    p["c2_w1"] = (w(ks[4], (512, 512)) * s2[None, :]).astype(jnp.bfloat16)
    p["c2_b"] = (w(ks[5], (512,)) * s2 + h2).reshape(1, 512)
    # Linear(1024, 512) + BatchNorm1d(512)
    s5, h5 = bn(ks[16], ks[17], 512)
    p["lin1_w"] = (w(ks[6], (1024, 512)) * s5[None, :]).astype(jnp.bfloat16)
    p["lin1_b"] = (w(ks[7], (512,)) * s5 + h5).reshape(1, 512)
    # Linear(512, 256) + BatchNorm1d(256)
    s6, h6 = bn(ks[18], ks[19], 256)
    p["lin2_w"] = (w(ks[8], (512, 256)) * s6[None, :]).astype(jnp.bfloat16)
    p["lin2_b"] = (w(ks[9], (256,)) * s6 + h6).reshape(1, 256)
    # Linear(256, 4) (no BN)
    p["lin3_w"] = w(ks[10], (256, 4)).astype(jnp.bfloat16)
    p["lin3_b"] = w(ks[11], (4,)).reshape(1, 4)
    return p


def net_forward(x, l_hat1, l_hat2, p):
    """x: [B, N, Fin]; l_hat1/l_hat2: [B, N, N] -> (out1, out2, out, feature)."""
    B, N, Fin = x.shape

    # Both branches share all weights -> stack them along the row axis so the
    # weights are streamed from HBM exactly once.
    x_flat = x.reshape(B * N, Fin)
    x_stack = jnp.concatenate([x_flat, x_flat], axis=0).astype(jnp.bfloat16)  # (2BN, Fin)

    # Block-diagonal scaled Laplacian over all 2B graphs: per-graph propagation
    # becomes one flat (2BN, 2BN) @ (2BN, F) matmul inside the kernel.
    l_full = jnp.zeros((2 * B * N, 2 * B * N), jnp.float32)
    for i, lh in enumerate((l_hat1, l_hat2)):
        for g in range(B):
            r = (i * B + g) * N
            l_full = l_full.at[r:r + N, r:r + N].set(lh[g])
    l_full = l_full.astype(jnp.bfloat16)

    kernel = functools.partial(fused_net_kernel, n_graphs=B, n_nodes=N)
    out1, out2, out, feature = pl.pallas_call(
        kernel,
        out_shape=(jax.ShapeDtypeStruct((B, 4), jnp.float32),
                   jax.ShapeDtypeStruct((B, 4), jnp.float32),
                   jax.ShapeDtypeStruct((B, 4), jnp.float32),
                   jax.ShapeDtypeStruct((B, 512), jnp.float32)),
        compiler_params=pltpu.CompilerParams(vmem_limit_bytes=32 << 20),
    )(x_stack, l_full,
      p["c1_w0"], p["c1_w1"], p["c1_b"],
      p["c2_w0"], p["c2_w1"], p["c2_b"],
      p["lin1_w"], p["lin1_b"],
      p["lin2_w"], p["lin2_b"],
      p["lin3_w"], p["lin3_b"])
    return out1, out2, out, feature


# ----------------------------------------------------------------------------
# Driver
# ----------------------------------------------------------------------------

if __name__ == "__main__":
    B, N, F_IN = 2, 8, 1025          # 2 graphs, 8 nodes each, 1025-dim node features

    key = jax.random.PRNGKey(0)
    kx, kp = jax.random.split(key)
    x = jax.random.normal(kx, (B, N, F_IN), dtype=jnp.float32)
    params = init_params(kp)

    A1, A2 = build_adjs(B, N)
    L1 = normalized_prop_matrix(A1)
    L2 = normalized_prop_matrix(A2)

    fwd = jax.jit(net_forward)
    out1, out2, out, feature = fwd(x, L1, L2, params)
    jax.block_until_ready((out1, out2, out, feature))

    assert out1.shape == (B, 4) and out2.shape == (B, 4)
    assert out.shape == (B, 4) and feature.shape == (B, 512)
    assert bool(jnp.all(jnp.isfinite(out)))
    assert bool(jnp.allclose(jnp.sum(out, -1), 1.0, atol=1e-4))
    assert bool(jnp.allclose(jnp.sum(out1, -1), 1.0, atol=1e-4))
    assert bool(jnp.allclose(jnp.sum(out2, -1), 1.0, atol=1e-4))

    print("KERNEL_OK")
</pallas_src>

<mosaic_0001>
module attributes {stable_mosaic.version = 11 : i64} {
  func.func @fused_net_kernel(%arg0: memref<32x1025xbf16, #tpu.memory_space<vmem>>, %arg1: memref<32x32xbf16, #tpu.memory_space<vmem>>, %arg2: memref<1025x512xbf16, #tpu.memory_space<vmem>>, %arg3: memref<1025x512xbf16, #tpu.memory_space<vmem>>, %arg4: memref<1x512xf32, #tpu.memory_space<vmem>>, %arg5: memref<512x512xbf16, #tpu.memory_space<vmem>>, %arg6: memref<512x512xbf16, #tpu.memory_space<vmem>>, %arg7: memref<1x512xf32, #tpu.memory_space<vmem>>, %arg8: memref<1024x512xbf16, #tpu.memory_space<vmem>>, %arg9: memref<1x512xf32, #tpu.memory_space<vmem>>, %arg10: memref<512x256xbf16, #tpu.memory_space<vmem>>, %arg11: memref<1x256xf32, #tpu.memory_space<vmem>>, %arg12: memref<256x4xbf16, #tpu.memory_space<vmem>>, %arg13: memref<1x4xf32, #tpu.memory_space<vmem>>, %arg14: memref<2x4xf32, #tpu.memory_space<vmem>>, %arg15: memref<2x4xf32, #tpu.memory_space<vmem>>, %arg16: memref<2x4xf32, #tpu.memory_space<vmem>>, %arg17: memref<2x512xf32, #tpu.memory_space<vmem>>) attributes {dimension_semantics = [], scalar_prefetch = 0 : i64, scratch_operands = 0 : i64, tpu.core_type = #tpu.core_type<tc>} {
    %c0 = arith.constant 0 : index
    %c0_0 = arith.constant 0 : index
    %0 = vector.load %arg0[%c0, %c0_0] : memref<32x1025xbf16, #tpu.memory_space<vmem>>, vector<32x1025xbf16>
    %c0_1 = arith.constant 0 : index
    %c0_2 = arith.constant 0 : index
    %1 = vector.load %arg1[%c0_1, %c0_2] : memref<32x32xbf16, #tpu.memory_space<vmem>>, vector<32x32xbf16>
    %cst = arith.constant dense<0.000000e+00> : vector<32x1025xf32>
    %2 = tpu.matmul %1, %0, %cst {dimension_numbers = #tpu.dot_dimension_numbers<[1], [0], [0], [1], [0, 0, 1, 1], [], []>} : vector<32x32xbf16>, vector<32x1025xbf16>, vector<32x1025xf32> -> vector<32x1025xf32>
    %3 = arith.truncf %2 : vector<32x1025xf32> to vector<32x1025xbf16>
    %c0_3 = arith.constant 0 : index
    %c0_4 = arith.constant 0 : index
    %4 = vector.load %arg2[%c0_3, %c0_4] : memref<1025x512xbf16, #tpu.memory_space<vmem>>, vector<1025x512xbf16>
    %cst_5 = arith.constant dense<0.000000e+00> : vector<32x512xf32>
    %5 = tpu.matmul %0, %4, %cst_5 {dimension_numbers = #tpu.dot_dimension_numbers<[1], [0], [0], [1], [0, 0, 1, 1], [], []>} : vector<32x1025xbf16>, vector<1025x512xbf16>, vector<32x512xf32> -> vector<32x512xf32>
    %c0_6 = arith.constant 0 : index
    %c0_7 = arith.constant 0 : index
    %6 = vector.load %arg3[%c0_6, %c0_7] : memref<1025x512xbf16, #tpu.memory_space<vmem>>, vector<1025x512xbf16>
    %cst_8 = arith.constant dense<0.000000e+00> : vector<32x512xf32>
    %7 = tpu.matmul %3, %6, %cst_8 {dimension_numbers = #tpu.dot_dimension_numbers<[1], [0], [0], [1], [0, 0, 1, 1], [], []>} : vector<32x1025xbf16>, vector<1025x512xbf16>, vector<32x512xf32> -> vector<32x512xf32>
    %8 = arith.addf %5, %7 : vector<32x512xf32>
    %c0_9 = arith.constant 0 : index
    %c0_10 = arith.constant 0 : index
    %9 = vector.load %arg4[%c0_9, %c0_10] : memref<1x512xf32, #tpu.memory_space<vmem>>, vector<1x512xf32>
    %10 = vector.broadcast %9 : vector<1x512xf32> to vector<32x512xf32>
    %11 = arith.addf %8, %10 : vector<32x512xf32>
    %cst_11 = arith.constant 0.000000e+00 : f32
    %12 = vector.broadcast %cst_11 : f32 to vector<32x512xf32>
    %13 = arith.maximumf %11, %12 : vector<32x512xf32>
    %14 = arith.truncf %13 : vector<32x512xf32> to vector<32x512xbf16>
    %cst_12 = arith.constant dense<0.000000e+00> : vector<32x512xf32>
    %15 = tpu.matmul %1, %14, %cst_12 {dimension_numbers = #tpu.dot_dimension_numbers<[1], [0], [0], [1], [0, 0, 1, 1], [], []>} : vector<32x32xbf16>, vector<32x512xbf16>, vector<32x512xf32> -> vector<32x512xf32>
    %16 = arith.truncf %15 : vector<32x512xf32> to vector<32x512xbf16>
    %c0_13 = arith.constant 0 : index
    %c0_14 = arith.constant 0 : index
    %17 = vector.load %arg5[%c0_13, %c0_14] : memref<512x512xbf16, #tpu.memory_space<vmem>>, vector<512x512xbf16>
    %cst_15 = arith.constant dense<0.000000e+00> : vector<32x512xf32>
    %18 = tpu.matmul %14, %17, %cst_15 {dimension_numbers = #tpu.dot_dimension_numbers<[1], [0], [0], [1], [0, 0, 1, 1], [], []>} : vector<32x512xbf16>, vector<512x512xbf16>, vector<32x512xf32> -> vector<32x512xf32>
    %c0_16 = arith.constant 0 : index
    %c0_17 = arith.constant 0 : index
    %19 = vector.load %arg6[%c0_16, %c0_17] : memref<512x512xbf16, #tpu.memory_space<vmem>>, vector<512x512xbf16>
    %cst_18 = arith.constant dense<0.000000e+00> : vector<32x512xf32>
    %20 = tpu.matmul %16, %19, %cst_18 {dimension_numbers = #tpu.dot_dimension_numbers<[1], [0], [0], [1], [0, 0, 1, 1], [], []>} : vector<32x512xbf16>, vector<512x512xbf16>, vector<32x512xf32> -> vector<32x512xf32>
    %21 = arith.addf %18, %20 : vector<32x512xf32>
    %c0_19 = arith.constant 0 : index
    %c0_20 = arith.constant 0 : index
    %22 = vector.load %arg7[%c0_19, %c0_20] : memref<1x512xf32, #tpu.memory_space<vmem>>, vector<1x512xf32>
    %23 = vector.broadcast %22 : vector<1x512xf32> to vector<32x512xf32>
    %24 = arith.addf %21, %23 : vector<32x512xf32>
    %cst_21 = arith.constant 0.000000e+00 : f32
    %25 = vector.broadcast %cst_21 : f32 to vector<32x512xf32>
    %26 = arith.maximumf %24, %25 : vector<32x512xf32>
    %27 = vector.extract_strided_slice %26 {offsets = [0, 0], sizes = [8, 512], strides = [1, 1]} : vector<32x512xf32> to vector<8x512xf32>
    %cst_22 = arith.constant dense<0xFF800000> : vector<512xf32>
    %28 = vector.multi_reduction <maximumf>, %27, %cst_22 [0] : vector<8x512xf32> to vector<512xf32>
    %29 = vector.shape_cast %28 : vector<512xf32> to vector<1x512xf32>
    %cst_23 = arith.constant dense<0.000000e+00> : vector<512xf32>
    %30 = vector.multi_reduction <add>, %27, %cst_23 [0] : vector<8x512xf32> to vector<512xf32>
    %31 = vector.shape_cast %30 : vector<512xf32> to vector<1x512xf32>
    %cst_24 = arith.constant 8.000000e+00 : f32
    %32 = vector.broadcast %cst_24 : f32 to vector<1x512xf32>
    %33 = arith.divf %31, %32 : vector<1x512xf32>
    %34 = vector.extract_strided_slice %26 {offsets = [8, 0], sizes = [8, 512], strides = [1, 1]} : vector<32x512xf32> to vector<8x512xf32>
    %cst_25 = arith.constant dense<0xFF800000> : vector<512xf32>
    %35 = vector.multi_reduction <maximumf>, %34, %cst_25 [0] : vector<8x512xf32> to vector<512xf32>
    %36 = vector.shape_cast %35 : vector<512xf32> to vector<1x512xf32>
    %cst_26 = arith.constant dense<0.000000e+00> : vector<512xf32>
    %37 = vector.multi_reduction <add>, %34, %cst_26 [0] : vector<8x512xf32> to vector<512xf32>
    %38 = vector.shape_cast %37 : vector<512xf32> to vector<1x512xf32>
    %cst_27 = arith.constant 8.000000e+00 : f32
    %39 = vector.broadcast %cst_27 : f32 to vector<1x512xf32>
    %40 = arith.divf %38, %39 : vector<1x512xf32>
    %41 = vector.extract_strided_slice %26 {offsets = [16, 0], sizes = [8, 512], strides = [1, 1]} : vector<32x512xf32> to vector<8x512xf32>
    %cst_28 = arith.constant dense<0xFF800000> : vector<512xf32>
    %42 = vector.multi_reduction <maximumf>, %41, %cst_28 [0] : vector<8x512xf32> to vector<512xf32>
    %43 = vector.shape_cast %42 : vector<512xf32> to vector<1x512xf32>
    %cst_29 = arith.constant dense<0.000000e+00> : vector<512xf32>
    %44 = vector.multi_reduction <add>, %41, %cst_29 [0] : vector<8x512xf32> to vector<512xf32>
    %45 = vector.shape_cast %44 : vector<512xf32> to vector<1x512xf32>
    %cst_30 = arith.constant 8.000000e+00 : f32
    %46 = vector.broadcast %cst_30 : f32 to vector<1x512xf32>
    %47 = arith.divf %45, %46 : vector<1x512xf32>
    %48 = vector.extract_strided_slice %26 {offsets = [24, 0], sizes = [8, 512], strides = [1, 1]} : vector<32x512xf32> to vector<8x512xf32>
    %cst_31 = arith.constant dense<0xFF800000> : vector<512xf32>
    %49 = vector.multi_reduction <maximumf>, %48, %cst_31 [0] : vector<8x512xf32> to vector<512xf32>
    %50 = vector.shape_cast %49 : vector<512xf32> to vector<1x512xf32>
    %cst_32 = arith.constant dense<0.000000e+00> : vector<512xf32>
    %51 = vector.multi_reduction <add>, %48, %cst_32 [0] : vector<8x512xf32> to vector<512xf32>
    %52 = vector.shape_cast %51 : vector<512xf32> to vector<1x512xf32>
    %cst_33 = arith.constant 8.000000e+00 : f32
    %53 = vector.broadcast %cst_33 : f32 to vector<1x512xf32>
    %54 = arith.divf %52, %53 : vector<1x512xf32>
    %55 = tpu.concatenate %29, %36, %43, %50 in 0 : vector<1x512xf32>, vector<1x512xf32>, vector<1x512xf32>, vector<1x512xf32> -> vector<4x512xf32>
    %56 = tpu.concatenate %33, %40, %47, %54 in 0 : vector<1x512xf32>, vector<1x512xf32>, vector<1x512xf32>, vector<1x512xf32> -> vector<4x512xf32>
    %57 = tpu.concatenate %55, %56 in 1 : vector<4x512xf32>, vector<4x512xf32> -> vector<4x1024xf32>
    %58 = arith.truncf %57 : vector<4x1024xf32> to vector<4x1024xbf16>
    %c0_34 = arith.constant 0 : index
    %c0_35 = arith.constant 0 : index
    %59 = vector.load %arg8[%c0_34, %c0_35] : memref<1024x512xbf16, #tpu.memory_space<vmem>>, vector<1024x512xbf16>
    %cst_36 = arith.constant dense<0.000000e+00> : vector<4x512xf32>
    %60 = tpu.matmul %58, %59, %cst_36 {dimension_numbers = #tpu.dot_dimension_numbers<[1], [0], [0], [1], [0, 0, 1, 1], [], []>} : vector<4x1024xbf16>, vector<1024x512xbf16>, vector<4x512xf32> -> vector<4x512xf32>
    %c0_37 = arith.constant 0 : index
    %c0_38 = arith.constant 0 : index
    %61 = vector.load %arg9[%c0_37, %c0_38] : memref<1x512xf32, #tpu.memory_space<vmem>>, vector<1x512xf32>
    %62 = vector.broadcast %61 : vector<1x512xf32> to vector<4x512xf32>
    %63 = arith.addf %60, %62 : vector<4x512xf32>
    %cst_39 = arith.constant 0.000000e+00 : f32
    %64 = vector.broadcast %cst_39 : f32 to vector<4x512xf32>
    %65 = arith.maximumf %63, %64 : vector<4x512xf32>
    %66 = arith.truncf %65 : vector<4x512xf32> to vector<4x512xbf16>
    %c0_40 = arith.constant 0 : index
    %c0_41 = arith.constant 0 : index
    %67 = vector.load %arg10[%c0_40, %c0_41] : memref<512x256xbf16, #tpu.memory_space<vmem>>, vector<512x256xbf16>
    %cst_42 = arith.constant dense<0.000000e+00> : vector<4x256xf32>
    %68 = tpu.matmul %66, %67, %cst_42 {dimension_numbers = #tpu.dot_dimension_numbers<[1], [0], [0], [1], [0, 0, 1, 1], [], []>} : vector<4x512xbf16>, vector<512x256xbf16>, vector<4x256xf32> -> vector<4x256xf32>
    %c0_43 = arith.constant 0 : index
    %c0_44 = arith.constant 0 : index
    %69 = vector.load %arg11[%c0_43, %c0_44] : memref<1x256xf32, #tpu.memory_space<vmem>>, vector<1x256xf32>
    %70 = vector.broadcast %69 : vector<1x256xf32> to vector<4x256xf32>
    %71 = arith.addf %68, %70 : vector<4x256xf32>
    %cst_45 = arith.constant 0.000000e+00 : f32
    %72 = vector.broadcast %cst_45 : f32 to vector<4x256xf32>
    %73 = arith.maximumf %71, %72 : vector<4x256xf32>
    %74 = arith.truncf %73 : vector<4x256xf32> to vector<4x256xbf16>
    %c0_46 = arith.constant 0 : index
    %c0_47 = arith.constant 0 : index
    %75 = vector.load %arg12[%c0_46, %c0_47] : memref<256x4xbf16, #tpu.memory_space<vmem>>, vector<256x4xbf16>
    %cst_48 = arith.constant dense<0.000000e+00> : vector<4x4xf32>
    %76 = tpu.matmul %74, %75, %cst_48 {dimension_numbers = #tpu.dot_dimension_numbers<[1], [0], [0], [1], [0, 0, 1, 1], [], []>} : vector<4x256xbf16>, vector<256x4xbf16>, vector<4x4xf32> -> vector<4x4xf32>
    %c0_49 = arith.constant 0 : index
    %c0_50 = arith.constant 0 : index
    %77 = vector.load %arg13[%c0_49, %c0_50] : memref<1x4xf32, #tpu.memory_space<vmem>>, vector<1x4xf32>
    %78 = vector.broadcast %77 : vector<1x4xf32> to vector<4x4xf32>
    %79 = arith.addf %76, %78 : vector<4x4xf32>
    %cst_51 = arith.constant 0.000000e+00 : f32
    %80 = vector.broadcast %cst_51 : f32 to vector<4x4xf32>
    %81 = arith.maximumf %79, %80 : vector<4x4xf32>
    %82 = vector.extract_strided_slice %81 {offsets = [0, 0], sizes = [2, 4], strides = [1, 1]} : vector<4x4xf32> to vector<2x4xf32>
    %83 = vector.extract_strided_slice %81 {offsets = [2, 0], sizes = [2, 4], strides = [1, 1]} : vector<4x4xf32> to vector<2x4xf32>
    %cst_52 = arith.constant dense<0xFF800000> : vector<2xf32>
    %84 = vector.multi_reduction <maximumf>, %82, %cst_52 [1] : vector<2x4xf32> to vector<2xf32>
    %85 = vector.shape_cast %84 : vector<2xf32> to vector<2x1xf32>
    %86 = vector.broadcast %85 : vector<2x1xf32> to vector<2x4xf32>
    %87 = arith.subf %82, %86 : vector<2x4xf32>
    %88 = math.exp %87 : vector<2x4xf32>
    %cst_53 = arith.constant dense<0.000000e+00> : vector<2xf32>
    %89 = vector.multi_reduction <add>, %88, %cst_53 [1] : vector<2x4xf32> to vector<2xf32>
    %90 = vector.shape_cast %89 : vector<2xf32> to vector<2x1xf32>
    %91 = vector.broadcast %90 : vector<2x1xf32> to vector<2x4xf32>
    %92 = arith.divf %88, %91 : vector<2x4xf32>
    %c0_54 = arith.constant 0 : index
    %c0_55 = arith.constant 0 : index
    %93 = vector.load %arg14[%c0_54, %c0_55] : memref<2x4xf32, #tpu.memory_space<vmem>>, vector<2x4xf32>
    tpu.vector_store %arg14[%c0_54, %c0_55], %92 {strides = array<i32>} : memref<2x4xf32, #tpu.memory_space<vmem>>, vector<2x4xf32>,
    %cst_56 = arith.constant dense<0xFF800000> : vector<2xf32>
    %94 = vector.multi_reduction <maximumf>, %83, %cst_56 [1] : vector<2x4xf32> to vector<2xf32>
    %95 = vector.shape_cast %94 : vector<2xf32> to vector<2x1xf32>
    %96 = vector.broadcast %95 : vector<2x1xf32> to vector<2x4xf32>
    %97 = arith.subf %83, %96 : vector<2x4xf32>
    %98 = math.exp %97 : vector<2x4xf32>
    %cst_57 = arith.constant dense<0.000000e+00> : vector<2xf32>
    %99 = vector.multi_reduction <add>, %98, %cst_57 [1] : vector<2x4xf32> to vector<2xf32>
    %100 = vector.shape_cast %99 : vector<2xf32> to vector<2x1xf32>
    %101 = vector.broadcast %100 : vector<2x1xf32> to vector<2x4xf32>
    %102 = arith.divf %98, %101 : vector<2x4xf32>
    %c0_58 = arith.constant 0 : index
    %c0_59 = arith.constant 0 : index
    %103 = vector.load %arg15[%c0_58, %c0_59] : memref<2x4xf32, #tpu.memory_space<vmem>>, vector<2x4xf32>
    tpu.vector_store %arg15[%c0_58, %c0_59], %102 {strides = array<i32>} : memref<2x4xf32, #tpu.memory_space<vmem>>, vector<2x4xf32>,
    %104 = arith.addf %82, %83 : vector<2x4xf32>
    %cst_60 = arith.constant 5.000000e-01 : f32
    %105 = vector.broadcast %cst_60 : f32 to vector<2x4xf32>
    %106 = arith.mulf %105, %104 : vector<2x4xf32>
    %cst_61 = arith.constant dense<0xFF800000> : vector<2xf32>
    %107 = vector.multi_reduction <maximumf>, %106, %cst_61 [1] : vector<2x4xf32> to vector<2xf32>
    %108 = vector.shape_cast %107 : vector<2xf32> to vector<2x1xf32>
    %109 = vector.broadcast %108 : vector<2x1xf32> to vector<2x4xf32>
    %110 = arith.subf %106, %109 : vector<2x4xf32>
    %111 = math.exp %110 : vector<2x4xf32>
    %cst_62 = arith.constant dense<0.000000e+00> : vector<2xf32>
    %112 = vector.multi_reduction <add>, %111, %cst_62 [1] : vector<2x4xf32> to vector<2xf32>
    %113 = vector.shape_cast %112 : vector<2xf32> to vector<2x1xf32>
    %114 = vector.broadcast %113 : vector<2x1xf32> to vector<2x4xf32>
    %115 = arith.divf %111, %114 : vector<2x4xf32>
    %c0_63 = arith.constant 0 : index
    %c0_64 = arith.constant 0 : index
    %116 = vector.load %arg16[%c0_63, %c0_64] : memref<2x4xf32, #tpu.memory_space<vmem>>, vector<2x4xf32>
    tpu.vector_store %arg16[%c0_63, %c0_64], %115 {strides = array<i32>} : memref<2x4xf32, #tpu.memory_space<vmem>>, vector<2x4xf32>,
    %117 = vector.extract_strided_slice %73 {offsets = [0, 0], sizes = [2, 256], strides = [1, 1]} : vector<4x256xf32> to vector<2x256xf32>
    %118 = vector.extract_strided_slice %73 {offsets = [2, 0], sizes = [2, 256], strides = [1, 1]} : vector<4x256xf32> to vector<2x256xf32>
    %119 = tpu.concatenate %117, %118 in 1 : vector<2x256xf32>, vector<2x256xf32> -> vector<2x512xf32>
    %c0_65 = arith.constant 0 : index
    %c0_66 = arith.constant 0 : index
    %120 = vector.load %arg17[%c0_65, %c0_66] : memref<2x512xf32, #tpu.memory_space<vmem>>, vector<2x512xf32>
    tpu.vector_store %arg17[%c0_65, %c0_66], %119 {strides = array<i32>} : memref<2x512xf32, #tpu.memory_space<vmem>>, vector<2x512xf32>,
    return
  }
}

</mosaic_0001>

<llo_original>
// kernel: net_forward.1
$region0: #{net_forward.1}
  #allocation0 [shape = 'u32[]', space=smem, size = 0x4, offset = 0x4, fixed_abs, tag = 'smem constant byte address 0x4 - core index']
  #allocation1 [shape = 'u32[144,128]{1,0:T(1,128)}', space=vmem, size = 0x12000, scoped, tag = 'internal scratch']
  %s0 = inlined_call_operand.vmem [shape: bf16[32,1025], index: 0, kind: input, shape index: {}]
  %s1 = inlined_call_operand.vmem [shape: bf16[32,32], index: 1, kind: input, shape index: {}]
  %s2 = inlined_call_operand.hbm [shape: bf16[1025,512], index: 2, kind: input, shape index: {}]
  %s3 = inlined_call_operand.hbm [shape: bf16[1025,512], index: 3, kind: input, shape index: {}]
  %s4 = inlined_call_operand.hbm [shape: f32[1,512], index: 4, kind: input, shape index: {}]
  %s5 = inlined_call_operand.hbm [shape: bf16[512,512], index: 5, kind: input, shape index: {}]
  %s6 = inlined_call_operand.hbm [shape: bf16[512,512], index: 6, kind: input, shape index: {}]
  %s7 = inlined_call_operand.hbm [shape: f32[1,512], index: 7, kind: input, shape index: {}]
  %s8 = inlined_call_operand.hbm [shape: bf16[1024,512], index: 8, kind: input, shape index: {}]
  %s9 = inlined_call_operand.hbm [shape: f32[1,512], index: 9, kind: input, shape index: {}]
  %s10 = inlined_call_operand.hbm [shape: bf16[512,256], index: 10, kind: input, shape index: {}]
  %s11 = inlined_call_operand.hbm [shape: f32[1,256], index: 11, kind: input, shape index: {}]
  %s12 = inlined_call_operand.vmem [shape: bf16[256,4], index: 12, kind: input, shape index: {}]
  %s13 = inlined_call_operand.hbm [shape: f32[1,4], index: 13, kind: input, shape index: {}]
  %s14 = inlined_call_operand.hbm [shape: f32[2,4], index: 14, kind: output, shape index: {0}]
  %s15 = inlined_call_operand.hbm [shape: f32[2,4], index: 15, kind: output, shape index: {1}]
  %s16 = inlined_call_operand.hbm [shape: f32[2,4], index: 16, kind: output, shape index: {2}]
  %s17 = inlined_call_operand.hbm [shape: f32[2,512], index: 17, kind: output, shape index: {3}]
  %18 = xla_tuple %s14, %s15, %s16, %s17
  %s19 = sld [smem:[#allocation0]]
  $region134: #{net_forward.1} parent=0
    _
  %s21 = ssub.s32 1, %s19
  %s22 = scalar_select 0, %s21, %s19
  $region1: #{net_forward.1} parent=0
    #allocation2 [shape = 'u8[1056768]{0}', space=vmem, size = 0x102000, scoped, tag = 'input window, operand 2, single buffered']
    #allocation3 [shape = 's32[1]{0}', space=sflag, size = 0x4, scoped, tag = 'scoped memory for net_forward.1']
    #allocation4 [shape = 's32[1]{0}', space=sflag, size = 0x4, scoped, tag = 'scoped memory for net_forward.1']
    #allocation5 [shape = 'u8[1056768]{0}', space=vmem, size = 0x102000, scoped, tag = 'input window, operand 3, single buffered']
    #allocation6 [shape = 's32[1]{0}', space=sflag, size = 0x4, scoped, tag = 'scoped memory for net_forward.1']
    #allocation7 [shape = 'u8[2048]{0}', space=vmem, size = 0x800, scoped, tag = 'input window, operand 4, single buffered']
    #allocation8 [shape = 'u8[524288]{0}', space=vmem, size = 0x80000, scoped, tag = 'input window, operand 5, single buffered']
    #allocation9 [shape = 's32[1]{0}', space=sflag, size = 0x4, scoped, tag = 'scoped memory for net_forward.1']
    #allocation10 [shape = 'u8[524288]{0}', space=vmem, size = 0x80000, scoped, tag = 'input window, operand 6, single buffered']
    #allocation11 [shape = 'u8[2048]{0}', space=vmem, size = 0x800, scoped, tag = 'input window, operand 7, single buffered']
    #allocation12 [shape = 's32[1]{0}', space=sflag, size = 0x4, scoped, tag = 'scoped memory for net_forward.1']
    #allocation13 [shape = 'u8[1048576]{0}', space=vmem, size = 0x100000, scoped, tag = 'input window, operand 8, single buffered']
    #allocation14 [shape = 'u8[2048]{0}', space=vmem, size = 0x800, scoped, tag = 'input window, operand 9, single buffered']
    #allocation15 [shape = 's32[1]{0}', space=sflag, size = 0x4, scoped, tag = 'scoped memory for net_forward.1']
    #allocation16 [shape = 'u8[262144]{0}', space=vmem, size = 0x40000, scoped, tag = 'input window, operand 10, single buffered']
    #allocation17 [shape = 'u8[1024]{0}', space=vmem, size = 0x400, scoped, tag = 'input window, operand 11, single buffered']
    #allocation18 [shape = 's32[1]{0}', space=sflag, size = 0x4, scoped, tag = 'scoped memory for net_forward.1']
    #allocation19 [shape = 'u8[512]{0}', space=vmem, size = 0x400, scoped, tag = 'input window, operand 13, single buffered']
    #allocation20 [shape = 'u8[1024]{0}', space=vmem, size = 0x400, scoped, tag = 'output window, operand 0, single buffered']
    #allocation21 [shape = 'u8[1024]{0}', space=vmem, size = 0x400, scoped, tag = 'output window, operand 1, single buffered']
    #allocation22 [shape = 's32[1]{0}', space=sflag, size = 0x4, scoped, tag = 'scoped memory for net_forward.1']
    #allocation23 [shape = 'u8[1024]{0}', space=vmem, size = 0x400, scoped, tag = 'output window, operand 2, single buffered']
    #allocation24 [shape = 'u8[4096]{0}', space=vmem, size = 0x1000, scoped, tag = 'output window, operand 3, single buffered']
    #allocation25 [shape = 's32[1]{0}', space=sflag, size = 0x4, scoped, tag = 'scoped memory for net_forward.1']
    %23 = vsyncpa [#allocation3], 0
    %24 = vsyncpa [#allocation6], 0
    %25 = vsyncpa [#allocation9], 0
    %26 = vsyncpa [#allocation12], 0
    %27 = vsyncpa [#allocation15], 0
    %28 = vsyncpa [#allocation18], 0
    %29 = vsyncpa [#allocation4], 0
    %30 = vsyncpa [#allocation22], 0
    %31 = vsyncpa [#allocation25], 0
    // Predicated region
    $region2: #{net_forward.1} parent=1 // pred_check
      _
    $region3: #{net_forward.1} parent=1 // pred_check_branch
      %33 = sbr.rel (0) target = $region5
    $region4: #{net_forward.1} parent=1 // pred_region
      _
    $region5: #{net_forward.1} parent=1 // pred_fallthru
      _
    // Predicated region
    $region6: #{net_forward.1} parent=1 // pred_check
      _
    $region7: #{net_forward.1} parent=1 // pred_check_branch
      %35 = sbr.rel (0) target = $region9
    $region8: #{net_forward.1} parent=1 // pred_region
      _
    $region9: #{net_forward.1} parent=1 // pred_fallthru
      _
    // Predicated region
    $region10: #{net_forward.1} parent=1 // pred_check
      _
    $region11: #{net_forward.1} parent=1 // pred_check_branch
      %37 = sbr.rel (0) target = $region13
    $region12: #{net_forward.1} parent=1 // pred_region
      %s39 = ssub.s32 33024, 33024
      %40 = vsyncadd [#allocation3], %s39
      %s41 = sshll.u32 [#allocation2], 4
      %s42 = int_to_ptr.vmem [resolvable:$true] %s41
      %47 = dma.hbm_to_vmem [thread:$0]  %s2, 33024, %s42, [#allocation3], 256, 256, 16
    $region13: #{net_forward.1} parent=1 // pred_fallthru
      _
    // Predicated region
    $region14: #{net_forward.1} parent=1 // pred_check
      _
    $region15: #{net_forward.1} parent=1 // pred_check_branch
      %49 = sbr.rel (0) target = $region17
    $region16: #{net_forward.1} parent=1 // pred_region
      %s51 = ssub.s32 33024, 33024
      %52 = vsyncadd [#allocation6], %s51
      %s53 = sshll.u32 [#allocation5], 4
      %s54 = int_to_ptr.vmem [resolvable:$true] %s53
      %59 = dma.hbm_to_vmem [thread:$0]  %s3, 33024, %s54, [#allocation6], 256, 256, 16
    $region17: #{net_forward.1} parent=1 // pred_fallthru
      _
    // Predicated region
    $region18: #{net_forward.1} parent=1 // pred_check
      _
    $region19: #{net_forward.1} parent=1 // pred_check_branch
      %61 = sbr.rel (0) target = $region21
    $region20: #{net_forward.1} parent=1 // pred_region
      %s63 = ssub.s32 64, 64
      %64 = vsyncadd [#allocation6], %s63
      %s66 = sshll.u32 [#allocation7], 4
      %s67 = int_to_ptr.vmem [resolvable:$true] %s66
      %69 = dma.hbm_to_vmem [thread:$0]  %s4, 64, %s67, [#allocation6]
    $region21: #{net_forward.1} parent=1 // pred_fallthru
      _
    // Predicated region
    $region22: #{net_forward.1} parent=1 // pred_check
      _
    $region23: #{net_forward.1} parent=1 // pred_check_branch
      %71 = sbr.rel (0) target = $region25
    $region24: #{net_forward.1} parent=1 // pred_region
      %s73 = ssub.s32 16384, 16384
      %74 = vsyncadd [#allocation9], %s73
      %s75 = sshll.u32 [#allocation8], 4
      %s76 = int_to_ptr.vmem [resolvable:$true] %s75
      %81 = dma.hbm_to_vmem [thread:$0]  %s5, 16384, %s76, [#allocation9], 256, 256, 16
    $region25: #{net_forward.1} parent=1 // pred_fallthru
      _
    // Predicated region
    $region26: #{net_forward.1} parent=1 // pred_check
      _
    $region27: #{net_forward.1} parent=1 // pred_check_branch
      %83 = sbr.rel (0) target = $region29
    $region28: #{net_forward.1} parent=1 // pred_region
      %s85 = ssub.s32 16384, 16384
      %86 = vsyncadd [#allocation9], %s85
      %s87 = sshll.u32 [#allocation10], 4
      %s88 = int_to_ptr.vmem [resolvable:$true] %s87
      %93 = dma.hbm_to_vmem [thread:$0]  %s6, 16384, %s88, [#allocation9], 256, 256, 16
    $region29: #{net_forward.1} parent=1 // pred_fallthru
      _
    // Predicated region
    $region30: #{net_forward.1} parent=1 // pred_check
      _
    $region31: #{net_forward.1} parent=1 // pred_check_branch
      %95 = sbr.rel (0) target = $region33
    $region32: #{net_forward.1} parent=1 // pred_region
      %s97 = ssub.s32 64, 64
      %98 = vsyncadd [#allocation12], %s97
      %s100 = sshll.u32 [#allocation11], 4
      %s101 = int_to_ptr.vmem [resolvable:$true] %s100
      %103 = dma.hbm_to_vmem [thread:$0]  %s7, 64, %s101, [#allocation12]
    $region33: #{net_forward.1} parent=1 // pred_fallthru
      _
    // Predicated region
    $region34: #{net_forward.1} parent=1 // pred_check
      _
    $region35: #{net_forward.1} parent=1 // pred_check_branch
      %105 = sbr.rel (0) target = $region37
    $region36: #{net_forward.1} parent=1 // pred_region
      %s107 = ssub.s32 32768, 32768
      %108 = vsyncadd [#allocation12], %s107
      %s109 = sshll.u32 [#allocation13], 4
      %s110 = int_to_ptr.vmem [resolvable:$true] %s109
      %115 = dma.hbm_to_vmem [thread:$0]  %s8, 32768, %s110, [#allocation12], 256, 256, 16
    $region37: #{net_forward.1} parent=1 // pred_fallthru
      _
    // Predicated region
    $region38: #{net_forward.1} parent=1 // pred_check
      _
    $region39: #{net_forward.1} parent=1 // pred_check_branch
      %117 = sbr.rel (0) target = $region41
    $region40: #{net_forward.1} parent=1 // pred_region
      %s119 = ssub.s32 64, 64
      %120 = vsyncadd [#allocation15], %s119
      %s122 = sshll.u32 [#allocation14], 4
      %s123 = int_to_ptr.vmem [resolvable:$true] %s122
      %125 = dma.hbm_to_vmem [thread:$0]  %s9, 64, %s123, [#allocation15]
    $region41: #{net_forward.1} parent=1 // pred_fallthru
      _
    // Predicated region
    $region42: #{net_forward.1} parent=1 // pred_check
      _
    $region43: #{net_forward.1} parent=1 // pred_check_branch
      %127 = sbr.rel (0) target = $region45
    $region44: #{net_forward.1} parent=1 // pred_region
      %s129 = ssub.s32 8192, 8192
      %130 = vsyncadd [#allocation15], %s129
      %s131 = sshll.u32 [#allocation16], 4
      %s132 = int_to_ptr.vmem [resolvable:$true] %s131
      %137 = dma.hbm_to_vmem [thread:$0]  %s10, 8192, %s132, [#allocation15], 128, 128, 8
    $region45: #{net_forward.1} parent=1 // pred_fallthru
      _
    // Predicated region
    $region46: #{net_forward.1} parent=1 // pred_check
      _
    $region47: #{net_forward.1} parent=1 // pred_check_branch
      %139 = sbr.rel (0) target = $region49
    $region48: #{net_forward.1} parent=1 // pred_region
      %s141 = ssub.s32 32, 32
      %142 = vsyncadd [#allocation18], %s141
      %s144 = sshll.u32 [#allocation17], 4
      %s145 = int_to_ptr.vmem [resolvable:$true] %s144
      %147 = dma.hbm_to_vmem [thread:$0]  %s11, 32, %s145, [#allocation18]
    $region49: #{net_forward.1} parent=1 // pred_fallthru
      _
    // Predicated region
    $region50: #{net_forward.1} parent=1 // pred_check
      _
    $region51: #{net_forward.1} parent=1 // pred_check_branch
      %149 = sbr.rel (0) target = $region53
    $region52: #{net_forward.1} parent=1 // pred_region
      _
    $region53: #{net_forward.1} parent=1 // pred_fallthru
      _
    // Predicated region
    $region54: #{net_forward.1} parent=1 // pred_check
      _
    $region55: #{net_forward.1} parent=1 // pred_check_branch
      %151 = sbr.rel (0) target = $region57
    $region56: #{net_forward.1} parent=1 // pred_region
      %s153 = ssub.s32 16, 16
      %154 = vsyncadd [#allocation18], %s153
      %s156 = sshll.u32 [#allocation19], 4
      %s157 = int_to_ptr.vmem [resolvable:$true] %s156
      %159 = dma.hbm_to_vmem [thread:$0]  %s13, 16, %s157, [#allocation18]
    $region57: #{net_forward.1} parent=1 // pred_fallthru
      _
    // Predicated region
    $region58: #{net_forward.1} parent=1 // pred_check
      _
    $region59: #{net_forward.1} parent=1 // pred_check_branch
      %161 = sbr.rel (0) target = $region61
    $region60: #{net_forward.1} parent=1 // pred_region
      %162 = dma.done [#allocation3], 33024
    $region61: #{net_forward.1} parent=1 // pred_fallthru
      _
    // Predicated region
    $region62: #{net_forward.1} parent=1 // pred_check
      _
    $region63: #{net_forward.1} parent=1 // pred_check_branch
      %164 = sbr.rel (0) target = $region65
    $region64: #{net_forward.1} parent=1 // pred_region
      %165 = dma.done [#allocation6], 33024
    $region65: #{net_forward.1} parent=1 // pred_fallthru
      _
    // Predicated region
    $region66: #{net_forward.1} parent=1 // pred_check
      _
    $region67: #{net_forward.1} parent=1 // pred_check_branch
      %167 = sbr.rel (0) target = $region69
    $region68: #{net_forward.1} parent=1 // pred_region
      %168 = dma.done [#allocation6], 64
    $region69: #{net_forward.1} parent=1 // pred_fallthru
      _
    // Predicated region
    $region70: #{net_forward.1} parent=1 // pred_check
      _
    $region71: #{net_forward.1} parent=1 // pred_check_branch
      %170 = sbr.rel (0) target = $region73
    $region72: #{net_forward.1} parent=1 // pred_region
      %171 = dma.done [#allocation9], 16384
    $region73: #{net_forward.1} parent=1 // pred_fallthru
      _
    // Predicated region
    $region74: #{net_forward.1} parent=1 // pred_check
      _
    $region75: #{net_forward.1} parent=1 // pred_check_branch
      %173 = sbr.rel (0) target = $region77
    $region76: #{net_forward.1} parent=1 // pred_region
      %174 = dma.done [#allocation9], 16384
    $region77: #{net_forward.1} parent=1 // pred_fallthru
      _
    // Predicated region
    $region78: #{net_forward.1} parent=1 // pred_check
      _
    $region79: #{net_forward.1} parent=1 // pred_check_branch
      %176 = sbr.rel (0) target = $region81
    $region80: #{net_forward.1} parent=1 // pred_region
      %177 = dma.done [#allocation12], 64
    $region81: #{net_forward.1} parent=1 // pred_fallthru
      _
    // Predicated region
    $region82: #{net_forward.1} parent=1 // pred_check
      _
    $region83: #{net_forward.1} parent=1 // pred_check_branch
      %179 = sbr.rel (0) target = $region85
    $region84: #{net_forward.1} parent=1 // pred_region
      %180 = dma.done [#allocation12], 32768
    $region85: #{net_forward.1} parent=1 // pred_fallthru
      _
    // Predicated region
    $region86: #{net_forward.1} parent=1 // pred_check
      _
    $region87: #{net_forward.1} parent=1 // pred_check_branch
      %182 = sbr.rel (0) target = $region89
    $region88: #{net_forward.1} parent=1 // pred_region
      %183 = dma.done [#allocation15], 64
    $region89: #{net_forward.1} parent=1 // pred_fallthru
      _
    // Predicated region
    $region90: #{net_forward.1} parent=1 // pred_check
      _
    $region91: #{net_forward.1} parent=1 // pred_check_branch
      %185 = sbr.rel (0) target = $region93
    $region92: #{net_forward.1} parent=1 // pred_region
      %186 = dma.done [#allocation15], 8192
    $region93: #{net_forward.1} parent=1 // pred_fallthru
      _
    // Predicated region
    $region94: #{net_forward.1} parent=1 // pred_check
      _
    $region95: #{net_forward.1} parent=1 // pred_check_branch
      %188 = sbr.rel (0) target = $region97
    $region96: #{net_forward.1} parent=1 // pred_region
      %189 = dma.done [#allocation18], 32
    $region97: #{net_forward.1} parent=1 // pred_fallthru
      _
    // Predicated region
    $region98: #{net_forward.1} parent=1 // pred_check
      _
    $region99: #{net_forward.1} parent=1 // pred_check_branch
      %191 = sbr.rel (0) target = $region101
    $region100: #{net_forward.1} parent=1 // pred_region
      %192 = dma.done [#allocation18], 16
    $region101: #{net_forward.1} parent=1 // pred_fallthru
      _
    %v194 = vld [vmem:[%s0] sm:$0xff]
    %v195 = vld [vmem:[%s0 + $0x8] sm:$0xff]
    %v196 = vld [vmem:[%s0 + $0x10] sm:$0xff]
    %v197 = vld [vmem:[%s0 + $0x18] sm:$0xff]
    %v198 = vld [vmem:[%s0 + $0x20] sm:$0xf]
    %v199 = vld [vmem:[%s0 + $0x24] sm:$0xff]
    %v200 = vld [vmem:[%s0 + $0x2c] sm:$0xff]
    %v201 = vld [vmem:[%s0 + $0x34] sm:$0xff]
    %v202 = vld [vmem:[%s0 + $0x3c] sm:$0xff]
    %v203 = vld [vmem:[%s0 + $0x44] sm:$0xf]
    %v204 = vld [vmem:[%s0 + $0x48] sm:$0xff]
    %v205 = vld [vmem:[%s0 + $0x50] sm:$0xff]
    %v206 = vld [vmem:[%s0 + $0x58] sm:$0xff]
    %v207 = vld [vmem:[%s0 + $0x60] sm:$0xff]
    %v208 = vld [vmem:[%s0 + $0x68] sm:$0xf]
    %v209 = vld [vmem:[%s0 + $0x6c] sm:$0xff]
    %v210 = vld [vmem:[%s0 + $0x74] sm:$0xff]
    %v211 = vld [vmem:[%s0 + $0x7c] sm:$0xff]
    %v212 = vld [vmem:[%s0 + $0x84] sm:$0xff]
    %v213 = vld [vmem:[%s0 + $0x8c] sm:$0xf]
    %v214 = vld [vmem:[%s1] sm:$0xf]
    %v215 = vld [vmem:[%s1 + $0x4] sm:$0xf]
    %v216 = vld [vmem:[%s1 + $0x8] sm:$0xf]
    %v217 = vld [vmem:[%s1 + $0xc] sm:$0xf]
    %v222 = vunpack.c.l.b16 %v214
    %v223 = vunpack.c.l.b16 %v215
    %v224 = vunpack.c.l.b16 %v216
    %v225 = vunpack.c.l.b16 %v217
    %v226 = vpack.c.b16 %v223, %v222
    %v227 = vpack.c.b16 %v225, %v224
    %v248 = vunpack.c.l.b16 %v194
    %v249 = vunpack.c.h.b16 %v194
    %v250 = vunpack.c.l.b16 %v195
    %v251 = vunpack.c.h.b16 %v195
    %v252 = vunpack.c.l.b16 %v196
    %v253 = vunpack.c.h.b16 %v196
    %v254 = vunpack.c.l.b16 %v197
    %v255 = vunpack.c.h.b16 %v197
    %v256 = vunpack.c.l.b16 %v198
    %v257 = vunpack.c.l.b16 %v199
    %v258 = vunpack.c.h.b16 %v199
    %v259 = vunpack.c.l.b16 %v200
    %v260 = vunpack.c.h.b16 %v200
    %v261 = vunpack.c.l.b16 %v201
    %v262 = vunpack.c.h.b16 %v201
    %v263 = vunpack.c.l.b16 %v202
    %v264 = vunpack.c.h.b16 %v202
    %v265 = vunpack.c.l.b16 %v203
    %v266 = vunpack.c.l.b16 %v204
    %v267 = vunpack.c.h.b16 %v204
    %v268 = vunpack.c.l.b16 %v205
    %v269 = vunpack.c.h.b16 %v205
    %v270 = vunpack.c.l.b16 %v206
    %v271 = vunpack.c.h.b16 %v206
    %v272 = vunpack.c.l.b16 %v207
    %v273 = vunpack.c.h.b16 %v207
    %v274 = vunpack.c.l.b16 %v208
    %v275 = vunpack.c.l.b16 %v209
    %v276 = vunpack.c.h.b16 %v209
    %v277 = vunpack.c.l.b16 %v210
    %v278 = vunpack.c.h.b16 %v210
    %v279 = vunpack.c.l.b16 %v211
    %v280 = vunpack.c.h.b16 %v211
    %v281 = vunpack.c.l.b16 %v212
    %v282 = vunpack.c.h.b16 %v212
    %v283 = vunpack.c.l.b16 %v213
    %v284 = vpack.c.b16 %v257, %v248
    %v285 = vpack.c.b16 %v258, %v249
    %v286 = vpack.c.b16 %v259, %v250
    %v287 = vpack.c.b16 %v260, %v251
    %v288 = vpack.c.b16 %v261, %v252
    %v289 = vpack.c.b16 %v262, %v253
    %v290 = vpack.c.b16 %v263, %v254
    %v291 = vpack.c.b16 %v264, %v255
    %v292 = vpack.c.b16 %v265, %v256
    %v293 = vpack.c.b16 %v275, %v266
    %v294 = vpack.c.b16 %v276, %v267
    %v295 = vpack.c.b16 %v277, %v268
    %v296 = vpack.c.b16 %v278, %v269
    %v297 = vpack.c.b16 %v279, %v270
    %v298 = vpack.c.b16 %v280, %v271
    %v299 = vpack.c.b16 %v281, %v272
    %v300 = vpack.c.b16 %v282, %v273
    %v301 = vpack.c.b16 %v283, %v274
    %vm320 = vcmask 261120
    %v322 = vsel %vm320, %v226, 0
    %v325 = vsel %vm320, %v227, 0
    %327 = vmatprep.subr.bf16.mxu0 0
    %328 = vmatpush1.bf16.msra.mxu0 0
    %329 = vmatprep.subr.bf16.mxu0 0
    %330 = vmatpush1.bf16.msra.mxu0 0
    %331 = vmatprep.subr.bf16.mxu0 0
    %332 = vmatpush1.bf16.msra.mxu0 0
    %333 = vmatprep.subr.bf16.mxu0 0
    %334 = vmatpush1.bf16.msra.mxu0 0
    %335 = vmatprep.subr.bf16.mxu0 0
    %336 = vmatpush1.bf16.msra.mxu0 0
    %337 = vmatprep.subr.bf16.mxu0 0
    %338 = vmatpush1.bf16.msra.mxu0 0
    %339 = vmatprep.subr.bf16.mxu0 %v294
    %340 = vmatpush1.bf16.msra.mxu0 %v293
    %341 = vmatprep.subr.bf16.mxu0 %v285
    %342 = vmatpush1.bf16.msra.mxu0 %v284
    %343 = vmatprep.subr.bf16.mxu0 0
    %344 = vmatpush2.bf16.msra.mxu0 0
    %345 = vmatprep.subr.bf16.mxu0 0
    %346 = vmatpush2.bf16.msra.mxu0 0
    %347 = vmatprep.subr.bf16.mxu0 0
    %348 = vmatpush2.bf16.msra.mxu0 0
    %349 = vmatprep.subr.bf16.mxu0 0
    %350 = vmatpush2.bf16.msra.mxu0 0
    %351 = vmatprep.subr.bf16.mxu0 0
    %352 = vmatpush2.bf16.msra.mxu0 0
    %353 = vmatprep.subr.bf16.mxu0 0
    %354 = vmatpush2.bf16.msra.mxu0 0
    %355 = vmatprep.subr.bf16.mxu0 0
    %356 = vmatpush2.bf16.msra.mxu0 0
    %357 = vmatprep.subr.bf16.mxu0 0
    %358 = vmatpush2.bf16.msra.mxu0 0
    %359 = vmatprep.mubr.bf16.mxu0 0
    %360 = vmatmul.mubr.bf16.gmra.mxu0 %v322
    %v361 = vpop.f32.mrf.mxu0
    %v362 = vadd.f32 0.0, %v361
    %v363 = vpop.f32.mrf.mxu0
    %v364 = vadd.f32 0.0, %v363
    %v365 = vpop.f32.mrf.mxu0
    %v366 = vadd.f32 0.0, %v365
    %v367 = vpop.f32.mrf.mxu0
    %v368 = vadd.f32 0.0, %v367
    %369 = vmatprep.mubr.bf16.mxu0 0
    %370 = vmatmul.mubr.bf16.gmra.mxu0 %v325
    %v371 = vpop.f32.mrf.mxu0
    %v372 = vadd.f32 0.0, %v371
    %v373 = vpop.f32.mrf.mxu0
    %v374 = vadd.f32 0.0, %v373
    %v375 = vpop.f32.mrf.mxu0
    %v376 = vadd.f32 0.0, %v375
    %v377 = vpop.f32.mrf.mxu0
    %v378 = vadd.f32 0.0, %v377
    %379 = vdwg.mxu0
    %380 = vmatprep.subr.bf16.mxu0 0
    %381 = vmatpush1.bf16.msra.mxu0 0
    %382 = vmatprep.subr.bf16.mxu0 0
    %383 = vmatpush1.bf16.msra.mxu0 0
    %384 = vmatprep.subr.bf16.mxu0 0
    %385 = vmatpush1.bf16.msra.mxu0 0
    %386 = vmatprep.subr.bf16.mxu0 0
    %387 = vmatpush1.bf16.msra.mxu0 0
    %388 = vmatprep.subr.bf16.mxu0 0
    %389 = vmatpush1.bf16.msra.mxu0 0
    %390 = vmatprep.subr.bf16.mxu0 0
    %391 = vmatpush1.bf16.msra.mxu0 0
    %392 = vmatprep.subr.bf16.mxu0 %v296
    %393 = vmatpush1.bf16.msra.mxu0 %v295
    %394 = vmatprep.subr.bf16.mxu0 %v287
    %395 = vmatpush1.bf16.msra.mxu0 %v286
    %396 = vmatprep.subr.bf16.mxu0 0
    %397 = vmatpush2.bf16.msra.mxu0 0
    %398 = vmatprep.subr.bf16.mxu0 0
    %399 = vmatpush2.bf16.msra.mxu0 0
    %400 = vmatprep.subr.bf16.mxu0 0
    %401 = vmatpush2.bf16.msra.mxu0 0
    %402 = vmatprep.subr.bf16.mxu0 0
    %403 = vmatpush2.bf16.msra.mxu0 0
    %404 = vmatprep.subr.bf16.mxu0 0
    %405 = vmatpush2.bf16.msra.mxu0 0
    %406 = vmatprep.subr.bf16.mxu0 0
    %407 = vmatpush2.bf16.msra.mxu0 0
    %408 = vmatprep.subr.bf16.mxu0 0
    %409 = vmatpush2.bf16.msra.mxu0 0
    %410 = vmatprep.subr.bf16.mxu0 0
    %411 = vmatpush2.bf16.msra.mxu0 0
    %412 = vmatprep.mubr.bf16.mxu0 0
    %413 = vmatmul.mubr.bf16.gmra.mxu0 %v322
    %v414 = vpop.f32.mrf.mxu0
    %v415 = vadd.f32 0.0, %v414
    %v416 = vpop.f32.mrf.mxu0
    %v417 = vadd.f32 0.0, %v416
    %v418 = vpop.f32.mrf.mxu0
    %v419 = vadd.f32 0.0, %v418
    %v420 = vpop.f32.mrf.mxu0
    %v421 = vadd.f32 0.0, %v420
    %422 = vmatprep.mubr.bf16.mxu0 0
    %423 = vmatmul.mubr.bf16.gmra.mxu0 %v325
    %v424 = vpop.f32.mrf.mxu0
    %v425 = vadd.f32 0.0, %v424
    %v426 = vpop.f32.mrf.mxu0
    %v427 = vadd.f32 0.0, %v426
    %v428 = vpop.f32.mrf.mxu0
    %v429 = vadd.f32 0.0, %v428
    %v430 = vpop.f32.mrf.mxu0
    %v431 = vadd.f32 0.0, %v430
    %432 = vdwg.mxu0
    %433 = vmatprep.subr.bf16.mxu0 0
    %434 = vmatpush1.bf16.msra.mxu0 0
    %435 = vmatprep.subr.bf16.mxu0 0
    %436 = vmatpush1.bf16.msra.mxu0 0
    %437 = vmatprep.subr.bf16.mxu0 0
    %438 = vmatpush1.bf16.msra.mxu0 0
    %439 = vmatprep.subr.bf16.mxu0 0
    %440 = vmatpush1.bf16.msra.mxu0 0
    %441 = vmatprep.subr.bf16.mxu0 0
    %442 = vmatpush1.bf16.msra.mxu0 0
    %443 = vmatprep.subr.bf16.mxu0 0
    %444 = vmatpush1.bf16.msra.mxu0 0
    %445 = vmatprep.subr.bf16.mxu0 %v298
    %446 = vmatpush1.bf16.msra.mxu0 %v297
    %447 = vmatprep.subr.bf16.mxu0 %v289
    %448 = vmatpush1.bf16.msra.mxu0 %v288
    %449 = vmatprep.subr.bf16.mxu0 0
    %450 = vmatpush2.bf16.msra.mxu0 0
    %451 = vmatprep.subr.bf16.mxu0 0
    %452 = vmatpush2.bf16.msra.mxu0 0
    %453 = vmatprep.subr.bf16.mxu0 0
    %454 = vmatpush2.bf16.msra.mxu0 0
    %455 = vmatprep.subr.bf16.mxu0 0
    %456 = vmatpush2.bf16.msra.mxu0 0
    %457 = vmatprep.subr.bf16.mxu0 0
    %458 = vmatpush2.bf16.msra.mxu0 0
    %459 = vmatprep.subr.bf16.mxu0 0
    %460 = vmatpush2.bf16.msra.mxu0 0
    %461 = vmatprep.subr.bf16.mxu0 0
    %462 = vmatpush2.bf16.msra.mxu0 0
    %463 = vmatprep.subr.bf16.mxu0 0
    %464 = vmatpush2.bf16.msra.mxu0 0
    %465 = vmatprep.mubr.bf16.mxu0 0
    %466 = vmatmul.mubr.bf16.gmra.mxu0 %v322
    %v467 = vpop.f32.mrf.mxu0
    %v468 = vadd.f32 0.0, %v467
    %v469 = vpop.f32.mrf.mxu0
    %v470 = vadd.f32 0.0, %v469
    %v471 = vpop.f32.mrf.mxu0
    %v472 = vadd.f32 0.0, %v471
    %v473 = vpop.f32.mrf.mxu0
    %v474 = vadd.f32 0.0, %v473
    %475 = vmatprep.mubr.bf16.mxu0 0
    %476 = vmatmul.mubr.bf16.gmra.mxu0 %v325
    %v477 = vpop.f32.mrf.mxu0
    %v478 = vadd.f32 0.0, %v477
    %v479 = vpop.f32.mrf.mxu0
    %v480 = vadd.f32 0.0, %v479
    %v481 = vpop.f32.mrf.mxu0
    %v482 = vadd.f32 0.0, %v481
    %v483 = vpop.f32.mrf.mxu0
    %v484 = vadd.f32 0.0, %v483
    %485 = vdwg.mxu0
    %486 = vmatprep.subr.bf16.mxu0 0
    %487 = vmatpush1.bf16.msra.mxu0 0
    %488 = vmatprep.subr.bf16.mxu0 0
    %489 = vmatpush1.bf16.msra.mxu0 0
    %490 = vmatprep.subr.bf16.mxu0 0
    %491 = vmatpush1.bf16.msra.mxu0 0
    %492 = vmatprep.subr.bf16.mxu0 0
    %493 = vmatpush1.bf16.msra.mxu0 0
    %494 = vmatprep.subr.bf16.mxu0 0
    %495 = vmatpush1.bf16.msra.mxu0 0
    %496 = vmatprep.subr.bf16.mxu0 0
    %497 = vmatpush1.bf16.msra.mxu0 0
    %498 = vmatprep.subr.bf16.mxu0 %v300
    %499 = vmatpush1.bf16.msra.mxu0 %v299
    %500 = vmatprep.subr.bf16.mxu0 %v291
    %501 = vmatpush1.bf16.msra.mxu0 %v290
    %502 = vmatprep.subr.bf16.mxu0 0
    %503 = vmatpush2.bf16.msra.mxu0 0
    %504 = vmatprep.subr.bf16.mxu0 0
    %505 = vmatpush2.bf16.msra.mxu0 0
    %506 = vmatprep.subr.bf16.mxu0 0
    %507 = vmatpush2.bf16.msra.mxu0 0
    %508 = vmatprep.subr.bf16.mxu0 0
    %509 = vmatpush2.bf16.msra.mxu0 0
    %510 = vmatprep.subr.bf16.mxu0 0
    %511 = vmatpush2.bf16.msra.mxu0 0
    %512 = vmatprep.subr.bf16.mxu0 0
    %513 = vmatpush2.bf16.msra.mxu0 0
    %514 = vmatprep.subr.bf16.mxu0 0
    %515 = vmatpush2.bf16.msra.mxu0 0
    %516 = vmatprep.subr.bf16.mxu0 0
    %517 = vmatpush2.bf16.msra.mxu0 0
    %518 = vmatprep.mubr.bf16.mxu0 0
    %519 = vmatmul.mubr.bf16.gmra.mxu0 %v322
    %v520 = vpop.f32.mrf.mxu0
    %v521 = vadd.f32 0.0, %v520
    %v522 = vpop.f32.mrf.mxu0
    %v523 = vadd.f32 0.0, %v522
    %v524 = vpop.f32.mrf.mxu0
    %v525 = vadd.f32 0.0, %v524
    %v526 = vpop.f32.mrf.mxu0
    %v527 = vadd.f32 0.0, %v526
    %528 = vmatprep.mubr.bf16.mxu0 0
    %529 = vmatmul.mubr.bf16.gmra.mxu0 %v325
    %v530 = vpop.f32.mrf.mxu0
    %v531 = vadd.f32 0.0, %v530
    %v532 = vpop.f32.mrf.mxu0
    %v533 = vadd.f32 0.0, %v532
    %v534 = vpop.f32.mrf.mxu0
    %v535 = vadd.f32 0.0, %v534
    %v536 = vpop.f32.mrf.mxu0
    %v537 = vadd.f32 0.0, %v536
    %538 = vdwg.mxu0
    %539 = vmatprep.subr.bf16.mxu0 0
    %540 = vmatpush1.bf16.msra.mxu0 0
    %541 = vmatprep.subr.bf16.mxu0 0
    %542 = vmatpush1.bf16.msra.mxu0 0
    %543 = vmatprep.subr.bf16.mxu0 0
    %544 = vmatpush1.bf16.msra.mxu0 0
    %545 = vmatprep.subr.bf16.mxu0 0
    %546 = vmatpush1.bf16.msra.mxu0 0
    %547 = vmatprep.subr.bf16.mxu0 0
    %548 = vmatpush1.bf16.msra.mxu0 0
    %549 = vmatprep.subr.bf16.mxu0 0
    %550 = vmatpush1.bf16.msra.mxu0 0
    %551 = vmatprep.subr.bf16.mxu0 0
    %552 = vmatpush1.bf16.msra.mxu0 %v301
    %553 = vmatprep.subr.bf16.mxu0 0
    %554 = vmatpush1.bf16.msra.mxu0 %v292
    %555 = vmatprep.subr.bf16.mxu0 0
    %556 = vmatpush2.bf16.msra.mxu0 0
    %557 = vmatprep.subr.bf16.mxu0 0
    %558 = vmatpush2.bf16.msra.mxu0 0
    %559 = vmatprep.subr.bf16.mxu0 0
    %560 = vmatpush2.bf16.msra.mxu0 0
    %561 = vmatprep.subr.bf16.mxu0 0
    %562 = vmatpush2.bf16.msra.mxu0 0
    %563 = vmatprep.subr.bf16.mxu0 0
    %564 = vmatpush2.bf16.msra.mxu0 0
    %565 = vmatprep.subr.bf16.mxu0 0
    %566 = vmatpush2.bf16.msra.mxu0 0
    %567 = vmatprep.subr.bf16.mxu0 0
    %568 = vmatpush2.bf16.msra.mxu0 0
    %569 = vmatprep.subr.bf16.mxu0 0
    %570 = vmatpush2.bf16.msra.mxu0 0
    %571 = vmatprep.mubr.bf16.mxu0 0
    %572 = vmatmul.mubr.bf16.gmra.mxu0 %v322
    %v573 = vpop.f32.mrf.mxu0
    %v574 = vadd.f32 0.0, %v573
    %v575 = vpop.f32.mrf.mxu0
    %v576 = vpop.f32.mrf.mxu0
    %v577 = vadd.f32 0.0, %v576
    %v578 = vpop.f32.mrf.mxu0
    %579 = vmatprep.mubr.bf16.mxu0 0
    %580 = vmatmul.mubr.bf16.gmra.mxu0 %v325
    %v581 = vpop.f32.mrf.mxu0
    %v582 = vadd.f32 0.0, %v581
    %v583 = vpop.f32.mrf.mxu0
    %v584 = vpop.f32.mrf.mxu0
    %v585 = vadd.f32 0.0, %v584
    %v586 = vpop.f32.mrf.mxu0
    %587 = vdwg.mxu0
    %v588 = vpack.c.bf16 %v366, %v362
    %v589 = vpack.c.bf16 %v368, %v364
    %v590 = vpack.c.bf16 %v419, %v415
    %v591 = vpack.c.bf16 %v421, %v417
    %v592 = vpack.c.bf16 %v472, %v468
    %v593 = vpack.c.bf16 %v474, %v470
    %v594 = vpack.c.bf16 %v525, %v521
    %v595 = vpack.c.bf16 %v527, %v523
    %v596 = vpack.c.bf16 %v577, %v574
    %v597 = vpack.c.bf16 %v376, %v372
    %v598 = vpack.c.bf16 %v378, %v374
    %v599 = vpack.c.bf16 %v429, %v425
    %v600 = vpack.c.bf16 %v431, %v427
    %v601 = vpack.c.bf16 %v482, %v478
    %v602 = vpack.c.bf16 %v484, %v480
    %v603 = vpack.c.bf16 %v535, %v531
    %v604 = vpack.c.bf16 %v537, %v533
    %v605 = vpack.c.bf16 %v585, %v582
    %v606 = vld [vmem:[#allocation2] sm:$0xff]
    %v607 = vld [vmem:[#allocation2 + $0x8] sm:$0xff]
    %v608 = vld [vmem:[#allocation2 + $0x10] sm:$0xff]
    %v609 = vld [vmem:[#allocation2 + $0x18] sm:$0xff]
    %v610 = vld [vmem:[#allocation2 + $0x20] sm:$0xff]
    %v611 = vld [vmem:[#allocation2 + $0x28] sm:$0xff]
    %v612 = vld [vmem:[#allocation2 + $0x30] sm:$0xff]
    %v613 = vld [vmem:[#allocation2 + $0x38] sm:$0xff]
    %v614 = vld [vmem:[#allocation2 + $0x40] sm:$0xff]
    %v615 = vld [vmem:[#allocation2 + $0x48] sm:$0xff]
    %v616 = vld [vmem:[#allocation2 + $0x50] sm:$0xff]
    %v617 = vld [vmem:[#allocation2 + $0x58] sm:$0xff]
    %v618 = vld [vmem:[#allocation2 + $0x60] sm:$0xff]
    %v619 = vld [vmem:[#allocation2 + $0x68] sm:$0xff]
    %v620 = vld [vmem:[#allocation2 + $0x70] sm:$0xff]
    %v621 = vld [vmem:[#allocation2 + $0x78] sm:$0xff]
    %v622 = vld [vmem:[#allocation2 + $0x80] sm:$0xff]
    %v623 = vld [vmem:[#allocation2 + $0x88] sm:$0xff]
    %v624 = vld [vmem:[#allocation2 + $0x90] sm:$0xff]
    %v625 = vld [vmem:[#allocation2 + $0x98] sm:$0xff]
    %v626 = vld [vmem:[#allocation2 + $0xa0] sm:$0xff]
    %v627 = vld [vmem:[#allocation2 + $0xa8] sm:$0xff]
    %v628 = vld [vmem:[#allocation2 + $0xb0] sm:$0xff]
    %v629 = vld [vmem:[#allocation2 + $0xb8] sm:$0xff]
    %v630 = vld [vmem:[#allocation2 + $0xc0] sm:$0xff]
    %v631 = vld [vmem:[#allocation2 + $0xc8] sm:$0xff]
    %v632 = vld [vmem:[#allocation2 + $0xd0] sm:$0xff]
    %v633 = vld [vmem:[#allocation2 + $0xd8] sm:$0xff]
    %v634 = vld [vmem:[#allocation2 + $0xe0] sm:$0xff]
    %v635 = vld [vmem:[#allocation2 + $0xe8] sm:$0xff]
    %v636 = vld [vmem:[#allocation2 + $0xf0] sm:$0xff]
    %v637 = vld [vmem:[#allocation2 + $0xf8] sm:$0xff]
    %v638 = vld [vmem:[#allocation2 + $0x100] sm:$0xff]
    %v639 = vld [vmem:[#allocation2 + $0x108] sm:$0xff]
    %v640 = vld [vmem:[#allocation2 + $0x110] sm:$0xff]
    %v641 = vld [vmem:[#allocation2 + $0x118] sm:$0xff]
    %v642 = vld [vmem:[#allocation2 + $0x120] sm:$0xff]
    %v643 = vld [vmem:[#allocation2 + $0x128] sm:$0xff]
    %v644 = vld [vmem:[#allocation2 + $0x130] sm:$0xff]
    %v645 = vld [vmem:[#allocation2 + $0x138] sm:$0xff]
    %v646 = vld [vmem:[#allocation2 + $0x140] sm:$0xff]
    %v647 = vld [vmem:[#allocation2 + $0x148] sm:$0xff]
    %v648 = vld [vmem:[#allocation2 + $0x150] sm:$0xff]
    %v649 = vld [vmem:[#allocation2 + $0x158] sm:$0xff]
    %v650 = vld [vmem:[#allocation2 + $0x160] sm:$0xff]
    %v651 = vld [vmem:[#allocation2 + $0x168] sm:$0xff]
    %v652 = vld [vmem:[#allocation2 + $0x170] sm:$0xff]
    %v653 = vld [vmem:[#allocation2 + $0x178] sm:$0xff]
    %v654 = vld [vmem:[#allocation2 + $0x180] sm:$0xff]
    %v655 = vld [vmem:[#allocation2 + $0x188] sm:$0xff]
    %v656 = vld [vmem:[#allocation2 + $0x190] sm:$0xff]
    %v657 = vld [vmem:[#allocation2 + $0x198] sm:$0xff]
    %v658 = vld [vmem:[#allocation2 + $0x1a0] sm:$0xff]
    %v659 = vld [vmem:[#allocation2 + $0x1a8] sm:$0xff]
    %v660 = vld [vmem:[#allocation2 + $0x1b0] sm:$0xff]
    %v661 = vld [vmem:[#allocation2 + $0x1b8] sm:$0xff]
    %v662 = vld [vmem:[#allocation2 + $0x1c0] sm:$0xff]
    %v663 = vld [vmem:[#allocation2 + $0x1c8] sm:$0xff]
    %v664 = vld [vmem:[#allocation2 + $0x1d0] sm:$0xff]
    %v665 = vld [vmem:[#allocation2 + $0x1d8] sm:$0xff]
    %v666 = vld [vmem:[#allocation2 + $0x1e0] sm:$0xff]
    %v667 = vld [vmem:[#allocation2 + $0x1e8] sm:$0xff]
    %v668 = vld [vmem:[#allocation2 + $0x1f0] sm:$0xff]
    %v669 = vld [vmem:[#allocation2 + $0x1f8] sm:$0xff]
    %v670 = vld [vmem:[#allocation2 + $0x200] sm:$0xff]
    %v671 = vld [vmem:[#allocation2 + $0x208] sm:$0xff]
    %v672 = vld [vmem:[#allocation2 + $0x210] sm:$0xff]
    %v673 = vld [vmem:[#allocation2 + $0x218] sm:$0xff]
    %v674 = vld [vmem:[#allocation2 + $0x220] sm:$0xff]
    %v675 = vld [vmem:[#allocation2 + $0x228] sm:$0xff]
    %v676 = vld [vmem:[#allocation2 + $0x230] sm:$0xff]
    %v677 = vld [vmem:[#allocation2 + $0x238] sm:$0xff]
    %v678 = vld [vmem:[#allocation2 + $0x240] sm:$0xff]
    %v679 = vld [vmem:[#allocation2 + $0x248] sm:$0xff]
    %v680 = vld [vmem:[#allocation2 + $0x250] sm:$0xff]
    %v681 = vld [vmem:[#allocation2 + $0x258] sm:$0xff]
    %v682 = vld [vmem:[#allocation2 + $0x260] sm:$0xff]
    %v683 = vld [vmem:[#allocation2 + $0x268] sm:$0xff]
    %v684 = vld [vmem:[#allocation2 + $0x270] sm:$0xff]
    %v685 = vld [vmem:[#allocation2 + $0x278] sm:$0xff]
    %v686 = vld [vmem:[#allocation2 + $0x280] sm:$0xff]
    %v687 = vld [vmem:[#allocation2 + $0x288] sm:$0xff]
    %v688 = vld [vmem:[#allocation2 + $0x290] sm:$0xff]
    %v689 = vld [vmem:[#allocation2 + $0x298] sm:$0xff]
    %v690 = vld [vmem:[#allocation2 + $0x2a0] sm:$0xff]
    %v691 = vld [vmem:[#allocation2 + $0x2a8] sm:$0xff]
    %v692 = vld [vmem:[#allocation2 + $0x2b0] sm:$0xff]
    %v693 = vld [vmem:[#allocation2 + $0x2b8] sm:$0xff]
    %v694 = vld [vmem:[#allocation2 + $0x2c0] sm:$0xff]
    %v695 = vld [vmem:[#allocation2 + $0x2c8] sm:$0xff]
    %v696 = vld [vmem:[#allocation2 + $0x2d0] sm:$0xff]
    %v697 = vld [vmem:[#allocation2 + $0x2d8] sm:$0xff]
    %v698 = vld [vmem:[#allocation2 + $0x2e0] sm:$0xff]
    %v699 = vld [vmem:[#allocation2 + $0x2e8] sm:$0xff]
    %v700 = vld [vmem:[#allocation2 + $0x2f0] sm:$0xff]
    %v701 = vld [vmem:[#allocation2 + $0x2f8] sm:$0xff]
    %v702 = vld [vmem:[#allocation2 + $0x300] sm:$0xff]
    %v703 = vld [vmem:[#allocation2 + $0x308] sm:$0xff]
    %v704 = vld [vmem:[#allocation2 + $0x310] sm:$0xff]
    %v705 = vld [vmem:[#allocation2 + $0x318] sm:$0xff]
    %v706 = vld [vmem:[#allocation2 + $0x320] sm:$0xff]
    %v707 = vld [vmem:[#allocation2 + $0x328] sm:$0xff]
    %v708 = vld [vmem:[#allocation2 + $0x330] sm:$0xff]
    %v709 = vld [vmem:[#allocation2 + $0x338] sm:$0xff]
    %v710 = vld [vmem:[#allocation2 + $0x340] sm:$0xff]
    %v711 = vld [vmem:[#allocation2 + $0x348] sm:$0xff]
    %v712 = vld [vmem:[#allocation2 + $0x350] sm:$0xff]
    %v713 = vld [vmem:[#allocation2 + $0x358] sm:$0xff]
    %v714 = vld [vmem:[#allocation2 + $0x360] sm:$0xff]
    %v715 = vld [vmem:[#allocation2 + $0x368] sm:$0xff]
    %v716 = vld [vmem:[#allocation2 + $0x370] sm:$0xff]
    %v717 = vld [vmem:[#allocation2 + $0x378] sm:$0xff]
    %v718 = vld [vmem:[#allocation2 + $0x380] sm:$0xff]
    %v719 = vld [vmem:[#allocation2 + $0x388] sm:$0xff]
    %v720 = vld [vmem:[#allocation2 + $0x390] sm:$0xff]
    %v721 = vld [vmem:[#allocation2 + $0x398] sm:$0xff]
    %v722 = vld [vmem:[#allocation2 + $0x3a0] sm:$0xff]
    %v723 = vld [vmem:[#allocation2 + $0x3a8] sm:$0xff]
    %v724 = vld [vmem:[#allocation2 + $0x3b0] sm:$0xff]
    %v725 = vld [vmem:[#allocation2 + $0x3b8] sm:$0xff]
    %v726 = vld [vmem:[#allocation2 + $0x3c0] sm:$0xff]
    %v727 = vld [vmem:[#allocation2 + $0x3c8] sm:$0xff]
    %v728 = vld [vmem:[#allocation2 + $0x3d0] sm:$0xff]
    %v729 = vld [vmem:[#allocation2 + $0x3d8] sm:$0xff]
    %v730 = vld [vmem:[#allocation2 + $0x3e0] sm:$0xff]
    %v731 = vld [vmem:[#allocation2 + $0x3e8] sm:$0xff]
    %v732 = vld [vmem:[#allocation2 + $0x3f0] sm:$0xff]
    %v733 = vld [vmem:[#allocation2 + $0x3f8] sm:$0xff]
    %v734 = vld [vmem:[#allocation2 + $0x400] sm:$0xff]
    %v735 = vld [vmem:[#allocation2 + $0x408] sm:$0xff]
    %v736 = vld [vmem:[#allocation2 + $0x410] sm:$0xff]
    %v737 = vld [vmem:[#allocation2 + $0x418] sm:$0xff]
    %v738 = vld [vmem:[#allocation2 + $0x420] sm:$0xff]
    %v739 = vld [vmem:[#allocation2 + $0x428] sm:$0xff]
    %v740 = vld [vmem:[#allocation2 + $0x430] sm:$0xff]
    %v741 = vld [vmem:[#allocation2 + $0x438] sm:$0xff]
    %v742 = vld [vmem:[#allocation2 + $0x440] sm:$0xff]
    %v743 = vld [vmem:[#allocation2 + $0x448] sm:$0xff]
    %v744 = vld [vmem:[#allocation2 + $0x450] sm:$0xff]
    %v745 = vld [vmem:[#allocation2 + $0x458] sm:$0xff]
    %v746 = vld [vmem:[#allocation2 + $0x460] sm:$0xff]
    %v747 = vld [vmem:[#allocation2 + $0x468] sm:$0xff]
    %v748 = vld [vmem:[#allocation2 + $0x470] sm:$0xff]
    %v749 = vld [vmem:[#allocation2 + $0x478] sm:$0xff]
    %v750 = vld [vmem:[#allocation2 + $0x480] sm:$0xff]
    %v751 = vld [vmem:[#allocation2 + $0x488] sm:$0xff]
    %v752 = vld [vmem:[#allocation2 + $0x490] sm:$0xff]
    %v753 = vld [vmem:[#allocation2 + $0x498] sm:$0xff]
    %v754 = vld [vmem:[#allocation2 + $0x4a0] sm:$0xff]
    %v755 = vld [vmem:[#allocation2 + $0x4a8] sm:$0xff]
    %v756 = vld [vmem:[#allocation2 + $0x4b0] sm:$0xff]
    %v757 = vld [vmem:[#allocation2 + $0x4b8] sm:$0xff]
    %v758 = vld [vmem:[#allocation2 + $0x4c0] sm:$0xff]
    %v759 = vld [vmem:[#allocation2 + $0x4c8] sm:$0xff]
    %v760 = vld [vmem:[#allocation2 + $0x4d0] sm:$0xff]
    %v761 = vld [vmem:[#allocation2 + $0x4d8] sm:$0xff]
    %v762 = vld [vmem:[#allocation2 + $0x4e0] sm:$0xff]
    %v763 = vld [vmem:[#allocation2 + $0x4e8] sm:$0xff]
    %v764 = vld [vmem:[#allocation2 + $0x4f0] sm:$0xff]
    %v765 = vld [vmem:[#allocation2 + $0x4f8] sm:$0xff]
    %v766 = vld [vmem:[#allocation2 + $0x500] sm:$0xff]
    %v767 = vld [vmem:[#allocation2 + $0x508] sm:$0xff]
    %v768 = vld [vmem:[#allocation2 + $0x510] sm:$0xff]
    %v769 = vld [vmem:[#allocation2 + $0x518] sm:$0xff]
    %v770 = vld [vmem:[#allocation2 + $0x520] sm:$0xff]
    %v771 = vld [vmem:[#allocation2 + $0x528] sm:$0xff]
    %v772 = vld [vmem:[#allocation2 + $0x530] sm:$0xff]
    %v773 = vld [vmem:[#allocation2 + $0x538] sm:$0xff]
    %v774 = vld [vmem:[#allocation2 + $0x540] sm:$0xff]
    %v775 = vld [vmem:[#allocation2 + $0x548] sm:$0xff]
    %v776 = vld [vmem:[#allocation2 + $0x550] sm:$0xff]
    %v777 = vld [vmem:[#allocation2 + $0x558] sm:$0xff]
    %v778 = vld [vmem:[#allocation2 + $0x560] sm:$0xff]
    %v779 = vld [vmem:[#allocation2 + $0x568] sm:$0xff]
    %v780 = vld [vmem:[#allocation2 + $0x570] sm:$0xff]
    %v781 = vld [vmem:[#allocation2 + $0x578] sm:$0xff]
    %v782 = vld [vmem:[#allocation2 + $0x580] sm:$0xff]
    %v783 = vld [vmem:[#allocation2 + $0x588] sm:$0xff]
    %v784 = vld [vmem:[#allocation2 + $0x590] sm:$0xff]
    %v785 = vld [vmem:[#allocation2 + $0x598] sm:$0xff]
    %v786 = vld [vmem:[#allocation2 + $0x5a0] sm:$0xff]
    %v787 = vld [vmem:[#allocation2 + $0x5a8] sm:$0xff]
    %v788 = vld [vmem:[#allocation2 + $0x5b0] sm:$0xff]
    %v789 = vld [vmem:[#allocation2 + $0x5b8] sm:$0xff]
    %v790 = vld [vmem:[#allocation2 + $0x5c0] sm:$0xff]
    %v791 = vld [vmem:[#allocation2 + $0x5c8] sm:$0xff]
    %v792 = vld [vmem:[#allocation2 + $0x5d0] sm:$0xff]
    %v793 = vld [vmem:[#allocation2 + $0x5d8] sm:$0xff]
    %v794 = vld [vmem:[#allocation2 + $0x5e0] sm:$0xff]
    %v795 = vld [vmem:[#allocation2 + $0x5e8] sm:$0xff]
    %v796 = vld [vmem:[#allocation2 + $0x5f0] sm:$0xff]
    %v797 = vld [vmem:[#allocation2 + $0x5f8] sm:$0xff]
    %v798 = vld [vmem:[#allocation2 + $0x600] sm:$0xff]
    %v799 = vld [vmem:[#allocation2 + $0x608] sm:$0xff]
    %v800 = vld [vmem:[#allocation2 + $0x610] sm:$0xff]
    %v801 = vld [vmem:[#allocation2 + $0x618] sm:$0xff]
    %v802 = vld [vmem:[#allocation2 + $0x620] sm:$0xff]
    %v803 = vld [vmem:[#allocation2 + $0x628] sm:$0xff]
    %v804 = vld [vmem:[#allocation2 + $0x630] sm:$0xff]
    %v805 = vld [vmem:[#allocation2 + $0x638] sm:$0xff]
    %v806 = vld [vmem:[#allocation2 + $0x640] sm:$0xff]
    %v807 = vld [vmem:[#allocation2 + $0x648] sm:$0xff]
    %v808 = vld [vmem:[#allocation2 + $0x650] sm:$0xff]
    %v809 = vld [vmem:[#allocation2 + $0x658] sm:$0xff]
    %v810 = vld [vmem:[#allocation2 + $0x660] sm:$0xff]
    %v811 = vld [vmem:[#allocation2 + $0x668] sm:$0xff]
    %v812 = vld [vmem:[#allocation2 + $0x670] sm:$0xff]
    %v813 = vld [vmem:[#allocation2 + $0x678] sm:$0xff]
    %v814 = vld [vmem:[#allocation2 + $0x680] sm:$0xff]
    %v815 = vld [vmem:[#allocation2 + $0x688] sm:$0xff]
    %v816 = vld [vmem:[#allocation2 + $0x690] sm:$0xff]
    %v817 = vld [vmem:[#allocation2 + $0x698] sm:$0xff]
    %v818 = vld [vmem:[#allocation2 + $0x6a0] sm:$0xff]
    %v819 = vld [vmem:[#allocation2 + $0x6a8] sm:$0xff]
    %v820 = vld [vmem:[#allocation2 + $0x6b0] sm:$0xff]
    %v821 = vld [vmem:[#allocation2 + $0x6b8] sm:$0xff]
    %v822 = vld [vmem:[#allocation2 + $0x6c0] sm:$0xff]
    %v823 = vld [vmem:[#allocation2 + $0x6c8] sm:$0xff]
    %v824 = vld [vmem:[#allocation2 + $0x6d0] sm:$0xff]
    %v825 = vld [vmem:[#allocation2 + $0x6d8] sm:$0xff]
    %v826 = vld [vmem:[#allocation2 + $0x6e0] sm:$0xff]
    %v827 = vld [vmem:[#allocation2 + $0x6e8] sm:$0xff]
    %v828 = vld [vmem:[#allocation2 + $0x6f0] sm:$0xff]
    %v829 = vld [vmem:[#allocation2 + $0x6f8] sm:$0xff]
    %v830 = vld [vmem:[#allocation2 + $0x700] sm:$0xff]
    %v831 = vld [vmem:[#allocation2 + $0x708] sm:$0xff]
    %v832 = vld [vmem:[#allocation2 + $0x710] sm:$0xff]
    %v833 = vld [vmem:[#allocation2 + $0x718] sm:$0xff]
    %v834 = vld [vmem:[#allocation2 + $0x720] sm:$0xff]
    %v835 = vld [vmem:[#allocation2 + $0x728] sm:$0xff]
    %v836 = vld [vmem:[#allocation2 + $0x730] sm:$0xff]
    %v837 = vld [vmem:[#allocation2 + $0x738] sm:$0xff]
    %v838 = vld [vmem:[#allocation2 + $0x740] sm:$0xff]
    %v839 = vld [vmem:[#allocation2 + $0x748] sm:$0xff]
    %v840 = vld [vmem:[#allocation2 + $0x750] sm:$0xff]
    %v841 = vld [vmem:[#allocation2 + $0x758] sm:$0xff]
    %v842 = vld [vmem:[#allocation2 + $0x760] sm:$0xff]
    %v843 = vld [vmem:[#allocation2 + $0x768] sm:$0xff]
    %v844 = vld [vmem:[#allocation2 + $0x770] sm:$0xff]
    %v845 = vld [vmem:[#allocation2 + $0x778] sm:$0xff]
    %v846 = vld [vmem:[#allocation2 + $0x780] sm:$0xff]
    %v847 = vld [vmem:[#allocation2 + $0x788] sm:$0xff]
    %v848 = vld [vmem:[#allocation2 + $0x790] sm:$0xff]
    %v849 = vld [vmem:[#allocation2 + $0x798] sm:$0xff]
    %v850 = vld [vmem:[#allocation2 + $0x7a0] sm:$0xff]
    %v851 = vld [vmem:[#allocation2 + $0x7a8] sm:$0xff]
    %v852 = vld [vmem:[#allocation2 + $0x7b0] sm:$0xff]
    %v853 = vld [vmem:[#allocation2 + $0x7b8] sm:$0xff]
    %v854 = vld [vmem:[#allocation2 + $0x7c0] sm:$0xff]
    %v855 = vld [vmem:[#allocation2 + $0x7c8] sm:$0xff]
    %v856 = vld [vmem:[#allocation2 + $0x7d0] sm:$0xff]
    %v857 = vld [vmem:[#allocation2 + $0x7d8] sm:$0xff]
    %v858 = vld [vmem:[#allocation2 + $0x7e0] sm:$0xff]
    %v859 = vld [vmem:[#allocation2 + $0x7e8] sm:$0xff]
    %v860 = vld [vmem:[#allocation2 + $0x7f0] sm:$0xff]
    %v861 = vld [vmem:[#allocation2 + $0x7f8] sm:$0xff]
    %v862 = vld [vmem:[#allocation2 + $0x800] sm:$0x11]
    %v863 = vld [vmem:[#allocation2 + $0x808] sm:$0x11]
    %v864 = vld [vmem:[#allocation5] sm:$0xff]
    %v865 = vld [vmem:[#allocation5 + $0x8] sm:$0xff]
    %v866 = vld [vmem:[#allocation5 + $0x10] sm:$0xff]
    %v867 = vld [vmem:[#allocation5 + $0x18] sm:$0xff]
    %v868 = vld [vmem:[#allocation5 + $0x20] sm:$0xff]
    %v869 = vld [vmem:[#allocation5 + $0x28] sm:$0xff]
    %v870 = vld [vmem:[#allocation5 + $0x30] sm:$0xff]
    %v871 = vld [vmem:[#allocation5 + $0x38] sm:$0xff]
    %v872 = vld [vmem:[#allocation5 + $0x40] sm:$0xff]
    %v873 = vld [vmem:[#allocation5 + $0x48] sm:$0xff]
    %v874 = vld [vmem:[#allocation5 + $0x50] sm:$0xff]
    %v875 = vld [vmem:[#allocation5 + $0x58] sm:$0xff]
    %v876 = vld [vmem:[#allocation5 + $0x60] sm:$0xff]
    %v877 = vld [vmem:[#allocation5 + $0x68] sm:$0xff]
    %v878 = vld [vmem:[#allocation5 + $0x70] sm:$0xff]
    %v879 = vld [vmem:[#allocation5 + $0x78] sm:$0xff]
    %v880 = vld [vmem:[#allocation5 + $0x80] sm:$0xff]
    %v881 = vld [vmem:[#allocation5 + $0x88] sm:$0xff]
    %v882 = vld [vmem:[#allocation5 + $0x90] sm:$0xff]
    %v883 = vld [vmem:[#allocation5 + $0x98] sm:$0xff]
    %v884 = vld [vmem:[#allocation5 + $0xa0] sm:$0xff]
    %v885 = vld [vmem:[#allocation5 + $0xa8] sm:$0xff]
    %v886 = vld [vmem:[#allocation5 + $0xb0] sm:$0xff]
    %v887 = vld [vmem:[#allocation5 + $0xb8] sm:$0xff]
    %v888 = vld [vmem:[#allocation5 + $0xc0] sm:$0xff]
    %v889 = vld [vmem:[#allocation5 + $0xc8] sm:$0xff]
    %v890 = vld [vmem:[#allocation5 + $0xd0] sm:$0xff]
    %v891 = vld [vmem:[#allocation5 + $0xd8] sm:$0xff]
    %v892 = vld [vmem:[#allocation5 + $0xe0] sm:$0xff]
    %v893 = vld [vmem:[#allocation5 + $0xe8] sm:$0xff]
    %v894 = vld [vmem:[#allocation5 + $0xf0] sm:$0xff]
    %v895 = vld [vmem:[#allocation5 + $0xf8] sm:$0xff]
    %v896 = vld [vmem:[#allocation5 + $0x100] sm:$0xff]
    %v897 = vld [vmem:[#allocation5 + $0x108] sm:$0xff]
    %v898 = vld [vmem:[#allocation5 + $0x110] sm:$0xff]
    %v899 = vld [vmem:[#allocation5 + $0x118] sm:$0xff]
    %v900 = vld [vmem:[#allocation5 + $0x120] sm:$0xff]
    %v901 = vld [vmem:[#allocation5 + $0x128] sm:$0xff]
    %v902 = vld [vmem:[#allocation5 + $0x130] sm:$0xff]
    %v903 = vld [vmem:[#allocation5 + $0x138] sm:$0xff]
    %v904 = vld [vmem:[#allocation5 + $0x140] sm:$0xff]
    %v905 = vld [vmem:[#allocation5 + $0x148] sm:$0xff]
    %v906 = vld [vmem:[#allocation5 + $0x150] sm:$0xff]
    %v907 = vld [vmem:[#allocation5 + $0x158] sm:$0xff]
    %v908 = vld [vmem:[#allocation5 + $0x160] sm:$0xff]
    %v909 = vld [vmem:[#allocation5 + $0x168] sm:$0xff]
    %v910 = vld [vmem:[#allocation5 + $0x170] sm:$0xff]
    %v911 = vld [vmem:[#allocation5 + $0x178] sm:$0xff]
    %v912 = vld [vmem:[#allocation5 + $0x180] sm:$0xff]
    %v913 = vld [vmem:[#allocation5 + $0x188] sm:$0xff]
    %v914 = vld [vmem:[#allocation5 + $0x190] sm:$0xff]
    %v915 = vld [vmem:[#allocation5 + $0x198] sm:$0xff]
    %v916 = vld [vmem:[#allocation5 + $0x1a0] sm:$0xff]
    %v917 = vld [vmem:[#allocation5 + $0x1a8] sm:$0xff]
    %v918 = vld [vmem:[#allocation5 + $0x1b0] sm:$0xff]
    %v919 = vld [vmem:[#allocation5 + $0x1b8] sm:$0xff]
    %v920 = vld [vmem:[#allocation5 + $0x1c0] sm:$0xff]
    %v921 = vld [vmem:[#allocation5 + $0x1c8] sm:$0xff]
    %v922 = vld [vmem:[#allocation5 + $0x1d0] sm:$0xff]
    %v923 = vld [vmem:[#allocation5 + $0x1d8] sm:$0xff]
    %v924 = vld [vmem:[#allocation5 + $0x1e0] sm:$0xff]
    %v925 = vld [vmem:[#allocation5 + $0x1e8] sm:$0xff]
    %v926 = vld [vmem:[#allocation5 + $0x1f0] sm:$0xff]
    %v927 = vld [vmem:[#allocation5 + $0x1f8] sm:$0xff]
    %v928 = vld [vmem:[#allocation5 + $0x200] sm:$0xff]
    %v929 = vld [vmem:[#allocation5 + $0x208] sm:$0xff]
    %v930 = vld [vmem:[#allocation5 + $0x210] sm:$0xff]
    %v931 = vld [vmem:[#allocation5 + $0x218] sm:$0xff]
    %v932 = vld [vmem:[#allocation5 + $0x220] sm:$0xff]
    %v933 = vld [vmem:[#allocation5 + $0x228] sm:$0xff]
    %v934 = vld [vmem:[#allocation5 + $0x230] sm:$0xff]
    %v935 = vld [vmem:[#allocation5 + $0x238] sm:$0xff]
    %v936 = vld [vmem:[#allocation5 + $0x240] sm:$0xff]
    %v937 = vld [vmem:[#allocation5 + $0x248] sm:$0xff]
    %v938 = vld [vmem:[#allocation5 + $0x250] sm:$0xff]
    %v939 = vld [vmem:[#allocation5 + $0x258] sm:$0xff]
    %v940 = vld [vmem:[#allocation5 + $0x260] sm:$0xff]
    %v941 = vld [vmem:[#allocation5 + $0x268] sm:$0xff]
    %v942 = vld [vmem:[#allocation5 + $0x270] sm:$0xff]
    %v943 = vld [vmem:[#allocation5 + $0x278] sm:$0xff]
    %v944 = vld [vmem:[#allocation5 + $0x280] sm:$0xff]
    %v945 = vld [vmem:[#allocation5 + $0x288] sm:$0xff]
    %v946 = vld [vmem:[#allocation5 + $0x290] sm:$0xff]
    %v947 = vld [vmem:[#allocation5 + $0x298] sm:$0xff]
    %v948 = vld [vmem:[#allocation5 + $0x2a0] sm:$0xff]
    %v949 = vld [vmem:[#allocation5 + $0x2a8] sm:$0xff]
    %v950 = vld [vmem:[#allocation5 + $0x2b0] sm:$0xff]
    %v951 = vld [vmem:[#allocation5 + $0x2b8] sm:$0xff]
    %v952 = vld [vmem:[#allocation5 + $0x2c0] sm:$0xff]
    %v953 = vld [vmem:[#allocation5 + $0x2c8] sm:$0xff]
    %v954 = vld [vmem:[#allocation5 + $0x2d0] sm:$0xff]
    %v955 = vld [vmem:[#allocation5 + $0x2d8] sm:$0xff]
    %v956 = vld [vmem:[#allocation5 + $0x2e0] sm:$0xff]
    %v957 = vld [vmem:[#allocation5 + $0x2e8] sm:$0xff]
    %v958 = vld [vmem:[#allocation5 + $0x2f0] sm:$0xff]
    %v959 = vld [vmem:[#allocation5 + $0x2f8] sm:$0xff]
    %v960 = vld [vmem:[#allocation5 + $0x300] sm:$0xff]
    %v961 = vld [vmem:[#allocation5 + $0x308] sm:$0xff]
    %v962 = vld [vmem:[#allocation5 + $0x310] sm:$0xff]
    %v963 = vld [vmem:[#allocation5 + $0x318] sm:$0xff]
    %v964 = vld [vmem:[#allocation5 + $0x320] sm:$0xff]
    %v965 = vld [vmem:[#allocation5 + $0x328] sm:$0xff]
    %v966 = vld [vmem:[#allocation5 + $0x330] sm:$0xff]
    %v967 = vld [vmem:[#allocation5 + $0x338] sm:$0xff]
    %v968 = vld [vmem:[#allocation5 + $0x340] sm:$0xff]
    %v969 = vld [vmem:[#allocation5 + $0x348] sm:$0xff]
    %v970 = vld [vmem:[#allocation5 + $0x350] sm:$0xff]
    %v971 = vld [vmem:[#allocation5 + $0x358] sm:$0xff]
    %v972 = vld [vmem:[#allocation5 + $0x360] sm:$0xff]
    %v973 = vld [vmem:[#allocation5 + $0x368] sm:$0xff]
    %v974 = vld [vmem:[#allocation5 + $0x370] sm:$0xff]
    %v975 = vld [vmem:[#allocation5 + $0x378] sm:$0xff]
    %v976 = vld [vmem:[#allocation5 + $0x380] sm:$0xff]
    %v977 = vld [vmem:[#allocation5 + $0x388] sm:$0xff]
    %v978 = vld [vmem:[#allocation5 + $0x390] sm:$0xff]
    %v979 = vld [vmem:[#allocation5 + $0x398] sm:$0xff]
    %v980 = vld [vmem:[#allocation5 + $0x3a0] sm:$0xff]
    %v981 = vld [vmem:[#allocation5 + $0x3a8] sm:$0xff]
    %v982 = vld [vmem:[#allocation5 + $0x3b0] sm:$0xff]
    %v983 = vld [vmem:[#allocation5 + $0x3b8] sm:$0xff]
    %v984 = vld [vmem:[#allocation5 + $0x3c0] sm:$0xff]
    %v985 = vld [vmem:[#allocation5 + $0x3c8] sm:$0xff]
    %v986 = vld [vmem:[#allocation5 + $0x3d0] sm:$0xff]
    %v987 = vld [vmem:[#allocation5 + $0x3d8] sm:$0xff]
    %v988 = vld [vmem:[#allocation5 + $0x3e0] sm:$0xff]
    %v989 = vld [vmem:[#allocation5 + $0x3e8] sm:$0xff]
    %v990 = vld [vmem:[#allocation5 + $0x3f0] sm:$0xff]
    %v991 = vld [vmem:[#allocation5 + $0x3f8] sm:$0xff]
    %v992 = vld [vmem:[#allocation5 + $0x400] sm:$0xff]
    %v993 = vld [vmem:[#allocation5 + $0x408] sm:$0xff]
    %v994 = vld [vmem:[#allocation5 + $0x410] sm:$0xff]
    %v995 = vld [vmem:[#allocation5 + $0x418] sm:$0xff]
    %v996 = vld [vmem:[#allocation5 + $0x420] sm:$0xff]
    %v997 = vld [vmem:[#allocation5 + $0x428] sm:$0xff]
    %v998 = vld [vmem:[#allocation5 + $0x430] sm:$0xff]
    %v999 = vld [vmem:[#allocation5 + $0x438] sm:$0xff]
    %v1000 = vld [vmem:[#allocation5 + $0x440] sm:$0xff]
    %v1001 = vld [vmem:[#allocation5 + $0x448] sm:$0xff]
    %v1002 = vld [vmem:[#allocation5 + $0x450] sm:$0xff]
    %v1003 = vld [vmem:[#allocation5 + $0x458] sm:$0xff]
    %v1004 = vld [vmem:[#allocation5 + $0x460] sm:$0xff]
    %v1005 = vld [vmem:[#allocation5 + $0x468] sm:$0xff]
    %v1006 = vld [vmem:[#allocation5 + $0x470] sm:$0xff]
    %v1007 = vld [vmem:[#allocation5 + $0x478] sm:$0xff]
    %v1008 = vld [vmem:[#allocation5 + $0x480] sm:$0xff]
    %v1009 = vld [vmem:[#allocation5 + $0x488] sm:$0xff]
    %v1010 = vld [vmem:[#allocation5 + $0x490] sm:$0xff]
    %v1011 = vld [vmem:[#allocation5 + $0x498] sm:$0xff]
    %v1012 = vld [vmem:[#allocation5 + $0x4a0] sm:$0xff]
    %v1013 = vld [vmem:[#allocation5 + $0x4a8] sm:$0xff]
    %v1014 = vld [vmem:[#allocation5 + $0x4b0] sm:$0xff]
    %v1015 = vld [vmem:[#allocation5 + $0x4b8] sm:$0xff]
    %v1016 = vld [vmem:[#allocation5 + $0x4c0] sm:$0xff]
    %v1017 = vld [vmem:[#allocation5 + $0x4c8] sm:$0xff]
    %v1018 = vld [vmem:[#allocation5 + $0x4d0] sm:$0xff]
    %v1019 = vld [vmem:[#allocation5 + $0x4d8] sm:$0xff]
    %v1020 = vld [vmem:[#allocation5 + $0x4e0] sm:$0xff]
    %v1021 = vld [vmem:[#allocation5 + $0x4e8] sm:$0xff]
    %v1022 = vld [vmem:[#allocation5 + $0x4f0] sm:$0xff]
    %v1023 = vld [vmem:[#allocation5 + $0x4f8] sm:$0xff]
    %v1024 = vld [vmem:[#allocation5 + $0x500] sm:$0xff]
    %v1025 = vld [vmem:[#allocation5 + $0x508] sm:$0xff]
    %v1026 = vld [vmem:[#allocation5 + $0x510] sm:$0xff]
    %v1027 = vld [vmem:[#allocation5 + $0x518] sm:$0xff]
    %v1028 = vld [vmem:[#allocation5 + $0x520] sm:$0xff]
    %v1029 = vld [vmem:[#allocation5 + $0x528] sm:$0xff]
    %v1030 = vld [vmem:[#allocation5 + $0x530] sm:$0xff]
    %v1031 = vld [vmem:[#allocation5 + $0x538] sm:$0xff]
    %v1032 = vld [vmem:[#allocation5 + $0x540] sm:$0xff]
    %v1033 = vld [vmem:[#allocation5 + $0x548] sm:$0xff]
    %v1034 = vld [vmem:[#allocation5 + $0x550] sm:$0xff]
    %v1035 = vld [vmem:[#allocation5 + $0x558] sm:$0xff]
    %v1036 = vld [vmem:[#allocation5 + $0x560] sm:$0xff]
    %v1037 = vld [vmem:[#allocation5 + $0x568] sm:$0xff]
    %v1038 = vld [vmem:[#allocation5 + $0x570] sm:$0xff]
    %v1039 = vld [vmem:[#allocation5 + $0x578] sm:$0xff]
    %v1040 = vld [vmem:[#allocation5 + $0x580] sm:$0xff]
    %v1041 = vld [vmem:[#allocation5 + $0x588] sm:$0xff]
    %v1042 = vld [vmem:[#allocation5 + $0x590] sm:$0xff]
    %v1043 = vld [vmem:[#allocation5 + $0x598] sm:$0xff]
    %v1044 = vld [vmem:[#allocation5 + $0x5a0] sm:$0xff]
    %v1045 = vld [vmem:[#allocation5 + $0x5a8] sm:$0xff]
    %v1046 = vld [vmem:[#allocation5 + $0x5b0] sm:$0xff]
    %v1047 = vld [vmem:[#allocation5 + $0x5b8] sm:$0xff]
    %v1048 = vld [vmem:[#allocation5 + $0x5c0] sm:$0xff]
    %v1049 = vld [vmem:[#allocation5 + $0x5c8] sm:$0xff]
    %v1050 = vld [vmem:[#allocation5 + $0x5d0] sm:$0xff]
    %v1051 = vld [vmem:[#allocation5 + $0x5d8] sm:$0xff]
    %v1052 = vld [vmem:[#allocation5 + $0x5e0] sm:$0xff]
    %v1053 = vld [vmem:[#allocation5 + $0x5e8] sm:$0xff]
    %v1054 = vld [vmem:[#allocation5 + $0x5f0] sm:$0xff]
    %v1055 = vld [vmem:[#allocation5 + $0x5f8] sm:$0xff]
    %v1056 = vld [vmem:[#allocation5 + $0x600] sm:$0xff]
    %v1057 = vld [vmem:[#allocation5 + $0x608] sm:$0xff]
    %v1058 = vld [vmem:[#allocation5 + $0x610] sm:$0xff]
    %v1059 = vld [vmem:[#allocation5 + $0x618] sm:$0xff]
    %v1060 = vld [vmem:[#allocation5 + $0x620] sm:$0xff]
    %v1061 = vld [vmem:[#allocation5 + $0x628] sm:$0xff]
    %v1062 = vld [vmem:[#allocation5 + $0x630] sm:$0xff]
    %v1063 = vld [vmem:[#allocation5 + $0x638] sm:$0xff]
    %v1064 = vld [vmem:[#allocation5 + $0x640] sm:$0xff]
    %v1065 = vld [vmem:[#allocation5 + $0x648] sm:$0xff]
    %v1066 = vld [vmem:[#allocation5 + $0x650] sm:$0xff]
    %v1067 = vld [vmem:[#allocation5 + $0x658] sm:$0xff]
    %v1068 = vld [vmem:[#allocation5 + $0x660] sm:$0xff]
    %v1069 = vld [vmem:[#allocation5 + $0x668] sm:$0xff]
    %v1070 = vld [vmem:[#allocation5 + $0x670] sm:$0xff]
    %v1071 = vld [vmem:[#allocation5 + $0x678] sm:$0xff]
    %v1072 = vld [vmem:[#allocation5 + $0x680] sm:$0xff]
    %v1073 = vld [vmem:[#allocation5 + $0x688] sm:$0xff]
    %v1074 = vld [vmem:[#allocation5 + $0x690] sm:$0xff]
    %v1075 = vld [vmem:[#allocation5 + $0x698] sm:$0xff]
    %v1076 = vld [vmem:[#allocation5 + $0x6a0] sm:$0xff]
    %v1077 = vld [vmem:[#allocation5 + $0x6a8] sm:$0xff]
    %v1078 = vld [vmem:[#allocation5 + $0x6b0] sm:$0xff]
    %v1079 = vld [vmem:[#allocation5 + $0x6b8] sm:$0xff]
    %v1080 = vld [vmem:[#allocation5 + $0x6c0] sm:$0xff]
    %v1081 = vld [vmem:[#allocation5 + $0x6c8] sm:$0xff]
    %v1082 = vld [vmem:[#allocation5 + $0x6d0] sm:$0xff]
    %v1083 = vld [vmem:[#allocation5 + $0x6d8] sm:$0xff]
    %v1084 = vld [vmem:[#allocation5 + $0x6e0] sm:$0xff]
    %v1085 = vld [vmem:[#allocation5 + $0x6e8] sm:$0xff]
    %v1086 = vld [vmem:[#allocation5 + $0x6f0] sm:$0xff]
    %v1087 = vld [vmem:[#allocation5 + $0x6f8] sm:$0xff]
    %v1088 = vld [vmem:[#allocation5 + $0x700] sm:$0xff]
    %v1089 = vld [vmem:[#allocation5 + $0x708] sm:$0xff]
    %v1090 = vld [vmem:[#allocation5 + $0x710] sm:$0xff]
    %v1091 = vld [vmem:[#allocation5 + $0x718] sm:$0xff]
    %v1092 = vld [vmem:[#allocation5 + $0x720] sm:$0xff]
    %v1093 = vld [vmem:[#allocation5 + $0x728] sm:$0xff]
    %v1094 = vld [vmem:[#allocation5 + $0x730] sm:$0xff]
    %v1095 = vld [vmem:[#allocation5 + $0x738] sm:$0xff]
    %v1096 = vld [vmem:[#allocation5 + $0x740] sm:$0xff]
    %v1097 = vld [vmem:[#allocation5 + $0x748] sm:$0xff]
    %v1098 = vld [vmem:[#allocation5 + $0x750] sm:$0xff]
    %v1099 = vld [vmem:[#allocation5 + $0x758] sm:$0xff]
    %v1100 = vld [vmem:[#allocation5 + $0x760] sm:$0xff]
    %v1101 = vld [vmem:[#allocation5 + $0x768] sm:$0xff]
    %v1102 = vld [vmem:[#allocation5 + $0x770] sm:$0xff]
    %v1103 = vld [vmem:[#allocation5 + $0x778] sm:$0xff]
    %v1104 = vld [vmem:[#allocation5 + $0x780] sm:$0xff]
    %v1105 = vld [vmem:[#allocation5 + $0x788] sm:$0xff]
    %v1106 = vld [vmem:[#allocation5 + $0x790] sm:$0xff]
    %v1107 = vld [vmem:[#allocation5 + $0x798] sm:$0xff]
    %v1108 = vld [vmem:[#allocation5 + $0x7a0] sm:$0xff]
    %v1109 = vld [vmem:[#allocation5 + $0x7a8] sm:$0xff]
    %v1110 = vld [vmem:[#allocation5 + $0x7b0] sm:$0xff]
    %v1111 = vld [vmem:[#allocation5 + $0x7b8] sm:$0xff]
    %v1112 = vld [vmem:[#allocation5 + $0x7c0] sm:$0xff]
    %v1113 = vld [vmem:[#allocation5 + $0x7c8] sm:$0xff]
    %v1114 = vld [vmem:[#allocation5 + $0x7d0] sm:$0xff]
    %v1115 = vld [vmem:[#allocation5 + $0x7d8] sm:$0xff]
    %v1116 = vld [vmem:[#allocation5 + $0x7e0] sm:$0xff]
    %v1117 = vld [vmem:[#allocation5 + $0x7e8] sm:$0xff]
    %v1118 = vld [vmem:[#allocation5 + $0x7f0] sm:$0xff]
    %v1119 = vld [vmem:[#allocation5 + $0x7f8] sm:$0xff]
    %v1120 = vld [vmem:[#allocation5 + $0x800] sm:$0x11]
    %v1121 = vld [vmem:[#allocation5 + $0x808] sm:$0x11]
    %v1380 = vunpack.c.l.b16 %v864
    %v1381 = vunpack.c.h.b16 %v864
    %v1382 = vunpack.c.l.b16 %v865
    %v1383 = vunpack.c.h.b16 %v865
    %v1384 = vunpack.c.l.b16 %v866
    %v1385 = vunpack.c.h.b16 %v866
    %v1386 = vunpack.c.l.b16 %v867
    %v1387 = vunpack.c.h.b16 %v867
    %v1388 = vunpack.c.l.b16 %v868
    %v1389 = vunpack.c.h.b16 %v868
    %v1390 = vunpack.c.l.b16 %v869
    %v1391 = vunpack.c.h.b16 %v869
    %v1392 = vunpack.c.l.b16 %v870
    %v1393 = vunpack.c.h.b16 %v870
    %v1394 = vunpack.c.l.b16 %v871
    %v1395 = vunpack.c.h.b16 %v871
    %v1396 = vunpack.c.l.b16 %v872
    %v1397 = vunpack.c.h.b16 %v872
    %v1398 = vunpack.c.l.b16 %v873
    %v1399 = vunpack.c.h.b16 %v873
    %v1400 = vunpack.c.l.b16 %v874
    %v1401 = vunpack.c.h.b16 %v874
    %v1402 = vunpack.c.l.b16 %v875
    %v1403 = vunpack.c.h.b16 %v875
    %v1404 = vunpack.c.l.b16 %v876
    %v1405 = vunpack.c.h.b16 %v876
    %v1406 = vunpack.c.l.b16 %v877
    %v1407 = vunpack.c.h.b16 %v877
    %v1408 = vunpack.c.l.b16 %v878
    %v1409 = vunpack.c.h.b16 %v878
    %v1410 = vunpack.c.l.b16 %v879
    %v1411 = vunpack.c.h.b16 %v879
    %v1412 = vunpack.c.l.b16 %v880
    %v1413 = vunpack.c.h.b16 %v880
    %v1414 = vunpack.c.l.b16 %v881
    %v1415 = vunpack.c.h.b16 %v881
    %v1416 = vunpack.c.l.b16 %v882
    %v1417 = vunpack.c.h.b16 %v882
    %v1418 = vunpack.c.l.b16 %v883
    %v1419 = vunpack.c.h.b16 %v883
    %v1420 = vunpack.c.l.b16 %v884
    %v1421 = vunpack.c.h.b16 %v884
    %v1422 = vunpack.c.l.b16 %v885
    %v1423 = vunpack.c.h.b16 %v885
    %v1424 = vunpack.c.l.b16 %v886
    %v1425 = vunpack.c.h.b16 %v886
    %v1426 = vunpack.c.l.b16 %v887
    %v1427 = vunpack.c.h.b16 %v887
    %v1428 = vunpack.c.l.b16 %v888
    %v1429 = vunpack.c.h.b16 %v888
    %v1430 = vunpack.c.l.b16 %v889
    %v1431 = vunpack.c.h.b16 %v889
    %v1432 = vunpack.c.l.b16 %v890
    %v1433 = vunpack.c.h.b16 %v890
    %v1434 = vunpack.c.l.b16 %v891
    %v1435 = vunpack.c.h.b16 %v891
    %v1436 = vunpack.c.l.b16 %v892
    %v1437 = vunpack.c.h.b16 %v892
    %v1438 = vunpack.c.l.b16 %v893
    %v1439 = vunpack.c.h.b16 %v893
    %v1440 = vunpack.c.l.b16 %v894
    %v1441 = vunpack.c.h.b16 %v894
    %v1442 = vunpack.c.l.b16 %v895
    %v1443 = vunpack.c.h.b16 %v895
    %v1444 = vunpack.c.l.b16 %v896
    %v1445 = vunpack.c.h.b16 %v896
    %v1446 = vunpack.c.l.b16 %v897
    %v1447 = vunpack.c.h.b16 %v897
    %v1448 = vunpack.c.l.b16 %v898
    %v1449 = vunpack.c.h.b16 %v898
    %v1450 = vunpack.c.l.b16 %v899
    %v1451 = vunpack.c.h.b16 %v899
    %v1452 = vunpack.c.l.b16 %v900
    %v1453 = vunpack.c.h.b16 %v900
    %v1454 = vunpack.c.l.b16 %v901
    %v1455 = vunpack.c.h.b16 %v901
    %v1456 = vunpack.c.l.b16 %v902
    %v1457 = vunpack.c.h.b16 %v902
    %v1458 = vunpack.c.l.b16 %v903
    %v1459 = vunpack.c.h.b16 %v903
    %v1460 = vunpack.c.l.b16 %v904
    %v1461 = vunpack.c.h.b16 %v904
    %v1462 = vunpack.c.l.b16 %v905
    %v1463 = vunpack.c.h.b16 %v905
    %v1464 = vunpack.c.l.b16 %v906
    %v1465 = vunpack.c.h.b16 %v906
    %v1466 = vunpack.c.l.b16 %v907
    %v1467 = vunpack.c.h.b16 %v907
    %v1468 = vunpack.c.l.b16 %v908
    %v1469 = vunpack.c.h.b16 %v908
    %v1470 = vunpack.c.l.b16 %v909
    %v1471 = vunpack.c.h.b16 %v909
    %v1472 = vunpack.c.l.b16 %v910
    %v1473 = vunpack.c.h.b16 %v910
    %v1474 = vunpack.c.l.b16 %v911
    %v1475 = vunpack.c.h.b16 %v911
    %v1476 = vunpack.c.l.b16 %v912
    %v1477 = vunpack.c.h.b16 %v912
    %v1478 = vunpack.c.l.b16 %v913
    %v1479 = vunpack.c.h.b16 %v913
    %v1480 = vunpack.c.l.b16 %v914
    %v1481 = vunpack.c.h.b16 %v914
    %v1482 = vunpack.c.l.b16 %v915
    %v1483 = vunpack.c.h.b16 %v915
    %v1484 = vunpack.c.l.b16 %v916
    %v1485 = vunpack.c.h.b16 %v916
    %v1486 = vunpack.c.l.b16 %v917
    %v1487 = vunpack.c.h.b16 %v917
    %v1488 = vunpack.c.l.b16 %v918
    %v1489 = vunpack.c.h.b16 %v918
    %v1490 = vunpack.c.l.b16 %v919
    %v1491 = vunpack.c.h.b16 %v919
    %v1492 = vunpack.c.l.b16 %v920
    %v1493 = vunpack.c.h.b16 %v920
    %v1494 = vunpack.c.l.b16 %v921
    %v1495 = vunpack.c.h.b16 %v921
    %v1496 = vunpack.c.l.b16 %v922
    %v1497 = vunpack.c.h.b16 %v922
    %v1498 = vunpack.c.l.b16 %v923
    %v1499 = vunpack.c.h.b16 %v923
    %v1500 = vunpack.c.l.b16 %v924
    %v1501 = vunpack.c.h.b16 %v924
    %v1502 = vunpack.c.l.b16 %v925
    %v1503 = vunpack.c.h.b16 %v925
    %v1504 = vunpack.c.l.b16 %v926
    %v1505 = vunpack.c.h.b16 %v926
    %v1506 = vunpack.c.l.b16 %v927
    %v1507 = vunpack.c.h.b16 %v927
    %v1508 = vunpack.c.l.b16 %v928
    %v1509 = vunpack.c.h.b16 %v928
    %v1510 = vunpack.c.l.b16 %v929
    %v1511 = vunpack.c.h.b16 %v929
    %v1512 = vunpack.c.l.b16 %v930
    %v1513 = vunpack.c.h.b16 %v930
    %v1514 = vunpack.c.l.b16 %v931
    %v1515 = vunpack.c.h.b16 %v931
    %v1516 = vunpack.c.l.b16 %v932
    %v1517 = vunpack.c.h.b16 %v932
    %v1518 = vunpack.c.l.b16 %v933
    %v1519 = vunpack.c.h.b16 %v933
    %v1520 = vunpack.c.l.b16 %v934
    %v1521 = vunpack.c.h.b16 %v934
    %v1522 = vunpack.c.l.b16 %v935
    %v1523 = vunpack.c.h.b16 %v935
    %v1524 = vunpack.c.l.b16 %v936
    %v1525 = vunpack.c.h.b16 %v936
    %v1526 = vunpack.c.l.b16 %v937
    %v1527 = vunpack.c.h.b16 %v937
    %v1528 = vunpack.c.l.b16 %v938
    %v1529 = vunpack.c.h.b16 %v938
    %v1530 = vunpack.c.l.b16 %v939
    %v1531 = vunpack.c.h.b16 %v939
    %v1532 = vunpack.c.l.b16 %v940
    %v1533 = vunpack.c.h.b16 %v940
    %v1534 = vunpack.c.l.b16 %v941
    %v1535 = vunpack.c.h.b16 %v941
    %v1536 = vunpack.c.l.b16 %v942
    %v1537 = vunpack.c.h.b16 %v942
    %v1538 = vunpack.c.l.b16 %v943
    %v1539 = vunpack.c.h.b16 %v943
    %v1540 = vunpack.c.l.b16 %v944
    %v1541 = vunpack.c.h.b16 %v944
    %v1542 = vunpack.c.l.b16 %v945
    %v1543 = vunpack.c.h.b16 %v945
    %v1544 = vunpack.c.l.b16 %v946
    %v1545 = vunpack.c.h.b16 %v946
    %v1546 = vunpack.c.l.b16 %v947
    %v1547 = vunpack.c.h.b16 %v947
    %v1548 = vunpack.c.l.b16 %v948
    %v1549 = vunpack.c.h.b16 %v948
    %v1550 = vunpack.c.l.b16 %v949
    %v1551 = vunpack.c.h.b16 %v949
    %v1552 = vunpack.c.l.b16 %v950
    %v1553 = vunpack.c.h.b16 %v950
    %v1554 = vunpack.c.l.b16 %v951
    %v1555 = vunpack.c.h.b16 %v951
    %v1556 = vunpack.c.l.b16 %v952
    %v1557 = vunpack.c.h.b16 %v952
    %v1558 = vunpack.c.l.b16 %v953
    %v1559 = vunpack.c.h.b16 %v953
    %v1560 = vunpack.c.l.b16 %v954
    %v1561 = vunpack.c.h.b16 %v954
    %v1562 = vunpack.c.l.b16 %v955
    %v1563 = vunpack.c.h.b16 %v955
    %v1564 = vunpack.c.l.b16 %v956
    %v1565 = vunpack.c.h.b16 %v956
    %v1566 = vunpack.c.l.b16 %v957
    %v1567 = vunpack.c.h.b16 %v957
    %v1568 = vunpack.c.l.b16 %v958
    %v1569 = vunpack.c.h.b16 %v958
    %v1570 = vunpack.c.l.b16 %v959
    %v1571 = vunpack.c.h.b16 %v959
    %v1572 = vunpack.c.l.b16 %v960
    %v1573 = vunpack.c.h.b16 %v960
    %v1574 = vunpack.c.l.b16 %v961
    %v1575 = vunpack.c.h.b16 %v961
    %v1576 = vunpack.c.l.b16 %v962
    %v1577 = vunpack.c.h.b16 %v962
    %v1578 = vunpack.c.l.b16 %v963
    %v1579 = vunpack.c.h.b16 %v963
    %v1580 = vunpack.c.l.b16 %v964
    %v1581 = vunpack.c.h.b16 %v964
    %v1582 = vunpack.c.l.b16 %v965
    %v1583 = vunpack.c.h.b16 %v965
    %v1584 = vunpack.c.l.b16 %v966
    %v1585 = vunpack.c.h.b16 %v966
    %v1586 = vunpack.c.l.b16 %v967
    %v1587 = vunpack.c.h.b16 %v967
    %v1588 = vunpack.c.l.b16 %v968
    %v1589 = vunpack.c.h.b16 %v968
    %v1590 = vunpack.c.l.b16 %v969
    %v1591 = vunpack.c.h.b16 %v969
    %v1592 = vunpack.c.l.b16 %v970
    %v1593 = vunpack.c.h.b16 %v970
    %v1594 = vunpack.c.l.b16 %v971
    %v1595 = vunpack.c.h.b16 %v971
    %v1596 = vunpack.c.l.b16 %v972
    %v1597 = vunpack.c.h.b16 %v972
    %v1598 = vunpack.c.l.b16 %v973
    %v1599 = vunpack.c.h.b16 %v973
    %v1600 = vunpack.c.l.b16 %v974
    %v1601 = vunpack.c.h.b16 %v974
    %v1602 = vunpack.c.l.b16 %v975
    %v1603 = vunpack.c.h.b16 %v975
    %v1604 = vunpack.c.l.b16 %v976
    %v1605 = vunpack.c.h.b16 %v976
    %v1606 = vunpack.c.l.b16 %v977
    %v1607 = vunpack.c.h.b16 %v977
    %v1608 = vunpack.c.l.b16 %v978
    %v1609 = vunpack.c.h.b16 %v978
    %v1610 = vunpack.c.l.b16 %v979
    %v1611 = vunpack.c.h.b16 %v979
    %v1612 = vunpack.c.l.b16 %v980
    %v1613 = vunpack.c.h.b16 %v980
    %v1614 = vunpack.c.l.b16 %v981
    %v1615 = vunpack.c.h.b16 %v981
    %v1616 = vunpack.c.l.b16 %v982
    %v1617 = vunpack.c.h.b16 %v982
    %v1618 = vunpack.c.l.b16 %v983
    %v1619 = vunpack.c.h.b16 %v983
    %v1620 = vunpack.c.l.b16 %v984
    %v1621 = vunpack.c.h.b16 %v984
    %v1622 = vunpack.c.l.b16 %v985
    %v1623 = vunpack.c.h.b16 %v985
    %v1624 = vunpack.c.l.b16 %v986
    %v1625 = vunpack.c.h.b16 %v986
    %v1626 = vunpack.c.l.b16 %v987
    %v1627 = vunpack.c.h.b16 %v987
    %v1628 = vunpack.c.l.b16 %v988
    %v1629 = vunpack.c.h.b16 %v988
    %v1630 = vunpack.c.l.b16 %v989
    %v1631 = vunpack.c.h.b16 %v989
    %v1632 = vunpack.c.l.b16 %v990
    %v1633 = vunpack.c.h.b16 %v990
    %v1634 = vunpack.c.l.b16 %v991
    %v1635 = vunpack.c.h.b16 %v991
    %v1636 = vunpack.c.l.b16 %v992
    %v1637 = vunpack.c.h.b16 %v992
    %v1638 = vunpack.c.l.b16 %v993
    %v1639 = vunpack.c.h.b16 %v993
    %v1640 = vunpack.c.l.b16 %v994
    %v1641 = vunpack.c.h.b16 %v994
    %v1642 = vunpack.c.l.b16 %v995
    %v1643 = vunpack.c.h.b16 %v995
    %v1644 = vunpack.c.l.b16 %v996
    %v1645 = vunpack.c.h.b16 %v996
    %v1646 = vunpack.c.l.b16 %v997
    %v1647 = vunpack.c.h.b16 %v997
    %v1648 = vunpack.c.l.b16 %v998
    %v1649 = vunpack.c.h.b16 %v998
    %v1650 = vunpack.c.l.b16 %v999
    %v1651 = vunpack.c.h.b16 %v999
    %v1652 = vunpack.c.l.b16 %v1000
    %v1653 = vunpack.c.h.b16 %v1000
    %v1654 = vunpack.c.l.b16 %v1001
    %v1655 = vunpack.c.h.b16 %v1001
    %v1656 = vunpack.c.l.b16 %v1002
    %v1657 = vunpack.c.h.b16 %v1002
    %v1658 = vunpack.c.l.b16 %v1003
    %v1659 = vunpack.c.h.b16 %v1003
    %v1660 = vunpack.c.l.b16 %v1004
    %v1661 = vunpack.c.h.b16 %v1004
    %v1662 = vunpack.c.l.b16 %v1005
    %v1663 = vunpack.c.h.b16 %v1005
    %v1664 = vunpack.c.l.b16 %v1006
    %v1665 = vunpack.c.h.b16 %v1006
    %v1666 = vunpack.c.l.b16 %v1007
    %v1667 = vunpack.c.h.b16 %v1007
    %v1668 = vunpack.c.l.b16 %v1008
    %v1669 = vunpack.c.h.b16 %v1008
    %v1670 = vunpack.c.l.b16 %v1009
    %v1671 = vunpack.c.h.b16 %v1009
    %v1672 = vunpack.c.l.b16 %v1010
    %v1673 = vunpack.c.h.b16 %v1010
    %v1674 = vunpack.c.l.b16 %v1011
    %v1675 = vunpack.c.h.b16 %v1011
    %v1676 = vunpack.c.l.b16 %v1012
    %v1677 = vunpack.c.h.b16 %v1012
    %v1678 = vunpack.c.l.b16 %v1013
    %v1679 = vunpack.c.h.b16 %v1013
    %v1680 = vunpack.c.l.b16 %v1014
    %v1681 = vunpack.c.h.b16 %v1014
    %v1682 = vunpack.c.l.b16 %v1015
    %v1683 = vunpack.c.h.b16 %v1015
    %v1684 = vunpack.c.l.b16 %v1016
    %v1685 = vunpack.c.h.b16 %v1016
    %v1686 = vunpack.c.l.b16 %v1017
    %v1687 = vunpack.c.h.b16 %v1017
    %v1688 = vunpack.c.l.b16 %v1018
    %v1689 = vunpack.c.h.b16 %v1018
    %v1690 = vunpack.c.l.b16 %v1019
    %v1691 = vunpack.c.h.b16 %v1019
    %v1692 = vunpack.c.l.b16 %v1020
    %v1693 = vunpack.c.h.b16 %v1020
    %v1694 = vunpack.c.l.b16 %v1021
    %v1695 = vunpack.c.h.b16 %v1021
    %v1696 = vunpack.c.l.b16 %v1022
    %v1697 = vunpack.c.h.b16 %v1022
    %v1698 = vunpack.c.l.b16 %v1023
    %v1699 = vunpack.c.h.b16 %v1023
    %v1700 = vunpack.c.l.b16 %v1024
    %v1701 = vunpack.c.h.b16 %v1024
    %v1702 = vunpack.c.l.b16 %v1025
    %v1703 = vunpack.c.h.b16 %v1025
    %v1704 = vunpack.c.l.b16 %v1026
    %v1705 = vunpack.c.h.b16 %v1026
    %v1706 = vunpack.c.l.b16 %v1027
    %v1707 = vunpack.c.h.b16 %v1027
    %v1708 = vunpack.c.l.b16 %v1028
    %v1709 = vunpack.c.h.b16 %v1028
    %v1710 = vunpack.c.l.b16 %v1029
    %v1711 = vunpack.c.h.b16 %v1029
    %v1712 = vunpack.c.l.b16 %v1030
    %v1713 = vunpack.c.h.b16 %v1030
    %v1714 = vunpack.c.l.b16 %v1031
    %v1715 = vunpack.c.h.b16 %v1031
    %v1716 = vunpack.c.l.b16 %v1032
    %v1717 = vunpack.c.h.b16 %v1032
    %v1718 = vunpack.c.l.b16 %v1033
    %v1719 = vunpack.c.h.b16 %v1033
    %v1720 = vunpack.c.l.b16 %v1034
    %v1721 = vunpack.c.h.b16 %v1034
    %v1722 = vunpack.c.l.b16 %v1035
    %v1723 = vunpack.c.h.b16 %v1035
    %v1724 = vunpack.c.l.b16 %v1036
    %v1725 = vunpack.c.h.b16 %v1036
    %v1726 = vunpack.c.l.b16 %v1037
    %v1727 = vunpack.c.h.b16 %v1037
    %v1728 = vunpack.c.l.b16 %v1038
    %v1729 = vunpack.c.h.b16 %v1038
    %v1730 = vunpack.c.l.b16 %v1039
    %v1731 = vunpack.c.h.b16 %v1039
    %v1732 = vunpack.c.l.b16 %v1040
    %v1733 = vunpack.c.h.b16 %v1040
    %v1734 = vunpack.c.l.b16 %v1041
    %v1735 = vunpack.c.h.b16 %v1041
    %v1736 = vunpack.c.l.b16 %v1042
    %v1737 = vunpack.c.h.b16 %v1042
    %v1738 = vunpack.c.l.b16 %v1043
    %v1739 = vunpack.c.h.b16 %v1043
    %v1740 = vunpack.c.l.b16 %v1044
    %v1741 = vunpack.c.h.b16 %v1044
    %v1742 = vunpack.c.l.b16 %v1045
    %v1743 = vunpack.c.h.b16 %v1045
    %v1744 = vunpack.c.l.b16 %v1046
    %v1745 = vunpack.c.h.b16 %v1046
    %v1746 = vunpack.c.l.b16 %v1047
    %v1747 = vunpack.c.h.b16 %v1047
    %v1748 = vunpack.c.l.b16 %v1048
    %v1749 = vunpack.c.h.b16 %v1048
    %v1750 = vunpack.c.l.b16 %v1049
    %v1751 = vunpack.c.h.b16 %v1049
    %v1752 = vunpack.c.l.b16 %v1050
    %v1753 = vunpack.c.h.b16 %v1050
    %v1754 = vunpack.c.l.b16 %v1051
    %v1755 = vunpack.c.h.b16 %v1051
    %v1756 = vunpack.c.l.b16 %v1052
    %v1757 = vunpack.c.h.b16 %v1052
    %v1758 = vunpack.c.l.b16 %v1053
    %v1759 = vunpack.c.h.b16 %v1053
    %v1760 = vunpack.c.l.b16 %v1054
    %v1761 = vunpack.c.h.b16 %v1054
    %v1762 = vunpack.c.l.b16 %v1055
    %v1763 = vunpack.c.h.b16 %v1055
    %v1764 = vunpack.c.l.b16 %v1056
    %v1765 = vunpack.c.h.b16 %v1056
    %v1766 = vunpack.c.l.b16 %v1057
    %v1767 = vunpack.c.h.b16 %v1057
    %v1768 = vunpack.c.l.b16 %v1058
    %v1769 = vunpack.c.h.b16 %v1058
    %v1770 = vunpack.c.l.b16 %v1059
    %v1771 = vunpack.c.h.b16 %v1059
    %v1772 = vunpack.c.l.b16 %v1060
    %v1773 = vunpack.c.h.b16 %v1060
    %v1774 = vunpack.c.l.b16 %v1061
    %v1775 = vunpack.c.h.b16 %v1061
    %v1776 = vunpack.c.l.b16 %v1062
    %v1777 = vunpack.c.h.b16 %v1062
    %v1778 = vunpack.c.l.b16 %v1063
    %v1779 = vunpack.c.h.b16 %v1063
    %v1780 = vunpack.c.l.b16 %v1064
    %v1781 = vunpack.c.h.b16 %v1064
    %v1782 = vunpack.c.l.b16 %v1065
    %v1783 = vunpack.c.h.b16 %v1065
    %v1784 = vunpack.c.l.b16 %v1066
    %v1785 = vunpack.c.h.b16 %v1066
    %v1786 = vunpack.c.l.b16 %v1067
    %v1787 = vunpack.c.h.b16 %v1067
    %v1788 = vunpack.c.l.b16 %v1068
    %v1789 = vunpack.c.h.b16 %v1068
    %v1790 = vunpack.c.l.b16 %v1069
    %v1791 = vunpack.c.h.b16 %v1069
    %v1792 = vunpack.c.l.b16 %v1070
    %v1793 = vunpack.c.h.b16 %v1070
    %v1794 = vunpack.c.l.b16 %v1071
    %v1795 = vunpack.c.h.b16 %v1071
    %v1796 = vunpack.c.l.b16 %v1072
    %v1797 = vunpack.c.h.b16 %v1072
    %v1798 = vunpack.c.l.b16 %v1073
    %v1799 = vunpack.c.h.b16 %v1073
    %v1800 = vunpack.c.l.b16 %v1074
    %v1801 = vunpack.c.h.b16 %v1074
    %v1802 = vunpack.c.l.b16 %v1075
    %v1803 = vunpack.c.h.b16 %v1075
    %v1804 = vunpack.c.l.b16 %v1076
    %v1805 = vunpack.c.h.b16 %v1076
    %v1806 = vunpack.c.l.b16 %v1077
    %v1807 = vunpack.c.h.b16 %v1077
    %v1808 = vunpack.c.l.b16 %v1078
    %v1809 = vunpack.c.h.b16 %v1078
    %v1810 = vunpack.c.l.b16 %v1079
    %v1811 = vunpack.c.h.b16 %v1079
    %v1812 = vunpack.c.l.b16 %v1080
    %v1813 = vunpack.c.h.b16 %v1080
    %v1814 = vunpack.c.l.b16 %v1081
    %v1815 = vunpack.c.h.b16 %v1081
    %v1816 = vunpack.c.l.b16 %v1082
    %v1817 = vunpack.c.h.b16 %v1082
    %v1818 = vunpack.c.l.b16 %v1083
    %v1819 = vunpack.c.h.b16 %v1083
    %v1820 = vunpack.c.l.b16 %v1084
    %v1821 = vunpack.c.h.b16 %v1084
    %v1822 = vunpack.c.l.b16 %v1085
    %v1823 = vunpack.c.h.b16 %v1085
    %v1824 = vunpack.c.l.b16 %v1086
    %v1825 = vunpack.c.h.b16 %v1086
    %v1826 = vunpack.c.l.b16 %v1087
    %v1827 = vunpack.c.h.b16 %v1087
    %v1828 = vunpack.c.l.b16 %v1088
    %v1829 = vunpack.c.h.b16 %v1088
    %v1830 = vunpack.c.l.b16 %v1089
    %v1831 = vunpack.c.h.b16 %v1089
    %v1832 = vunpack.c.l.b16 %v1090
    %v1833 = vunpack.c.h.b16 %v1090
    %v1834 = vunpack.c.l.b16 %v1091
    %v1835 = vunpack.c.h.b16 %v1091
    %v1836 = vunpack.c.l.b16 %v1092
    %v1837 = vunpack.c.h.b16 %v1092
    %v1838 = vunpack.c.l.b16 %v1093
    %v1839 = vunpack.c.h.b16 %v1093
    %v1840 = vunpack.c.l.b16 %v1094
    %v1841 = vunpack.c.h.b16 %v1094
    %v1842 = vunpack.c.l.b16 %v1095
    %v1843 = vunpack.c.h.b16 %v1095
    %v1844 = vunpack.c.l.b16 %v1096
    %v1845 = vunpack.c.h.b16 %v1096
    %v1846 = vunpack.c.l.b16 %v1097
    %v1847 = vunpack.c.h.b16 %v1097
    %v1848 = vunpack.c.l.b16 %v1098
    %v1849 = vunpack.c.h.b16 %v1098
    %v1850 = vunpack.c.l.b16 %v1099
    %v1851 = vunpack.c.h.b16 %v1099
    %v1852 = vunpack.c.l.b16 %v1100
    %v1853 = vunpack.c.h.b16 %v1100
    %v1854 = vunpack.c.l.b16 %v1101
    %v1855 = vunpack.c.h.b16 %v1101
    %v1856 = vunpack.c.l.b16 %v1102
    %v1857 = vunpack.c.h.b16 %v1102
    %v1858 = vunpack.c.l.b16 %v1103
    %v1859 = vunpack.c.h.b16 %v1103
    %v1860 = vunpack.c.l.b16 %v1104
    %v1861 = vunpack.c.h.b16 %v1104
    %v1862 = vunpack.c.l.b16 %v1105
    %v1863 = vunpack.c.h.b16 %v1105
    %v1864 = vunpack.c.l.b16 %v1106
    %v1865 = vunpack.c.h.b16 %v1106
    %v1866 = vunpack.c.l.b16 %v1107
    %v1867 = vunpack.c.h.b16 %v1107
    %v1868 = vunpack.c.l.b16 %v1108
    %v1869 = vunpack.c.h.b16 %v1108
    %v1870 = vunpack.c.l.b16 %v1109
    %v1871 = vunpack.c.h.b16 %v1109
    %v1872 = vunpack.c.l.b16 %v1110
    %v1873 = vunpack.c.h.b16 %v1110
    %v1874 = vunpack.c.l.b16 %v1111
    %v1875 = vunpack.c.h.b16 %v1111
    %v1876 = vunpack.c.l.b16 %v1112
    %v1877 = vunpack.c.h.b16 %v1112
    %v1878 = vunpack.c.l.b16 %v1113
    %v1879 = vunpack.c.h.b16 %v1113
    %v1880 = vunpack.c.l.b16 %v1114
    %v1881 = vunpack.c.h.b16 %v1114
    %v1882 = vunpack.c.l.b16 %v1115
    %v1883 = vunpack.c.h.b16 %v1115
    %v1884 = vunpack.c.l.b16 %v1116
    %v1885 = vunpack.c.h.b16 %v1116
    %v1886 = vunpack.c.l.b16 %v1117
    %v1887 = vunpack.c.h.b16 %v1117
    %v1888 = vunpack.c.l.b16 %v1118
    %v1889 = vunpack.c.h.b16 %v1118
    %v1890 = vunpack.c.l.b16 %v1119
    %v1891 = vunpack.c.h.b16 %v1119
    %v1892 = vunpack.c.l.b16 %v1120
    %v1893 = vunpack.c.h.b16 %v1120
    %v1894 = vunpack.c.l.b16 %v1121
    %v1895 = vunpack.c.h.b16 %v1121
    %v1896 = vpack.c.b16 %v1384, %v1380
    %v1897 = vpack.c.b16 %v1385, %v1381
    %v1898 = vpack.c.b16 %v1386, %v1382
    %v1899 = vpack.c.b16 %v1387, %v1383
    %v1900 = vpack.c.b16 %v1392, %v1388
    %v1901 = vpack.c.b16 %v1393, %v1389
    %v1902 = vpack.c.b16 %v1394, %v1390
    %v1903 = vpack.c.b16 %v1395, %v1391
    %v1904 = vpack.c.b16 %v1400, %v1396
    %v1905 = vpack.c.b16 %v1401, %v1397
    %v1906 = vpack.c.b16 %v1402, %v1398
    %v1907 = vpack.c.b16 %v1403, %v1399
    %v1908 = vpack.c.b16 %v1408, %v1404
    %v1909 = vpack.c.b16 %v1409, %v1405
    %v1910 = vpack.c.b16 %v1410, %v1406
    %v1911 = vpack.c.b16 %v1411, %v1407
    %v1912 = vpack.c.b16 %v1416, %v1412
    %v1913 = vpack.c.b16 %v1417, %v1413
    %v1914 = vpack.c.b16 %v1418, %v1414
    %v1915 = vpack.c.b16 %v1419, %v1415
    %v1916 = vpack.c.b16 %v1424, %v1420
    %v1917 = vpack.c.b16 %v1425, %v1421
    %v1918 = vpack.c.b16 %v1426, %v1422
    %v1919 = vpack.c.b16 %v1427, %v1423
    %v1920 = vpack.c.b16 %v1432, %v1428
    %v1921 = vpack.c.b16 %v1433, %v1429
    %v1922 = vpack.c.b16 %v1434, %v1430
    %v1923 = vpack.c.b16 %v1435, %v1431
    %v1924 = vpack.c.b16 %v1440, %v1436
    %v1925 = vpack.c.b16 %v1441, %v1437
    %v1926 = vpack.c.b16 %v1442, %v1438
    %v1927 = vpack.c.b16 %v1443, %v1439
    %v1928 = vpack.c.b16 %v1448, %v1444
    %v1929 = vpack.c.b16 %v1449, %v1445
    %v1930 = vpack.c.b16 %v1450, %v1446
    %v1931 = vpack.c.b16 %v1451, %v1447
    %v1932 = vpack.c.b16 %v1456, %v1452
    %v1933 = vpack.c.b16 %v1457, %v1453
    %v1934 = vpack.c.b16 %v1458, %v1454
    %v1935 = vpack.c.b16 %v1459, %v1455
    %v1936 = vpack.c.b16 %v1464, %v1460
    %v1937 = vpack.c.b16 %v1465, %v1461
    %v1938 = vpack.c.b16 %v1466, %v1462
    %v1939 = vpack.c.b16 %v1467, %v1463
    %v1940 = vpack.c.b16 %v1472, %v1468
    %v1941 = vpack.c.b16 %v1473, %v1469
    %v1942 = vpack.c.b16 %v1474, %v1470
    %v1943 = vpack.c.b16 %v1475, %v1471
    %v1944 = vpack.c.b16 %v1480, %v1476
    %v1945 = vpack.c.b16 %v1481, %v1477
    %v1946 = vpack.c.b16 %v1482, %v1478
    %v1947 = vpack.c.b16 %v1483, %v1479
    %v1948 = vpack.c.b16 %v1488, %v1484
    %v1949 = vpack.c.b16 %v1489, %v1485
    %v1950 = vpack.c.b16 %v1490, %v1486
    %v1951 = vpack.c.b16 %v1491, %v1487
    %v1952 = vpack.c.b16 %v1496, %v1492
    %v1953 = vpack.c.b16 %v1497, %v1493
    %v1954 = vpack.c.b16 %v1498, %v1494
    %v1955 = vpack.c.b16 %v1499, %v1495
    %v1956 = vpack.c.b16 %v1504, %v1500
    %v1957 = vpack.c.b16 %v1505, %v1501
    %v1958 = vpack.c.b16 %v1506, %v1502
    %v1959 = vpack.c.b16 %v1507, %v1503
    %v1960 = vpack.c.b16 %v1512, %v1508
    %v1961 = vpack.c.b16 %v1513, %v1509
    %v1962 = vpack.c.b16 %v1514, %v1510
    %v1963 = vpack.c.b16 %v1515, %v1511
    %v1964 = vpack.c.b16 %v1520, %v1516
    %v1965 = vpack.c.b16 %v1521, %v1517
    %v1966 = vpack.c.b16 %v1522, %v1518
    %v1967 = vpack.c.b16 %v1523, %v1519
    %v1968 = vpack.c.b16 %v1528, %v1524
    %v1969 = vpack.c.b16 %v1529, %v1525
    %v1970 = vpack.c.b16 %v1530, %v1526
    %v1971 = vpack.c.b16 %v1531, %v1527
    %v1972 = vpack.c.b16 %v1536, %v1532
    %v1973 = vpack.c.b16 %v1537, %v1533
    %v1974 = vpack.c.b16 %v1538, %v1534
    %v1975 = vpack.c.b16 %v1539, %v1535
    %v1976 = vpack.c.b16 %v1544, %v1540
    %v1977 = vpack.c.b16 %v1545, %v1541
    %v1978 = vpack.c.b16 %v1546, %v1542
    %v1979 = vpack.c.b16 %v1547, %v1543
    %v1980 = vpack.c.b16 %v1552, %v1548
    %v1981 = vpack.c.b16 %v1553, %v1549
    %v1982 = vpack.c.b16 %v1554, %v1550
    %v1983 = vpack.c.b16 %v1555, %v1551
    %v1984 = vpack.c.b16 %v1560, %v1556
    %v1985 = vpack.c.b16 %v1561, %v1557
    %v1986 = vpack.c.b16 %v1562, %v1558
    %v1987 = vpack.c.b16 %v1563, %v1559
    %v1988 = vpack.c.b16 %v1568, %v1564
    %v1989 = vpack.c.b16 %v1569, %v1565
    %v1990 = vpack.c.b16 %v1570, %v1566
    %v1991 = vpack.c.b16 %v1571, %v1567
    %v1992 = vpack.c.b16 %v1576, %v1572
    %v1993 = vpack.c.b16 %v1577, %v1573
    %v1994 = vpack.c.b16 %v1578, %v1574
    %v1995 = vpack.c.b16 %v1579, %v1575
    %v1996 = vpack.c.b16 %v1584, %v1580
    %v1997 = vpack.c.b16 %v1585, %v1581
    %v1998 = vpack.c.b16 %v1586, %v1582
    %v1999 = vpack.c.b16 %v1587, %v1583
    %v2000 = vpack.c.b16 %v1592, %v1588
    %v2001 = vpack.c.b16 %v1593, %v1589
    %v2002 = vpack.c.b16 %v1594, %v1590
    %v2003 = vpack.c.b16 %v1595, %v1591
    %v2004 = vpack.c.b16 %v1600, %v1596
    %v2005 = vpack.c.b16 %v1601, %v1597
    %v2006 = vpack.c.b16 %v1602, %v1598
    %v2007 = vpack.c.b16 %v1603, %v1599
    %v2008 = vpack.c.b16 %v1608, %v1604
    %v2009 = vpack.c.b16 %v1609, %v1605
    %v2010 = vpack.c.b16 %v1610, %v1606
    %v2011 = vpack.c.b16 %v1611, %v1607
    %v2012 = vpack.c.b16 %v1616, %v1612
    %v2013 = vpack.c.b16 %v1617, %v1613
    %v2014 = vpack.c.b16 %v1618, %v1614
    %v2015 = vpack.c.b16 %v1619, %v1615
    %v2016 = vpack.c.b16 %v1624, %v1620
    %v2017 = vpack.c.b16 %v1625, %v1621
    %v2018 = vpack.c.b16 %v1626, %v1622
    %v2019 = vpack.c.b16 %v1627, %v1623
    %v2020 = vpack.c.b16 %v1632, %v1628
    %v2021 = vpack.c.b16 %v1633, %v1629
    %v2022 = vpack.c.b16 %v1634, %v1630
    %v2023 = vpack.c.b16 %v1635, %v1631
    %v2024 = vpack.c.b16 %v1640, %v1636
    %v2025 = vpack.c.b16 %v1641, %v1637
    %v2026 = vpack.c.b16 %v1642, %v1638
    %v2027 = vpack.c.b16 %v1643, %v1639
    %v2028 = vpack.c.b16 %v1648, %v1644
    %v2029 = vpack.c.b16 %v1649, %v1645
    %v2030 = vpack.c.b16 %v1650, %v1646
    %v2031 = vpack.c.b16 %v1651, %v1647
    %v2032 = vpack.c.b16 %v1656, %v1652
    %v2033 = vpack.c.b16 %v1657, %v1653
    %v2034 = vpack.c.b16 %v1658, %v1654
    %v2035 = vpack.c.b16 %v1659, %v1655
    %v2036 = vpack.c.b16 %v1664, %v1660
    %v2037 = vpack.c.b16 %v1665, %v1661
    %v2038 = vpack.c.b16 %v1666, %v1662
    %v2039 = vpack.c.b16 %v1667, %v1663
    %v2040 = vpack.c.b16 %v1672, %v1668
    %v2041 = vpack.c.b16 %v1673, %v1669
    %v2042 = vpack.c.b16 %v1674, %v1670
    %v2043 = vpack.c.b16 %v1675, %v1671
    %v2044 = vpack.c.b16 %v1680, %v1676
    %v2045 = vpack.c.b16 %v1681, %v1677
    %v2046 = vpack.c.b16 %v1682, %v1678
    %v2047 = vpack.c.b16 %v1683, %v1679
    %v2048 = vpack.c.b16 %v1688, %v1684
    %v2049 = vpack.c.b16 %v1689, %v1685
    %v2050 = vpack.c.b16 %v1690, %v1686
    %v2051 = vpack.c.b16 %v1691, %v1687
    %v2052 = vpack.c.b16 %v1696, %v1692
    %v2053 = vpack.c.b16 %v1697, %v1693
    %v2054 = vpack.c.b16 %v1698, %v1694
    %v2055 = vpack.c.b16 %v1699, %v1695
    %v2056 = vpack.c.b16 %v1704, %v1700
    %v2057 = vpack.c.b16 %v1705, %v1701
    %v2058 = vpack.c.b16 %v1706, %v1702
    %v2059 = vpack.c.b16 %v1707, %v1703
    %v2060 = vpack.c.b16 %v1712, %v1708
    %v2061 = vpack.c.b16 %v1713, %v1709
    %v2062 = vpack.c.b16 %v1714, %v1710
    %v2063 = vpack.c.b16 %v1715, %v1711
    %v2064 = vpack.c.b16 %v1720, %v1716
    %v2065 = vpack.c.b16 %v1721, %v1717
    %v2066 = vpack.c.b16 %v1722, %v1718
    %v2067 = vpack.c.b16 %v1723, %v1719
    %v2068 = vpack.c.b16 %v1728, %v1724
    %v2069 = vpack.c.b16 %v1729, %v1725
    %v2070 = vpack.c.b16 %v1730, %v1726
    %v2071 = vpack.c.b16 %v1731, %v1727
    %v2072 = vpack.c.b16 %v1736, %v1732
    %v2073 = vpack.c.b16 %v1737, %v1733
    %v2074 = vpack.c.b16 %v1738, %v1734
    %v2075 = vpack.c.b16 %v1739, %v1735
    %v2076 = vpack.c.b16 %v1744, %v1740
    %v2077 = vpack.c.b16 %v1745, %v1741
    %v2078 = vpack.c.b16 %v1746, %v1742
    %v2079 = vpack.c.b16 %v1747, %v1743
    %v2080 = vpack.c.b16 %v1752, %v1748
    %v2081 = vpack.c.b16 %v1753, %v1749
    %v2082 = vpack.c.b16 %v1754, %v1750
    %v2083 = vpack.c.b16 %v1755, %v1751
    %v2084 = vpack.c.b16 %v1760, %v1756
    %v2085 = vpack.c.b16 %v1761, %v1757
    %v2086 = vpack.c.b16 %v1762, %v1758
    %v2087 = vpack.c.b16 %v1763, %v1759
    %v2088 = vpack.c.b16 %v1768, %v1764
    %v2089 = vpack.c.b16 %v1769, %v1765
    %v2090 = vpack.c.b16 %v1770, %v1766
    %v2091 = vpack.c.b16 %v1771, %v1767
    %v2092 = vpack.c.b16 %v1776, %v1772
    %v2093 = vpack.c.b16 %v1777, %v1773
    %v2094 = vpack.c.b16 %v1778, %v1774
    %v2095 = vpack.c.b16 %v1779, %v1775
    %v2096 = vpack.c.b16 %v1784, %v1780
    %v2097 = vpack.c.b16 %v1785, %v1781
    %v2098 = vpack.c.b16 %v1786, %v1782
    %v2099 = vpack.c.b16 %v1787, %v1783
    %v2100 = vpack.c.b16 %v1792, %v1788
    %v2101 = vpack.c.b16 %v1793, %v1789
    %v2102 = vpack.c.b16 %v1794, %v1790
    %v2103 = vpack.c.b16 %v1795, %v1791
    %v2104 = vpack.c.b16 %v1800, %v1796
    %v2105 = vpack.c.b16 %v1801, %v1797
    %v2106 = vpack.c.b16 %v1802, %v1798
    %v2107 = vpack.c.b16 %v1803, %v1799
    %v2108 = vpack.c.b16 %v1808, %v1804
    %v2109 = vpack.c.b16 %v1809, %v1805
    %v2110 = vpack.c.b16 %v1810, %v1806
    %v2111 = vpack.c.b16 %v1811, %v1807
    %v2112 = vpack.c.b16 %v1816, %v1812
    %v2113 = vpack.c.b16 %v1817, %v1813
    %v2114 = vpack.c.b16 %v1818, %v1814
    %v2115 = vpack.c.b16 %v1819, %v1815
    %v2116 = vpack.c.b16 %v1824, %v1820
    %v2117 = vpack.c.b16 %v1825, %v1821
    %v2118 = vpack.c.b16 %v1826, %v1822
    %v2119 = vpack.c.b16 %v1827, %v1823
    %v2120 = vpack.c.b16 %v1832, %v1828
    %v2121 = vpack.c.b16 %v1833, %v1829
    %v2122 = vpack.c.b16 %v1834, %v1830
    %v2123 = vpack.c.b16 %v1835, %v1831
    %v2124 = vpack.c.b16 %v1840, %v1836
    %v2125 = vpack.c.b16 %v1841, %v1837
    %v2126 = vpack.c.b16 %v1842, %v1838
    %v2127 = vpack.c.b16 %v1843, %v1839
    %v2128 = vpack.c.b16 %v1848, %v1844
    %v2129 = vpack.c.b16 %v1849, %v1845
    %v2130 = vpack.c.b16 %v1850, %v1846
    %v2131 = vpack.c.b16 %v1851, %v1847
    %v2132 = vpack.c.b16 %v1856, %v1852
    %v2133 = vpack.c.b16 %v1857, %v1853
    %v2134 = vpack.c.b16 %v1858, %v1854
    %v2135 = vpack.c.b16 %v1859, %v1855
    %v2136 = vpack.c.b16 %v1864, %v1860
    %v2137 = vpack.c.b16 %v1865, %v1861
    %v2138 = vpack.c.b16 %v1866, %v1862
    %v2139 = vpack.c.b16 %v1867, %v1863
    %v2140 = vpack.c.b16 %v1872, %v1868
    %v2141 = vpack.c.b16 %v1873, %v1869
    %v2142 = vpack.c.b16 %v1874, %v1870
    %v2143 = vpack.c.b16 %v1875, %v1871
    %v2144 = vpack.c.b16 %v1880, %v1876
    %v2145 = vpack.c.b16 %v1881, %v1877
    %v2146 = vpack.c.b16 %v1882, %v1878
    %v2147 = vpack.c.b16 %v1883, %v1879
    %v2148 = vpack.c.b16 %v1888, %v1884
    %v2149 = vpack.c.b16 %v1889, %v1885
    %v2150 = vpack.c.b16 %v1890, %v1886
    %v2151 = vpack.c.b16 %v1891, %v1887
    %v2152 = vpack.c.b16 %v1892, %v1892
    %v2153 = vpack.c.b16 %v1893, %v1893
    %v2154 = vpack.c.b16 %v1894, %v1894
    %v2155 = vpack.c.b16 %v1895, %v1895
    %vm2412 = vcmask 7168
    %v2414 = vsel %vm2412, %v596, 0
    %v2417 = vsel %vm2412, %v605, 0
    %vm2419 = vcmask 1040384
    %v2420 = vsel 0, 4294967295, 65535
    %v2421 = vsel %vm2419, %v2420, 0
    %v2423 = vand.u32 %v2152, %v2421
    %v2426 = vand.u32 %v2153, %v2421
    %v2429 = vand.u32 %v2154, %v2421
    %v2432 = vand.u32 %v2155, %v2421
    %2434 = vmatprep.subr.bf16.mxu0 %v1925
    %2435 = vmatpush1.bf16.msra.mxu0 %v1924
    %2436 = vmatprep.subr.bf16.mxu0 %v1921
    %2437 = vmatpush1.bf16.msra.mxu0 %v1920
    %2438 = vmatprep.subr.bf16.mxu0 %v1917
    %2439 = vmatpush1.bf16.msra.mxu0 %v1916
    %2440 = vmatprep.subr.bf16.mxu0 %v1913
    %2441 = vmatpush1.bf16.msra.mxu0 %v1912
    %2442 = vmatprep.subr.bf16.mxu0 %v1909
    %2443 = vmatpush1.bf16.msra.mxu0 %v1908
    %2444 = vmatprep.subr.bf16.mxu0 %v1905
    %2445 = vmatpush1.bf16.msra.mxu0 %v1904
    %2446 = vmatprep.subr.bf16.mxu0 %v1901
    %2447 = vmatpush1.bf16.msra.mxu0 %v1900
    %2448 = vmatprep.subr.bf16.mxu0 %v1897
    %2449 = vmatpush1.bf16.msra.mxu0 %v1896
    %2450 = vmatprep.subr.bf16.mxu0 %v1957
    %2451 = vmatpush2.bf16.msra.mxu0 %v1956
    %2452 = vmatprep.subr.bf16.mxu0 %v1953
    %2453 = vmatpush2.bf16.msra.mxu0 %v1952
    %2454 = vmatprep.subr.bf16.mxu0 %v1949
    %2455 = vmatpush2.bf16.msra.mxu0 %v1948
    %2456 = vmatprep.subr.bf16.mxu0 %v1945
    %2457 = vmatpush2.bf16.msra.mxu0 %v1944
    %2458 = vmatprep.subr.bf16.mxu0 %v1941
    %2459 = vmatpush2.bf16.msra.mxu0 %v1940
    %2460 = vmatprep.subr.bf16.mxu0 %v1937
    %2461 = vmatpush2.bf16.msra.mxu0 %v1936
    %2462 = vmatprep.subr.bf16.mxu0 %v1933
    %2463 = vmatpush2.bf16.msra.mxu0 %v1932
    %2464 = vmatprep.subr.bf16.mxu0 %v1929
    %2465 = vmatpush2.bf16.msra.mxu0 %v1928
    %2466 = vmatprep.mubr.bf16.mxu0 %v589
    %2467 = vmatmul.mubr.bf16.gmra.mxu0 %v588
    %v2468 = vpop.f32.mrf.mxu0
    %v2469 = vadd.f32 0.0, %v2468
    %v2470 = vpop.f32.mrf.mxu0
    %v2471 = vadd.f32 0.0, %v2470
    %v2472 = vpop.f32.mrf.mxu0
    %v2473 = vadd.f32 0.0, %v2472
    %v2474 = vpop.f32.mrf.mxu0
    %v2475 = vadd.f32 0.0, %v2474
    %2476 = vmatprep.mubr.bf16.mxu0 %v598
    %2477 = vmatmul.mubr.bf16.gmra.mxu0 %v597
    %v2478 = vpop.f32.mrf.mxu0
    %v2479 = vadd.f32 0.0, %v2478
    %v2480 = vpop.f32.mrf.mxu0
    %v2481 = vadd.f32 0.0, %v2480
    %v2482 = vpop.f32.mrf.mxu0
    %v2483 = vadd.f32 0.0, %v2482
    %v2484 = vpop.f32.mrf.mxu0
    %v2485 = vadd.f32 0.0, %v2484
    %2486 = vdwg.mxu0
    %2487 = vmatprep.subr.bf16.mxu0 %v1989
    %2488 = vmatpush1.bf16.msra.mxu0 %v1988
    %2489 = vmatprep.subr.bf16.mxu0 %v1985
    %2490 = vmatpush1.bf16.msra.mxu0 %v1984
    %2491 = vmatprep.subr.bf16.mxu0 %v1981
    %2492 = vmatpush1.bf16.msra.mxu0 %v1980
    %2493 = vmatprep.subr.bf16.mxu0 %v1977
    %2494 = vmatpush1.bf16.msra.mxu0 %v1976
    %2495 = vmatprep.subr.bf16.mxu0 %v1973
    %2496 = vmatpush1.bf16.msra.mxu0 %v1972
    %2497 = vmatprep.subr.bf16.mxu0 %v1969
    %2498 = vmatpush1.bf16.msra.mxu0 %v1968
    %2499 = vmatprep.subr.bf16.mxu0 %v1965
    %2500 = vmatpush1.bf16.msra.mxu0 %v1964
    %2501 = vmatprep.subr.bf16.mxu0 %v1961
    %2502 = vmatpush1.bf16.msra.mxu0 %v1960
    %2503 = vmatprep.subr.bf16.mxu0 %v2021
    %2504 = vmatpush2.bf16.msra.mxu0 %v2020
    %2505 = vmatprep.subr.bf16.mxu0 %v2017
    %2506 = vmatpush2.bf16.msra.mxu0 %v2016
    %2507 = vmatprep.subr.bf16.mxu0 %v2013
    %2508 = vmatpush2.bf16.msra.mxu0 %v2012
    %2509 = vmatprep.subr.bf16.mxu0 %v2009
    %2510 = vmatpush2.bf16.msra.mxu0 %v2008
    %2511 = vmatprep.subr.bf16.mxu0 %v2005
    %2512 = vmatpush2.bf16.msra.mxu0 %v2004
    %2513 = vmatprep.subr.bf16.mxu0 %v2001
    %2514 = vmatpush2.bf16.msra.mxu0 %v2000
    %2515 = vmatprep.subr.bf16.mxu0 %v1997
    %2516 = vmatpush2.bf16.msra.mxu0 %v1996
    %2517 = vmatprep.subr.bf16.mxu0 %v1993
    %2518 = vmatpush2.bf16.msra.mxu0 %v1992
    %2519 = vmatprep.mubr.bf16.mxu0 %v591
    %2520 = vmatmul.mubr.bf16.gmra.mxu0 %v590
    %v2521 = vpop.f32.mrf.mxu0
    %v2522 = vadd.f32 %v2469, %v2521
    %v2523 = vpop.f32.mrf.mxu0
    %v2524 = vadd.f32 %v2471, %v2523
    %v2525 = vpop.f32.mrf.mxu0
    %v2526 = vadd.f32 %v2473, %v2525
    %v2527 = vpop.f32.mrf.mxu0
    %v2528 = vadd.f32 %v2475, %v2527
    %2529 = vmatprep.mubr.bf16.mxu0 %v600
    %2530 = vmatmul.mubr.bf16.gmra.mxu0 %v599
    %v2531 = vpop.f32.mrf.mxu0
    %v2532 = vadd.f32 %v2479, %v2531
    %v2533 = vpop.f32.mrf.mxu0
    %v2534 = vadd.f32 %v2481, %v2533
    %v2535 = vpop.f32.mrf.mxu0
    %v2536 = vadd.f32 %v2483, %v2535
    %v2537 = vpop.f32.mrf.mxu0
    %v2538 = vadd.f32 %v2485, %v2537
    %2539 = vdwg.mxu0
    %2540 = vmatprep.subr.bf16.mxu0 %v2053
    %2541 = vmatpush1.bf16.msra.mxu0 %v2052
    %2542 = vmatprep.subr.bf16.mxu0 %v2049
    %2543 = vmatpush1.bf16.msra.mxu0 %v2048
    %2544 = vmatprep.subr.bf16.mxu0 %v2045
    %2545 = vmatpush1.bf16.msra.mxu0 %v2044
    %2546 = vmatprep.subr.bf16.mxu0 %v2041
    %2547 = vmatpush1.bf16.msra.mxu0 %v2040
    %2548 = vmatprep.subr.bf16.mxu0 %v2037
    %2549 = vmatpush1.bf16.msra.mxu0 %v2036
    %2550 = vmatprep.subr.bf16.mxu0 %v2033
    %2551 = vmatpush1.bf16.msra.mxu0 %v2032
    %2552 = vmatprep.subr.bf16.mxu0 %v2029
    %2553 = vmatpush1.bf16.msra.mxu0 %v2028
    %2554 = vmatprep.subr.bf16.mxu0 %v2025
    %2555 = vmatpush1.bf16.msra.mxu0 %v2024
    %2556 = vmatprep.subr.bf16.mxu0 %v2085
    %2557 = vmatpush2.bf16.msra.mxu0 %v2084
    %2558 = vmatprep.subr.bf16.mxu0 %v2081
    %2559 = vmatpush2.bf16.msra.mxu0 %v2080
    %2560 = vmatprep.subr.bf16.mxu0 %v2077
    %2561 = vmatpush2.bf16.msra.mxu0 %v2076
    %2562 = vmatprep.subr.bf16.mxu0 %v2073
    %2563 = vmatpush2.bf16.msra.mxu0 %v2072
    %2564 = vmatprep.subr.bf16.mxu0 %v2069
    %2565 = vmatpush2.bf16.msra.mxu0 %v2068
    %2566 = vmatprep.subr.bf16.mxu0 %v2065
    %2567 = vmatpush2.bf16.msra.mxu0 %v2064
    %2568 = vmatprep.subr.bf16.mxu0 %v2061
    %2569 = vmatpush2.bf16.msra.mxu0 %v2060
    %2570 = vmatprep.subr.bf16.mxu0 %v2057
    %2571 = vmatpush2.bf16.msra.mxu0 %v2056
    %2572 = vmatprep.mubr.bf16.mxu0 %v593
    %2573 = vmatmul.mubr.bf16.gmra.mxu0 %v592
    %v2574 = vpop.f32.mrf.mxu0
    %v2575 = vadd.f32 %v2522, %v2574
    %v2576 = vpop.f32.mrf.mxu0
    %v2577 = vadd.f32 %v2524, %v2576
    %v2578 = vpop.f32.mrf.mxu0
    %v2579 = vadd.f32 %v2526, %v2578
    %v2580 = vpop.f32.mrf.mxu0
    %v2581 = vadd.f32 %v2528, %v2580
    %2582 = vmatprep.mubr.bf16.mxu0 %v602
    %2583 = vmatmul.mubr.bf16.gmra.mxu0 %v601
    %v2584 = vpop.f32.mrf.mxu0
    %v2585 = vadd.f32 %v2532, %v2584
    %v2586 = vpop.f32.mrf.mxu0
    %v2587 = vadd.f32 %v2534, %v2586
    %v2588 = vpop.f32.mrf.mxu0
    %v2589 = vadd.f32 %v2536, %v2588
    %v2590 = vpop.f32.mrf.mxu0
    %v2591 = vadd.f32 %v2538, %v2590
    %2592 = vdwg.mxu0
    %2593 = vmatprep.subr.bf16.mxu0 %v2117
    %2594 = vmatpush1.bf16.msra.mxu0 %v2116
    %2595 = vmatprep.subr.bf16.mxu0 %v2113
    %2596 = vmatpush1.bf16.msra.mxu0 %v2112
    %2597 = vmatprep.subr.bf16.mxu0 %v2109
    %2598 = vmatpush1.bf16.msra.mxu0 %v2108
    %2599 = vmatprep.subr.bf16.mxu0 %v2105
    %2600 = vmatpush1.bf16.msra.mxu0 %v2104
    %2601 = vmatprep.subr.bf16.mxu0 %v2101
    %2602 = vmatpush1.bf16.msra.mxu0 %v2100
    %2603 = vmatprep.subr.bf16.mxu0 %v2097
    %2604 = vmatpush1.bf16.msra.mxu0 %v2096
    %2605 = vmatprep.subr.bf16.mxu0 %v2093
    %2606 = vmatpush1.bf16.msra.mxu0 %v2092
    %2607 = vmatprep.subr.bf16.mxu0 %v2089
    %2608 = vmatpush1.bf16.msra.mxu0 %v2088
    %2609 = vmatprep.subr.bf16.mxu0 %v2149
    %2610 = vmatpush2.bf16.msra.mxu0 %v2148
    %2611 = vmatprep.subr.bf16.mxu0 %v2145
    %2612 = vmatpush2.bf16.msra.mxu0 %v2144
    %2613 = vmatprep.subr.bf16.mxu0 %v2141
    %2614 = vmatpush2.bf16.msra.mxu0 %v2140
    %2615 = vmatprep.subr.bf16.mxu0 %v2137
    %2616 = vmatpush2.bf16.msra.mxu0 %v2136
    %2617 = vmatprep.subr.bf16.mxu0 %v2133
    %2618 = vmatpush2.bf16.msra.mxu0 %v2132
    %2619 = vmatprep.subr.bf16.mxu0 %v2129
    %2620 = vmatpush2.bf16.msra.mxu0 %v2128
    %2621 = vmatprep.subr.bf16.mxu0 %v2125
    %2622 = vmatpush2.bf16.msra.mxu0 %v2124
    %2623 = vmatprep.subr.bf16.mxu0 %v2121
    %2624 = vmatpush2.bf16.msra.mxu0 %v2120
    %2625 = vmatprep.mubr.bf16.mxu0 %v595
    %2626 = vmatmul.mubr.bf16.gmra.mxu0 %v594
    %v2627 = vpop.f32.mrf.mxu0
    %v2628 = vadd.f32 %v2575, %v2627
    %v2629 = vpop.f32.mrf.mxu0
    %v2630 = vadd.f32 %v2577, %v2629
    %v2631 = vpop.f32.mrf.mxu0
    %v2632 = vadd.f32 %v2579, %v2631
    %v2633 = vpop.f32.mrf.mxu0
    %v2634 = vadd.f32 %v2581, %v2633
    %2635 = vmatprep.mubr.bf16.mxu0 %v604
    %2636 = vmatmul.mubr.bf16.gmra.mxu0 %v603
    %v2637 = vpop.f32.mrf.mxu0
    %v2638 = vadd.f32 %v2585, %v2637
    %v2639 = vpop.f32.mrf.mxu0
    %v2640 = vadd.f32 %v2587, %v2639
    %v2641 = vpop.f32.mrf.mxu0
    %v2642 = vadd.f32 %v2589, %v2641
    %v2643 = vpop.f32.mrf.mxu0
    %v2644 = vadd.f32 %v2591, %v2643
    %2645 = vdwg.mxu0
    %2646 = vmatprep.subr.bf16.mxu0 0
    %2647 = vmatpush1.bf16.msra.mxu0 0
    %2648 = vmatprep.subr.bf16.mxu0 0
    %2649 = vmatpush1.bf16.msra.mxu0 0
    %2650 = vmatprep.subr.bf16.mxu0 0
    %2651 = vmatpush1.bf16.msra.mxu0 0
    %2652 = vmatprep.subr.bf16.mxu0 0
    %2653 = vmatpush1.bf16.msra.mxu0 0
    %2654 = vmatprep.subr.bf16.mxu0 0
    %2655 = vmatpush1.bf16.msra.mxu0 0
    %2656 = vmatprep.subr.bf16.mxu0 0
    %2657 = vmatpush1.bf16.msra.mxu0 0
    %2658 = vmatprep.subr.bf16.mxu0 0
    %2659 = vmatpush1.bf16.msra.mxu0 0
    %2660 = vmatprep.subr.bf16.mxu0 %v2426
    %2661 = vmatpush1.bf16.msra.mxu0 %v2423
    %2662 = vmatprep.subr.bf16.mxu0 0
    %2663 = vmatpush2.bf16.msra.mxu0 0
    %2664 = vmatprep.subr.bf16.mxu0 0
    %2665 = vmatpush2.bf16.msra.mxu0 0
    %2666 = vmatprep.subr.bf16.mxu0 0
    %2667 = vmatpush2.bf16.msra.mxu0 0
    %2668 = vmatprep.subr.bf16.mxu0 0
    %2669 = vmatpush2.bf16.msra.mxu0 0
    %2670 = vmatprep.subr.bf16.mxu0 0
    %2671 = vmatpush2.bf16.msra.mxu0 0
    %2672 = vmatprep.subr.bf16.mxu0 0
    %2673 = vmatpush2.bf16.msra.mxu0 0
    %2674 = vmatprep.subr.bf16.mxu0 0
    %2675 = vmatpush2.bf16.msra.mxu0 0
    %2676 = vmatprep.subr.bf16.mxu0 0
    %2677 = vmatpush2.bf16.msra.mxu0 0
    %2678 = vmatprep.mubr.bf16.mxu0 0
    %2679 = vmatmul.mubr.bf16.gmra.mxu0 %v2414
    %v2680 = vpop.f32.mrf.mxu0
    %v2681 = vadd.f32 %v2628, %v2680
    %v2682 = vpop.f32.mrf.mxu0
    %v2683 = vadd.f32 %v2630, %v2682
    %v2684 = vpop.f32.mrf.mxu0
    %v2685 = vadd.f32 %v2632, %v2684
    %v2686 = vpop.f32.mrf.mxu0
    %v2687 = vadd.f32 %v2634, %v2686
    %2688 = vmatprep.mubr.bf16.mxu0 0
    %2689 = vmatmul.mubr.bf16.gmra.mxu0 %v2417
    %v2690 = vpop.f32.mrf.mxu0
    %v2691 = vadd.f32 %v2638, %v2690
    %v2692 = vpop.f32.mrf.mxu0
    %v2693 = vadd.f32 %v2640, %v2692
    %v2694 = vpop.f32.mrf.mxu0
    %v2695 = vadd.f32 %v2642, %v2694
    %v2696 = vpop.f32.mrf.mxu0
    %v2697 = vadd.f32 %v2644, %v2696
    %2698 = vdwg.mxu0
    %2699 = vmatprep.subr.bf16.mxu0 %v1927
    %2700 = vmatpush1.bf16.msra.mxu0 %v1926
    %2701 = vmatprep.subr.bf16.mxu0 %v1923
    %2702 = vmatpush1.bf16.msra.mxu0 %v1922
    %2703 = vmatprep.subr.bf16.mxu0 %v1919
    %2704 = vmatpush1.bf16.msra.mxu0 %v1918
    %2705 = vmatprep.subr.bf16.mxu0 %v1915
    %2706 = vmatpush1.bf16.msra.mxu0 %v1914
    %2707 = vmatprep.subr.bf16.mxu0 %v1911
    %2708 = vmatpush1.bf16.msra.mxu0 %v1910
    %2709 = vmatprep.subr.bf16.mxu0 %v1907
    %2710 = vmatpush1.bf16.msra.mxu0 %v1906
    %2711 = vmatprep.subr.bf16.mxu0 %v1903
    %2712 = vmatpush1.bf16.msra.mxu0 %v1902
    %2713 = vmatprep.subr.bf16.mxu0 %v1899
    %2714 = vmatpush1.bf16.msra.mxu0 %v1898
    %2715 = vmatprep.subr.bf16.mxu0 %v1959
    %2716 = vmatpush2.bf16.msra.mxu0 %v1958
    %2717 = vmatprep.subr.bf16.mxu0 %v1955
    %2718 = vmatpush2.bf16.msra.mxu0 %v1954
    %2719 = vmatprep.subr.bf16.mxu0 %v1951
    %2720 = vmatpush2.bf16.msra.mxu0 %v1950
    %2721 = vmatprep.subr.bf16.mxu0 %v1947
    %2722 = vmatpush2.bf16.msra.mxu0 %v1946
    %2723 = vmatprep.subr.bf16.mxu0 %v1943
    %2724 = vmatpush2.bf16.msra.mxu0 %v1942
    %2725 = vmatprep.subr.bf16.mxu0 %v1939
    %2726 = vmatpush2.bf16.msra.mxu0 %v1938
    %2727 = vmatprep.subr.bf16.mxu0 %v1935
    %2728 = vmatpush2.bf16.msra.mxu0 %v1934
    %2729 = vmatprep.subr.bf16.mxu0 %v1931
    %2730 = vmatpush2.bf16.msra.mxu0 %v1930
    %2731 = vmatprep.mubr.bf16.mxu0 %v589
    %2732 = vmatmul.mubr.bf16.gmra.mxu0 %v588
    %v2733 = vpop.f32.mrf.mxu0
    %v2734 = vadd.f32 0.0, %v2733
    %v2735 = vpop.f32.mrf.mxu0
    %v2736 = vadd.f32 0.0, %v2735
    %v2737 = vpop.f32.mrf.mxu0
    %v2738 = vadd.f32 0.0, %v2737
    %v2739 = vpop.f32.mrf.mxu0
    %v2740 = vadd.f32 0.0, %v2739
    %2741 = vmatprep.mubr.bf16.mxu0 %v598
    %2742 = vmatmul.mubr.bf16.gmra.mxu0 %v597
    %v2743 = vpop.f32.mrf.mxu0
    %v2744 = vadd.f32 0.0, %v2743
    %v2745 = vpop.f32.mrf.mxu0
    %v2746 = vadd.f32 0.0, %v2745
    %v2747 = vpop.f32.mrf.mxu0
    %v2748 = vadd.f32 0.0, %v2747
    %v2749 = vpop.f32.mrf.mxu0
    %v2750 = vadd.f32 0.0, %v2749
    %2751 = vdwg.mxu0
    %2752 = vmatprep.subr.bf16.mxu0 %v1991
    %2753 = vmatpush1.bf16.msra.mxu0 %v1990
    %2754 = vmatprep.subr.bf16.mxu0 %v1987
    %2755 = vmatpush1.bf16.msra.mxu0 %v1986
    %2756 = vmatprep.subr.bf16.mxu0 %v1983
    %2757 = vmatpush1.bf16.msra.mxu0 %v1982
    %2758 = vmatprep.subr.bf16.mxu0 %v1979
    %2759 = vmatpush1.bf16.msra.mxu0 %v1978
    %2760 = vmatprep.subr.bf16.mxu0 %v1975
    %2761 = vmatpush1.bf16.msra.mxu0 %v1974
    %2762 = vmatprep.subr.bf16.mxu0 %v1971
    %2763 = vmatpush1.bf16.msra.mxu0 %v1970
    %2764 = vmatprep.subr.bf16.mxu0 %v1967
    %2765 = vmatpush1.bf16.msra.mxu0 %v1966
    %2766 = vmatprep.subr.bf16.mxu0 %v1963
    %2767 = vmatpush1.bf16.msra.mxu0 %v1962
    %2768 = vmatprep.subr.bf16.mxu0 %v2023
    %2769 = vmatpush2.bf16.msra.mxu0 %v2022
    %2770 = vmatprep.subr.bf16.mxu0 %v2019
    %2771 = vmatpush2.bf16.msra.mxu0 %v2018
    %2772 = vmatprep.subr.bf16.mxu0 %v2015
    %2773 = vmatpush2.bf16.msra.mxu0 %v2014
    %2774 = vmatprep.subr.bf16.mxu0 %v2011
    %2775 = vmatpush2.bf16.msra.mxu0 %v2010
    %2776 = vmatprep.subr.bf16.mxu0 %v2007
    %2777 = vmatpush2.bf16.msra.mxu0 %v2006
    %2778 = vmatprep.subr.bf16.mxu0 %v2003
    %2779 = vmatpush2.bf16.msra.mxu0 %v2002
    %2780 = vmatprep.subr.bf16.mxu0 %v1999
    %2781 = vmatpush2.bf16.msra.mxu0 %v1998
    %2782 = vmatprep.subr.bf16.mxu0 %v1995
    %2783 = vmatpush2.bf16.msra.mxu0 %v1994
    %2784 = vmatprep.mubr.bf16.mxu0 %v591
    %2785 = vmatmul.mubr.bf16.gmra.mxu0 %v590
    %v2786 = vpop.f32.mrf.mxu0
    %v2787 = vadd.f32 %v2734, %v2786
    %v2788 = vpop.f32.mrf.mxu0
    %v2789 = vadd.f32 %v2736, %v2788
    %v2790 = vpop.f32.mrf.mxu0
    %v2791 = vadd.f32 %v2738, %v2790
    %v2792 = vpop.f32.mrf.mxu0
    %v2793 = vadd.f32 %v2740, %v2792
    %2794 = vmatprep.mubr.bf16.mxu0 %v600
    %2795 = vmatmul.mubr.bf16.gmra.mxu0 %v599
    %v2796 = vpop.f32.mrf.mxu0
    %v2797 = vadd.f32 %v2744, %v2796
    %v2798 = vpop.f32.mrf.mxu0
    %v2799 = vadd.f32 %v2746, %v2798
    %v2800 = vpop.f32.mrf.mxu0
    %v2801 = vadd.f32 %v2748, %v2800
    %v2802 = vpop.f32.mrf.mxu0
    %v2803 = vadd.f32 %v2750, %v2802
    %2804 = vdwg.mxu0
    %2805 = vmatprep.subr.bf16.mxu0 %v2055
    %2806 = vmatpush1.bf16.msra.mxu0 %v2054
    %2807 = vmatprep.subr.bf16.mxu0 %v2051
    %2808 = vmatpush1.bf16.msra.mxu0 %v2050
    %2809 = vmatprep.subr.bf16.mxu0 %v2047
    %2810 = vmatpush1.bf16.msra.mxu0 %v2046
    %2811 = vmatprep.subr.bf16.mxu0 %v2043
    %2812 = vmatpush1.bf16.msra.mxu0 %v2042
    %2813 = vmatprep.subr.bf16.mxu0 %v2039
    %2814 = vmatpush1.bf16.msra.mxu0 %v2038
    %2815 = vmatprep.subr.bf16.mxu0 %v2035
    %2816 = vmatpush1.bf16.msra.mxu0 %v2034
    %2817 = vmatprep.subr.bf16.mxu0 %v2031
    %2818 = vmatpush1.bf16.msra.mxu0 %v2030
    %2819 = vmatprep.subr.bf16.mxu0 %v2027
    %2820 = vmatpush1.bf16.msra.mxu0 %v2026
    %2821 = vmatprep.subr.bf16.mxu0 %v2087
    %2822 = vmatpush2.bf16.msra.mxu0 %v2086
    %2823 = vmatprep.subr.bf16.mxu0 %v2083
    %2824 = vmatpush2.bf16.msra.mxu0 %v2082
    %2825 = vmatprep.subr.bf16.mxu0 %v2079
    %2826 = vmatpush2.bf16.msra.mxu0 %v2078
    %2827 = vmatprep.subr.bf16.mxu0 %v2075
    %2828 = vmatpush2.bf16.msra.mxu0 %v2074
    %2829 = vmatprep.subr.bf16.mxu0 %v2071
    %2830 = vmatpush2.bf16.msra.mxu0 %v2070
    %2831 = vmatprep.subr.bf16.mxu0 %v2067
    %2832 = vmatpush2.bf16.msra.mxu0 %v2066
    %2833 = vmatprep.subr.bf16.mxu0 %v2063
    %2834 = vmatpush2.bf16.msra.mxu0 %v2062
    %2835 = vmatprep.subr.bf16.mxu0 %v2059
    %2836 = vmatpush2.bf16.msra.mxu0 %v2058
    %2837 = vmatprep.mubr.bf16.mxu0 %v593
    %2838 = vmatmul.mubr.bf16.gmra.mxu0 %v592
    %v2839 = vpop.f32.mrf.mxu0
    %v2840 = vadd.f32 %v2787, %v2839
    %v2841 = vpop.f32.mrf.mxu0
    %v2842 = vadd.f32 %v2789, %v2841
    %v2843 = vpop.f32.mrf.mxu0
    %v2844 = vadd.f32 %v2791, %v2843
    %v2845 = vpop.f32.mrf.mxu0
    %v2846 = vadd.f32 %v2793, %v2845
    %2847 = vmatprep.mubr.bf16.mxu0 %v602
    %2848 = vmatmul.mubr.bf16.gmra.mxu0 %v601
    %v2849 = vpop.f32.mrf.mxu0
    %v2850 = vadd.f32 %v2797, %v2849
    %v2851 = vpop.f32.mrf.mxu0
    %v2852 = vadd.f32 %v2799, %v2851
    %v2853 = vpop.f32.mrf.mxu0
    %v2854 = vadd.f32 %v2801, %v2853
    %v2855 = vpop.f32.mrf.mxu0
    %v2856 = vadd.f32 %v2803, %v2855
    %2857 = vdwg.mxu0
    %2858 = vmatprep.subr.bf16.mxu0 %v2119
    %2859 = vmatpush1.bf16.msra.mxu0 %v2118
    %2860 = vmatprep.subr.bf16.mxu0 %v2115
    %2861 = vmatpush1.bf16.msra.mxu0 %v2114
    %2862 = vmatprep.subr.bf16.mxu0 %v2111
    %2863 = vmatpush1.bf16.msra.mxu0 %v2110
    %2864 = vmatprep.subr.bf16.mxu0 %v2107
    %2865 = vmatpush1.bf16.msra.mxu0 %v2106
    %2866 = vmatprep.subr.bf16.mxu0 %v2103
    %2867 = vmatpush1.bf16.msra.mxu0 %v2102
    %2868 = vmatprep.subr.bf16.mxu0 %v2099
    %2869 = vmatpush1.bf16.msra.mxu0 %v2098
    %2870 = vmatprep.subr.bf16.mxu0 %v2095
    %2871 = vmatpush1.bf16.msra.mxu0 %v2094
    %2872 = vmatprep.subr.bf16.mxu0 %v2091
    %2873 = vmatpush1.bf16.msra.mxu0 %v2090
    %2874 = vmatprep.subr.bf16.mxu0 %v2151
    %2875 = vmatpush2.bf16.msra.mxu0 %v2150
    %2876 = vmatprep.subr.bf16.mxu0 %v2147
    %2877 = vmatpush2.bf16.msra.mxu0 %v2146
    %2878 = vmatprep.subr.bf16.mxu0 %v2143
    %2879 = vmatpush2.bf16.msra.mxu0 %v2142
    %2880 = vmatprep.subr.bf16.mxu0 %v2139
    %2881 = vmatpush2.bf16.msra.mxu0 %v2138
    %2882 = vmatprep.subr.bf16.mxu0 %v2135
    %2883 = vmatpush2.bf16.msra.mxu0 %v2134
    %2884 = vmatprep.subr.bf16.mxu0 %v2131
    %2885 = vmatpush2.bf16.msra.mxu0 %v2130
    %2886 = vmatprep.subr.bf16.mxu0 %v2127
    %2887 = vmatpush2.bf16.msra.mxu0 %v2126
    %2888 = vmatprep.subr.bf16.mxu0 %v2123
    %2889 = vmatpush2.bf16.msra.mxu0 %v2122
    %2890 = vmatprep.mubr.bf16.mxu0 %v595
    %2891 = vmatmul.mubr.bf16.gmra.mxu0 %v594
    %v2892 = vpop.f32.mrf.mxu0
    %v2893 = vadd.f32 %v2840, %v2892
    %v2894 = vpop.f32.mrf.mxu0
    %v2895 = vadd.f32 %v2842, %v2894
    %v2896 = vpop.f32.mrf.mxu0
    %v2897 = vadd.f32 %v2844, %v2896
    %v2898 = vpop.f32.mrf.mxu0
    %v2899 = vadd.f32 %v2846, %v2898
    %2900 = vmatprep.mubr.bf16.mxu0 %v604
    %2901 = vmatmul.mubr.bf16.gmra.mxu0 %v603
    %v2902 = vpop.f32.mrf.mxu0
    %v2903 = vadd.f32 %v2850, %v2902
    %v2904 = vpop.f32.mrf.mxu0
    %v2905 = vadd.f32 %v2852, %v2904
    %v2906 = vpop.f32.mrf.mxu0
    %v2907 = vadd.f32 %v2854, %v2906
    %v2908 = vpop.f32.mrf.mxu0
    %v2909 = vadd.f32 %v2856, %v2908
    %2910 = vdwg.mxu0
    %2911 = vmatprep.subr.bf16.mxu0 0
    %2912 = vmatpush1.bf16.msra.mxu0 0
    %2913 = vmatprep.subr.bf16.mxu0 0
    %2914 = vmatpush1.bf16.msra.mxu0 0
    %2915 = vmatprep.subr.bf16.mxu0 0
    %2916 = vmatpush1.bf16.msra.mxu0 0
    %2917 = vmatprep.subr.bf16.mxu0 0
    %2918 = vmatpush1.bf16.msra.mxu0 0
    %2919 = vmatprep.subr.bf16.mxu0 0
    %2920 = vmatpush1.bf16.msra.mxu0 0
    %2921 = vmatprep.subr.bf16.mxu0 0
    %2922 = vmatpush1.bf16.msra.mxu0 0
    %2923 = vmatprep.subr.bf16.mxu0 0
    %2924 = vmatpush1.bf16.msra.mxu0 0
    %2925 = vmatprep.subr.bf16.mxu0 %v2432
    %2926 = vmatpush1.bf16.msra.mxu0 %v2429
    %2927 = vmatprep.subr.bf16.mxu0 0
    %2928 = vmatpush2.bf16.msra.mxu0 0
    %2929 = vmatprep.subr.bf16.mxu0 0
    %2930 = vmatpush2.bf16.msra.mxu0 0
    %2931 = vmatprep.subr.bf16.mxu0 0
    %2932 = vmatpush2.bf16.msra.mxu0 0
    %2933 = vmatprep.subr.bf16.mxu0 0
    %2934 = vmatpush2.bf16.msra.mxu0 0
    %2935 = vmatprep.subr.bf16.mxu0 0
    %2936 = vmatpush2.bf16.msra.mxu0 0
    %2937 = vmatprep.subr.bf16.mxu0 0
    %2938 = vmatpush2.bf16.msra.mxu0 0
    %2939 = vmatprep.subr.bf16.mxu0 0
    %2940 = vmatpush2.bf16.msra.mxu0 0
    %2941 = vmatprep.subr.bf16.mxu0 0
    %2942 = vmatpush2.bf16.msra.mxu0 0
    %2943 = vmatprep.mubr.bf16.mxu0 0
    %2944 = vmatmul.mubr.bf16.gmra.mxu0 %v2414
    %v2945 = vpop.f32.mrf.mxu0
    %v2946 = vadd.f32 %v2893, %v2945
    %v2947 = vpop.f32.mrf.mxu0
    %v2948 = vadd.f32 %v2895, %v2947
    %v2949 = vpop.f32.mrf.mxu0
    %v2950 = vadd.f32 %v2897, %v2949
    %v2951 = vpop.f32.mrf.mxu0
    %v2952 = vadd.f32 %v2899, %v2951
    %2953 = vmatprep.mubr.bf16.mxu0 0
    %2954 = vmatmul.mubr.bf16.gmra.mxu0 %v2417
    %v2955 = vpop.f32.mrf.mxu0
    %v2956 = vadd.f32 %v2903, %v2955
    %v2957 = vpop.f32.mrf.mxu0
    %v2958 = vadd.f32 %v2905, %v2957
    %v2959 = vpop.f32.mrf.mxu0
    %v2960 = vadd.f32 %v2907, %v2959
    %v2961 = vpop.f32.mrf.mxu0
    %v2962 = vadd.f32 %v2909, %v2961
    %2963 = vdwg.mxu0
    %v3222 = vunpack.c.l.b16 %v606
    %v3223 = vunpack.c.h.b16 %v606
    %v3224 = vunpack.c.l.b16 %v607
    %v3225 = vunpack.c.h.b16 %v607
    %v3226 = vunpack.c.l.b16 %v608
    %v3227 = vunpack.c.h.b16 %v608
    %v3228 = vunpack.c.l.b16 %v609
    %v3229 = vunpack.c.h.b16 %v609
    %v3230 = vunpack.c.l.b16 %v610
    %v3231 = vunpack.c.h.b16 %v610
    %v3232 = vunpack.c.l.b16 %v611
    %v3233 = vunpack.c.h.b16 %v611
    %v3234 = vunpack.c.l.b16 %v612
    %v3235 = vunpack.c.h.b16 %v612
    %v3236 = vunpack.c.l.b16 %v613
    %v3237 = vunpack.c.h.b16 %v613
    %v3238 = vunpack.c.l.b16 %v614
    %v3239 = vunpack.c.h.b16 %v614
    %v3240 = vunpack.c.l.b16 %v615
    %v3241 = vunpack.c.h.b16 %v615
    %v3242 = vunpack.c.l.b16 %v616
    %v3243 = vunpack.c.h.b16 %v616
    %v3244 = vunpack.c.l.b16 %v617
    %v3245 = vunpack.c.h.b16 %v617
    %v3246 = vunpack.c.l.b16 %v618
    %v3247 = vunpack.c.h.b16 %v618
    %v3248 = vunpack.c.l.b16 %v619
    %v3249 = vunpack.c.h.b16 %v619
    %v3250 = vunpack.c.l.b16 %v620
    %v3251 = vunpack.c.h.b16 %v620
    %v3252 = vunpack.c.l.b16 %v621
    %v3253 = vunpack.c.h.b16 %v621
    %v3254 = vunpack.c.l.b16 %v622
    %v3255 = vunpack.c.h.b16 %v622
    %v3256 = vunpack.c.l.b16 %v623
    %v3257 = vunpack.c.h.b16 %v623
    %v3258 = vunpack.c.l.b16 %v624
    %v3259 = vunpack.c.h.b16 %v624
    %v3260 = vunpack.c.l.b16 %v625
    %v3261 = vunpack.c.h.b16 %v625
    %v3262 = vunpack.c.l.b16 %v626
    %v3263 = vunpack.c.h.b16 %v626
    %v3264 = vunpack.c.l.b16 %v627
    %v3265 = vunpack.c.h.b16 %v627
    %v3266 = vunpack.c.l.b16 %v628
    %v3267 = vunpack.c.h.b16 %v628
    %v3268 = vunpack.c.l.b16 %v629
    %v3269 = vunpack.c.h.b16 %v629
    %v3270 = vunpack.c.l.b16 %v630
    %v3271 = vunpack.c.h.b16 %v630
    %v3272 = vunpack.c.l.b16 %v631
    %v3273 = vunpack.c.h.b16 %v631
    %v3274 = vunpack.c.l.b16 %v632
    %v3275 = vunpack.c.h.b16 %v632
    %v3276 = vunpack.c.l.b16 %v633
    %v3277 = vunpack.c.h.b16 %v633
    %v3278 = vunpack.c.l.b16 %v634
    %v3279 = vunpack.c.h.b16 %v634
    %v3280 = vunpack.c.l.b16 %v635
    %v3281 = vunpack.c.h.b16 %v635
    %v3282 = vunpack.c.l.b16 %v636
    %v3283 = vunpack.c.h.b16 %v636
    %v3284 = vunpack.c.l.b16 %v637
    %v3285 = vunpack.c.h.b16 %v637
    %v3286 = vunpack.c.l.b16 %v638
    %v3287 = vunpack.c.h.b16 %v638
    %v3288 = vunpack.c.l.b16 %v639
    %v3289 = vunpack.c.h.b16 %v639
    %v3290 = vunpack.c.l.b16 %v640
    %v3291 = vunpack.c.h.b16 %v640
    %v3292 = vunpack.c.l.b16 %v641
    %v3293 = vunpack.c.h.b16 %v641
    %v3294 = vunpack.c.l.b16 %v642
    %v3295 = vunpack.c.h.b16 %v642
    %v3296 = vunpack.c.l.b16 %v643
    %v3297 = vunpack.c.h.b16 %v643
    %v3298 = vunpack.c.l.b16 %v644
    %v3299 = vunpack.c.h.b16 %v644
    %v3300 = vunpack.c.l.b16 %v645
    %v3301 = vunpack.c.h.b16 %v645
    %v3302 = vunpack.c.l.b16 %v646
    %v3303 = vunpack.c.h.b16 %v646
    %v3304 = vunpack.c.l.b16 %v647
    %v3305 = vunpack.c.h.b16 %v647
    %v3306 = vunpack.c.l.b16 %v648
    %v3307 = vunpack.c.h.b16 %v648
    %v3308 = vunpack.c.l.b16 %v649
    %v3309 = vunpack.c.h.b16 %v649
    %v3310 = vunpack.c.l.b16 %v650
    %v3311 = vunpack.c.h.b16 %v650
    %v3312 = vunpack.c.l.b16 %v651
    %v3313 = vunpack.c.h.b16 %v651
    %v3314 = vunpack.c.l.b16 %v652
    %v3315 = vunpack.c.h.b16 %v652
    %v3316 = vunpack.c.l.b16 %v653
    %v3317 = vunpack.c.h.b16 %v653
    %v3318 = vunpack.c.l.b16 %v654
    %v3319 = vunpack.c.h.b16 %v654
    %v3320 = vunpack.c.l.b16 %v655
    %v3321 = vunpack.c.h.b16 %v655
    %v3322 = vunpack.c.l.b16 %v656
    %v3323 = vunpack.c.h.b16 %v656
    %v3324 = vunpack.c.l.b16 %v657
    %v3325 = vunpack.c.h.b16 %v657
    %v3326 = vunpack.c.l.b16 %v658
    %v3327 = vunpack.c.h.b16 %v658
    %v3328 = vunpack.c.l.b16 %v659
    %v3329 = vunpack.c.h.b16 %v659
    %v3330 = vunpack.c.l.b16 %v660
    %v3331 = vunpack.c.h.b16 %v660
    %v3332 = vunpack.c.l.b16 %v661
    %v3333 = vunpack.c.h.b16 %v661
    %v3334 = vunpack.c.l.b16 %v662
    %v3335 = vunpack.c.h.b16 %v662
    %v3336 = vunpack.c.l.b16 %v663
    %v3337 = vunpack.c.h.b16 %v663
    %v3338 = vunpack.c.l.b16 %v664
    %v3339 = vunpack.c.h.b16 %v664
    %v3340 = vunpack.c.l.b16 %v665
    %v3341 = vunpack.c.h.b16 %v665
    %v3342 = vunpack.c.l.b16 %v666
    %v3343 = vunpack.c.h.b16 %v666
    %v3344 = vunpack.c.l.b16 %v667
    %v3345 = vunpack.c.h.b16 %v667
    %v3346 = vunpack.c.l.b16 %v668
    %v3347 = vunpack.c.h.b16 %v668
    %v3348 = vunpack.c.l.b16 %v669
    %v3349 = vunpack.c.h.b16 %v669
    %v3350 = vunpack.c.l.b16 %v670
    %v3351 = vunpack.c.h.b16 %v670
    %v3352 = vunpack.c.l.b16 %v671
    %v3353 = vunpack.c.h.b16 %v671
    %v3354 = vunpack.c.l.b16 %v672
    %v3355 = vunpack.c.h.b16 %v672
    %v3356 = vunpack.c.l.b16 %v673
    %v3357 = vunpack.c.h.b16 %v673
    %v3358 = vunpack.c.l.b16 %v674
    %v3359 = vunpack.c.h.b16 %v674
    %v3360 = vunpack.c.l.b16 %v675
    %v3361 = vunpack.c.h.b16 %v675
    %v3362 = vunpack.c.l.b16 %v676
    %v3363 = vunpack.c.h.b16 %v676
    %v3364 = vunpack.c.l.b16 %v677
    %v3365 = vunpack.c.h.b16 %v677
    %v3366 = vunpack.c.l.b16 %v678
    %v3367 = vunpack.c.h.b16 %v678
    %v3368 = vunpack.c.l.b16 %v679
    %v3369 = vunpack.c.h.b16 %v679
    %v3370 = vunpack.c.l.b16 %v680
    %v3371 = vunpack.c.h.b16 %v680
    %v3372 = vunpack.c.l.b16 %v681
    %v3373 = vunpack.c.h.b16 %v681
    %v3374 = vunpack.c.l.b16 %v682
    %v3375 = vunpack.c.h.b16 %v682
    %v3376 = vunpack.c.l.b16 %v683
    %v3377 = vunpack.c.h.b16 %v683
    %v3378 = vunpack.c.l.b16 %v684
    %v3379 = vunpack.c.h.b16 %v684
    %v3380 = vunpack.c.l.b16 %v685
    %v3381 = vunpack.c.h.b16 %v685
    %v3382 = vunpack.c.l.b16 %v686
    %v3383 = vunpack.c.h.b16 %v686
    %v3384 = vunpack.c.l.b16 %v687
    %v3385 = vunpack.c.h.b16 %v687
    %v3386 = vunpack.c.l.b16 %v688
    %v3387 = vunpack.c.h.b16 %v688
    %v3388 = vunpack.c.l.b16 %v689
    %v3389 = vunpack.c.h.b16 %v689
    %v3390 = vunpack.c.l.b16 %v690
    %v3391 = vunpack.c.h.b16 %v690
    %v3392 = vunpack.c.l.b16 %v691
    %v3393 = vunpack.c.h.b16 %v691
    %v3394 = vunpack.c.l.b16 %v692
    %v3395 = vunpack.c.h.b16 %v692
    %v3396 = vunpack.c.l.b16 %v693
    %v3397 = vunpack.c.h.b16 %v693
    %v3398 = vunpack.c.l.b16 %v694
    %v3399 = vunpack.c.h.b16 %v694
    %v3400 = vunpack.c.l.b16 %v695
    %v3401 = vunpack.c.h.b16 %v695
    %v3402 = vunpack.c.l.b16 %v696
    %v3403 = vunpack.c.h.b16 %v696
    %v3404 = vunpack.c.l.b16 %v697
    %v3405 = vunpack.c.h.b16 %v697
    %v3406 = vunpack.c.l.b16 %v698
    %v3407 = vunpack.c.h.b16 %v698
    %v3408 = vunpack.c.l.b16 %v699
    %v3409 = vunpack.c.h.b16 %v699
    %v3410 = vunpack.c.l.b16 %v700
    %v3411 = vunpack.c.h.b16 %v700
    %v3412 = vunpack.c.l.b16 %v701
    %v3413 = vunpack.c.h.b16 %v701
    %v3414 = vunpack.c.l.b16 %v702
    %v3415 = vunpack.c.h.b16 %v702
    %v3416 = vunpack.c.l.b16 %v703
    %v3417 = vunpack.c.h.b16 %v703
    %v3418 = vunpack.c.l.b16 %v704
    %v3419 = vunpack.c.h.b16 %v704
    %v3420 = vunpack.c.l.b16 %v705
    %v3421 = vunpack.c.h.b16 %v705
    %v3422 = vunpack.c.l.b16 %v706
    %v3423 = vunpack.c.h.b16 %v706
    %v3424 = vunpack.c.l.b16 %v707
    %v3425 = vunpack.c.h.b16 %v707
    %v3426 = vunpack.c.l.b16 %v708
    %v3427 = vunpack.c.h.b16 %v708
    %v3428 = vunpack.c.l.b16 %v709
    %v3429 = vunpack.c.h.b16 %v709
    %v3430 = vunpack.c.l.b16 %v710
    %v3431 = vunpack.c.h.b16 %v710
    %v3432 = vunpack.c.l.b16 %v711
    %v3433 = vunpack.c.h.b16 %v711
    %v3434 = vunpack.c.l.b16 %v712
    %v3435 = vunpack.c.h.b16 %v712
    %v3436 = vunpack.c.l.b16 %v713
    %v3437 = vunpack.c.h.b16 %v713
    %v3438 = vunpack.c.l.b16 %v714
    %v3439 = vunpack.c.h.b16 %v714
    %v3440 = vunpack.c.l.b16 %v715
    %v3441 = vunpack.c.h.b16 %v715
    %v3442 = vunpack.c.l.b16 %v716
    %v3443 = vunpack.c.h.b16 %v716
    %v3444 = vunpack.c.l.b16 %v717
    %v3445 = vunpack.c.h.b16 %v717
    %v3446 = vunpack.c.l.b16 %v718
    %v3447 = vunpack.c.h.b16 %v718
    %v3448 = vunpack.c.l.b16 %v719
    %v3449 = vunpack.c.h.b16 %v719
    %v3450 = vunpack.c.l.b16 %v720
    %v3451 = vunpack.c.h.b16 %v720
    %v3452 = vunpack.c.l.b16 %v721
    %v3453 = vunpack.c.h.b16 %v721
    %v3454 = vunpack.c.l.b16 %v722
    %v3455 = vunpack.c.h.b16 %v722
    %v3456 = vunpack.c.l.b16 %v723
    %v3457 = vunpack.c.h.b16 %v723
    %v3458 = vunpack.c.l.b16 %v724
    %v3459 = vunpack.c.h.b16 %v724
    %v3460 = vunpack.c.l.b16 %v725
    %v3461 = vunpack.c.h.b16 %v725
    %v3462 = vunpack.c.l.b16 %v726
    %v3463 = vunpack.c.h.b16 %v726
    %v3464 = vunpack.c.l.b16 %v727
    %v3465 = vunpack.c.h.b16 %v727
    %v3466 = vunpack.c.l.b16 %v728
    %v3467 = vunpack.c.h.b16 %v728
    %v3468 = vunpack.c.l.b16 %v729
    %v3469 = vunpack.c.h.b16 %v729
    %v3470 = vunpack.c.l.b16 %v730
    %v3471 = vunpack.c.h.b16 %v730
    %v3472 = vunpack.c.l.b16 %v731
    %v3473 = vunpack.c.h.b16 %v731
    %v3474 = vunpack.c.l.b16 %v732
    %v3475 = vunpack.c.h.b16 %v732
    %v3476 = vunpack.c.l.b16 %v733
    %v3477 = vunpack.c.h.b16 %v733
    %v3478 = vunpack.c.l.b16 %v734
    %v3479 = vunpack.c.h.b16 %v734
    %v3480 = vunpack.c.l.b16 %v735
    %v3481 = vunpack.c.h.b16 %v735
    %v3482 = vunpack.c.l.b16 %v736
    %v3483 = vunpack.c.h.b16 %v736
    %v3484 = vunpack.c.l.b16 %v737
    %v3485 = vunpack.c.h.b16 %v737
    %v3486 = vunpack.c.l.b16 %v738
    %v3487 = vunpack.c.h.b16 %v738
    %v3488 = vunpack.c.l.b16 %v739
    %v3489 = vunpack.c.h.b16 %v739
    %v3490 = vunpack.c.l.b16 %v740
    %v3491 = vunpack.c.h.b16 %v740
    %v3492 = vunpack.c.l.b16 %v741
    %v3493 = vunpack.c.h.b16 %v741
    %v3494 = vunpack.c.l.b16 %v742
    %v3495 = vunpack.c.h.b16 %v742
    %v3496 = vunpack.c.l.b16 %v743
    %v3497 = vunpack.c.h.b16 %v743
    %v3498 = vunpack.c.l.b16 %v744
    %v3499 = vunpack.c.h.b16 %v744
    %v3500 = vunpack.c.l.b16 %v745
    %v3501 = vunpack.c.h.b16 %v745
    %v3502 = vunpack.c.l.b16 %v746
    %v3503 = vunpack.c.h.b16 %v746
    %v3504 = vunpack.c.l.b16 %v747
    %v3505 = vunpack.c.h.b16 %v747
    %v3506 = vunpack.c.l.b16 %v748
    %v3507 = vunpack.c.h.b16 %v748
    %v3508 = vunpack.c.l.b16 %v749
    %v3509 = vunpack.c.h.b16 %v749
    %v3510 = vunpack.c.l.b16 %v750
    %v3511 = vunpack.c.h.b16 %v750
    %v3512 = vunpack.c.l.b16 %v751
    %v3513 = vunpack.c.h.b16 %v751
    %v3514 = vunpack.c.l.b16 %v752
    %v3515 = vunpack.c.h.b16 %v752
    %v3516 = vunpack.c.l.b16 %v753
    %v3517 = vunpack.c.h.b16 %v753
    %v3518 = vunpack.c.l.b16 %v754
    %v3519 = vunpack.c.h.b16 %v754
    %v3520 = vunpack.c.l.b16 %v755
    %v3521 = vunpack.c.h.b16 %v755
    %v3522 = vunpack.c.l.b16 %v756
    %v3523 = vunpack.c.h.b16 %v756
    %v3524 = vunpack.c.l.b16 %v757
    %v3525 = vunpack.c.h.b16 %v757
    %v3526 = vunpack.c.l.b16 %v758
    %v3527 = vunpack.c.h.b16 %v758
    %v3528 = vunpack.c.l.b16 %v759
    %v3529 = vunpack.c.h.b16 %v759
    %v3530 = vunpack.c.l.b16 %v760
    %v3531 = vunpack.c.h.b16 %v760
    %v3532 = vunpack.c.l.b16 %v761
    %v3533 = vunpack.c.h.b16 %v761
    %v3534 = vunpack.c.l.b16 %v762
    %v3535 = vunpack.c.h.b16 %v762
    %v3536 = vunpack.c.l.b16 %v763
    %v3537 = vunpack.c.h.b16 %v763
    %v3538 = vunpack.c.l.b16 %v764
    %v3539 = vunpack.c.h.b16 %v764
    %v3540 = vunpack.c.l.b16 %v765
    %v3541 = vunpack.c.h.b16 %v765
    %v3542 = vunpack.c.l.b16 %v766
    %v3543 = vunpack.c.h.b16 %v766
    %v3544 = vunpack.c.l.b16 %v767
    %v3545 = vunpack.c.h.b16 %v767
    %v3546 = vunpack.c.l.b16 %v768
    %v3547 = vunpack.c.h.b16 %v768
    %v3548 = vunpack.c.l.b16 %v769
    %v3549 = vunpack.c.h.b16 %v769
    %v3550 = vunpack.c.l.b16 %v770
    %v3551 = vunpack.c.h.b16 %v770
    %v3552 = vunpack.c.l.b16 %v771
    %v3553 = vunpack.c.h.b16 %v771
    %v3554 = vunpack.c.l.b16 %v772
    %v3555 = vunpack.c.h.b16 %v772
    %v3556 = vunpack.c.l.b16 %v773
    %v3557 = vunpack.c.h.b16 %v773
    %v3558 = vunpack.c.l.b16 %v774
    %v3559 = vunpack.c.h.b16 %v774
    %v3560 = vunpack.c.l.b16 %v775
    %v3561 = vunpack.c.h.b16 %v775
    %v3562 = vunpack.c.l.b16 %v776
    %v3563 = vunpack.c.h.b16 %v776
    %v3564 = vunpack.c.l.b16 %v777
    %v3565 = vunpack.c.h.b16 %v777
    %v3566 = vunpack.c.l.b16 %v778
    %v3567 = vunpack.c.h.b16 %v778
    %v3568 = vunpack.c.l.b16 %v779
    %v3569 = vunpack.c.h.b16 %v779
    %v3570 = vunpack.c.l.b16 %v780
    %v3571 = vunpack.c.h.b16 %v780
    %v3572 = vunpack.c.l.b16 %v781
    %v3573 = vunpack.c.h.b16 %v781
    %v3574 = vunpack.c.l.b16 %v782
    %v3575 = vunpack.c.h.b16 %v782
    %v3576 = vunpack.c.l.b16 %v783
    %v3577 = vunpack.c.h.b16 %v783
    %v3578 = vunpack.c.l.b16 %v784
    %v3579 = vunpack.c.h.b16 %v784
    %v3580 = vunpack.c.l.b16 %v785
    %v3581 = vunpack.c.h.b16 %v785
    %v3582 = vunpack.c.l.b16 %v786
    %v3583 = vunpack.c.h.b16 %v786
    %v3584 = vunpack.c.l.b16 %v787
    %v3585 = vunpack.c.h.b16 %v787
    %v3586 = vunpack.c.l.b16 %v788
    %v3587 = vunpack.c.h.b16 %v788
    %v3588 = vunpack.c.l.b16 %v789
    %v3589 = vunpack.c.h.b16 %v789
    %v3590 = vunpack.c.l.b16 %v790
    %v3591 = vunpack.c.h.b16 %v790
    %v3592 = vunpack.c.l.b16 %v791
    %v3593 = vunpack.c.h.b16 %v791
    %v3594 = vunpack.c.l.b16 %v792
    %v3595 = vunpack.c.h.b16 %v792
    %v3596 = vunpack.c.l.b16 %v793
    %v3597 = vunpack.c.h.b16 %v793
    %v3598 = vunpack.c.l.b16 %v794
    %v3599 = vunpack.c.h.b16 %v794
    %v3600 = vunpack.c.l.b16 %v795
    %v3601 = vunpack.c.h.b16 %v795
    %v3602 = vunpack.c.l.b16 %v796
    %v3603 = vunpack.c.h.b16 %v796
    %v3604 = vunpack.c.l.b16 %v797
    %v3605 = vunpack.c.h.b16 %v797
    %v3606 = vunpack.c.l.b16 %v798
    %v3607 = vunpack.c.h.b16 %v798
    %v3608 = vunpack.c.l.b16 %v799
    %v3609 = vunpack.c.h.b16 %v799
    %v3610 = vunpack.c.l.b16 %v800
    %v3611 = vunpack.c.h.b16 %v800
    %v3612 = vunpack.c.l.b16 %v801
    %v3613 = vunpack.c.h.b16 %v801
    %v3614 = vunpack.c.l.b16 %v802
    %v3615 = vunpack.c.h.b16 %v802
    %v3616 = vunpack.c.l.b16 %v803
    %v3617 = vunpack.c.h.b16 %v803
    %v3618 = vunpack.c.l.b16 %v804
    %v3619 = vunpack.c.h.b16 %v804
    %v3620 = vunpack.c.l.b16 %v805
    %v3621 = vunpack.c.h.b16 %v805
    %v3622 = vunpack.c.l.b16 %v806
    %v3623 = vunpack.c.h.b16 %v806
    %v3624 = vunpack.c.l.b16 %v807
    %v3625 = vunpack.c.h.b16 %v807
    %v3626 = vunpack.c.l.b16 %v808
    %v3627 = vunpack.c.h.b16 %v808
    %v3628 = vunpack.c.l.b16 %v809
    %v3629 = vunpack.c.h.b16 %v809
    %v3630 = vunpack.c.l.b16 %v810
    %v3631 = vunpack.c.h.b16 %v810
    %v3632 = vunpack.c.l.b16 %v811
    %v3633 = vunpack.c.h.b16 %v811
    %v3634 = vunpack.c.l.b16 %v812
    %v3635 = vunpack.c.h.b16 %v812
    %v3636 = vunpack.c.l.b16 %v813
    %v3637 = vunpack.c.h.b16 %v813
    %v3638 = vunpack.c.l.b16 %v814
    %v3639 = vunpack.c.h.b16 %v814
    %v3640 = vunpack.c.l.b16 %v815
    %v3641 = vunpack.c.h.b16 %v815
    %v3642 = vunpack.c.l.b16 %v816
    %v3643 = vunpack.c.h.b16 %v816
    %v3644 = vunpack.c.l.b16 %v817
    %v3645 = vunpack.c.h.b16 %v817
    %v3646 = vunpack.c.l.b16 %v818
    %v3647 = vunpack.c.h.b16 %v818
    %v3648 = vunpack.c.l.b16 %v819
    %v3649 = vunpack.c.h.b16 %v819
    %v3650 = vunpack.c.l.b16 %v820
    %v3651 = vunpack.c.h.b16 %v820
    %v3652 = vunpack.c.l.b16 %v821
    %v3653 = vunpack.c.h.b16 %v821
    %v3654 = vunpack.c.l.b16 %v822
    %v3655 = vunpack.c.h.b16 %v822
    %v3656 = vunpack.c.l.b16 %v823
    %v3657 = vunpack.c.h.b16 %v823
    %v3658 = vunpack.c.l.b16 %v824
    %v3659 = vunpack.c.h.b16 %v824
    %v3660 = vunpack.c.l.b16 %v825
    %v3661 = vunpack.c.h.b16 %v825
    %v3662 = vunpack.c.l.b16 %v826
    %v3663 = vunpack.c.h.b16 %v826
    %v3664 = vunpack.c.l.b16 %v827
    %v3665 = vunpack.c.h.b16 %v827
    %v3666 = vunpack.c.l.b16 %v828
    %v3667 = vunpack.c.h.b16 %v828
    %v3668 = vunpack.c.l.b16 %v829
    %v3669 = vunpack.c.h.b16 %v829
    %v3670 = vunpack.c.l.b16 %v830
    %v3671 = vunpack.c.h.b16 %v830
    %v3672 = vunpack.c.l.b16 %v831
    %v3673 = vunpack.c.h.b16 %v831
    %v3674 = vunpack.c.l.b16 %v832
    %v3675 = vunpack.c.h.b16 %v832
    %v3676 = vunpack.c.l.b16 %v833
    %v3677 = vunpack.c.h.b16 %v833
    %v3678 = vunpack.c.l.b16 %v834
    %v3679 = vunpack.c.h.b16 %v834
    %v3680 = vunpack.c.l.b16 %v835
    %v3681 = vunpack.c.h.b16 %v835
    %v3682 = vunpack.c.l.b16 %v836
    %v3683 = vunpack.c.h.b16 %v836
    %v3684 = vunpack.c.l.b16 %v837
    %v3685 = vunpack.c.h.b16 %v837
    %v3686 = vunpack.c.l.b16 %v838
    %v3687 = vunpack.c.h.b16 %v838
    %v3688 = vunpack.c.l.b16 %v839
    %v3689 = vunpack.c.h.b16 %v839
    %v3690 = vunpack.c.l.b16 %v840
    %v3691 = vunpack.c.h.b16 %v840
    %v3692 = vunpack.c.l.b16 %v841
    %v3693 = vunpack.c.h.b16 %v841
    %v3694 = vunpack.c.l.b16 %v842
    %v3695 = vunpack.c.h.b16 %v842
    %v3696 = vunpack.c.l.b16 %v843
    %v3697 = vunpack.c.h.b16 %v843
    %v3698 = vunpack.c.l.b16 %v844
    %v3699 = vunpack.c.h.b16 %v844
    %v3700 = vunpack.c.l.b16 %v845
    %v3701 = vunpack.c.h.b16 %v845
    %v3702 = vunpack.c.l.b16 %v846
    %v3703 = vunpack.c.h.b16 %v846
    %v3704 = vunpack.c.l.b16 %v847
    %v3705 = vunpack.c.h.b16 %v847
    %v3706 = vunpack.c.l.b16 %v848
    %v3707 = vunpack.c.h.b16 %v848
    %v3708 = vunpack.c.l.b16 %v849
    %v3709 = vunpack.c.h.b16 %v849
    %v3710 = vunpack.c.l.b16 %v850
    %v3711 = vunpack.c.h.b16 %v850
    %v3712 = vunpack.c.l.b16 %v851
    %v3713 = vunpack.c.h.b16 %v851
    %v3714 = vunpack.c.l.b16 %v852
    %v3715 = vunpack.c.h.b16 %v852
    %v3716 = vunpack.c.l.b16 %v853
    %v3717 = vunpack.c.h.b16 %v853
    %v3718 = vunpack.c.l.b16 %v854
    %v3719 = vunpack.c.h.b16 %v854
    %v3720 = vunpack.c.l.b16 %v855
    %v3721 = vunpack.c.h.b16 %v855
    %v3722 = vunpack.c.l.b16 %v856
    %v3723 = vunpack.c.h.b16 %v856
    %v3724 = vunpack.c.l.b16 %v857
    %v3725 = vunpack.c.h.b16 %v857
    %v3726 = vunpack.c.l.b16 %v858
    %v3727 = vunpack.c.h.b16 %v858
    %v3728 = vunpack.c.l.b16 %v859
    %v3729 = vunpack.c.h.b16 %v859
    %v3730 = vunpack.c.l.b16 %v860
    %v3731 = vunpack.c.h.b16 %v860
    %v3732 = vunpack.c.l.b16 %v861
    %v3733 = vunpack.c.h.b16 %v861
    %v3734 = vunpack.c.l.b16 %v862
    %v3735 = vunpack.c.h.b16 %v862
    %v3736 = vunpack.c.l.b16 %v863
    %v3737 = vunpack.c.h.b16 %v863
    %v3738 = vpack.c.b16 %v3226, %v3222
    %v3739 = vpack.c.b16 %v3227, %v3223
    %v3740 = vpack.c.b16 %v3228, %v3224
    %v3741 = vpack.c.b16 %v3229, %v3225
    %v3742 = vpack.c.b16 %v3234, %v3230
    %v3743 = vpack.c.b16 %v3235, %v3231
    %v3744 = vpack.c.b16 %v3236, %v3232
    %v3745 = vpack.c.b16 %v3237, %v3233
    %v3746 = vpack.c.b16 %v3242, %v3238
    %v3747 = vpack.c.b16 %v3243, %v3239
    %v3748 = vpack.c.b16 %v3244, %v3240
    %v3749 = vpack.c.b16 %v3245, %v3241
    %v3750 = vpack.c.b16 %v3250, %v3246
    %v3751 = vpack.c.b16 %v3251, %v3247
    %v3752 = vpack.c.b16 %v3252, %v3248
    %v3753 = vpack.c.b16 %v3253, %v3249
    %v3754 = vpack.c.b16 %v3258, %v3254
    %v3755 = vpack.c.b16 %v3259, %v3255
    %v3756 = vpack.c.b16 %v3260, %v3256
    %v3757 = vpack.c.b16 %v3261, %v3257
    %v3758 = vpack.c.b16 %v3266, %v3262
    %v3759 = vpack.c.b16 %v3267, %v3263
    %v3760 = vpack.c.b16 %v3268, %v3264
    %v3761 = vpack.c.b16 %v3269, %v3265
    %v3762 = vpack.c.b16 %v3274, %v3270
    %v3763 = vpack.c.b16 %v3275, %v3271
    %v3764 = vpack.c.b16 %v3276, %v3272
    %v3765 = vpack.c.b16 %v3277, %v3273
    %v3766 = vpack.c.b16 %v3282, %v3278
    %v3767 = vpack.c.b16 %v3283, %v3279
    %v3768 = vpack.c.b16 %v3284, %v3280
    %v3769 = vpack.c.b16 %v3285, %v3281
    %v3770 = vpack.c.b16 %v3290, %v3286
    %v3771 = vpack.c.b16 %v3291, %v3287
    %v3772 = vpack.c.b16 %v3292, %v3288
    %v3773 = vpack.c.b16 %v3293, %v3289
    %v3774 = vpack.c.b16 %v3298, %v3294
    %v3775 = vpack.c.b16 %v3299, %v3295
    %v3776 = vpack.c.b16 %v3300, %v3296
    %v3777 = vpack.c.b16 %v3301, %v3297
    %v3778 = vpack.c.b16 %v3306, %v3302
    %v3779 = vpack.c.b16 %v3307, %v3303
    %v3780 = vpack.c.b16 %v3308, %v3304
    %v3781 = vpack.c.b16 %v3309, %v3305
    %v3782 = vpack.c.b16 %v3314, %v3310
    %v3783 = vpack.c.b16 %v3315, %v3311
    %v3784 = vpack.c.b16 %v3316, %v3312
    %v3785 = vpack.c.b16 %v3317, %v3313
    %v3786 = vpack.c.b16 %v3322, %v3318
    %v3787 = vpack.c.b16 %v3323, %v3319
    %v3788 = vpack.c.b16 %v3324, %v3320
    %v3789 = vpack.c.b16 %v3325, %v3321
    %v3790 = vpack.c.b16 %v3330, %v3326
    %v3791 = vpack.c.b16 %v3331, %v3327
    %v3792 = vpack.c.b16 %v3332, %v3328
    %v3793 = vpack.c.b16 %v3333, %v3329
    %v3794 = vpack.c.b16 %v3338, %v3334
    %v3795 = vpack.c.b16 %v3339, %v3335
    %v3796 = vpack.c.b16 %v3340, %v3336
    %v3797 = vpack.c.b16 %v3341, %v3337
    %v3798 = vpack.c.b16 %v3346, %v3342
    %v3799 = vpack.c.b16 %v3347, %v3343
    %v3800 = vpack.c.b16 %v3348, %v3344
    %v3801 = vpack.c.b16 %v3349, %v3345
    %v3802 = vpack.c.b16 %v3354, %v3350
    %v3803 = vpack.c.b16 %v3355, %v3351
    %v3804 = vpack.c.b16 %v3356, %v3352
    %v3805 = vpack.c.b16 %v3357, %v3353
    %v3806 = vpack.c.b16 %v3362, %v3358
    %v3807 = vpack.c.b16 %v3363, %v3359
    %v3808 = vpack.c.b16 %v3364, %v3360
    %v3809 = vpack.c.b16 %v3365, %v3361
    %v3810 = vpack.c.b16 %v3370, %v3366
    %v3811 = vpack.c.b16 %v3371, %v3367
    %v3812 = vpack.c.b16 %v3372, %v3368
    %v3813 = vpack.c.b16 %v3373, %v3369
    %v3814 = vpack.c.b16 %v3378, %v3374
    %v3815 = vpack.c.b16 %v3379, %v3375
    %v3816 = vpack.c.b16 %v3380, %v3376
    %v3817 = vpack.c.b16 %v3381, %v3377
    %v3818 = vpack.c.b16 %v3386, %v3382
    %v3819 = vpack.c.b16 %v3387, %v3383
    %v3820 = vpack.c.b16 %v3388, %v3384
    %v3821 = vpack.c.b16 %v3389, %v3385
    %v3822 = vpack.c.b16 %v3394, %v3390
    %v3823 = vpack.c.b16 %v3395, %v3391
    %v3824 = vpack.c.b16 %v3396, %v3392
    %v3825 = vpack.c.b16 %v3397, %v3393
    %v3826 = vpack.c.b16 %v3402, %v3398
    %v3827 = vpack.c.b16 %v3403, %v3399
    %v3828 = vpack.c.b16 %v3404, %v3400
    %v3829 = vpack.c.b16 %v3405, %v3401
    %v3830 = vpack.c.b16 %v3410, %v3406
    %v3831 = vpack.c.b16 %v3411, %v3407
    %v3832 = vpack.c.b16 %v3412, %v3408
    %v3833 = vpack.c.b16 %v3413, %v3409
    %v3834 = vpack.c.b16 %v3418, %v3414
    %v3835 = vpack.c.b16 %v3419, %v3415
    %v3836 = vpack.c.b16 %v3420, %v3416
    %v3837 = vpack.c.b16 %v3421, %v3417
    %v3838 = vpack.c.b16 %v3426, %v3422
    %v3839 = vpack.c.b16 %v3427, %v3423
    %v3840 = vpack.c.b16 %v3428, %v3424
    %v3841 = vpack.c.b16 %v3429, %v3425
    %v3842 = vpack.c.b16 %v3434, %v3430
    %v3843 = vpack.c.b16 %v3435, %v3431
    %v3844 = vpack.c.b16 %v3436, %v3432
    %v3845 = vpack.c.b16 %v3437, %v3433
    %v3846 = vpack.c.b16 %v3442, %v3438
    %v3847 = vpack.c.b16 %v3443, %v3439
    %v3848 = vpack.c.b16 %v3444, %v3440
    %v3849 = vpack.c.b16 %v3445, %v3441
    %v3850 = vpack.c.b16 %v3450, %v3446
    %v3851 = vpack.c.b16 %v3451, %v3447
    %v3852 = vpack.c.b16 %v3452, %v3448
    %v3853 = vpack.c.b16 %v3453, %v3449
    %v3854 = vpack.c.b16 %v3458, %v3454
    %v3855 = vpack.c.b16 %v3459, %v3455
    %v3856 = vpack.c.b16 %v3460, %v3456
    %v3857 = vpack.c.b16 %v3461, %v3457
    %v3858 = vpack.c.b16 %v3466, %v3462
    %v3859 = vpack.c.b16 %v3467, %v3463
    %v3860 = vpack.c.b16 %v3468, %v3464
    %v3861 = vpack.c.b16 %v3469, %v3465
    %v3862 = vpack.c.b16 %v3474, %v3470
    %v3863 = vpack.c.b16 %v3475, %v3471
    %v3864 = vpack.c.b16 %v3476, %v3472
    %v3865 = vpack.c.b16 %v3477, %v3473
    %v3866 = vpack.c.b16 %v3482, %v3478
    %v3867 = vpack.c.b16 %v3483, %v3479
    %v3868 = vpack.c.b16 %v3484, %v3480
    %v3869 = vpack.c.b16 %v3485, %v3481
    %v3870 = vpack.c.b16 %v3490, %v3486
    %v3871 = vpack.c.b16 %v3491, %v3487
    %v3872 = vpack.c.b16 %v3492, %v3488
    %v3873 = vpack.c.b16 %v3493, %v3489
    %v3874 = vpack.c.b16 %v3498, %v3494
    %v3875 = vpack.c.b16 %v3499, %v3495
    %v3876 = vpack.c.b16 %v3500, %v3496
    %v3877 = vpack.c.b16 %v3501, %v3497
    %v3878 = vpack.c.b16 %v3506, %v3502
    %v3879 = vpack.c.b16 %v3507, %v3503
    %v3880 = vpack.c.b16 %v3508, %v3504
    %v3881 = vpack.c.b16 %v3509, %v3505
    %v3882 = vpack.c.b16 %v3514, %v3510
    %v3883 = vpack.c.b16 %v3515, %v3511
    %v3884 = vpack.c.b16 %v3516, %v3512
    %v3885 = vpack.c.b16 %v3517, %v3513
    %v3886 = vpack.c.b16 %v3522, %v3518
    %v3887 = vpack.c.b16 %v3523, %v3519
    %v3888 = vpack.c.b16 %v3524, %v3520
    %v3889 = vpack.c.b16 %v3525, %v3521
    %v3890 = vpack.c.b16 %v3530, %v3526
    %v3891 = vpack.c.b16 %v3531, %v3527
    %v3892 = vpack.c.b16 %v3532, %v3528
    %v3893 = vpack.c.b16 %v3533, %v3529
    %v3894 = vpack.c.b16 %v3538, %v3534
    %v3895 = vpack.c.b16 %v3539, %v3535
    %v3896 = vpack.c.b16 %v3540, %v3536
    %v3897 = vpack.c.b16 %v3541, %v3537
    %v3898 = vpack.c.b16 %v3546, %v3542
    %v3899 = vpack.c.b16 %v3547, %v3543
    %v3900 = vpack.c.b16 %v3548, %v3544
    %v3901 = vpack.c.b16 %v3549, %v3545
    %v3902 = vpack.c.b16 %v3554, %v3550
    %v3903 = vpack.c.b16 %v3555, %v3551
    %v3904 = vpack.c.b16 %v3556, %v3552
    %v3905 = vpack.c.b16 %v3557, %v3553
    %v3906 = vpack.c.b16 %v3562, %v3558
    %v3907 = vpack.c.b16 %v3563, %v3559
    %v3908 = vpack.c.b16 %v3564, %v3560
    %v3909 = vpack.c.b16 %v3565, %v3561
    %v3910 = vpack.c.b16 %v3570, %v3566
    %v3911 = vpack.c.b16 %v3571, %v3567
    %v3912 = vpack.c.b16 %v3572, %v3568
    %v3913 = vpack.c.b16 %v3573, %v3569
    %v3914 = vpack.c.b16 %v3578, %v3574
    %v3915 = vpack.c.b16 %v3579, %v3575
    %v3916 = vpack.c.b16 %v3580, %v3576
    %v3917 = vpack.c.b16 %v3581, %v3577
    %v3918 = vpack.c.b16 %v3586, %v3582
    %v3919 = vpack.c.b16 %v3587, %v3583
    %v3920 = vpack.c.b16 %v3588, %v3584
    %v3921 = vpack.c.b16 %v3589, %v3585
    %v3922 = vpack.c.b16 %v3594, %v3590
    %v3923 = vpack.c.b16 %v3595, %v3591
    %v3924 = vpack.c.b16 %v3596, %v3592
    %v3925 = vpack.c.b16 %v3597, %v3593
    %v3926 = vpack.c.b16 %v3602, %v3598
    %v3927 = vpack.c.b16 %v3603, %v3599
    %v3928 = vpack.c.b16 %v3604, %v3600
    %v3929 = vpack.c.b16 %v3605, %v3601
    %v3930 = vpack.c.b16 %v3610, %v3606
    %v3931 = vpack.c.b16 %v3611, %v3607
    %v3932 = vpack.c.b16 %v3612, %v3608
    %v3933 = vpack.c.b16 %v3613, %v3609
    %v3934 = vpack.c.b16 %v3618, %v3614
    %v3935 = vpack.c.b16 %v3619, %v3615
    %v3936 = vpack.c.b16 %v3620, %v3616
    %v3937 = vpack.c.b16 %v3621, %v3617
    %v3938 = vpack.c.b16 %v3626, %v3622
    %v3939 = vpack.c.b16 %v3627, %v3623
    %v3940 = vpack.c.b16 %v3628, %v3624
    %v3941 = vpack.c.b16 %v3629, %v3625
    %v3942 = vpack.c.b16 %v3634, %v3630
    %v3943 = vpack.c.b16 %v3635, %v3631
    %v3944 = vpack.c.b16 %v3636, %v3632
    %v3945 = vpack.c.b16 %v3637, %v3633
    %v3946 = vpack.c.b16 %v3642, %v3638
    %v3947 = vpack.c.b16 %v3643, %v3639
    %v3948 = vpack.c.b16 %v3644, %v3640
    %v3949 = vpack.c.b16 %v3645, %v3641
    %v3950 = vpack.c.b16 %v3650, %v3646
    %v3951 = vpack.c.b16 %v3651, %v3647
    %v3952 = vpack.c.b16 %v3652, %v3648
    %v3953 = vpack.c.b16 %v3653, %v3649
    %v3954 = vpack.c.b16 %v3658, %v3654
    %v3955 = vpack.c.b16 %v3659, %v3655
    %v3956 = vpack.c.b16 %v3660, %v3656
    %v3957 = vpack.c.b16 %v3661, %v3657
    %v3958 = vpack.c.b16 %v3666, %v3662
    %v3959 = vpack.c.b16 %v3667, %v3663
    %v3960 = vpack.c.b16 %v3668, %v3664
    %v3961 = vpack.c.b16 %v3669, %v3665
    %v3962 = vpack.c.b16 %v3674, %v3670
    %v3963 = vpack.c.b16 %v3675, %v3671
    %v3964 = vpack.c.b16 %v3676, %v3672
    %v3965 = vpack.c.b16 %v3677, %v3673
    %v3966 = vpack.c.b16 %v3682, %v3678
    %v3967 = vpack.c.b16 %v3683, %v3679
    %v3968 = vpack.c.b16 %v3684, %v3680
    %v3969 = vpack.c.b16 %v3685, %v3681
    %v3970 = vpack.c.b16 %v3690, %v3686
    %v3971 = vpack.c.b16 %v3691, %v3687
    %v3972 = vpack.c.b16 %v3692, %v3688
    %v3973 = vpack.c.b16 %v3693, %v3689
    %v3974 = vpack.c.b16 %v3698, %v3694
    %v3975 = vpack.c.b16 %v3699, %v3695
    %v3976 = vpack.c.b16 %v3700, %v3696
    %v3977 = vpack.c.b16 %v3701, %v3697
    %v3978 = vpack.c.b16 %v3706, %v3702
    %v3979 = vpack.c.b16 %v3707, %v3703
    %v3980 = vpack.c.b16 %v3708, %v3704
    %v3981 = vpack.c.b16 %v3709, %v3705
    %v3982 = vpack.c.b16 %v3714, %v3710
    %v3983 = vpack.c.b16 %v3715, %v3711
    %v3984 = vpack.c.b16 %v3716, %v3712
    %v3985 = vpack.c.b16 %v3717, %v3713
    %v3986 = vpack.c.b16 %v3722, %v3718
    %v3987 = vpack.c.b16 %v3723, %v3719
    %v3988 = vpack.c.b16 %v3724, %v3720
    %v3989 = vpack.c.b16 %v3725, %v3721
    %v3990 = vpack.c.b16 %v3730, %v3726
    %v3991 = vpack.c.b16 %v3731, %v3727
    %v3992 = vpack.c.b16 %v3732, %v3728
    %v3993 = vpack.c.b16 %v3733, %v3729
    %v3994 = vpack.c.b16 %v3734, %v3734
    %v3995 = vpack.c.b16 %v3735, %v3735
    %v3996 = vpack.c.b16 %v3736, %v3736
    %v3997 = vpack.c.b16 %v3737, %v3737
    %v4255 = vsel %vm2412, %v292, 0
    %v4258 = vsel %vm2412, %v301, 0
    %v4261 = vand.u32 %v3994, %v2421
    %v4264 = vand.u32 %v3995, %v2421
    %v4267 = vand.u32 %v3996, %v2421
    %v4270 = vand.u32 %v3997, %v2421
    %4272 = vmatprep.subr.bf16.mxu0 %v3767
    %4273 = vmatpush1.bf16.msra.mxu0 %v3766
    %4274 = vmatprep.subr.bf16.mxu0 %v3763
    %4275 = vmatpush1.bf16.msra.mxu0 %v3762
    %4276 = vmatprep.subr.bf16.mxu0 %v3759
    %4277 = vmatpush1.bf16.msra.mxu0 %v3758
    %4278 = vmatprep.subr.bf16.mxu0 %v3755
    %4279 = vmatpush1.bf16.msra.mxu0 %v3754
    %4280 = vmatprep.subr.bf16.mxu0 %v3751
    %4281 = vmatpush1.bf16.msra.mxu0 %v3750
    %4282 = vmatprep.subr.bf16.mxu0 %v3747
    %4283 = vmatpush1.bf16.msra.mxu0 %v3746
    %4284 = vmatprep.subr.bf16.mxu0 %v3743
    %4285 = vmatpush1.bf16.msra.mxu0 %v3742
    %4286 = vmatprep.subr.bf16.mxu0 %v3739
    %4287 = vmatpush1.bf16.msra.mxu0 %v3738
    %4288 = vmatprep.subr.bf16.mxu0 %v3799
    %4289 = vmatpush2.bf16.msra.mxu0 %v3798
    %4290 = vmatprep.subr.bf16.mxu0 %v3795
    %4291 = vmatpush2.bf16.msra.mxu0 %v3794
    %4292 = vmatprep.subr.bf16.mxu0 %v3791
    %4293 = vmatpush2.bf16.msra.mxu0 %v3790
    %4294 = vmatprep.subr.bf16.mxu0 %v3787
    %4295 = vmatpush2.bf16.msra.mxu0 %v3786
    %4296 = vmatprep.subr.bf16.mxu0 %v3783
    %4297 = vmatpush2.bf16.msra.mxu0 %v3782
    %4298 = vmatprep.subr.bf16.mxu0 %v3779
    %4299 = vmatpush2.bf16.msra.mxu0 %v3778
    %4300 = vmatprep.subr.bf16.mxu0 %v3775
    %4301 = vmatpush2.bf16.msra.mxu0 %v3774
    %4302 = vmatprep.subr.bf16.mxu0 %v3771
    %4303 = vmatpush2.bf16.msra.mxu0 %v3770
    %4304 = vmatprep.mubr.bf16.mxu0 %v285
    %4305 = vmatmul.mubr.bf16.gmra.mxu0 %v284
    %v4306 = vpop.f32.mrf.mxu0
    %v4307 = vadd.f32 %v2681, %v4306
    %v4308 = vpop.f32.mrf.mxu0
    %v4309 = vadd.f32 %v2683, %v4308
    %v4310 = vpop.f32.mrf.mxu0
    %v4311 = vadd.f32 %v2685, %v4310
    %v4312 = vpop.f32.mrf.mxu0
    %v4313 = vadd.f32 %v2687, %v4312
    %4314 = vmatprep.mubr.bf16.mxu0 %v294
    %4315 = vmatmul.mubr.bf16.gmra.mxu0 %v293
    %v4316 = vpop.f32.mrf.mxu0
    %v4317 = vadd.f32 %v2691, %v4316
    %v4318 = vpop.f32.mrf.mxu0
    %v4319 = vadd.f32 %v2693, %v4318
    %v4320 = vpop.f32.mrf.mxu0
    %v4321 = vadd.f32 %v2695, %v4320
    %v4322 = vpop.f32.mrf.mxu0
    %v4323 = vadd.f32 %v2697, %v4322
    %4324 = vdwg.mxu0
    %4325 = vmatprep.subr.bf16.mxu0 %v3831
    %4326 = vmatpush1.bf16.msra.mxu0 %v3830
    %4327 = vmatprep.subr.bf16.mxu0 %v3827
    %4328 = vmatpush1.bf16.msra.mxu0 %v3826
    %4329 = vmatprep.subr.bf16.mxu0 %v3823
    %4330 = vmatpush1.bf16.msra.mxu0 %v3822
    %4331 = vmatprep.subr.bf16.mxu0 %v3819
    %4332 = vmatpush1.bf16.msra.mxu0 %v3818
    %4333 = vmatprep.subr.bf16.mxu0 %v3815
    %4334 = vmatpush1.bf16.msra.mxu0 %v3814
    %4335 = vmatprep.subr.bf16.mxu0 %v3811
    %4336 = vmatpush1.bf16.msra.mxu0 %v3810
    %4337 = vmatprep.subr.bf16.mxu0 %v3807
    %4338 = vmatpush1.bf16.msra.mxu0 %v3806
    %4339 = vmatprep.subr.bf16.mxu0 %v3803
    %4340 = vmatpush1.bf16.msra.mxu0 %v3802
    %4341 = vmatprep.subr.bf16.mxu0 %v3863
    %4342 = vmatpush2.bf16.msra.mxu0 %v3862
    %4343 = vmatprep.subr.bf16.mxu0 %v3859
    %4344 = vmatpush2.bf16.msra.mxu0 %v3858
    %4345 = vmatprep.subr.bf16.mxu0 %v3855
    %4346 = vmatpush2.bf16.msra.mxu0 %v3854
    %4347 = vmatprep.subr.bf16.mxu0 %v3851
    %4348 = vmatpush2.bf16.msra.mxu0 %v3850
    %4349 = vmatprep.subr.bf16.mxu0 %v3847
    %4350 = vmatpush2.bf16.msra.mxu0 %v3846
    %4351 = vmatprep.subr.bf16.mxu0 %v3843
    %4352 = vmatpush2.bf16.msra.mxu0 %v3842
    %4353 = vmatprep.subr.bf16.mxu0 %v3839
    %4354 = vmatpush2.bf16.msra.mxu0 %v3838
    %4355 = vmatprep.subr.bf16.mxu0 %v3835
    %4356 = vmatpush2.bf16.msra.mxu0 %v3834
    %4357 = vmatprep.mubr.bf16.mxu0 %v287
    %4358 = vmatmul.mubr.bf16.gmra.mxu0 %v286
    %v4359 = vpop.f32.mrf.mxu0
    %v4360 = vadd.f32 %v4307, %v4359
    %v4361 = vpop.f32.mrf.mxu0
    %v4362 = vadd.f32 %v4309, %v4361
    %v4363 = vpop.f32.mrf.mxu0
    %v4364 = vadd.f32 %v4311, %v4363
    %v4365 = vpop.f32.mrf.mxu0
    %v4366 = vadd.f32 %v4313, %v4365
    %4367 = vmatprep.mubr.bf16.mxu0 %v296
    %4368 = vmatmul.mubr.bf16.gmra.mxu0 %v295
    %v4369 = vpop.f32.mrf.mxu0
    %v4370 = vadd.f32 %v4317, %v4369
    %v4371 = vpop.f32.mrf.mxu0
    %v4372 = vadd.f32 %v4319, %v4371
    %v4373 = vpop.f32.mrf.mxu0
    %v4374 = vadd.f32 %v4321, %v4373
    %v4375 = vpop.f32.mrf.mxu0
    %v4376 = vadd.f32 %v4323, %v4375
    %4377 = vdwg.mxu0
    %4378 = vmatprep.subr.bf16.mxu0 %v3895
    %4379 = vmatpush1.bf16.msra.mxu0 %v3894
    %4380 = vmatprep.subr.bf16.mxu0 %v3891
    %4381 = vmatpush1.bf16.msra.mxu0 %v3890
    %4382 = vmatprep.subr.bf16.mxu0 %v3887
    %4383 = vmatpush1.bf16.msra.mxu0 %v3886
    %4384 = vmatprep.subr.bf16.mxu0 %v3883
    %4385 = vmatpush1.bf16.msra.mxu0 %v3882
    %4386 = vmatprep.subr.bf16.mxu0 %v3879
    %4387 = vmatpush1.bf16.msra.mxu0 %v3878
    %4388 = vmatprep.subr.bf16.mxu0 %v3875
    %4389 = vmatpush1.bf16.msra.mxu0 %v3874
    %4390 = vmatprep.subr.bf16.mxu0 %v3871
    %4391 = vmatpush1.bf16.msra.mxu0 %v3870
    %4392 = vmatprep.subr.bf16.mxu0 %v3867
    %4393 = vmatpush1.bf16.msra.mxu0 %v3866
    %4394 = vmatprep.subr.bf16.mxu0 %v3927
    %4395 = vmatpush2.bf16.msra.mxu0 %v3926
    %4396 = vmatprep.subr.bf16.mxu0 %v3923
    %4397 = vmatpush2.bf16.msra.mxu0 %v3922
    %4398 = vmatprep.subr.bf16.mxu0 %v3919
    %4399 = vmatpush2.bf16.msra.mxu0 %v3918
    %4400 = vmatprep.subr.bf16.mxu0 %v3915
    %4401 = vmatpush2.bf16.msra.mxu0 %v3914
    %4402 = vmatprep.subr.bf16.mxu0 %v3911
    %4403 = vmatpush2.bf16.msra.mxu0 %v3910
    %4404 = vmatprep.subr.bf16.mxu0 %v3907
    %4405 = vmatpush2.bf16.msra.mxu0 %v3906
    %4406 = vmatprep.subr.bf16.mxu0 %v3903
    %4407 = vmatpush2.bf16.msra.mxu0 %v3902
    %4408 = vmatprep.subr.bf16.mxu0 %v3899
    %4409 = vmatpush2.bf16.msra.mxu0 %v3898
    %4410 = vmatprep.mubr.bf16.mxu0 %v289
    %4411 = vmatmul.mubr.bf16.gmra.mxu0 %v288
    %v4412 = vpop.f32.mrf.mxu0
    %v4413 = vadd.f32 %v4360, %v4412
    %v4414 = vpop.f32.mrf.mxu0
    %v4415 = vadd.f32 %v4362, %v4414
    %v4416 = vpop.f32.mrf.mxu0
    %v4417 = vadd.f32 %v4364, %v4416
    %v4418 = vpop.f32.mrf.mxu0
    %v4419 = vadd.f32 %v4366, %v4418
    %4420 = vmatprep.mubr.bf16.mxu0 %v298
    %4421 = vmatmul.mubr.bf16.gmra.mxu0 %v297
    %v4422 = vpop.f32.mrf.mxu0
    %v4423 = vadd.f32 %v4370, %v4422
    %v4424 = vpop.f32.mrf.mxu0
    %v4425 = vadd.f32 %v4372, %v4424
    %v4426 = vpop.f32.mrf.mxu0
    %v4427 = vadd.f32 %v4374, %v4426
    %v4428 = vpop.f32.mrf.mxu0
    %v4429 = vadd.f32 %v4376, %v4428
    %4430 = vdwg.mxu0
    %4431 = vmatprep.subr.bf16.mxu0 %v3959
    %4432 = vmatpush1.bf16.msra.mxu0 %v3958
    %4433 = vmatprep.subr.bf16.mxu0 %v3955
    %4434 = vmatpush1.bf16.msra.mxu0 %v3954
    %4435 = vmatprep.subr.bf16.mxu0 %v3951
    %4436 = vmatpush1.bf16.msra.mxu0 %v3950
    %4437 = vmatprep.subr.bf16.mxu0 %v3947
    %4438 = vmatpush1.bf16.msra.mxu0 %v3946
    %4439 = vmatprep.subr.bf16.mxu0 %v3943
    %4440 = vmatpush1.bf16.msra.mxu0 %v3942
    %4441 = vmatprep.subr.bf16.mxu0 %v3939
    %4442 = vmatpush1.bf16.msra.mxu0 %v3938
    %4443 = vmatprep.subr.bf16.mxu0 %v3935
    %4444 = vmatpush1.bf16.msra.mxu0 %v3934
    %4445 = vmatprep.subr.bf16.mxu0 %v3931
    %4446 = vmatpush1.bf16.msra.mxu0 %v3930
    %4447 = vmatprep.subr.bf16.mxu0 %v3991
    %4448 = vmatpush2.bf16.msra.mxu0 %v3990
    %4449 = vmatprep.subr.bf16.mxu0 %v3987
    %4450 = vmatpush2.bf16.msra.mxu0 %v3986
    %4451 = vmatprep.subr.bf16.mxu0 %v3983
    %4452 = vmatpush2.bf16.msra.mxu0 %v3982
    %4453 = vmatprep.subr.bf16.mxu0 %v3979
    %4454 = vmatpush2.bf16.msra.mxu0 %v3978
    %4455 = vmatprep.subr.bf16.mxu0 %v3975
    %4456 = vmatpush2.bf16.msra.mxu0 %v3974
    %4457 = vmatprep.subr.bf16.mxu0 %v3971
    %4458 = vmatpush2.bf16.msra.mxu0 %v3970
    %4459 = vmatprep.subr.bf16.mxu0 %v3967
    %4460 = vmatpush2.bf16.msra.mxu0 %v3966
    %4461 = vmatprep.subr.bf16.mxu0 %v3963
    %4462 = vmatpush2.bf16.msra.mxu0 %v3962
    %4463 = vmatprep.mubr.bf16.mxu0 %v291
    %4464 = vmatmul.mubr.bf16.gmra.mxu0 %v290
    %v4465 = vpop.f32.mrf.mxu0
    %v4466 = vadd.f32 %v4413, %v4465
    %v4467 = vpop.f32.mrf.mxu0
    %v4468 = vadd.f32 %v4415, %v4467
    %v4469 = vpop.f32.mrf.mxu0
    %v4470 = vadd.f32 %v4417, %v4469
    %v4471 = vpop.f32.mrf.mxu0
    %v4472 = vadd.f32 %v4419, %v4471
    %4473 = vmatprep.mubr.bf16.mxu0 %v300
    %4474 = vmatmul.mubr.bf16.gmra.mxu0 %v299
    %v4475 = vpop.f32.mrf.mxu0
    %v4476 = vadd.f32 %v4423, %v4475
    %v4477 = vpop.f32.mrf.mxu0
    %v4478 = vadd.f32 %v4425, %v4477
    %v4479 = vpop.f32.mrf.mxu0
    %v4480 = vadd.f32 %v4427, %v4479
    %v4481 = vpop.f32.mrf.mxu0
    %v4482 = vadd.f32 %v4429, %v4481
    %4483 = vdwg.mxu0
    %4484 = vmatprep.subr.bf16.mxu0 0
    %4485 = vmatpush1.bf16.msra.mxu0 0
    %4486 = vmatprep.subr.bf16.mxu0 0
    %4487 = vmatpush1.bf16.msra.mxu0 0
    %4488 = vmatprep.subr.bf16.mxu0 0
    %4489 = vmatpush1.bf16.msra.mxu0 0
    %4490 = vmatprep.subr.bf16.mxu0 0
    %4491 = vmatpush1.bf16.msra.mxu0 0
    %4492 = vmatprep.subr.bf16.mxu0 0
    %4493 = vmatpush1.bf16.msra.mxu0 0
    %4494 = vmatprep.subr.bf16.mxu0 0
    %4495 = vmatpush1.bf16.msra.mxu0 0
    %4496 = vmatprep.subr.bf16.mxu0 0
    %4497 = vmatpush1.bf16.msra.mxu0 0
    %4498 = vmatprep.subr.bf16.mxu0 %v4264
    %4499 = vmatpush1.bf16.msra.mxu0 %v4261
    %4500 = vmatprep.subr.bf16.mxu0 0
    %4501 = vmatpush2.bf16.msra.mxu0 0
    %4502 = vmatprep.subr.bf16.mxu0 0
    %4503 = vmatpush2.bf16.msra.mxu0 0
    %4504 = vmatprep.subr.bf16.mxu0 0
    %4505 = vmatpush2.bf16.msra.mxu0 0
    %4506 = vmatprep.subr.bf16.mxu0 0
    %4507 = vmatpush2.bf16.msra.mxu0 0
    %4508 = vmatprep.subr.bf16.mxu0 0
    %4509 = vmatpush2.bf16.msra.mxu0 0
    %4510 = vmatprep.subr.bf16.mxu0 0
    %4511 = vmatpush2.bf16.msra.mxu0 0
    %4512 = vmatprep.subr.bf16.mxu0 0
    %4513 = vmatpush2.bf16.msra.mxu0 0
    %4514 = vmatprep.subr.bf16.mxu0 0
    %4515 = vmatpush2.bf16.msra.mxu0 0
    %4516 = vmatprep.mubr.bf16.mxu0 0
    %4517 = vmatmul.mubr.bf16.gmra.mxu0 %v4255
    %v4518 = vpop.f32.mrf.mxu0
    %v4519 = vadd.f32 %v4466, %v4518
    %v4520 = vpop.f32.mrf.mxu0
    %v4521 = vadd.f32 %v4468, %v4520
    %v4522 = vpop.f32.mrf.mxu0
    %v4523 = vadd.f32 %v4470, %v4522
    %v4524 = vpop.f32.mrf.mxu0
    %v4525 = vadd.f32 %v4472, %v4524
    %4526 = vmatprep.mubr.bf16.mxu0 0
    %4527 = vmatmul.mubr.bf16.gmra.mxu0 %v4258
    %v4528 = vpop.f32.mrf.mxu0
    %v4529 = vadd.f32 %v4476, %v4528
    %v4530 = vpop.f32.mrf.mxu0
    %v4531 = vadd.f32 %v4478, %v4530
    %v4532 = vpop.f32.mrf.mxu0
    %v4533 = vadd.f32 %v4480, %v4532
    %v4534 = vpop.f32.mrf.mxu0
    %v4535 = vadd.f32 %v4482, %v4534
    %4536 = vdwg.mxu0
    %4537 = vmatprep.subr.bf16.mxu0 %v3769
    %4538 = vmatpush1.bf16.msra.mxu0 %v3768
    %4539 = vmatprep.subr.bf16.mxu0 %v3765
    %4540 = vmatpush1.bf16.msra.mxu0 %v3764
    %4541 = vmatprep.subr.bf16.mxu0 %v3761
    %4542 = vmatpush1.bf16.msra.mxu0 %v3760
    %4543 = vmatprep.subr.bf16.mxu0 %v3757
    %4544 = vmatpush1.bf16.msra.mxu0 %v3756
    %4545 = vmatprep.subr.bf16.mxu0 %v3753
    %4546 = vmatpush1.bf16.msra.mxu0 %v3752
    %4547 = vmatprep.subr.bf16.mxu0 %v3749
    %4548 = vmatpush1.bf16.msra.mxu0 %v3748
    %4549 = vmatprep.subr.bf16.mxu0 %v3745
    %4550 = vmatpush1.bf16.msra.mxu0 %v3744
    %4551 = vmatprep.subr.bf16.mxu0 %v3741
    %4552 = vmatpush1.bf16.msra.mxu0 %v3740
    %4553 = vmatprep.subr.bf16.mxu0 %v3801
    %4554 = vmatpush2.bf16.msra.mxu0 %v3800
    %4555 = vmatprep.subr.bf16.mxu0 %v3797
    %4556 = vmatpush2.bf16.msra.mxu0 %v3796
    %4557 = vmatprep.subr.bf16.mxu0 %v3793
    %4558 = vmatpush2.bf16.msra.mxu0 %v3792
    %4559 = vmatprep.subr.bf16.mxu0 %v3789
    %4560 = vmatpush2.bf16.msra.mxu0 %v3788
    %4561 = vmatprep.subr.bf16.mxu0 %v3785
    %4562 = vmatpush2.bf16.msra.mxu0 %v3784
    %4563 = vmatprep.subr.bf16.mxu0 %v3781
    %4564 = vmatpush2.bf16.msra.mxu0 %v3780
    %4565 = vmatprep.subr.bf16.mxu0 %v3777
    %4566 = vmatpush2.bf16.msra.mxu0 %v3776
    %4567 = vmatprep.subr.bf16.mxu0 %v3773
    %4568 = vmatpush2.bf16.msra.mxu0 %v3772
    %4569 = vmatprep.mubr.bf16.mxu0 %v285
    %4570 = vmatmul.mubr.bf16.gmra.mxu0 %v284
    %v4571 = vpop.f32.mrf.mxu0
    %v4572 = vadd.f32 %v2946, %v4571
    %v4573 = vpop.f32.mrf.mxu0
    %v4574 = vadd.f32 %v2948, %v4573
    %v4575 = vpop.f32.mrf.mxu0
    %v4576 = vadd.f32 %v2950, %v4575
    %v4577 = vpop.f32.mrf.mxu0
    %v4578 = vadd.f32 %v2952, %v4577
    %4579 = vmatprep.mubr.bf16.mxu0 %v294
    %4580 = vmatmul.mubr.bf16.gmra.mxu0 %v293
    %v4581 = vpop.f32.mrf.mxu0
    %v4582 = vadd.f32 %v2956, %v4581
    %v4583 = vpop.f32.mrf.mxu0
    %v4584 = vadd.f32 %v2958, %v4583
    %v4585 = vpop.f32.mrf.mxu0
    %v4586 = vadd.f32 %v2960, %v4585
    %v4587 = vpop.f32.mrf.mxu0
    %v4588 = vadd.f32 %v2962, %v4587
    %4589 = vdwg.mxu0
    %4590 = vmatprep.subr.bf16.mxu0 %v3833
    %4591 = vmatpush1.bf16.msra.mxu0 %v3832
    %4592 = vmatprep.subr.bf16.mxu0 %v3829
    %4593 = vmatpush1.bf16.msra.mxu0 %v3828
    %4594 = vmatprep.subr.bf16.mxu0 %v3825
    %4595 = vmatpush1.bf16.msra.mxu0 %v3824
    %4596 = vmatprep.subr.bf16.mxu0 %v3821
    %4597 = vmatpush1.bf16.msra.mxu0 %v3820
    %4598 = vmatprep.subr.bf16.mxu0 %v3817
    %4599 = vmatpush1.bf16.msra.mxu0 %v3816
    %4600 = vmatprep.subr.bf16.mxu0 %v3813
    %4601 = vmatpush1.bf16.msra.mxu0 %v3812
    %4602 = vmatprep.subr.bf16.mxu0 %v3809
    %4603 = vmatpush1.bf16.msra.mxu0 %v3808
    %4604 = vmatprep.subr.bf16.mxu0 %v3805
    %4605 = vmatpush1.bf16.msra.mxu0 %v3804
    %4606 = vmatprep.subr.bf16.mxu0 %v3865
    %4607 = vmatpush2.bf16.msra.mxu0 %v3864
    %4608 = vmatprep.subr.bf16.mxu0 %v3861
    %4609 = vmatpush2.bf16.msra.mxu0 %v3860
    %4610 = vmatprep.subr.bf16.mxu0 %v3857
    %4611 = vmatpush2.bf16.msra.mxu0 %v3856
    %4612 = vmatprep.subr.bf16.mxu0 %v3853
    %4613 = vmatpush2.bf16.msra.mxu0 %v3852
    %4614 = vmatprep.subr.bf16.mxu0 %v3849
    %4615 = vmatpush2.bf16.msra.mxu0 %v3848
    %4616 = vmatprep.subr.bf16.mxu0 %v3845
    %4617 = vmatpush2.bf16.msra.mxu0 %v3844
    %4618 = vmatprep.subr.bf16.mxu0 %v3841
    %4619 = vmatpush2.bf16.msra.mxu0 %v3840
    %4620 = vmatprep.subr.bf16.mxu0 %v3837
    %4621 = vmatpush2.bf16.msra.mxu0 %v3836
    %4622 = vmatprep.mubr.bf16.mxu0 %v287
    %4623 = vmatmul.mubr.bf16.gmra.mxu0 %v286
    %v4624 = vpop.f32.mrf.mxu0
    %v4625 = vadd.f32 %v4572, %v4624
    %v4626 = vpop.f32.mrf.mxu0
    %v4627 = vadd.f32 %v4574, %v4626
    %v4628 = vpop.f32.mrf.mxu0
    %v4629 = vadd.f32 %v4576, %v4628
    %v4630 = vpop.f32.mrf.mxu0
    %v4631 = vadd.f32 %v4578, %v4630
    %4632 = vmatprep.mubr.bf16.mxu0 %v296
    %4633 = vmatmul.mubr.bf16.gmra.mxu0 %v295
    %v4634 = vpop.f32.mrf.mxu0
    %v4635 = vadd.f32 %v4582, %v4634
    %v4636 = vpop.f32.mrf.mxu0
    %v4637 = vadd.f32 %v4584, %v4636
    %v4638 = vpop.f32.mrf.mxu0
    %v4639 = vadd.f32 %v4586, %v4638
    %v4640 = vpop.f32.mrf.mxu0
    %v4641 = vadd.f32 %v4588, %v4640
    %4642 = vdwg.mxu0
    %4643 = vmatprep.subr.bf16.mxu0 %v3897
    %4644 = vmatpush1.bf16.msra.mxu0 %v3896
    %4645 = vmatprep.subr.bf16.mxu0 %v3893
    %4646 = vmatpush1.bf16.msra.mxu0 %v3892
    %4647 = vmatprep.subr.bf16.mxu0 %v3889
    %4648 = vmatpush1.bf16.msra.mxu0 %v3888
    %4649 = vmatprep.subr.bf16.mxu0 %v3885
    %4650 = vmatpush1.bf16.msra.mxu0 %v3884
    %4651 = vmatprep.subr.bf16.mxu0 %v3881
    %4652 = vmatpush1.bf16.msra.mxu0 %v3880
    %4653 = vmatprep.subr.bf16.mxu0 %v3877
    %4654 = vmatpush1.bf16.msra.mxu0 %v3876
    %4655 = vmatprep.subr.bf16.mxu0 %v3873
    %4656 = vmatpush1.bf16.msra.mxu0 %v3872
    %4657 = vmatprep.subr.bf16.mxu0 %v3869
    %4658 = vmatpush1.bf16.msra.mxu0 %v3868
    %4659 = vmatprep.subr.bf16.mxu0 %v3929
    %4660 = vmatpush2.bf16.msra.mxu0 %v3928
    %4661 = vmatprep.subr.bf16.mxu0 %v3925
    %4662 = vmatpush2.bf16.msra.mxu0 %v3924
    %4663 = vmatprep.subr.bf16.mxu0 %v3921
    %4664 = vmatpush2.bf16.msra.mxu0 %v3920
    %4665 = vmatprep.subr.bf16.mxu0 %v3917
    %4666 = vmatpush2.bf16.msra.mxu0 %v3916
    %4667 = vmatprep.subr.bf16.mxu0 %v3913
    %4668 = vmatpush2.bf16.msra.mxu0 %v3912
    %4669 = vmatprep.subr.bf16.mxu0 %v3909
    %4670 = vmatpush2.bf16.msra.mxu0 %v3908
    %4671 = vmatprep.subr.bf16.mxu0 %v3905
    %4672 = vmatpush2.bf16.msra.mxu0 %v3904
    %4673 = vmatprep.subr.bf16.mxu0 %v3901
    %4674 = vmatpush2.bf16.msra.mxu0 %v3900
    %4675 = vmatprep.mubr.bf16.mxu0 %v289
    %4676 = vmatmul.mubr.bf16.gmra.mxu0 %v288
    %v4677 = vpop.f32.mrf.mxu0
    %v4678 = vadd.f32 %v4625, %v4677
    %v4679 = vpop.f32.mrf.mxu0
    %v4680 = vadd.f32 %v4627, %v4679
    %v4681 = vpop.f32.mrf.mxu0
    %v4682 = vadd.f32 %v4629, %v4681
    %v4683 = vpop.f32.mrf.mxu0
    %v4684 = vadd.f32 %v4631, %v4683
    %4685 = vmatprep.mubr.bf16.mxu0 %v298
    %4686 = vmatmul.mubr.bf16.gmra.mxu0 %v297
    %v4687 = vpop.f32.mrf.mxu0
    %v4688 = vadd.f32 %v4635, %v4687
    %v4689 = vpop.f32.mrf.mxu0
    %v4690 = vadd.f32 %v4637, %v4689
    %v4691 = vpop.f32.mrf.mxu0
    %v4692 = vadd.f32 %v4639, %v4691
    %v4693 = vpop.f32.mrf.mxu0
    %v4694 = vadd.f32 %v4641, %v4693
    %4695 = vdwg.mxu0
    %4696 = vmatprep.subr.bf16.mxu0 %v3961
    %4697 = vmatpush1.bf16.msra.mxu0 %v3960
    %4698 = vmatprep.subr.bf16.mxu0 %v3957
    %4699 = vmatpush1.bf16.msra.mxu0 %v3956
    %4700 = vmatprep.subr.bf16.mxu0 %v3953
    %4701 = vmatpush1.bf16.msra.mxu0 %v3952
    %4702 = vmatprep.subr.bf16.mxu0 %v3949
    %4703 = vmatpush1.bf16.msra.mxu0 %v3948
    %4704 = vmatprep.subr.bf16.mxu0 %v3945
    %4705 = vmatpush1.bf16.msra.mxu0 %v3944
    %4706 = vmatprep.subr.bf16.mxu0 %v3941
    %4707 = vmatpush1.bf16.msra.mxu0 %v3940
    %4708 = vmatprep.subr.bf16.mxu0 %v3937
    %4709 = vmatpush1.bf16.msra.mxu0 %v3936
    %4710 = vmatprep.subr.bf16.mxu0 %v3933
    %4711 = vmatpush1.bf16.msra.mxu0 %v3932
    %4712 = vmatprep.subr.bf16.mxu0 %v3993
    %4713 = vmatpush2.bf16.msra.mxu0 %v3992
    %4714 = vmatprep.subr.bf16.mxu0 %v3989
    %4715 = vmatpush2.bf16.msra.mxu0 %v3988
    %4716 = vmatprep.subr.bf16.mxu0 %v3985
    %4717 = vmatpush2.bf16.msra.mxu0 %v3984
    %4718 = vmatprep.subr.bf16.mxu0 %v3981
    %4719 = vmatpush2.bf16.msra.mxu0 %v3980
    %4720 = vmatprep.subr.bf16.mxu0 %v3977
    %4721 = vmatpush2.bf16.msra.mxu0 %v3976
    %4722 = vmatprep.subr.bf16.mxu0 %v3973
    %4723 = vmatpush2.bf16.msra.mxu0 %v3972
    %4724 = vmatprep.subr.bf16.mxu0 %v3969
    %4725 = vmatpush2.bf16.msra.mxu0 %v3968
    %4726 = vmatprep.subr.bf16.mxu0 %v3965
    %4727 = vmatpush2.bf16.msra.mxu0 %v3964
    %4728 = vmatprep.mubr.bf16.mxu0 %v291
    %4729 = vmatmul.mubr.bf16.gmra.mxu0 %v290
    %v4730 = vpop.f32.mrf.mxu0
    %v4731 = vadd.f32 %v4678, %v4730
    %v4732 = vpop.f32.mrf.mxu0
    %v4733 = vadd.f32 %v4680, %v4732
    %v4734 = vpop.f32.mrf.mxu0
    %v4735 = vadd.f32 %v4682, %v4734
    %v4736 = vpop.f32.mrf.mxu0
    %v4737 = vadd.f32 %v4684, %v4736
    %4738 = vmatprep.mubr.bf16.mxu0 %v300
    %4739 = vmatmul.mubr.bf16.gmra.mxu0 %v299
    %v4740 = vpop.f32.mrf.mxu0
    %v4741 = vadd.f32 %v4688, %v4740
    %v4742 = vpop.f32.mrf.mxu0
    %v4743 = vadd.f32 %v4690, %v4742
    %v4744 = vpop.f32.mrf.mxu0
    %v4745 = vadd.f32 %v4692, %v4744
    %v4746 = vpop.f32.mrf.mxu0
    %v4747 = vadd.f32 %v4694, %v4746
    %4748 = vdwg.mxu0
    %4749 = vmatprep.subr.bf16.mxu0 0
    %4750 = vmatpush1.bf16.msra.mxu0 0
    %4751 = vmatprep.subr.bf16.mxu0 0
    %4752 = vmatpush1.bf16.msra.mxu0 0
    %4753 = vmatprep.subr.bf16.mxu0 0
    %4754 = vmatpush1.bf16.msra.mxu0 0
    %4755 = vmatprep.subr.bf16.mxu0 0
    %4756 = vmatpush1.bf16.msra.mxu0 0
    %4757 = vmatprep.subr.bf16.mxu0 0
    %4758 = vmatpush1.bf16.msra.mxu0 0
    %4759 = vmatprep.subr.bf16.mxu0 0
    %4760 = vmatpush1.bf16.msra.mxu0 0
    %4761 = vmatprep.subr.bf16.mxu0 0
    %4762 = vmatpush1.bf16.msra.mxu0 0
    %4763 = vmatprep.subr.bf16.mxu0 %v4270
    %4764 = vmatpush1.bf16.msra.mxu0 %v4267
    %4765 = vmatprep.subr.bf16.mxu0 0
    %4766 = vmatpush2.bf16.msra.mxu0 0
    %4767 = vmatprep.subr.bf16.mxu0 0
    %4768 = vmatpush2.bf16.msra.mxu0 0
    %4769 = vmatprep.subr.bf16.mxu0 0
    %4770 = vmatpush2.bf16.msra.mxu0 0
    %4771 = vmatprep.subr.bf16.mxu0 0
    %4772 = vmatpush2.bf16.msra.mxu0 0
    %4773 = vmatprep.subr.bf16.mxu0 0
    %4774 = vmatpush2.bf16.msra.mxu0 0
    %4775 = vmatprep.subr.bf16.mxu0 0
    %4776 = vmatpush2.bf16.msra.mxu0 0
    %4777 = vmatprep.subr.bf16.mxu0 0
    %4778 = vmatpush2.bf16.msra.mxu0 0
    %4779 = vmatprep.subr.bf16.mxu0 0
    %4780 = vmatpush2.bf16.msra.mxu0 0
    %4781 = vmatprep.mubr.bf16.mxu0 0
    %4782 = vmatmul.mubr.bf16.gmra.mxu0 %v4255
    %v4783 = vpop.f32.mrf.mxu0
    %v4784 = vadd.f32 %v4731, %v4783
    %v4785 = vpop.f32.mrf.mxu0
    %v4786 = vadd.f32 %v4733, %v4785
    %v4787 = vpop.f32.mrf.mxu0
    %v4788 = vadd.f32 %v4735, %v4787
    %v4789 = vpop.f32.mrf.mxu0
    %v4790 = vadd.f32 %v4737, %v4789
    %4791 = vmatprep.mubr.bf16.mxu0 0
    %4792 = vmatmul.mubr.bf16.gmra.mxu0 %v4258
    %v4793 = vpop.f32.mrf.mxu0
    %v4794 = vadd.f32 %v4741, %v4793
    %v4795 = vpop.f32.mrf.mxu0
    %v4796 = vadd.f32 %v4743, %v4795
    %v4797 = vpop.f32.mrf.mxu0
    %v4798 = vadd.f32 %v4745, %v4797
    %v4799 = vpop.f32.mrf.mxu0
    %v4800 = vadd.f32 %v4747, %v4799
    %4801 = vdwg.mxu0
    %v4802 = vld [vmem:[#allocation7] sm:$0xf]
    %v4804 = vlaneseq
    %v4805 = vshrl.u32 %v4804, 7
    %v4806 = vsub.s32 0, %v4805
    %v4807 = vrot.slane %v4802, %v4806
    %v4808 = vlaneseq
    %v4809 = vshrl.u32 %v4808, 7
    %v4810 = vsub.s32 1, %v4809
    %v4811 = vrot.slane %v4802, %v4810
    %v4812 = vlaneseq
    %v4813 = vshrl.u32 %v4812, 7
    %v4814 = vsub.s32 2, %v4813
    %v4815 = vrot.slane %v4802, %v4814
    %v4816 = vlaneseq
    %v4817 = vshrl.u32 %v4816, 7
    %v4818 = vsub.s32 3, %v4817
    %v4819 = vrot.slane %v4802, %v4818
    %v4824 = vadd.f32 %v4519, %v4807
    %v4825 = vadd.f32 %v4521, %v4811
    %v4826 = vadd.f32 %v4784, %v4815
    %v4827 = vadd.f32 %v4786, %v4819
    %v4828 = vadd.f32 %v4523, %v4807
    %v4829 = vadd.f32 %v4525, %v4811
    %v4830 = vadd.f32 %v4788, %v4815
    %v4831 = vadd.f32 %v4790, %v4819
    %v4832 = vadd.f32 %v4529, %v4807
    %v4833 = vadd.f32 %v4531, %v4811
    %v4834 = vadd.f32 %v4794, %v4815
    %v4835 = vadd.f32 %v4796, %v4819
    %v4836 = vadd.f32 %v4533, %v4807
    %v4837 = vadd.f32 %v4535, %v4811
    %v4838 = vadd.f32 %v4798, %v4815
    %v4839 = vadd.f32 %v4800, %v4819
    %v4840 = vmax.f32 %v4824, 0.0
    %v4841 = vmax.f32 %v4825, 0.0
    %v4842 = vmax.f32 %v4826, 0.0
    %v4843 = vmax.f32 %v4827, 0.0
    %v4844 = vmax.f32 %v4828, 0.0
    %v4845 = vmax.f32 %v4829, 0.0
    %v4846 = vmax.f32 %v4830, 0.0
    %v4847 = vmax.f32 %v4831, 0.0
    %v4848 = vmax.f32 %v4832, 0.0
    %v4849 = vmax.f32 %v4833, 0.0
    %v4850 = vmax.f32 %v4834, 0.0
    %v4851 = vmax.f32 %v4835, 0.0
    %v4852 = vmax.f32 %v4836, 0.0
    %v4853 = vmax.f32 %v4837, 0.0
    %v4854 = vmax.f32 %v4838, 0.0
    %v4855 = vmax.f32 %v4839, 0.0
    %v4856 = vpack.c.bf16 %v4844, %v4840
    %v4857 = vpack.c.bf16 %v4845, %v4841
    %v4858 = vpack.c.bf16 %v4846, %v4842
    %v4859 = vpack.c.bf16 %v4847, %v4843
    %v4860 = vpack.c.bf16 %v4852, %v4848
    %v4861 = vpack.c.bf16 %v4853, %v4849
    %v4862 = vpack.c.bf16 %v4854, %v4850
    %v4863 = vpack.c.bf16 %v4855, %v4851
    %4864 = vmatprep.subr.bf16.mxu0 0
    %4865 = vmatpush1.bf16.msra.mxu0 0
    %4866 = vmatprep.subr.bf16.mxu0 0
    %4867 = vmatpush1.bf16.msra.mxu0 0
    %4868 = vmatprep.subr.bf16.mxu0 0
    %4869 = vmatpush1.bf16.msra.mxu0 0
    %4870 = vmatprep.subr.bf16.mxu0 0
    %4871 = vmatpush1.bf16.msra.mxu0 0
    %4872 = vmatprep.subr.bf16.mxu0 0
    %4873 = vmatpush1.bf16.msra.mxu0 0
    %4874 = vmatprep.subr.bf16.mxu0 0
    %4875 = vmatpush1.bf16.msra.mxu0 0
    %4876 = vmatprep.subr.bf16.mxu0 %v4861
    %4877 = vmatpush1.bf16.msra.mxu0 %v4860
    %4878 = vmatprep.subr.bf16.mxu0 %v4857
    %4879 = vmatpush1.bf16.msra.mxu0 %v4856
    %4880 = vmatprep.subr.bf16.mxu0 0
    %4881 = vmatpush2.bf16.msra.mxu0 0
    %4882 = vmatprep.subr.bf16.mxu0 0
    %4883 = vmatpush2.bf16.msra.mxu0 0
    %4884 = vmatprep.subr.bf16.mxu0 0
    %4885 = vmatpush2.bf16.msra.mxu0 0
    %4886 = vmatprep.subr.bf16.mxu0 0
    %4887 = vmatpush2.bf16.msra.mxu0 0
    %4888 = vmatprep.subr.bf16.mxu0 0
    %4889 = vmatpush2.bf16.msra.mxu0 0
    %4890 = vmatprep.subr.bf16.mxu0 0
    %4891 = vmatpush2.bf16.msra.mxu0 0
    %4892 = vmatprep.subr.bf16.mxu0 0
    %4893 = vmatpush2.bf16.msra.mxu0 0
    %4894 = vmatprep.subr.bf16.mxu0 0
    %4895 = vmatpush2.bf16.msra.mxu0 0
    %4896 = vmatprep.mubr.bf16.mxu0 0
    %4897 = vmatmul.mubr.bf16.gmra.mxu0 %v322
    %v4898 = vpop.f32.mrf.mxu0
    %v4899 = vadd.f32 0.0, %v4898
    %v4900 = vpop.f32.mrf.mxu0
    %v4901 = vadd.f32 0.0, %v4900
    %v4902 = vpop.f32.mrf.mxu0
    %v4903 = vadd.f32 0.0, %v4902
    %v4904 = vpop.f32.mrf.mxu0
    %v4905 = vadd.f32 0.0, %v4904
    %4906 = vmatprep.mubr.bf16.mxu0 0
    %4907 = vmatmul.mubr.bf16.gmra.mxu0 %v325
    %v4908 = vpop.f32.mrf.mxu0
    %v4909 = vadd.f32 0.0, %v4908
    %v4910 = vpop.f32.mrf.mxu0
    %v4911 = vadd.f32 0.0, %v4910
    %v4912 = vpop.f32.mrf.mxu0
    %v4913 = vadd.f32 0.0, %v4912
    %v4914 = vpop.f32.mrf.mxu0
    %v4915 = vadd.f32 0.0, %v4914
    %4916 = vdwg.mxu0
    %4917 = vmatprep.subr.bf16.mxu0 0
    %4918 = vmatpush1.bf16.msra.mxu0 0
    %4919 = vmatprep.subr.bf16.mxu0 0
    %4920 = vmatpush1.bf16.msra.mxu0 0
    %4921 = vmatprep.subr.bf16.mxu0 0
    %4922 = vmatpush1.bf16.msra.mxu0 0
    %4923 = vmatprep.subr.bf16.mxu0 0
    %4924 = vmatpush1.bf16.msra.mxu0 0
    %4925 = vmatprep.subr.bf16.mxu0 0
    %4926 = vmatpush1.bf16.msra.mxu0 0
    %4927 = vmatprep.subr.bf16.mxu0 0
    %4928 = vmatpush1.bf16.msra.mxu0 0
    %4929 = vmatprep.subr.bf16.mxu0 %v4863
    %4930 = vmatpush1.bf16.msra.mxu0 %v4862
    %4931 = vmatprep.subr.bf16.mxu0 %v4859
    %4932 = vmatpush1.bf16.msra.mxu0 %v4858
    %4933 = vmatprep.subr.bf16.mxu0 0
    %4934 = vmatpush2.bf16.msra.mxu0 0
    %4935 = vmatprep.subr.bf16.mxu0 0
    %4936 = vmatpush2.bf16.msra.mxu0 0
    %4937 = vmatprep.subr.bf16.mxu0 0
    %4938 = vmatpush2.bf16.msra.mxu0 0
    %4939 = vmatprep.subr.bf16.mxu0 0
    %4940 = vmatpush2.bf16.msra.mxu0 0
    %4941 = vmatprep.subr.bf16.mxu0 0
    %4942 = vmatpush2.bf16.msra.mxu0 0
    %4943 = vmatprep.subr.bf16.mxu0 0
    %4944 = vmatpush2.bf16.msra.mxu0 0
    %4945 = vmatprep.subr.bf16.mxu0 0
    %4946 = vmatpush2.bf16.msra.mxu0 0
    %4947 = vmatprep.subr.bf16.mxu0 0
    %4948 = vmatpush2.bf16.msra.mxu0 0
    %4949 = vmatprep.mubr.bf16.mxu0 0
    %4950 = vmatmul.mubr.bf16.gmra.mxu0 %v322
    %v4951 = vpop.f32.mrf.mxu0
    %v4952 = vadd.f32 0.0, %v4951
    %v4953 = vpop.f32.mrf.mxu0
    %v4954 = vadd.f32 0.0, %v4953
    %v4955 = vpop.f32.mrf.mxu0
    %v4956 = vadd.f32 0.0, %v4955
    %v4957 = vpop.f32.mrf.mxu0
    %v4958 = vadd.f32 0.0, %v4957
    %4959 = vmatprep.mubr.bf16.mxu0 0
    %4960 = vmatmul.mubr.bf16.gmra.mxu0 %v325
    %v4961 = vpop.f32.mrf.mxu0
    %v4962 = vadd.f32 0.0, %v4961
    %v4963 = vpop.f32.mrf.mxu0
    %v4964 = vadd.f32 0.0, %v4963
    %v4965 = vpop.f32.mrf.mxu0
    %v4966 = vadd.f32 0.0, %v4965
    %v4967 = vpop.f32.mrf.mxu0
    %v4968 = vadd.f32 0.0, %v4967
    %4969 = vdwg.mxu0
    %v4970 = vpack.c.bf16 %v4903, %v4899
    %v4971 = vpack.c.bf16 %v4905, %v4901
    %v4972 = vpack.c.bf16 %v4956, %v4952
    %v4973 = vpack.c.bf16 %v4958, %v4954
    %v4974 = vpack.c.bf16 %v4913, %v4909
    %v4975 = vpack.c.bf16 %v4915, %v4911
    %v4976 = vpack.c.bf16 %v4966, %v4962
    %v4977 = vpack.c.bf16 %v4968, %v4964
    %v4978 = vld [vmem:[#allocation8] sm:$0xff]
    %v4979 = vld [vmem:[#allocation8 + $0x8] sm:$0xff]
    %v4980 = vld [vmem:[#allocation8 + $0x10] sm:$0xff]
    %v4981 = vld [vmem:[#allocation8 + $0x18] sm:$0xff]
    %v4982 = vld [vmem:[#allocation8 + $0x20] sm:$0xff]
    %v4983 = vld [vmem:[#allocation8 + $0x28] sm:$0xff]
    %v4984 = vld [vmem:[#allocation8 + $0x30] sm:$0xff]
    %v4985 = vld [vmem:[#allocation8 + $0x38] sm:$0xff]
    %v4986 = vld [vmem:[#allocation8 + $0x40] sm:$0xff]
    %v4987 = vld [vmem:[#allocation8 + $0x48] sm:$0xff]
    %v4988 = vld [vmem:[#allocation8 + $0x50] sm:$0xff]
    %v4989 = vld [vmem:[#allocation8 + $0x58] sm:$0xff]
    %v4990 = vld [vmem:[#allocation8 + $0x60] sm:$0xff]
    %v4991 = vld [vmem:[#allocation8 + $0x68] sm:$0xff]
    %v4992 = vld [vmem:[#allocation8 + $0x70] sm:$0xff]
    %v4993 = vld [vmem:[#allocation8 + $0x78] sm:$0xff]
    %v4994 = vld [vmem:[#allocation8 + $0x80] sm:$0xff]
    %v4995 = vld [vmem:[#allocation8 + $0x88] sm:$0xff]
    %v4996 = vld [vmem:[#allocation8 + $0x90] sm:$0xff]
    %v4997 = vld [vmem:[#allocation8 + $0x98] sm:$0xff]
    %v4998 = vld [vmem:[#allocation8 + $0xa0] sm:$0xff]
    %v4999 = vld [vmem:[#allocation8 + $0xa8] sm:$0xff]
    %v5000 = vld [vmem:[#allocation8 + $0xb0] sm:$0xff]
    %v5001 = vld [vmem:[#allocation8 + $0xb8] sm:$0xff]
    %v5002 = vld [vmem:[#allocation8 + $0xc0] sm:$0xff]
    %v5003 = vld [vmem:[#allocation8 + $0xc8] sm:$0xff]
    %v5004 = vld [vmem:[#allocation8 + $0xd0] sm:$0xff]
    %v5005 = vld [vmem:[#allocation8 + $0xd8] sm:$0xff]
    %v5006 = vld [vmem:[#allocation8 + $0xe0] sm:$0xff]
    %v5007 = vld [vmem:[#allocation8 + $0xe8] sm:$0xff]
    %v5008 = vld [vmem:[#allocation8 + $0xf0] sm:$0xff]
    %v5009 = vld [vmem:[#allocation8 + $0xf8] sm:$0xff]
    %v5010 = vld [vmem:[#allocation8 + $0x100] sm:$0xff]
    %v5011 = vld [vmem:[#allocation8 + $0x108] sm:$0xff]
    %v5012 = vld [vmem:[#allocation8 + $0x110] sm:$0xff]
    %v5013 = vld [vmem:[#allocation8 + $0x118] sm:$0xff]
    %v5014 = vld [vmem:[#allocation8 + $0x120] sm:$0xff]
    %v5015 = vld [vmem:[#allocation8 + $0x128] sm:$0xff]
    %v5016 = vld [vmem:[#allocation8 + $0x130] sm:$0xff]
    %v5017 = vld [vmem:[#allocation8 + $0x138] sm:$0xff]
    %v5018 = vld [vmem:[#allocation8 + $0x140] sm:$0xff]
    %v5019 = vld [vmem:[#allocation8 + $0x148] sm:$0xff]
    %v5020 = vld [vmem:[#allocation8 + $0x150] sm:$0xff]
    %v5021 = vld [vmem:[#allocation8 + $0x158] sm:$0xff]
    %v5022 = vld [vmem:[#allocation8 + $0x160] sm:$0xff]
    %v5023 = vld [vmem:[#allocation8 + $0x168] sm:$0xff]
    %v5024 = vld [vmem:[#allocation8 + $0x170] sm:$0xff]
    %v5025 = vld [vmem:[#allocation8 + $0x178] sm:$0xff]
    %v5026 = vld [vmem:[#allocation8 + $0x180] sm:$0xff]
    %v5027 = vld [vmem:[#allocation8 + $0x188] sm:$0xff]
    %v5028 = vld [vmem:[#allocation8 + $0x190] sm:$0xff]
    %v5029 = vld [vmem:[#allocation8 + $0x198] sm:$0xff]
    %v5030 = vld [vmem:[#allocation8 + $0x1a0] sm:$0xff]
    %v5031 = vld [vmem:[#allocation8 + $0x1a8] sm:$0xff]
    %v5032 = vld [vmem:[#allocation8 + $0x1b0] sm:$0xff]
    %v5033 = vld [vmem:[#allocation8 + $0x1b8] sm:$0xff]
    %v5034 = vld [vmem:[#allocation8 + $0x1c0] sm:$0xff]
    %v5035 = vld [vmem:[#allocation8 + $0x1c8] sm:$0xff]
    %v5036 = vld [vmem:[#allocation8 + $0x1d0] sm:$0xff]
    %v5037 = vld [vmem:[#allocation8 + $0x1d8] sm:$0xff]
    %v5038 = vld [vmem:[#allocation8 + $0x1e0] sm:$0xff]
    %v5039 = vld [vmem:[#allocation8 + $0x1e8] sm:$0xff]
    %v5040 = vld [vmem:[#allocation8 + $0x1f0] sm:$0xff]
    %v5041 = vld [vmem:[#allocation8 + $0x1f8] sm:$0xff]
    %v5042 = vld [vmem:[#allocation8 + $0x200] sm:$0xff]
    %v5043 = vld [vmem:[#allocation8 + $0x208] sm:$0xff]
    %v5044 = vld [vmem:[#allocation8 + $0x210] sm:$0xff]
    %v5045 = vld [vmem:[#allocation8 + $0x218] sm:$0xff]
    %v5046 = vld [vmem:[#allocation8 + $0x220] sm:$0xff]
    %v5047 = vld [vmem:[#allocation8 + $0x228] sm:$0xff]
    %v5048 = vld [vmem:[#allocation8 + $0x230] sm:$0xff]
    %v5049 = vld [vmem:[#allocation8 + $0x238] sm:$0xff]
    %v5050 = vld [vmem:[#allocation8 + $0x240] sm:$0xff]
    %v5051 = vld [vmem:[#allocation8 + $0x248] sm:$0xff]
    %v5052 = vld [vmem:[#allocation8 + $0x250] sm:$0xff]
    %v5053 = vld [vmem:[#allocation8 + $0x258] sm:$0xff]
    %v5054 = vld [vmem:[#allocation8 + $0x260] sm:$0xff]
    %v5055 = vld [vmem:[#allocation8 + $0x268] sm:$0xff]
    %v5056 = vld [vmem:[#allocation8 + $0x270] sm:$0xff]
    %v5057 = vld [vmem:[#allocation8 + $0x278] sm:$0xff]
    %v5058 = vld [vmem:[#allocation8 + $0x280] sm:$0xff]
    %v5059 = vld [vmem:[#allocation8 + $0x288] sm:$0xff]
    %v5060 = vld [vmem:[#allocation8 + $0x290] sm:$0xff]
    %v5061 = vld [vmem:[#allocation8 + $0x298] sm:$0xff]
    %v5062 = vld [vmem:[#allocation8 + $0x2a0] sm:$0xff]
    %v5063 = vld [vmem:[#allocation8 + $0x2a8] sm:$0xff]
    %v5064 = vld [vmem:[#allocation8 + $0x2b0] sm:$0xff]
    %v5065 = vld [vmem:[#allocation8 + $0x2b8] sm:$0xff]
    %v5066 = vld [vmem:[#allocation8 + $0x2c0] sm:$0xff]
    %v5067 = vld [vmem:[#allocation8 + $0x2c8] sm:$0xff]
    %v5068 = vld [vmem:[#allocation8 + $0x2d0] sm:$0xff]
    %v5069 = vld [vmem:[#allocation8 + $0x2d8] sm:$0xff]
    %v5070 = vld [vmem:[#allocation8 + $0x2e0] sm:$0xff]
    %v5071 = vld [vmem:[#allocation8 + $0x2e8] sm:$0xff]
    %v5072 = vld [vmem:[#allocation8 + $0x2f0] sm:$0xff]
    %v5073 = vld [vmem:[#allocation8 + $0x2f8] sm:$0xff]
    %v5074 = vld [vmem:[#allocation8 + $0x300] sm:$0xff]
    %v5075 = vld [vmem:[#allocation8 + $0x308] sm:$0xff]
    %v5076 = vld [vmem:[#allocation8 + $0x310] sm:$0xff]
    %v5077 = vld [vmem:[#allocation8 + $0x318] sm:$0xff]
    %v5078 = vld [vmem:[#allocation8 + $0x320] sm:$0xff]
    %v5079 = vld [vmem:[#allocation8 + $0x328] sm:$0xff]
    %v5080 = vld [vmem:[#allocation8 + $0x330] sm:$0xff]
    %v5081 = vld [vmem:[#allocation8 + $0x338] sm:$0xff]
    %v5082 = vld [vmem:[#allocation8 + $0x340] sm:$0xff]
    %v5083 = vld [vmem:[#allocation8 + $0x348] sm:$0xff]
    %v5084 = vld [vmem:[#allocation8 + $0x350] sm:$0xff]
    %v5085 = vld [vmem:[#allocation8 + $0x358] sm:$0xff]
    %v5086 = vld [vmem:[#allocation8 + $0x360] sm:$0xff]
    %v5087 = vld [vmem:[#allocation8 + $0x368] sm:$0xff]
    %v5088 = vld [vmem:[#allocation8 + $0x370] sm:$0xff]
    %v5089 = vld [vmem:[#allocation8 + $0x378] sm:$0xff]
    %v5090 = vld [vmem:[#allocation8 + $0x380] sm:$0xff]
    %v5091 = vld [vmem:[#allocation8 + $0x388] sm:$0xff]
    %v5092 = vld [vmem:[#allocation8 + $0x390] sm:$0xff]
    %v5093 = vld [vmem:[#allocation8 + $0x398] sm:$0xff]
    %v5094 = vld [vmem:[#allocation8 + $0x3a0] sm:$0xff]
    %v5095 = vld [vmem:[#allocation8 + $0x3a8] sm:$0xff]
    %v5096 = vld [vmem:[#allocation8 + $0x3b0] sm:$0xff]
    %v5097 = vld [vmem:[#allocation8 + $0x3b8] sm:$0xff]
    %v5098 = vld [vmem:[#allocation8 + $0x3c0] sm:$0xff]
    %v5099 = vld [vmem:[#allocation8 + $0x3c8] sm:$0xff]
    %v5100 = vld [vmem:[#allocation8 + $0x3d0] sm:$0xff]
    %v5101 = vld [vmem:[#allocation8 + $0x3d8] sm:$0xff]
    %v5102 = vld [vmem:[#allocation8 + $0x3e0] sm:$0xff]
    %v5103 = vld [vmem:[#allocation8 + $0x3e8] sm:$0xff]
    %v5104 = vld [vmem:[#allocation8 + $0x3f0] sm:$0xff]
    %v5105 = vld [vmem:[#allocation8 + $0x3f8] sm:$0xff]
    %v5106 = vld [vmem:[#allocation10] sm:$0xff]
    %v5107 = vld [vmem:[#allocation10 + $0x8] sm:$0xff]
    %v5108 = vld [vmem:[#allocation10 + $0x10] sm:$0xff]
    %v5109 = vld [vmem:[#allocation10 + $0x18] sm:$0xff]
    %v5110 = vld [vmem:[#allocation10 + $0x20] sm:$0xff]
    %v5111 = vld [vmem:[#allocation10 + $0x28] sm:$0xff]
    %v5112 = vld [vmem:[#allocation10 + $0x30] sm:$0xff]
    %v5113 = vld [vmem:[#allocation10 + $0x38] sm:$0xff]
    %v5114 = vld [vmem:[#allocation10 + $0x40] sm:$0xff]
    %v5115 = vld [vmem:[#allocation10 + $0x48] sm:$0xff]
    %v5116 = vld [vmem:[#allocation10 + $0x50] sm:$0xff]
    %v5117 = vld [vmem:[#allocation10 + $0x58] sm:$0xff]
    %v5118 = vld [vmem:[#allocation10 + $0x60] sm:$0xff]
    %v5119 = vld [vmem:[#allocation10 + $0x68] sm:$0xff]
    %v5120 = vld [vmem:[#allocation10 + $0x70] sm:$0xff]
    %v5121 = vld [vmem:[#allocation10 + $0x78] sm:$0xff]
    %v5122 = vld [vmem:[#allocation10 + $0x80] sm:$0xff]
    %v5123 = vld [vmem:[#allocation10 + $0x88] sm:$0xff]
    %v5124 = vld [vmem:[#allocation10 + $0x90] sm:$0xff]
    %v5125 = vld [vmem:[#allocation10 + $0x98] sm:$0xff]
    %v5126 = vld [vmem:[#allocation10 + $0xa0] sm:$0xff]
    %v5127 = vld [vmem:[#allocation10 + $0xa8] sm:$0xff]
    %v5128 = vld [vmem:[#allocation10 + $0xb0] sm:$0xff]
    %v5129 = vld [vmem:[#allocation10 + $0xb8] sm:$0xff]
    %v5130 = vld [vmem:[#allocation10 + $0xc0] sm:$0xff]
    %v5131 = vld [vmem:[#allocation10 + $0xc8] sm:$0xff]
    %v5132 = vld [vmem:[#allocation10 + $0xd0] sm:$0xff]
    %v5133 = vld [vmem:[#allocation10 + $0xd8] sm:$0xff]
    %v5134 = vld [vmem:[#allocation10 + $0xe0] sm:$0xff]
    %v5135 = vld [vmem:[#allocation10 + $0xe8] sm:$0xff]
    %v5136 = vld [vmem:[#allocation10 + $0xf0] sm:$0xff]
    %v5137 = vld [vmem:[#allocation10 + $0xf8] sm:$0xff]
    %v5138 = vld [vmem:[#allocation10 + $0x100] sm:$0xff]
    %v5139 = vld [vmem:[#allocation10 + $0x108] sm:$0xff]
    %v5140 = vld [vmem:[#allocation10 + $0x110] sm:$0xff]
    %v5141 = vld [vmem:[#allocation10 + $0x118] sm:$0xff]
    %v5142 = vld [vmem:[#allocation10 + $0x120] sm:$0xff]
    %v5143 = vld [vmem:[#allocation10 + $0x128] sm:$0xff]
    %v5144 = vld [vmem:[#allocation10 + $0x130] sm:$0xff]
    %v5145 = vld [vmem:[#allocation10 + $0x138] sm:$0xff]
    %v5146 = vld [vmem:[#allocation10 + $0x140] sm:$0xff]
    %v5147 = vld [vmem:[#allocation10 + $0x148] sm:$0xff]
    %v5148 = vld [vmem:[#allocation10 + $0x150] sm:$0xff]
    %v5149 = vld [vmem:[#allocation10 + $0x158] sm:$0xff]
    %v5150 = vld [vmem:[#allocation10 + $0x160] sm:$0xff]
    %v5151 = vld [vmem:[#allocation10 + $0x168] sm:$0xff]
    %v5152 = vld [vmem:[#allocation10 + $0x170] sm:$0xff]
    %v5153 = vld [vmem:[#allocation10 + $0x178] sm:$0xff]
    %v5154 = vld [vmem:[#allocation10 + $0x180] sm:$0xff]
    %v5155 = vld [vmem:[#allocation10 + $0x188] sm:$0xff]
    %v5156 = vld [vmem:[#allocation10 + $0x190] sm:$0xff]
    %v5157 = vld [vmem:[#allocation10 + $0x198] sm:$0xff]
    %v5158 = vld [vmem:[#allocation10 + $0x1a0] sm:$0xff]
    %v5159 = vld [vmem:[#allocation10 + $0x1a8] sm:$0xff]
    %v5160 = vld [vmem:[#allocation10 + $0x1b0] sm:$0xff]
    %v5161 = vld [vmem:[#allocation10 + $0x1b8] sm:$0xff]
    %v5162 = vld [vmem:[#allocation10 + $0x1c0] sm:$0xff]
    %v5163 = vld [vmem:[#allocation10 + $0x1c8] sm:$0xff]
    %v5164 = vld [vmem:[#allocation10 + $0x1d0] sm:$0xff]
    %v5165 = vld [vmem:[#allocation10 + $0x1d8] sm:$0xff]
    %v5166 = vld [vmem:[#allocation10 + $0x1e0] sm:$0xff]
    %v5167 = vld [vmem:[#allocation10 + $0x1e8] sm:$0xff]
    %v5168 = vld [vmem:[#allocation10 + $0x1f0] sm:$0xff]
    %v5169 = vld [vmem:[#allocation10 + $0x1f8] sm:$0xff]
    %v5170 = vld [vmem:[#allocation10 + $0x200] sm:$0xff]
    %v5171 = vld [vmem:[#allocation10 + $0x208] sm:$0xff]
    %v5172 = vld [vmem:[#allocation10 + $0x210] sm:$0xff]
    %v5173 = vld [vmem:[#allocation10 + $0x218] sm:$0xff]
    %v5174 = vld [vmem:[#allocation10 + $0x220] sm:$0xff]
    %v5175 = vld [vmem:[#allocation10 + $0x228] sm:$0xff]
    %v5176 = vld [vmem:[#allocation10 + $0x230] sm:$0xff]
    %v5177 = vld [vmem:[#allocation10 + $0x238] sm:$0xff]
    %v5178 = vld [vmem:[#allocation10 + $0x240] sm:$0xff]
    %v5179 = vld [vmem:[#allocation10 + $0x248] sm:$0xff]
    %v5180 = vld [vmem:[#allocation10 + $0x250] sm:$0xff]
    %v5181 = vld [vmem:[#allocation10 + $0x258] sm:$0xff]
    %v5182 = vld [vmem:[#allocation10 + $0x260] sm:$0xff]
    %v5183 = vld [vmem:[#allocation10 + $0x268] sm:$0xff]
    %v5184 = vld [vmem:[#allocation10 + $0x270] sm:$0xff]
    %v5185 = vld [vmem:[#allocation10 + $0x278] sm:$0xff]
    %v5186 = vld [vmem:[#allocation10 + $0x280] sm:$0xff]
    %v5187 = vld [vmem:[#allocation10 + $0x288] sm:$0xff]
    %v5188 = vld [vmem:[#allocation10 + $0x290] sm:$0xff]
    %v5189 = vld [vmem:[#allocation10 + $0x298] sm:$0xff]
    %v5190 = vld [vmem:[#allocation10 + $0x2a0] sm:$0xff]
    %v5191 = vld [vmem:[#allocation10 + $0x2a8] sm:$0xff]
    %v5192 = vld [vmem:[#allocation10 + $0x2b0] sm:$0xff]
    %v5193 = vld [vmem:[#allocation10 + $0x2b8] sm:$0xff]
    %v5194 = vld [vmem:[#allocation10 + $0x2c0] sm:$0xff]
    %v5195 = vld [vmem:[#allocation10 + $0x2c8] sm:$0xff]
    %v5196 = vld [vmem:[#allocation10 + $0x2d0] sm:$0xff]
    %v5197 = vld [vmem:[#allocation10 + $0x2d8] sm:$0xff]
    %v5198 = vld [vmem:[#allocation10 + $0x2e0] sm:$0xff]
    %v5199 = vld [vmem:[#allocation10 + $0x2e8] sm:$0xff]
    %v5200 = vld [vmem:[#allocation10 + $0x2f0] sm:$0xff]
    %v5201 = vld [vmem:[#allocation10 + $0x2f8] sm:$0xff]
    %v5202 = vld [vmem:[#allocation10 + $0x300] sm:$0xff]
    %v5203 = vld [vmem:[#allocation10 + $0x308] sm:$0xff]
    %v5204 = vld [vmem:[#allocation10 + $0x310] sm:$0xff]
    %v5205 = vld [vmem:[#allocation10 + $0x318] sm:$0xff]
    %v5206 = vld [vmem:[#allocation10 + $0x320] sm:$0xff]
    %v5207 = vld [vmem:[#allocation10 + $0x328] sm:$0xff]
    %v5208 = vld [vmem:[#allocation10 + $0x330] sm:$0xff]
    %v5209 = vld [vmem:[#allocation10 + $0x338] sm:$0xff]
    %v5210 = vld [vmem:[#allocation10 + $0x340] sm:$0xff]
    %v5211 = vld [vmem:[#allocation10 + $0x348] sm:$0xff]
    %v5212 = vld [vmem:[#allocation10 + $0x350] sm:$0xff]
    %v5213 = vld [vmem:[#allocation10 + $0x358] sm:$0xff]
    %v5214 = vld [vmem:[#allocation10 + $0x360] sm:$0xff]
    %v5215 = vld [vmem:[#allocation10 + $0x368] sm:$0xff]
    %v5216 = vld [vmem:[#allocation10 + $0x370] sm:$0xff]
    %v5217 = vld [vmem:[#allocation10 + $0x378] sm:$0xff]
    %v5218 = vld [vmem:[#allocation10 + $0x380] sm:$0xff]
    %v5219 = vld [vmem:[#allocation10 + $0x388] sm:$0xff]
    %v5220 = vld [vmem:[#allocation10 + $0x390] sm:$0xff]
    %v5221 = vld [vmem:[#allocation10 + $0x398] sm:$0xff]
    %v5222 = vld [vmem:[#allocation10 + $0x3a0] sm:$0xff]
    %v5223 = vld [vmem:[#allocation10 + $0x3a8] sm:$0xff]
    %v5224 = vld [vmem:[#allocation10 + $0x3b0] sm:$0xff]
    %v5225 = vld [vmem:[#allocation10 + $0x3b8] sm:$0xff]
    %v5226 = vld [vmem:[#allocation10 + $0x3c0] sm:$0xff]
    %v5227 = vld [vmem:[#allocation10 + $0x3c8] sm:$0xff]
    %v5228 = vld [vmem:[#allocation10 + $0x3d0] sm:$0xff]
    %v5229 = vld [vmem:[#allocation10 + $0x3d8] sm:$0xff]
    %v5230 = vld [vmem:[#allocation10 + $0x3e0] sm:$0xff]
    %v5231 = vld [vmem:[#allocation10 + $0x3e8] sm:$0xff]
    %v5232 = vld [vmem:[#allocation10 + $0x3f0] sm:$0xff]
    %v5233 = vld [vmem:[#allocation10 + $0x3f8] sm:$0xff]
    %v5362 = vunpack.c.l.b16 %v5106
    %v5363 = vunpack.c.h.b16 %v5106
    %v5364 = vunpack.c.l.b16 %v5107
    %v5365 = vunpack.c.h.b16 %v5107
    %v5366 = vunpack.c.l.b16 %v5108
    %v5367 = vunpack.c.h.b16 %v5108
    %v5368 = vunpack.c.l.b16 %v5109
    %v5369 = vunpack.c.h.b16 %v5109
    %v5370 = vunpack.c.l.b16 %v5110
    %v5371 = vunpack.c.h.b16 %v5110
    %v5372 = vunpack.c.l.b16 %v5111
    %v5373 = vunpack.c.h.b16 %v5111
    %v5374 = vunpack.c.l.b16 %v5112
    %v5375 = vunpack.c.h.b16 %v5112
    %v5376 = vunpack.c.l.b16 %v5113
    %v5377 = vunpack.c.h.b16 %v5113
    %v5378 = vunpack.c.l.b16 %v5114
    %v5379 = vunpack.c.h.b16 %v5114
    %v5380 = vunpack.c.l.b16 %v5115
    %v5381 = vunpack.c.h.b16 %v5115
    %v5382 = vunpack.c.l.b16 %v5116
    %v5383 = vunpack.c.h.b16 %v5116
    %v5384 = vunpack.c.l.b16 %v5117
    %v5385 = vunpack.c.h.b16 %v5117
    %v5386 = vunpack.c.l.b16 %v5118
    %v5387 = vunpack.c.h.b16 %v5118
    %v5388 = vunpack.c.l.b16 %v5119
    %v5389 = vunpack.c.h.b16 %v5119
    %v5390 = vunpack.c.l.b16 %v5120
    %v5391 = vunpack.c.h.b16 %v5120
    %v5392 = vunpack.c.l.b16 %v5121
    %v5393 = vunpack.c.h.b16 %v5121
    %v5394 = vunpack.c.l.b16 %v5122
    %v5395 = vunpack.c.h.b16 %v5122
    %v5396 = vunpack.c.l.b16 %v5123
    %v5397 = vunpack.c.h.b16 %v5123
    %v5398 = vunpack.c.l.b16 %v5124
    %v5399 = vunpack.c.h.b16 %v5124
    %v5400 = vunpack.c.l.b16 %v5125
    %v5401 = vunpack.c.h.b16 %v5125
    %v5402 = vunpack.c.l.b16 %v5126
    %v5403 = vunpack.c.h.b16 %v5126
    %v5404 = vunpack.c.l.b16 %v5127
    %v5405 = vunpack.c.h.b16 %v5127
    %v5406 = vunpack.c.l.b16 %v5128
    %v5407 = vunpack.c.h.b16 %v5128
    %v5408 = vunpack.c.l.b16 %v5129
    %v5409 = vunpack.c.h.b16 %v5129
    %v5410 = vunpack.c.l.b16 %v5130
    %v5411 = vunpack.c.h.b16 %v5130
    %v5412 = vunpack.c.l.b16 %v5131
    %v5413 = vunpack.c.h.b16 %v5131
    %v5414 = vunpack.c.l.b16 %v5132
    %v5415 = vunpack.c.h.b16 %v5132
    %v5416 = vunpack.c.l.b16 %v5133
    %v5417 = vunpack.c.h.b16 %v5133
    %v5418 = vunpack.c.l.b16 %v5134
    %v5419 = vunpack.c.h.b16 %v5134
    %v5420 = vunpack.c.l.b16 %v5135
    %v5421 = vunpack.c.h.b16 %v5135
    %v5422 = vunpack.c.l.b16 %v5136
    %v5423 = vunpack.c.h.b16 %v5136
    %v5424 = vunpack.c.l.b16 %v5137
    %v5425 = vunpack.c.h.b16 %v5137
    %v5426 = vunpack.c.l.b16 %v5138
    %v5427 = vunpack.c.h.b16 %v5138
    %v5428 = vunpack.c.l.b16 %v5139
    %v5429 = vunpack.c.h.b16 %v5139
    %v5430 = vunpack.c.l.b16 %v5140
    %v5431 = vunpack.c.h.b16 %v5140
    %v5432 = vunpack.c.l.b16 %v5141
    %v5433 = vunpack.c.h.b16 %v5141
    %v5434 = vunpack.c.l.b16 %v5142
    %v5435 = vunpack.c.h.b16 %v5142
    %v5436 = vunpack.c.l.b16 %v5143
    %v5437 = vunpack.c.h.b16 %v5143
    %v5438 = vunpack.c.l.b16 %v5144
    %v5439 = vunpack.c.h.b16 %v5144
    %v5440 = vunpack.c.l.b16 %v5145
    %v5441 = vunpack.c.h.b16 %v5145
    %v5442 = vunpack.c.l.b16 %v5146
    %v5443 = vunpack.c.h.b16 %v5146
    %v5444 = vunpack.c.l.b16 %v5147
    %v5445 = vunpack.c.h.b16 %v5147
    %v5446 = vunpack.c.l.b16 %v5148
    %v5447 = vunpack.c.h.b16 %v5148
    %v5448 = vunpack.c.l.b16 %v5149
    %v5449 = vunpack.c.h.b16 %v5149
    %v5450 = vunpack.c.l.b16 %v5150
    %v5451 = vunpack.c.h.b16 %v5150
    %v5452 = vunpack.c.l.b16 %v5151
    %v5453 = vunpack.c.h.b16 %v5151
    %v5454 = vunpack.c.l.b16 %v5152
    %v5455 = vunpack.c.h.b16 %v5152
    %v5456 = vunpack.c.l.b16 %v5153
    %v5457 = vunpack.c.h.b16 %v5153
    %v5458 = vunpack.c.l.b16 %v5154
    %v5459 = vunpack.c.h.b16 %v5154
    %v5460 = vunpack.c.l.b16 %v5155
    %v5461 = vunpack.c.h.b16 %v5155
    %v5462 = vunpack.c.l.b16 %v5156
    %v5463 = vunpack.c.h.b16 %v5156
    %v5464 = vunpack.c.l.b16 %v5157
    %v5465 = vunpack.c.h.b16 %v5157
    %v5466 = vunpack.c.l.b16 %v5158
    %v5467 = vunpack.c.h.b16 %v5158
    %v5468 = vunpack.c.l.b16 %v5159
    %v5469 = vunpack.c.h.b16 %v5159
    %v5470 = vunpack.c.l.b16 %v5160
    %v5471 = vunpack.c.h.b16 %v5160
    %v5472 = vunpack.c.l.b16 %v5161
    %v5473 = vunpack.c.h.b16 %v5161
    %v5474 = vunpack.c.l.b16 %v5162
    %v5475 = vunpack.c.h.b16 %v5162
    %v5476 = vunpack.c.l.b16 %v5163
    %v5477 = vunpack.c.h.b16 %v5163
    %v5478 = vunpack.c.l.b16 %v5164
    %v5479 = vunpack.c.h.b16 %v5164
    %v5480 = vunpack.c.l.b16 %v5165
    %v5481 = vunpack.c.h.b16 %v5165
    %v5482 = vunpack.c.l.b16 %v5166
    %v5483 = vunpack.c.h.b16 %v5166
    %v5484 = vunpack.c.l.b16 %v5167
    %v5485 = vunpack.c.h.b16 %v5167
    %v5486 = vunpack.c.l.b16 %v5168
    %v5487 = vunpack.c.h.b16 %v5168
    %v5488 = vunpack.c.l.b16 %v5169
    %v5489 = vunpack.c.h.b16 %v5169
    %v5490 = vunpack.c.l.b16 %v5170
    %v5491 = vunpack.c.h.b16 %v5170
    %v5492 = vunpack.c.l.b16 %v5171
    %v5493 = vunpack.c.h.b16 %v5171
    %v5494 = vunpack.c.l.b16 %v5172
    %v5495 = vunpack.c.h.b16 %v5172
    %v5496 = vunpack.c.l.b16 %v5173
    %v5497 = vunpack.c.h.b16 %v5173
    %v5498 = vunpack.c.l.b16 %v5174
    %v5499 = vunpack.c.h.b16 %v5174
    %v5500 = vunpack.c.l.b16 %v5175
    %v5501 = vunpack.c.h.b16 %v5175
    %v5502 = vunpack.c.l.b16 %v5176
    %v5503 = vunpack.c.h.b16 %v5176
    %v5504 = vunpack.c.l.b16 %v5177
    %v5505 = vunpack.c.h.b16 %v5177
    %v5506 = vunpack.c.l.b16 %v5178
    %v5507 = vunpack.c.h.b16 %v5178
    %v5508 = vunpack.c.l.b16 %v5179
    %v5509 = vunpack.c.h.b16 %v5179
    %v5510 = vunpack.c.l.b16 %v5180
    %v5511 = vunpack.c.h.b16 %v5180
    %v5512 = vunpack.c.l.b16 %v5181
    %v5513 = vunpack.c.h.b16 %v5181
    %v5514 = vunpack.c.l.b16 %v5182
    %v5515 = vunpack.c.h.b16 %v5182
    %v5516 = vunpack.c.l.b16 %v5183
    %v5517 = vunpack.c.h.b16 %v5183
    %v5518 = vunpack.c.l.b16 %v5184
    %v5519 = vunpack.c.h.b16 %v5184
    %v5520 = vunpack.c.l.b16 %v5185
    %v5521 = vunpack.c.h.b16 %v5185
    %v5522 = vunpack.c.l.b16 %v5186
    %v5523 = vunpack.c.h.b16 %v5186
    %v5524 = vunpack.c.l.b16 %v5187
    %v5525 = vunpack.c.h.b16 %v5187
    %v5526 = vunpack.c.l.b16 %v5188
    %v5527 = vunpack.c.h.b16 %v5188
    %v5528 = vunpack.c.l.b16 %v5189
    %v5529 = vunpack.c.h.b16 %v5189
    %v5530 = vunpack.c.l.b16 %v5190
    %v5531 = vunpack.c.h.b16 %v5190
    %v5532 = vunpack.c.l.b16 %v5191
    %v5533 = vunpack.c.h.b16 %v5191
    %v5534 = vunpack.c.l.b16 %v5192
    %v5535 = vunpack.c.h.b16 %v5192
    %v5536 = vunpack.c.l.b16 %v5193
    %v5537 = vunpack.c.h.b16 %v5193
    %v5538 = vunpack.c.l.b16 %v5194
    %v5539 = vunpack.c.h.b16 %v5194
    %v5540 = vunpack.c.l.b16 %v5195
    %v5541 = vunpack.c.h.b16 %v5195
    %v5542 = vunpack.c.l.b16 %v5196
    %v5543 = vunpack.c.h.b16 %v5196
    %v5544 = vunpack.c.l.b16 %v5197
    %v5545 = vunpack.c.h.b16 %v5197
    %v5546 = vunpack.c.l.b16 %v5198
    %v5547 = vunpack.c.h.b16 %v5198
    %v5548 = vunpack.c.l.b16 %v5199
    %v5549 = vunpack.c.h.b16 %v5199
    %v5550 = vunpack.c.l.b16 %v5200
    %v5551 = vunpack.c.h.b16 %v5200
    %v5552 = vunpack.c.l.b16 %v5201
    %v5553 = vunpack.c.h.b16 %v5201
    %v5554 = vunpack.c.l.b16 %v5202
    %v5555 = vunpack.c.h.b16 %v5202
    %v5556 = vunpack.c.l.b16 %v5203
    %v5557 = vunpack.c.h.b16 %v5203
    %v5558 = vunpack.c.l.b16 %v5204
    %v5559 = vunpack.c.h.b16 %v5204
    %v5560 = vunpack.c.l.b16 %v5205
    %v5561 = vunpack.c.h.b16 %v5205
    %v5562 = vunpack.c.l.b16 %v5206
    %v5563 = vunpack.c.h.b16 %v5206
    %v5564 = vunpack.c.l.b16 %v5207
    %v5565 = vunpack.c.h.b16 %v5207
    %v5566 = vunpack.c.l.b16 %v5208
    %v5567 = vunpack.c.h.b16 %v5208
    %v5568 = vunpack.c.l.b16 %v5209
    %v5569 = vunpack.c.h.b16 %v5209
    %v5570 = vunpack.c.l.b16 %v5210
    %v5571 = vunpack.c.h.b16 %v5210
    %v5572 = vunpack.c.l.b16 %v5211
    %v5573 = vunpack.c.h.b16 %v5211
    %v5574 = vunpack.c.l.b16 %v5212
    %v5575 = vunpack.c.h.b16 %v5212
    %v5576 = vunpack.c.l.b16 %v5213
    %v5577 = vunpack.c.h.b16 %v5213
    %v5578 = vunpack.c.l.b16 %v5214
    %v5579 = vunpack.c.h.b16 %v5214
    %v5580 = vunpack.c.l.b16 %v5215
    %v5581 = vunpack.c.h.b16 %v5215
    %v5582 = vunpack.c.l.b16 %v5216
    %v5583 = vunpack.c.h.b16 %v5216
    %v5584 = vunpack.c.l.b16 %v5217
    %v5585 = vunpack.c.h.b16 %v5217
    %v5586 = vunpack.c.l.b16 %v5218
    %v5587 = vunpack.c.h.b16 %v5218
    %v5588 = vunpack.c.l.b16 %v5219
    %v5589 = vunpack.c.h.b16 %v5219
    %v5590 = vunpack.c.l.b16 %v5220
    %v5591 = vunpack.c.h.b16 %v5220
    %v5592 = vunpack.c.l.b16 %v5221
    %v5593 = vunpack.c.h.b16 %v5221
    %v5594 = vunpack.c.l.b16 %v5222
    %v5595 = vunpack.c.h.b16 %v5222
    %v5596 = vunpack.c.l.b16 %v5223
    %v5597 = vunpack.c.h.b16 %v5223
    %v5598 = vunpack.c.l.b16 %v5224
    %v5599 = vunpack.c.h.b16 %v5224
    %v5600 = vunpack.c.l.b16 %v5225
    %v5601 = vunpack.c.h.b16 %v5225
    %v5602 = vunpack.c.l.b16 %v5226
    %v5603 = vunpack.c.h.b16 %v5226
    %v5604 = vunpack.c.l.b16 %v5227
    %v5605 = vunpack.c.h.b16 %v5227
    %v5606 = vunpack.c.l.b16 %v5228
    %v5607 = vunpack.c.h.b16 %v5228
    %v5608 = vunpack.c.l.b16 %v5229
    %v5609 = vunpack.c.h.b16 %v5229
    %v5610 = vunpack.c.l.b16 %v5230
    %v5611 = vunpack.c.h.b16 %v5230
    %v5612 = vunpack.c.l.b16 %v5231
    %v5613 = vunpack.c.h.b16 %v5231
    %v5614 = vunpack.c.l.b16 %v5232
    %v5615 = vunpack.c.h.b16 %v5232
    %v5616 = vunpack.c.l.b16 %v5233
    %v5617 = vunpack.c.h.b16 %v5233
    %v5618 = vpack.c.b16 %v5366, %v5362
    %v5619 = vpack.c.b16 %v5367, %v5363
    %v5620 = vpack.c.b16 %v5368, %v5364
    %v5621 = vpack.c.b16 %v5369, %v5365
    %v5622 = vpack.c.b16 %v5374, %v5370
    %v5623 = vpack.c.b16 %v5375, %v5371
    %v5624 = vpack.c.b16 %v5376, %v5372
    %v5625 = vpack.c.b16 %v5377, %v5373
    %v5626 = vpack.c.b16 %v5382, %v5378
    %v5627 = vpack.c.b16 %v5383, %v5379
    %v5628 = vpack.c.b16 %v5384, %v5380
    %v5629 = vpack.c.b16 %v5385, %v5381
    %v5630 = vpack.c.b16 %v5390, %v5386
    %v5631 = vpack.c.b16 %v5391, %v5387
    %v5632 = vpack.c.b16 %v5392, %v5388
    %v5633 = vpack.c.b16 %v5393, %v5389
    %v5634 = vpack.c.b16 %v5398, %v5394
    %v5635 = vpack.c.b16 %v5399, %v5395
    %v5636 = vpack.c.b16 %v5400, %v5396
    %v5637 = vpack.c.b16 %v5401, %v5397
    %v5638 = vpack.c.b16 %v5406, %v5402
    %v5639 = vpack.c.b16 %v5407, %v5403
    %v5640 = vpack.c.b16 %v5408, %v5404
    %v5641 = vpack.c.b16 %v5409, %v5405
    %v5642 = vpack.c.b16 %v5414, %v5410
    %v5643 = vpack.c.b16 %v5415, %v5411
    %v5644 = vpack.c.b16 %v5416, %v5412
    %v5645 = vpack.c.b16 %v5417, %v5413
    %v5646 = vpack.c.b16 %v5422, %v5418
    %v5647 = vpack.c.b16 %v5423, %v5419
    %v5648 = vpack.c.b16 %v5424, %v5420
    %v5649 = vpack.c.b16 %v5425, %v5421
    %v5650 = vpack.c.b16 %v5430, %v5426
    %v5651 = vpack.c.b16 %v5431, %v5427
    %v5652 = vpack.c.b16 %v5432, %v5428
    %v5653 = vpack.c.b16 %v5433, %v5429
    %v5654 = vpack.c.b16 %v5438, %v5434
    %v5655 = vpack.c.b16 %v5439, %v5435
    %v5656 = vpack.c.b16 %v5440, %v5436
    %v5657 = vpack.c.b16 %v5441, %v5437
    %v5658 = vpack.c.b16 %v5446, %v5442
    %v5659 = vpack.c.b16 %v5447, %v5443
    %v5660 = vpack.c.b16 %v5448, %v5444
    %v5661 = vpack.c.b16 %v5449, %v5445
    %v5662 = vpack.c.b16 %v5454, %v5450
    %v5663 = vpack.c.b16 %v5455, %v5451
    %v5664 = vpack.c.b16 %v5456, %v5452
    %v5665 = vpack.c.b16 %v5457, %v5453
    %v5666 = vpack.c.b16 %v5462, %v5458
    %v5667 = vpack.c.b16 %v5463, %v5459
    %v5668 = vpack.c.b16 %v5464, %v5460
    %v5669 = vpack.c.b16 %v5465, %v5461
    %v5670 = vpack.c.b16 %v5470, %v5466
    %v5671 = vpack.c.b16 %v5471, %v5467
    %v5672 = vpack.c.b16 %v5472, %v5468
    %v5673 = vpack.c.b16 %v5473, %v5469
    %v5674 = vpack.c.b16 %v5478, %v5474
    %v5675 = vpack.c.b16 %v5479, %v5475
    %v5676 = vpack.c.b16 %v5480, %v5476
    %v5677 = vpack.c.b16 %v5481, %v5477
    %v5678 = vpack.c.b16 %v5486, %v5482
    %v5679 = vpack.c.b16 %v5487, %v5483
    %v5680 = vpack.c.b16 %v5488, %v5484
    %v5681 = vpack.c.b16 %v5489, %v5485
    %v5682 = vpack.c.b16 %v5494, %v5490
    %v5683 = vpack.c.b16 %v5495, %v5491
    %v5684 = vpack.c.b16 %v5496, %v5492
    %v5685 = vpack.c.b16 %v5497, %v5493
    %v5686 = vpack.c.b16 %v5502, %v5498
    %v5687 = vpack.c.b16 %v5503, %v5499
    %v5688 = vpack.c.b16 %v5504, %v5500
    %v5689 = vpack.c.b16 %v5505, %v5501
    %v5690 = vpack.c.b16 %v5510, %v5506
    %v5691 = vpack.c.b16 %v5511, %v5507
    %v5692 = vpack.c.b16 %v5512, %v5508
    %v5693 = vpack.c.b16 %v5513, %v5509
    %v5694 = vpack.c.b16 %v5518, %v5514
    %v5695 = vpack.c.b16 %v5519, %v5515
    %v5696 = vpack.c.b16 %v5520, %v5516
    %v5697 = vpack.c.b16 %v5521, %v5517
    %v5698 = vpack.c.b16 %v5526, %v5522
    %v5699 = vpack.c.b16 %v5527, %v5523
    %v5700 = vpack.c.b16 %v5528, %v5524
    %v5701 = vpack.c.b16 %v5529, %v5525
    %v5702 = vpack.c.b16 %v5534, %v5530
    %v5703 = vpack.c.b16 %v5535, %v5531
    %v5704 = vpack.c.b16 %v5536, %v5532
    %v5705 = vpack.c.b16 %v5537, %v5533
    %v5706 = vpack.c.b16 %v5542, %v5538
    %v5707 = vpack.c.b16 %v5543, %v5539
    %v5708 = vpack.c.b16 %v5544, %v5540
    %v5709 = vpack.c.b16 %v5545, %v5541
    %v5710 = vpack.c.b16 %v5550, %v5546
    %v5711 = vpack.c.b16 %v5551, %v5547
    %v5712 = vpack.c.b16 %v5552, %v5548
    %v5713 = vpack.c.b16 %v5553, %v5549
    %v5714 = vpack.c.b16 %v5558, %v5554
    %v5715 = vpack.c.b16 %v5559, %v5555
    %v5716 = vpack.c.b16 %v5560, %v5556
    %v5717 = vpack.c.b16 %v5561, %v5557
    %v5718 = vpack.c.b16 %v5566, %v5562
    %v5719 = vpack.c.b16 %v5567, %v5563
    %v5720 = vpack.c.b16 %v5568, %v5564
    %v5721 = vpack.c.b16 %v5569, %v5565
    %v5722 = vpack.c.b16 %v5574, %v5570
    %v5723 = vpack.c.b16 %v5575, %v5571
    %v5724 = vpack.c.b16 %v5576, %v5572
    %v5725 = vpack.c.b16 %v5577, %v5573
    %v5726 = vpack.c.b16 %v5582, %v5578
    %v5727 = vpack.c.b16 %v5583, %v5579
    %v5728 = vpack.c.b16 %v5584, %v5580
    %v5729 = vpack.c.b16 %v5585, %v5581
    %v5730 = vpack.c.b16 %v5590, %v5586
    %v5731 = vpack.c.b16 %v5591, %v5587
    %v5732 = vpack.c.b16 %v5592, %v5588
    %v5733 = vpack.c.b16 %v5593, %v5589
    %v5734 = vpack.c.b16 %v5598, %v5594
    %v5735 = vpack.c.b16 %v5599, %v5595
    %v5736 = vpack.c.b16 %v5600, %v5596
    %v5737 = vpack.c.b16 %v5601, %v5597
    %v5738 = vpack.c.b16 %v5606, %v5602
    %v5739 = vpack.c.b16 %v5607, %v5603
    %v5740 = vpack.c.b16 %v5608, %v5604
    %v5741 = vpack.c.b16 %v5609, %v5605
    %v5742 = vpack.c.b16 %v5614, %v5610
    %v5743 = vpack.c.b16 %v5615, %v5611
    %v5744 = vpack.c.b16 %v5616, %v5612
    %v5745 = vpack.c.b16 %v5617, %v5613
    %5874 = vmatprep.subr.bf16.mxu0 %v5647
    %5875 = vmatpush1.bf16.msra.mxu0 %v5646
    %5876 = vmatprep.subr.bf16.mxu0 %v5643
    %5877 = vmatpush1.bf16.msra.mxu0 %v5642
    %5878 = vmatprep.subr.bf16.mxu0 %v5639
    %5879 = vmatpush1.bf16.msra.mxu0 %v5638
    %5880 = vmatprep.subr.bf16.mxu0 %v5635
    %5881 = vmatpush1.bf16.msra.mxu0 %v5634
    %5882 = vmatprep.subr.bf16.mxu0 %v5631
    %5883 = vmatpush1.bf16.msra.mxu0 %v5630
    %5884 = vmatprep.subr.bf16.mxu0 %v5627
    %5885 = vmatpush1.bf16.msra.mxu0 %v5626
    %5886 = vmatprep.subr.bf16.mxu0 %v5623
    %5887 = vmatpush1.bf16.msra.mxu0 %v5622
    %5888 = vmatprep.subr.bf16.mxu0 %v5619
    %5889 = vmatpush1.bf16.msra.mxu0 %v5618
    %5890 = vmatprep.subr.bf16.mxu0 %v5679
    %5891 = vmatpush2.bf16.msra.mxu0 %v5678
    %5892 = vmatprep.subr.bf16.mxu0 %v5675
    %5893 = vmatpush2.bf16.msra.mxu0 %v5674
    %5894 = vmatprep.subr.bf16.mxu0 %v5671
    %5895 = vmatpush2.bf16.msra.mxu0 %v5670
    %5896 = vmatprep.subr.bf16.mxu0 %v5667
    %5897 = vmatpush2.bf16.msra.mxu0 %v5666
    %5898 = vmatprep.subr.bf16.mxu0 %v5663
    %5899 = vmatpush2.bf16.msra.mxu0 %v5662
    %5900 = vmatprep.subr.bf16.mxu0 %v5659
    %5901 = vmatpush2.bf16.msra.mxu0 %v5658
    %5902 = vmatprep.subr.bf16.mxu0 %v5655
    %5903 = vmatpush2.bf16.msra.mxu0 %v5654
    %5904 = vmatprep.subr.bf16.mxu0 %v5651
    %5905 = vmatpush2.bf16.msra.mxu0 %v5650
    %5906 = vmatprep.mubr.bf16.mxu0 %v4971
    %5907 = vmatmul.mubr.bf16.gmra.mxu0 %v4970
    %v5908 = vpop.f32.mrf.mxu0
    %v5909 = vadd.f32 0.0, %v5908
    %v5910 = vpop.f32.mrf.mxu0
    %v5911 = vadd.f32 0.0, %v5910
    %v5912 = vpop.f32.mrf.mxu0
    %v5913 = vadd.f32 0.0, %v5912
    %v5914 = vpop.f32.mrf.mxu0
    %v5915 = vadd.f32 0.0, %v5914
    %5916 = vmatprep.mubr.bf16.mxu0 %v4975
    %5917 = vmatmul.mubr.bf16.gmra.mxu0 %v4974
    %v5918 = vpop.f32.mrf.mxu0
    %v5919 = vadd.f32 0.0, %v5918
    %v5920 = vpop.f32.mrf.mxu0
    %v5921 = vadd.f32 0.0, %v5920
    %v5922 = vpop.f32.mrf.mxu0
    %v5923 = vadd.f32 0.0, %v5922
    %v5924 = vpop.f32.mrf.mxu0
    %v5925 = vadd.f32 0.0, %v5924
    %5926 = vdwg.mxu0
    %5927 = vmatprep.subr.bf16.mxu0 %v5711
    %5928 = vmatpush1.bf16.msra.mxu0 %v5710
    %5929 = vmatprep.subr.bf16.mxu0 %v5707
    %5930 = vmatpush1.bf16.msra.mxu0 %v5706
    %5931 = vmatprep.subr.bf16.mxu0 %v5703
    %5932 = vmatpush1.bf16.msra.mxu0 %v5702
    %5933 = vmatprep.subr.bf16.mxu0 %v5699
    %5934 = vmatpush1.bf16.msra.mxu0 %v5698
    %5935 = vmatprep.subr.bf16.mxu0 %v5695
    %5936 = vmatpush1.bf16.msra.mxu0 %v5694
    %5937 = vmatprep.subr.bf16.mxu0 %v5691
    %5938 = vmatpush1.bf16.msra.mxu0 %v5690
    %5939 = vmatprep.subr.bf16.mxu0 %v5687
    %5940 = vmatpush1.bf16.msra.mxu0 %v5686
    %5941 = vmatprep.subr.bf16.mxu0 %v5683
    %5942 = vmatpush1.bf16.msra.mxu0 %v5682
    %5943 = vmatprep.subr.bf16.mxu0 %v5743
    %5944 = vmatpush2.bf16.msra.mxu0 %v5742
    %5945 = vmatprep.subr.bf16.mxu0 %v5739
    %5946 = vmatpush2.bf16.msra.mxu0 %v5738
    %5947 = vmatprep.subr.bf16.mxu0 %v5735
    %5948 = vmatpush2.bf16.msra.mxu0 %v5734
    %5949 = vmatprep.subr.bf16.mxu0 %v5731
    %5950 = vmatpush2.bf16.msra.mxu0 %v5730
    %5951 = vmatprep.subr.bf16.mxu0 %v5727
    %5952 = vmatpush2.bf16.msra.mxu0 %v5726
    %5953 = vmatprep.subr.bf16.mxu0 %v5723
    %5954 = vmatpush2.bf16.msra.mxu0 %v5722
    %5955 = vmatprep.subr.bf16.mxu0 %v5719
    %5956 = vmatpush2.bf16.msra.mxu0 %v5718
    %5957 = vmatprep.subr.bf16.mxu0 %v5715
    %5958 = vmatpush2.bf16.msra.mxu0 %v5714
    %5959 = vmatprep.mubr.bf16.mxu0 %v4973
    %5960 = vmatmul.mubr.bf16.gmra.mxu0 %v4972
    %v5961 = vpop.f32.mrf.mxu0
    %v5962 = vadd.f32 %v5909, %v5961
    %v5963 = vpop.f32.mrf.mxu0
    %v5964 = vadd.f32 %v5911, %v5963
    %v5965 = vpop.f32.mrf.mxu0
    %v5966 = vadd.f32 %v5913, %v5965
    %v5967 = vpop.f32.mrf.mxu0
    %v5968 = vadd.f32 %v5915, %v5967
    %5969 = vmatprep.mubr.bf16.mxu0 %v4977
    %5970 = vmatmul.mubr.bf16.gmra.mxu0 %v4976
    %v5971 = vpop.f32.mrf.mxu0
    %v5972 = vadd.f32 %v5919, %v5971
    %v5973 = vpop.f32.mrf.mxu0
    %v5974 = vadd.f32 %v5921, %v5973
    %v5975 = vpop.f32.mrf.mxu0
    %v5976 = vadd.f32 %v5923, %v5975
    %v5977 = vpop.f32.mrf.mxu0
    %v5978 = vadd.f32 %v5925, %v5977
    %5979 = vdwg.mxu0
    %5980 = vmatprep.subr.bf16.mxu0 %v5649
    %5981 = vmatpush1.bf16.msra.mxu0 %v5648
    %5982 = vmatprep.subr.bf16.mxu0 %v5645
    %5983 = vmatpush1.bf16.msra.mxu0 %v5644
    %5984 = vmatprep.subr.bf16.mxu0 %v5641
    %5985 = vmatpush1.bf16.msra.mxu0 %v5640
    %5986 = vmatprep.subr.bf16.mxu0 %v5637
    %5987 = vmatpush1.bf16.msra.mxu0 %v5636
    %5988 = vmatprep.subr.bf16.mxu0 %v5633
    %5989 = vmatpush1.bf16.msra.mxu0 %v5632
    %5990 = vmatprep.subr.bf16.mxu0 %v5629
    %5991 = vmatpush1.bf16.msra.mxu0 %v5628
    %5992 = vmatprep.subr.bf16.mxu0 %v5625
    %5993 = vmatpush1.bf16.msra.mxu0 %v5624
    %5994 = vmatprep.subr.bf16.mxu0 %v5621
    %5995 = vmatpush1.bf16.msra.mxu0 %v5620
    %5996 = vmatprep.subr.bf16.mxu0 %v5681
    %5997 = vmatpush2.bf16.msra.mxu0 %v5680
    %5998 = vmatprep.subr.bf16.mxu0 %v5677
    %5999 = vmatpush2.bf16.msra.mxu0 %v5676
    %6000 = vmatprep.subr.bf16.mxu0 %v5673
    %6001 = vmatpush2.bf16.msra.mxu0 %v5672
    %6002 = vmatprep.subr.bf16.mxu0 %v5669
    %6003 = vmatpush2.bf16.msra.mxu0 %v5668
    %6004 = vmatprep.subr.bf16.mxu0 %v5665
    %6005 = vmatpush2.bf16.msra.mxu0 %v5664
    %6006 = vmatprep.subr.bf16.mxu0 %v5661
    %6007 = vmatpush2.bf16.msra.mxu0 %v5660
    %6008 = vmatprep.subr.bf16.mxu0 %v5657
    %6009 = vmatpush2.bf16.msra.mxu0 %v5656
    %6010 = vmatprep.subr.bf16.mxu0 %v5653
    %6011 = vmatpush2.bf16.msra.mxu0 %v5652
    %6012 = vmatprep.mubr.bf16.mxu0 %v4971
    %6013 = vmatmul.mubr.bf16.gmra.mxu0 %v4970
    %v6014 = vpop.f32.mrf.mxu0
    %v6015 = vadd.f32 0.0, %v6014
    %v6016 = vpop.f32.mrf.mxu0
    %v6017 = vadd.f32 0.0, %v6016
    %v6018 = vpop.f32.mrf.mxu0
    %v6019 = vadd.f32 0.0, %v6018
    %v6020 = vpop.f32.mrf.mxu0
    %v6021 = vadd.f32 0.0, %v6020
    %6022 = vmatprep.mubr.bf16.mxu0 %v4975
    %6023 = vmatmul.mubr.bf16.gmra.mxu0 %v4974
    %v6024 = vpop.f32.mrf.mxu0
    %v6025 = vadd.f32 0.0, %v6024
    %v6026 = vpop.f32.mrf.mxu0
    %v6027 = vadd.f32 0.0, %v6026
    %v6028 = vpop.f32.mrf.mxu0
    %v6029 = vadd.f32 0.0, %v6028
    %v6030 = vpop.f32.mrf.mxu0
    %v6031 = vadd.f32 0.0, %v6030
    %6032 = vdwg.mxu0
    %6033 = vmatprep.subr.bf16.mxu0 %v5713
    %6034 = vmatpush1.bf16.msra.mxu0 %v5712
    %6035 = vmatprep.subr.bf16.mxu0 %v5709
    %6036 = vmatpush1.bf16.msra.mxu0 %v5708
    %6037 = vmatprep.subr.bf16.mxu0 %v5705
    %6038 = vmatpush1.bf16.msra.mxu0 %v5704
    %6039 = vmatprep.subr.bf16.mxu0 %v5701
    %6040 = vmatpush1.bf16.msra.mxu0 %v5700
    %6041 = vmatprep.subr.bf16.mxu0 %v5697
    %6042 = vmatpush1.bf16.msra.mxu0 %v5696
    %6043 = vmatprep.subr.bf16.mxu0 %v5693
    %6044 = vmatpush1.bf16.msra.mxu0 %v5692
    %6045 = vmatprep.subr.bf16.mxu0 %v5689
    %6046 = vmatpush1.bf16.msra.mxu0 %v5688
    %6047 = vmatprep.subr.bf16.mxu0 %v5685
    %6048 = vmatpush1.bf16.msra.mxu0 %v5684
    %6049 = vmatprep.subr.bf16.mxu0 %v5745
    %6050 = vmatpush2.bf16.msra.mxu0 %v5744
    %6051 = vmatprep.subr.bf16.mxu0 %v5741
    %6052 = vmatpush2.bf16.msra.mxu0 %v5740
    %6053 = vmatprep.subr.bf16.mxu0 %v5737
    %6054 = vmatpush2.bf16.msra.mxu0 %v5736
    %6055 = vmatprep.subr.bf16.mxu0 %v5733
    %6056 = vmatpush2.bf16.msra.mxu0 %v5732
    %6057 = vmatprep.subr.bf16.mxu0 %v5729
    %6058 = vmatpush2.bf16.msra.mxu0 %v5728
    %6059 = vmatprep.subr.bf16.mxu0 %v5725
    %6060 = vmatpush2.bf16.msra.mxu0 %v5724
    %6061 = vmatprep.subr.bf16.mxu0 %v5721
    %6062 = vmatpush2.bf16.msra.mxu0 %v5720
    %6063 = vmatprep.subr.bf16.mxu0 %v5717
    %6064 = vmatpush2.bf16.msra.mxu0 %v5716
    %6065 = vmatprep.mubr.bf16.mxu0 %v4973
    %6066 = vmatmul.mubr.bf16.gmra.mxu0 %v4972
    %v6067 = vpop.f32.mrf.mxu0
    %v6068 = vadd.f32 %v6015, %v6067
    %v6069 = vpop.f32.mrf.mxu0
    %v6070 = vadd.f32 %v6017, %v6069
    %v6071 = vpop.f32.mrf.mxu0
    %v6072 = vadd.f32 %v6019, %v6071
    %v6073 = vpop.f32.mrf.mxu0
    %v6074 = vadd.f32 %v6021, %v6073
    %6075 = vmatprep.mubr.bf16.mxu0 %v4977
    %6076 = vmatmul.mubr.bf16.gmra.mxu0 %v4976
    %v6077 = vpop.f32.mrf.mxu0
    %v6078 = vadd.f32 %v6025, %v6077
    %v6079 = vpop.f32.mrf.mxu0
    %v6080 = vadd.f32 %v6027, %v6079
    %v6081 = vpop.f32.mrf.mxu0
    %v6082 = vadd.f32 %v6029, %v6081
    %v6083 = vpop.f32.mrf.mxu0
    %v6084 = vadd.f32 %v6031, %v6083
    %6085 = vdwg.mxu0
    %v6214 = vunpack.c.l.b16 %v4978
    %v6215 = vunpack.c.h.b16 %v4978
    %v6216 = vunpack.c.l.b16 %v4979
    %v6217 = vunpack.c.h.b16 %v4979
    %v6218 = vunpack.c.l.b16 %v4980
    %v6219 = vunpack.c.h.b16 %v4980
    %v6220 = vunpack.c.l.b16 %v4981
    %v6221 = vunpack.c.h.b16 %v4981
    %v6222 = vunpack.c.l.b16 %v4982
    %v6223 = vunpack.c.h.b16 %v4982
    %v6224 = vunpack.c.l.b16 %v4983
    %v6225 = vunpack.c.h.b16 %v4983
    %v6226 = vunpack.c.l.b16 %v4984
    %v6227 = vunpack.c.h.b16 %v4984
    %v6228 = vunpack.c.l.b16 %v4985
    %v6229 = vunpack.c.h.b16 %v4985
    %v6230 = vunpack.c.l.b16 %v4986
    %v6231 = vunpack.c.h.b16 %v4986
    %v6232 = vunpack.c.l.b16 %v4987
    %v6233 = vunpack.c.h.b16 %v4987
    %v6234 = vunpack.c.l.b16 %v4988
    %v6235 = vunpack.c.h.b16 %v4988
    %v6236 = vunpack.c.l.b16 %v4989
    %v6237 = vunpack.c.h.b16 %v4989
    %v6238 = vunpack.c.l.b16 %v4990
    %v6239 = vunpack.c.h.b16 %v4990
    %v6240 = vunpack.c.l.b16 %v4991
    %v6241 = vunpack.c.h.b16 %v4991
    %v6242 = vunpack.c.l.b16 %v4992
    %v6243 = vunpack.c.h.b16 %v4992
    %v6244 = vunpack.c.l.b16 %v4993
    %v6245 = vunpack.c.h.b16 %v4993
    %v6246 = vunpack.c.l.b16 %v4994
    %v6247 = vunpack.c.h.b16 %v4994
    %v6248 = vunpack.c.l.b16 %v4995
    %v6249 = vunpack.c.h.b16 %v4995
    %v6250 = vunpack.c.l.b16 %v4996
    %v6251 = vunpack.c.h.b16 %v4996
    %v6252 = vunpack.c.l.b16 %v4997
    %v6253 = vunpack.c.h.b16 %v4997
    %v6254 = vunpack.c.l.b16 %v4998
    %v6255 = vunpack.c.h.b16 %v4998
    %v6256 = vunpack.c.l.b16 %v4999
    %v6257 = vunpack.c.h.b16 %v4999
    %v6258 = vunpack.c.l.b16 %v5000
    %v6259 = vunpack.c.h.b16 %v5000
    %v6260 = vunpack.c.l.b16 %v5001
    %v6261 = vunpack.c.h.b16 %v5001
    %v6262 = vunpack.c.l.b16 %v5002
    %v6263 = vunpack.c.h.b16 %v5002
    %v6264 = vunpack.c.l.b16 %v5003
    %v6265 = vunpack.c.h.b16 %v5003
    %v6266 = vunpack.c.l.b16 %v5004
    %v6267 = vunpack.c.h.b16 %v5004
    %v6268 = vunpack.c.l.b16 %v5005
    %v6269 = vunpack.c.h.b16 %v5005
    %v6270 = vunpack.c.l.b16 %v5006
    %v6271 = vunpack.c.h.b16 %v5006
    %v6272 = vunpack.c.l.b16 %v5007
    %v6273 = vunpack.c.h.b16 %v5007
    %v6274 = vunpack.c.l.b16 %v5008
    %v6275 = vunpack.c.h.b16 %v5008
    %v6276 = vunpack.c.l.b16 %v5009
    %v6277 = vunpack.c.h.b16 %v5009
    %v6278 = vunpack.c.l.b16 %v5010
    %v6279 = vunpack.c.h.b16 %v5010
    %v6280 = vunpack.c.l.b16 %v5011
    %v6281 = vunpack.c.h.b16 %v5011
    %v6282 = vunpack.c.l.b16 %v5012
    %v6283 = vunpack.c.h.b16 %v5012
    %v6284 = vunpack.c.l.b16 %v5013
    %v6285 = vunpack.c.h.b16 %v5013
    %v6286 = vunpack.c.l.b16 %v5014
    %v6287 = vunpack.c.h.b16 %v5014
    %v6288 = vunpack.c.l.b16 %v5015
    %v6289 = vunpack.c.h.b16 %v5015
    %v6290 = vunpack.c.l.b16 %v5016
    %v6291 = vunpack.c.h.b16 %v5016
    %v6292 = vunpack.c.l.b16 %v5017
    %v6293 = vunpack.c.h.b16 %v5017
    %v6294 = vunpack.c.l.b16 %v5018
    %v6295 = vunpack.c.h.b16 %v5018
    %v6296 = vunpack.c.l.b16 %v5019
    %v6297 = vunpack.c.h.b16 %v5019
    %v6298 = vunpack.c.l.b16 %v5020
    %v6299 = vunpack.c.h.b16 %v5020
    %v6300 = vunpack.c.l.b16 %v5021
    %v6301 = vunpack.c.h.b16 %v5021
    %v6302 = vunpack.c.l.b16 %v5022
    %v6303 = vunpack.c.h.b16 %v5022
    %v6304 = vunpack.c.l.b16 %v5023
    %v6305 = vunpack.c.h.b16 %v5023
    %v6306 = vunpack.c.l.b16 %v5024
    %v6307 = vunpack.c.h.b16 %v5024
    %v6308 = vunpack.c.l.b16 %v5025
    %v6309 = vunpack.c.h.b16 %v5025
    %v6310 = vunpack.c.l.b16 %v5026
    %v6311 = vunpack.c.h.b16 %v5026
    %v6312 = vunpack.c.l.b16 %v5027
    %v6313 = vunpack.c.h.b16 %v5027
    %v6314 = vunpack.c.l.b16 %v5028
    %v6315 = vunpack.c.h.b16 %v5028
    %v6316 = vunpack.c.l.b16 %v5029
    %v6317 = vunpack.c.h.b16 %v5029
    %v6318 = vunpack.c.l.b16 %v5030
    %v6319 = vunpack.c.h.b16 %v5030
    %v6320 = vunpack.c.l.b16 %v5031
    %v6321 = vunpack.c.h.b16 %v5031
    %v6322 = vunpack.c.l.b16 %v5032
    %v6323 = vunpack.c.h.b16 %v5032
    %v6324 = vunpack.c.l.b16 %v5033
    %v6325 = vunpack.c.h.b16 %v5033
    %v6326 = vunpack.c.l.b16 %v5034
    %v6327 = vunpack.c.h.b16 %v5034
    %v6328 = vunpack.c.l.b16 %v5035
    %v6329 = vunpack.c.h.b16 %v5035
    %v6330 = vunpack.c.l.b16 %v5036
    %v6331 = vunpack.c.h.b16 %v5036
    %v6332 = vunpack.c.l.b16 %v5037
    %v6333 = vunpack.c.h.b16 %v5037
    %v6334 = vunpack.c.l.b16 %v5038
    %v6335 = vunpack.c.h.b16 %v5038
    %v6336 = vunpack.c.l.b16 %v5039
    %v6337 = vunpack.c.h.b16 %v5039
    %v6338 = vunpack.c.l.b16 %v5040
    %v6339 = vunpack.c.h.b16 %v5040
    %v6340 = vunpack.c.l.b16 %v5041
    %v6341 = vunpack.c.h.b16 %v5041
    %v6342 = vunpack.c.l.b16 %v5042
    %v6343 = vunpack.c.h.b16 %v5042
    %v6344 = vunpack.c.l.b16 %v5043
    %v6345 = vunpack.c.h.b16 %v5043
    %v6346 = vunpack.c.l.b16 %v5044
    %v6347 = vunpack.c.h.b16 %v5044
    %v6348 = vunpack.c.l.b16 %v5045
    %v6349 = vunpack.c.h.b16 %v5045
    %v6350 = vunpack.c.l.b16 %v5046
    %v6351 = vunpack.c.h.b16 %v5046
    %v6352 = vunpack.c.l.b16 %v5047
    %v6353 = vunpack.c.h.b16 %v5047
    %v6354 = vunpack.c.l.b16 %v5048
    %v6355 = vunpack.c.h.b16 %v5048
    %v6356 = vunpack.c.l.b16 %v5049
    %v6357 = vunpack.c.h.b16 %v5049
    %v6358 = vunpack.c.l.b16 %v5050
    %v6359 = vunpack.c.h.b16 %v5050
    %v6360 = vunpack.c.l.b16 %v5051
    %v6361 = vunpack.c.h.b16 %v5051
    %v6362 = vunpack.c.l.b16 %v5052
    %v6363 = vunpack.c.h.b16 %v5052
    %v6364 = vunpack.c.l.b16 %v5053
    %v6365 = vunpack.c.h.b16 %v5053
    %v6366 = vunpack.c.l.b16 %v5054
    %v6367 = vunpack.c.h.b16 %v5054
    %v6368 = vunpack.c.l.b16 %v5055
    %v6369 = vunpack.c.h.b16 %v5055
    %v6370 = vunpack.c.l.b16 %v5056
    %v6371 = vunpack.c.h.b16 %v5056
    %v6372 = vunpack.c.l.b16 %v5057
    %v6373 = vunpack.c.h.b16 %v5057
    %v6374 = vunpack.c.l.b16 %v5058
    %v6375 = vunpack.c.h.b16 %v5058
    %v6376 = vunpack.c.l.b16 %v5059
    %v6377 = vunpack.c.h.b16 %v5059
    %v6378 = vunpack.c.l.b16 %v5060
    %v6379 = vunpack.c.h.b16 %v5060
    %v6380 = vunpack.c.l.b16 %v5061
    %v6381 = vunpack.c.h.b16 %v5061
    %v6382 = vunpack.c.l.b16 %v5062
    %v6383 = vunpack.c.h.b16 %v5062
    %v6384 = vunpack.c.l.b16 %v5063
    %v6385 = vunpack.c.h.b16 %v5063
    %v6386 = vunpack.c.l.b16 %v5064
    %v6387 = vunpack.c.h.b16 %v5064
    %v6388 = vunpack.c.l.b16 %v5065
    %v6389 = vunpack.c.h.b16 %v5065
    %v6390 = vunpack.c.l.b16 %v5066
    %v6391 = vunpack.c.h.b16 %v5066
    %v6392 = vunpack.c.l.b16 %v5067
    %v6393 = vunpack.c.h.b16 %v5067
    %v6394 = vunpack.c.l.b16 %v5068
    %v6395 = vunpack.c.h.b16 %v5068
    %v6396 = vunpack.c.l.b16 %v5069
    %v6397 = vunpack.c.h.b16 %v5069
    %v6398 = vunpack.c.l.b16 %v5070
    %v6399 = vunpack.c.h.b16 %v5070
    %v6400 = vunpack.c.l.b16 %v5071
    %v6401 = vunpack.c.h.b16 %v5071
    %v6402 = vunpack.c.l.b16 %v5072
    %v6403 = vunpack.c.h.b16 %v5072
    %v6404 = vunpack.c.l.b16 %v5073
    %v6405 = vunpack.c.h.b16 %v5073
    %v6406 = vunpack.c.l.b16 %v5074
    %v6407 = vunpack.c.h.b16 %v5074
    %v6408 = vunpack.c.l.b16 %v5075
    %v6409 = vunpack.c.h.b16 %v5075
    %v6410 = vunpack.c.l.b16 %v5076
    %v6411 = vunpack.c.h.b16 %v5076
    %v6412 = vunpack.c.l.b16 %v5077
    %v6413 = vunpack.c.h.b16 %v5077
    %v6414 = vunpack.c.l.b16 %v5078
    %v6415 = vunpack.c.h.b16 %v5078
    %v6416 = vunpack.c.l.b16 %v5079
    %v6417 = vunpack.c.h.b16 %v5079
    %v6418 = vunpack.c.l.b16 %v5080
    %v6419 = vunpack.c.h.b16 %v5080
    %v6420 = vunpack.c.l.b16 %v5081
    %v6421 = vunpack.c.h.b16 %v5081
    %v6422 = vunpack.c.l.b16 %v5082
    %v6423 = vunpack.c.h.b16 %v5082
    %v6424 = vunpack.c.l.b16 %v5083
    %v6425 = vunpack.c.h.b16 %v5083
    %v6426 = vunpack.c.l.b16 %v5084
    %v6427 = vunpack.c.h.b16 %v5084
    %v6428 = vunpack.c.l.b16 %v5085
    %v6429 = vunpack.c.h.b16 %v5085
    %v6430 = vunpack.c.l.b16 %v5086
    %v6431 = vunpack.c.h.b16 %v5086
    %v6432 = vunpack.c.l.b16 %v5087
    %v6433 = vunpack.c.h.b16 %v5087
    %v6434 = vunpack.c.l.b16 %v5088
    %v6435 = vunpack.c.h.b16 %v5088
    %v6436 = vunpack.c.l.b16 %v5089
    %v6437 = vunpack.c.h.b16 %v5089
    %v6438 = vunpack.c.l.b16 %v5090
    %v6439 = vunpack.c.h.b16 %v5090
    %v6440 = vunpack.c.l.b16 %v5091
    %v6441 = vunpack.c.h.b16 %v5091
    %v6442 = vunpack.c.l.b16 %v5092
    %v6443 = vunpack.c.h.b16 %v5092
    %v6444 = vunpack.c.l.b16 %v5093
    %v6445 = vunpack.c.h.b16 %v5093
    %v6446 = vunpack.c.l.b16 %v5094
    %v6447 = vunpack.c.h.b16 %v5094
    %v6448 = vunpack.c.l.b16 %v5095
    %v6449 = vunpack.c.h.b16 %v5095
    %v6450 = vunpack.c.l.b16 %v5096
    %v6451 = vunpack.c.h.b16 %v5096
    %v6452 = vunpack.c.l.b16 %v5097
    %v6453 = vunpack.c.h.b16 %v5097
    %v6454 = vunpack.c.l.b16 %v5098
    %v6455 = vunpack.c.h.b16 %v5098
    %v6456 = vunpack.c.l.b16 %v5099
    %v6457 = vunpack.c.h.b16 %v5099
    %v6458 = vunpack.c.l.b16 %v5100
    %v6459 = vunpack.c.h.b16 %v5100
    %v6460 = vunpack.c.l.b16 %v5101
    %v6461 = vunpack.c.h.b16 %v5101
    %v6462 = vunpack.c.l.b16 %v5102
    %v6463 = vunpack.c.h.b16 %v5102
    %v6464 = vunpack.c.l.b16 %v5103
    %v6465 = vunpack.c.h.b16 %v5103
    %v6466 = vunpack.c.l.b16 %v5104
    %v6467 = vunpack.c.h.b16 %v5104
    %v6468 = vunpack.c.l.b16 %v5105
    %v6469 = vunpack.c.h.b16 %v5105
    %v6470 = vpack.c.b16 %v6218, %v6214
    %v6471 = vpack.c.b16 %v6219, %v6215
    %v6472 = vpack.c.b16 %v6220, %v6216
    %v6473 = vpack.c.b16 %v6221, %v6217
    %v6474 = vpack.c.b16 %v6226, %v6222
    %v6475 = vpack.c.b16 %v6227, %v6223
    %v6476 = vpack.c.b16 %v6228, %v6224
    %v6477 = vpack.c.b16 %v6229, %v6225
    %v6478 = vpack.c.b16 %v6234, %v6230
    %v6479 = vpack.c.b16 %v6235, %v6231
    %v6480 = vpack.c.b16 %v6236, %v6232
    %v6481 = vpack.c.b16 %v6237, %v6233
    %v6482 = vpack.c.b16 %v6242, %v6238
    %v6483 = vpack.c.b16 %v6243, %v6239
    %v6484 = vpack.c.b16 %v6244, %v6240
    %v6485 = vpack.c.b16 %v6245, %v6241
    %v6486 = vpack.c.b16 %v6250, %v6246
    %v6487 = vpack.c.b16 %v6251, %v6247
    %v6488 = vpack.c.b16 %v6252, %v6248
    %v6489 = vpack.c.b16 %v6253, %v6249
    %v6490 = vpack.c.b16 %v6258, %v6254
    %v6491 = vpack.c.b16 %v6259, %v6255
    %v6492 = vpack.c.b16 %v6260, %v6256
    %v6493 = vpack.c.b16 %v6261, %v6257
    %v6494 = vpack.c.b16 %v6266, %v6262
    %v6495 = vpack.c.b16 %v6267, %v6263
    %v6496 = vpack.c.b16 %v6268, %v6264
    %v6497 = vpack.c.b16 %v6269, %v6265
    %v6498 = vpack.c.b16 %v6274, %v6270
    %v6499 = vpack.c.b16 %v6275, %v6271
    %v6500 = vpack.c.b16 %v6276, %v6272
    %v6501 = vpack.c.b16 %v6277, %v6273
    %v6502 = vpack.c.b16 %v6282, %v6278
    %v6503 = vpack.c.b16 %v6283, %v6279
    %v6504 = vpack.c.b16 %v6284, %v6280
    %v6505 = vpack.c.b16 %v6285, %v6281
    %v6506 = vpack.c.b16 %v6290, %v6286
    %v6507 = vpack.c.b16 %v6291, %v6287
    %v6508 = vpack.c.b16 %v6292, %v6288
    %v6509 = vpack.c.b16 %v6293, %v6289
    %v6510 = vpack.c.b16 %v6298, %v6294
    %v6511 = vpack.c.b16 %v6299, %v6295
    %v6512 = vpack.c.b16 %v6300, %v6296
    %v6513 = vpack.c.b16 %v6301, %v6297
    %v6514 = vpack.c.b16 %v6306, %v6302
    %v6515 = vpack.c.b16 %v6307, %v6303
    %v6516 = vpack.c.b16 %v6308, %v6304
    %v6517 = vpack.c.b16 %v6309, %v6305
    %v6518 = vpack.c.b16 %v6314, %v6310
    %v6519 = vpack.c.b16 %v6315, %v6311
    %v6520 = vpack.c.b16 %v6316, %v6312
    %v6521 = vpack.c.b16 %v6317, %v6313
    %v6522 = vpack.c.b16 %v6322, %v6318
    %v6523 = vpack.c.b16 %v6323, %v6319
    %v6524 = vpack.c.b16 %v6324, %v6320
    %v6525 = vpack.c.b16 %v6325, %v6321
    %v6526 = vpack.c.b16 %v6330, %v6326
    %v6527 = vpack.c.b16 %v6331, %v6327
    %v6528 = vpack.c.b16 %v6332, %v6328
    %v6529 = vpack.c.b16 %v6333, %v6329
    %v6530 = vpack.c.b16 %v6338, %v6334
    %v6531 = vpack.c.b16 %v6339, %v6335
    %v6532 = vpack.c.b16 %v6340, %v6336
    %v6533 = vpack.c.b16 %v6341, %v6337
    %v6534 = vpack.c.b16 %v6346, %v6342
    %v6535 = vpack.c.b16 %v6347, %v6343
    %v6536 = vpack.c.b16 %v6348, %v6344
    %v6537 = vpack.c.b16 %v6349, %v6345
    %v6538 = vpack.c.b16 %v6354, %v6350
    %v6539 = vpack.c.b16 %v6355, %v6351
    %v6540 = vpack.c.b16 %v6356, %v6352
    %v6541 = vpack.c.b16 %v6357, %v6353
    %v6542 = vpack.c.b16 %v6362, %v6358
    %v6543 = vpack.c.b16 %v6363, %v6359
    %v6544 = vpack.c.b16 %v6364, %v6360
    %v6545 = vpack.c.b16 %v6365, %v6361
    %v6546 = vpack.c.b16 %v6370, %v6366
    %v6547 = vpack.c.b16 %v6371, %v6367
    %v6548 = vpack.c.b16 %v6372, %v6368
    %v6549 = vpack.c.b16 %v6373, %v6369
    %v6550 = vpack.c.b16 %v6378, %v6374
    %v6551 = vpack.c.b16 %v6379, %v6375
    %v6552 = vpack.c.b16 %v6380, %v6376
    %v6553 = vpack.c.b16 %v6381, %v6377
    %v6554 = vpack.c.b16 %v6386, %v6382
    %v6555 = vpack.c.b16 %v6387, %v6383
    %v6556 = vpack.c.b16 %v6388, %v6384
    %v6557 = vpack.c.b16 %v6389, %v6385
    %v6558 = vpack.c.b16 %v6394, %v6390
    %v6559 = vpack.c.b16 %v6395, %v6391
    %v6560 = vpack.c.b16 %v6396, %v6392
    %v6561 = vpack.c.b16 %v6397, %v6393
    %v6562 = vpack.c.b16 %v6402, %v6398
    %v6563 = vpack.c.b16 %v6403, %v6399
    %v6564 = vpack.c.b16 %v6404, %v6400
    %v6565 = vpack.c.b16 %v6405, %v6401
    %v6566 = vpack.c.b16 %v6410, %v6406
    %v6567 = vpack.c.b16 %v6411, %v6407
    %v6568 = vpack.c.b16 %v6412, %v6408
    %v6569 = vpack.c.b16 %v6413, %v6409
    %v6570 = vpack.c.b16 %v6418, %v6414
    %v6571 = vpack.c.b16 %v6419, %v6415
    %v6572 = vpack.c.b16 %v6420, %v6416
    %v6573 = vpack.c.b16 %v6421, %v6417
    %v6574 = vpack.c.b16 %v6426, %v6422
    %v6575 = vpack.c.b16 %v6427, %v6423
    %v6576 = vpack.c.b16 %v6428, %v6424
    %v6577 = vpack.c.b16 %v6429, %v6425
    %v6578 = vpack.c.b16 %v6434, %v6430
    %v6579 = vpack.c.b16 %v6435, %v6431
    %v6580 = vpack.c.b16 %v6436, %v6432
    %v6581 = vpack.c.b16 %v6437, %v6433
    %v6582 = vpack.c.b16 %v6442, %v6438
    %v6583 = vpack.c.b16 %v6443, %v6439
    %v6584 = vpack.c.b16 %v6444, %v6440
    %v6585 = vpack.c.b16 %v6445, %v6441
    %v6586 = vpack.c.b16 %v6450, %v6446
    %v6587 = vpack.c.b16 %v6451, %v6447
    %v6588 = vpack.c.b16 %v6452, %v6448
    %v6589 = vpack.c.b16 %v6453, %v6449
    %v6590 = vpack.c.b16 %v6458, %v6454
    %v6591 = vpack.c.b16 %v6459, %v6455
    %v6592 = vpack.c.b16 %v6460, %v6456
    %v6593 = vpack.c.b16 %v6461, %v6457
    %v6594 = vpack.c.b16 %v6466, %v6462
    %v6595 = vpack.c.b16 %v6467, %v6463
    %v6596 = vpack.c.b16 %v6468, %v6464
    %v6597 = vpack.c.b16 %v6469, %v6465
    %6726 = vmatprep.subr.bf16.mxu0 %v6499
    %6727 = vmatpush1.bf16.msra.mxu0 %v6498
    %6728 = vmatprep.subr.bf16.mxu0 %v6495
    %6729 = vmatpush1.bf16.msra.mxu0 %v6494
    %6730 = vmatprep.subr.bf16.mxu0 %v6491
    %6731 = vmatpush1.bf16.msra.mxu0 %v6490
    %6732 = vmatprep.subr.bf16.mxu0 %v6487
    %6733 = vmatpush1.bf16.msra.mxu0 %v6486
    %6734 = vmatprep.subr.bf16.mxu0 %v6483
    %6735 = vmatpush1.bf16.msra.mxu0 %v6482
    %6736 = vmatprep.subr.bf16.mxu0 %v6479
    %6737 = vmatpush1.bf16.msra.mxu0 %v6478
    %6738 = vmatprep.subr.bf16.mxu0 %v6475
    %6739 = vmatpush1.bf16.msra.mxu0 %v6474
    %6740 = vmatprep.subr.bf16.mxu0 %v6471
    %6741 = vmatpush1.bf16.msra.mxu0 %v6470
    %6742 = vmatprep.subr.bf16.mxu0 %v6531
    %6743 = vmatpush2.bf16.msra.mxu0 %v6530
    %6744 = vmatprep.subr.bf16.mxu0 %v6527
    %6745 = vmatpush2.bf16.msra.mxu0 %v6526
    %6746 = vmatprep.subr.bf16.mxu0 %v6523
    %6747 = vmatpush2.bf16.msra.mxu0 %v6522
    %6748 = vmatprep.subr.bf16.mxu0 %v6519
    %6749 = vmatpush2.bf16.msra.mxu0 %v6518
    %6750 = vmatprep.subr.bf16.mxu0 %v6515
    %6751 = vmatpush2.bf16.msra.mxu0 %v6514
    %6752 = vmatprep.subr.bf16.mxu0 %v6511
    %6753 = vmatpush2.bf16.msra.mxu0 %v6510
    %6754 = vmatprep.subr.bf16.mxu0 %v6507
    %6755 = vmatpush2.bf16.msra.mxu0 %v6506
    %6756 = vmatprep.subr.bf16.mxu0 %v6503
    %6757 = vmatpush2.bf16.msra.mxu0 %v6502
    %6758 = vmatprep.mubr.bf16.mxu0 %v4857
    %6759 = vmatmul.mubr.bf16.gmra.mxu0 %v4856
    %v6760 = vpop.f32.mrf.mxu0
    %v6761 = vadd.f32 %v5962, %v6760
    %v6762 = vpop.f32.mrf.mxu0
    %v6763 = vadd.f32 %v5964, %v6762
    %v6764 = vpop.f32.mrf.mxu0
    %v6765 = vadd.f32 %v5966, %v6764
    %v6766 = vpop.f32.mrf.mxu0
    %v6767 = vadd.f32 %v5968, %v6766
    %6768 = vmatprep.mubr.bf16.mxu0 %v4861
    %6769 = vmatmul.mubr.bf16.gmra.mxu0 %v4860
    %v6770 = vpop.f32.mrf.mxu0
    %v6771 = vadd.f32 %v5972, %v6770
    %v6772 = vpop.f32.mrf.mxu0
    %v6773 = vadd.f32 %v5974, %v6772
    %v6774 = vpop.f32.mrf.mxu0
    %v6775 = vadd.f32 %v5976, %v6774
    %v6776 = vpop.f32.mrf.mxu0
    %v6777 = vadd.f32 %v5978, %v6776
    %6778 = vdwg.mxu0
    %6779 = vmatprep.subr.bf16.mxu0 %v6563
    %6780 = vmatpush1.bf16.msra.mxu0 %v6562
    %6781 = vmatprep.subr.bf16.mxu0 %v6559
    %6782 = vmatpush1.bf16.msra.mxu0 %v6558
    %6783 = vmatprep.subr.bf16.mxu0 %v6555
    %6784 = vmatpush1.bf16.msra.mxu0 %v6554
    %6785 = vmatprep.subr.bf16.mxu0 %v6551
    %6786 = vmatpush1.bf16.msra.mxu0 %v6550
    %6787 = vmatprep.subr.bf16.mxu0 %v6547
    %6788 = vmatpush1.bf16.msra.mxu0 %v6546
    %6789 = vmatprep.subr.bf16.mxu0 %v6543
    %6790 = vmatpush1.bf16.msra.mxu0 %v6542
    %6791 = vmatprep.subr.bf16.mxu0 %v6539
    %6792 = vmatpush1.bf16.msra.mxu0 %v6538
    %6793 = vmatprep.subr.bf16.mxu0 %v6535
    %6794 = vmatpush1.bf16.msra.mxu0 %v6534
    %6795 = vmatprep.subr.bf16.mxu0 %v6595
    %6796 = vmatpush2.bf16.msra.mxu0 %v6594
    %6797 = vmatprep.subr.bf16.mxu0 %v6591
    %6798 = vmatpush2.bf16.msra.mxu0 %v6590
    %6799 = vmatprep.subr.bf16.mxu0 %v6587
    %6800 = vmatpush2.bf16.msra.mxu0 %v6586
    %6801 = vmatprep.subr.bf16.mxu0 %v6583
    %6802 = vmatpush2.bf16.msra.mxu0 %v6582
    %6803 = vmatprep.subr.bf16.mxu0 %v6579
    %6804 = vmatpush2.bf16.msra.mxu0 %v6578
    %6805 = vmatprep.subr.bf16.mxu0 %v6575
    %6806 = vmatpush2.bf16.msra.mxu0 %v6574
    %6807 = vmatprep.subr.bf16.mxu0 %v6571
    %6808 = vmatpush2.bf16.msra.mxu0 %v6570
    %6809 = vmatprep.subr.bf16.mxu0 %v6567
    %6810 = vmatpush2.bf16.msra.mxu0 %v6566
    %6811 = vmatprep.mubr.bf16.mxu0 %v4859
    %6812 = vmatmul.mubr.bf16.gmra.mxu0 %v4858
    %v6813 = vpop.f32.mrf.mxu0
    %v6814 = vadd.f32 %v6761, %v6813
    %v6815 = vpop.f32.mrf.mxu0
    %v6816 = vadd.f32 %v6763, %v6815
    %v6817 = vpop.f32.mrf.mxu0
    %v6818 = vadd.f32 %v6765, %v6817
    %v6819 = vpop.f32.mrf.mxu0
    %v6820 = vadd.f32 %v6767, %v6819
    %6821 = vmatprep.mubr.bf16.mxu0 %v4863
    %6822 = vmatmul.mubr.bf16.gmra.mxu0 %v4862
    %v6823 = vpop.f32.mrf.mxu0
    %v6824 = vadd.f32 %v6771, %v6823
    %v6825 = vpop.f32.mrf.mxu0
    %v6826 = vadd.f32 %v6773, %v6825
    %v6827 = vpop.f32.mrf.mxu0
    %v6828 = vadd.f32 %v6775, %v6827
    %v6829 = vpop.f32.mrf.mxu0
    %v6830 = vadd.f32 %v6777, %v6829
    %6831 = vdwg.mxu0
    %6832 = vmatprep.subr.bf16.mxu0 %v6501
    %6833 = vmatpush1.bf16.msra.mxu0 %v6500
    %6834 = vmatprep.subr.bf16.mxu0 %v6497
    %6835 = vmatpush1.bf16.msra.mxu0 %v6496
    %6836 = vmatprep.subr.bf16.mxu0 %v6493
    %6837 = vmatpush1.bf16.msra.mxu0 %v6492
    %6838 = vmatprep.subr.bf16.mxu0 %v6489
    %6839 = vmatpush1.bf16.msra.mxu0 %v6488
    %6840 = vmatprep.subr.bf16.mxu0 %v6485
    %6841 = vmatpush1.bf16.msra.mxu0 %v6484
    %6842 = vmatprep.subr.bf16.mxu0 %v6481
    %6843 = vmatpush1.bf16.msra.mxu0 %v6480
    %6844 = vmatprep.subr.bf16.mxu0 %v6477
    %6845 = vmatpush1.bf16.msra.mxu0 %v6476
    %6846 = vmatprep.subr.bf16.mxu0 %v6473
    %6847 = vmatpush1.bf16.msra.mxu0 %v6472
    %6848 = vmatprep.subr.bf16.mxu0 %v6533
    %6849 = vmatpush2.bf16.msra.mxu0 %v6532
    %6850 = vmatprep.subr.bf16.mxu0 %v6529
    %6851 = vmatpush2.bf16.msra.mxu0 %v6528
    %6852 = vmatprep.subr.bf16.mxu0 %v6525
    %6853 = vmatpush2.bf16.msra.mxu0 %v6524
    %6854 = vmatprep.subr.bf16.mxu0 %v6521
    %6855 = vmatpush2.bf16.msra.mxu0 %v6520
    %6856 = vmatprep.subr.bf16.mxu0 %v6517
    %6857 = vmatpush2.bf16.msra.mxu0 %v6516
    %6858 = vmatprep.subr.bf16.mxu0 %v6513
    %6859 = vmatpush2.bf16.msra.mxu0 %v6512
    %6860 = vmatprep.subr.bf16.mxu0 %v6509
    %6861 = vmatpush2.bf16.msra.mxu0 %v6508
    %6862 = vmatprep.subr.bf16.mxu0 %v6505
    %6863 = vmatpush2.bf16.msra.mxu0 %v6504
    %6864 = vmatprep.mubr.bf16.mxu0 %v4857
    %6865 = vmatmul.mubr.bf16.gmra.mxu0 %v4856
    %v6866 = vpop.f32.mrf.mxu0
    %v6867 = vadd.f32 %v6068, %v6866
    %v6868 = vpop.f32.mrf.mxu0
    %v6869 = vadd.f32 %v6070, %v6868
    %v6870 = vpop.f32.mrf.mxu0
    %v6871 = vadd.f32 %v6072, %v6870
    %v6872 = vpop.f32.mrf.mxu0
    %v6873 = vadd.f32 %v6074, %v6872
    %6874 = vmatprep.mubr.bf16.mxu0 %v4861
    %6875 = vmatmul.mubr.bf16.gmra.mxu0 %v4860
    %v6876 = vpop.f32.mrf.mxu0
    %v6877 = vadd.f32 %v6078, %v6876
    %v6878 = vpop.f32.mrf.mxu0
    %v6879 = vadd.f32 %v6080, %v6878
    %v6880 = vpop.f32.mrf.mxu0
    %v6881 = vadd.f32 %v6082, %v6880
    %v6882 = vpop.f32.mrf.mxu0
    %v6883 = vadd.f32 %v6084, %v6882
    %6884 = vdwg.mxu0
    %6885 = vmatprep.subr.bf16.mxu0 %v6565
    %6886 = vmatpush1.bf16.msra.mxu0 %v6564
    %6887 = vmatprep.subr.bf16.mxu0 %v6561
    %6888 = vmatpush1.bf16.msra.mxu0 %v6560
    %6889 = vmatprep.subr.bf16.mxu0 %v6557
    %6890 = vmatpush1.bf16.msra.mxu0 %v6556
    %6891 = vmatprep.subr.bf16.mxu0 %v6553
    %6892 = vmatpush1.bf16.msra.mxu0 %v6552
    %6893 = vmatprep.subr.bf16.mxu0 %v6549
    %6894 = vmatpush1.bf16.msra.mxu0 %v6548
    %6895 = vmatprep.subr.bf16.mxu0 %v6545
    %6896 = vmatpush1.bf16.msra.mxu0 %v6544
    %6897 = vmatprep.subr.bf16.mxu0 %v6541
    %6898 = vmatpush1.bf16.msra.mxu0 %v6540
    %6899 = vmatprep.subr.bf16.mxu0 %v6537
    %6900 = vmatpush1.bf16.msra.mxu0 %v6536
    %6901 = vmatprep.subr.bf16.mxu0 %v6597
    %6902 = vmatpush2.bf16.msra.mxu0 %v6596
    %6903 = vmatprep.subr.bf16.mxu0 %v6593
    %6904 = vmatpush2.bf16.msra.mxu0 %v6592
    %6905 = vmatprep.subr.bf16.mxu0 %v6589
    %6906 = vmatpush2.bf16.msra.mxu0 %v6588
    %6907 = vmatprep.subr.bf16.mxu0 %v6585
    %6908 = vmatpush2.bf16.msra.mxu0 %v6584
    %6909 = vmatprep.subr.bf16.mxu0 %v6581
    %6910 = vmatpush2.bf16.msra.mxu0 %v6580
    %6911 = vmatprep.subr.bf16.mxu0 %v6577
    %6912 = vmatpush2.bf16.msra.mxu0 %v6576
    %6913 = vmatprep.subr.bf16.mxu0 %v6573
    %6914 = vmatpush2.bf16.msra.mxu0 %v6572
    %6915 = vmatprep.subr.bf16.mxu0 %v6569
    %6916 = vmatpush2.bf16.msra.mxu0 %v6568
    %6917 = vmatprep.mubr.bf16.mxu0 %v4859
    %6918 = vmatmul.mubr.bf16.gmra.mxu0 %v4858
    %v6919 = vpop.f32.mrf.mxu0
    %v6920 = vadd.f32 %v6867, %v6919
    %v6921 = vpop.f32.mrf.mxu0
    %v6922 = vadd.f32 %v6869, %v6921
    %v6923 = vpop.f32.mrf.mxu0
    %v6924 = vadd.f32 %v6871, %v6923
    %v6925 = vpop.f32.mrf.mxu0
    %v6926 = vadd.f32 %v6873, %v6925
    %6927 = vmatprep.mubr.bf16.mxu0 %v4863
    %6928 = vmatmul.mubr.bf16.gmra.mxu0 %v4862
    %v6929 = vpop.f32.mrf.mxu0
    %v6930 = vadd.f32 %v6877, %v6929
    %v6931 = vpop.f32.mrf.mxu0
    %v6932 = vadd.f32 %v6879, %v6931
    %v6933 = vpop.f32.mrf.mxu0
    %v6934 = vadd.f32 %v6881, %v6933
    %v6935 = vpop.f32.mrf.mxu0
    %v6936 = vadd.f32 %v6883, %v6935
    %6937 = vdwg.mxu0
    %v6938 = vld [vmem:[#allocation11] sm:$0xf]
    %v6940 = vlaneseq
    %v6941 = vshrl.u32 %v6940, 7
    %v6942 = vsub.s32 0, %v6941
    %v6943 = vrot.slane %v6938, %v6942
    %v6944 = vlaneseq
    %v6945 = vshrl.u32 %v6944, 7
    %v6946 = vsub.s32 1, %v6945
    %v6947 = vrot.slane %v6938, %v6946
    %v6948 = vlaneseq
    %v6949 = vshrl.u32 %v6948, 7
    %v6950 = vsub.s32 2, %v6949
    %v6951 = vrot.slane %v6938, %v6950
    %v6952 = vlaneseq
    %v6953 = vshrl.u32 %v6952, 7
    %v6954 = vsub.s32 3, %v6953
    %v6955 = vrot.slane %v6938, %v6954
    %v6960 = vadd.f32 %v6814, %v6943
    %v6961 = vadd.f32 %v6816, %v6947
    %v6962 = vadd.f32 %v6920, %v6951
    %v6963 = vadd.f32 %v6922, %v6955
    %v6964 = vadd.f32 %v6818, %v6943
    %v6965 = vadd.f32 %v6820, %v6947
    %v6966 = vadd.f32 %v6924, %v6951
    %v6967 = vadd.f32 %v6926, %v6955
    %v6968 = vadd.f32 %v6824, %v6943
    %v6969 = vadd.f32 %v6826, %v6947
    %v6970 = vadd.f32 %v6930, %v6951
    %v6971 = vadd.f32 %v6932, %v6955
    %v6972 = vadd.f32 %v6828, %v6943
    %v6973 = vadd.f32 %v6830, %v6947
    %v6974 = vadd.f32 %v6934, %v6951
    %v6975 = vadd.f32 %v6936, %v6955
    %v6976 = vmax.f32 %v6960, 0.0
    %v6977 = vmax.f32 %v6961, 0.0
    %v6978 = vmax.f32 %v6962, 0.0
    %v6979 = vmax.f32 %v6963, 0.0
    %v6980 = vmax.f32 %v6964, 0.0
    %v6981 = vmax.f32 %v6965, 0.0
    %v6982 = vmax.f32 %v6966, 0.0
    %v6983 = vmax.f32 %v6967, 0.0
    %v6984 = vmax.f32 %v6968, 0.0
    %v6985 = vmax.f32 %v6969, 0.0
    %v6986 = vmax.f32 %v6970, 0.0
    %v6987 = vmax.f32 %v6971, 0.0
    %v6988 = vmax.f32 %v6972, 0.0
    %v6989 = vmax.f32 %v6973, 0.0
    %v6990 = vmax.f32 %v6974, 0.0
    %v6991 = vmax.f32 %v6975, 0.0
    %v6992 = vrot.slane %v6976, 4
    %v6993 = vmax.f32 %v6976, %v6992
    %v6994 = vrot.slane %v6993, 2
    %v6995 = vmax.f32 %v6993, %v6994
    %v6996 = vrot.slane %v6995, 1
    %v6997 = vmax.f32 %v6995, %v6996
    %v6998 = vrot.slane %v6977, 4
    %v6999 = vmax.f32 %v6977, %v6998
    %v7000 = vrot.slane %v6999, 2
    %v7001 = vmax.f32 %v6999, %v7000
    %v7002 = vrot.slane %v7001, 1
    %v7003 = vmax.f32 %v7001, %v7002
    %v7004 = vrot.slane %v6978, 4
    %v7005 = vmax.f32 %v6978, %v7004
    %v7006 = vrot.slane %v7005, 2
    %v7007 = vmax.f32 %v7005, %v7006
    %v7008 = vrot.slane %v7007, 1
    %v7009 = vmax.f32 %v7007, %v7008
    %v7010 = vrot.slane %v6979, 4
    %v7011 = vmax.f32 %v6979, %v7010
    %v7012 = vrot.slane %v7011, 2
    %v7013 = vmax.f32 %v7011, %v7012
    %v7014 = vrot.slane %v7013, 1
    %v7015 = vmax.f32 %v7013, %v7014
    %v7016 = vrot.slane %v6976, 4
    %v7017 = vadd.f32 %v6976, %v7016
    %v7018 = vrot.slane %v7017, 2
    %v7019 = vadd.f32 %v7017, %v7018
    %v7020 = vrot.slane %v7019, 1
    %v7021 = vadd.f32 %v7019, %v7020
    %v7022 = vrot.slane %v6977, 4
    %v7023 = vadd.f32 %v6977, %v7022
    %v7024 = vrot.slane %v7023, 2
    %v7025 = vadd.f32 %v7023, %v7024
    %v7026 = vrot.slane %v7025, 1
    %v7027 = vadd.f32 %v7025, %v7026
    %v7028 = vrot.slane %v6978, 4
    %v7029 = vadd.f32 %v6978, %v7028
    %v7030 = vrot.slane %v7029, 2
    %v7031 = vadd.f32 %v7029, %v7030
    %v7032 = vrot.slane %v7031, 1
    %v7033 = vadd.f32 %v7031, %v7032
    %v7034 = vrot.slane %v6979, 4
    %v7035 = vadd.f32 %v6979, %v7034
    %v7036 = vrot.slane %v7035, 2
    %v7037 = vadd.f32 %v7035, %v7036
    %v7038 = vrot.slane %v7037, 1
    %v7039 = vadd.f32 %v7037, %v7038
    %v7040 = vrcp.pop 8.0
    %v7041 = vmul.f32 %v7021, %v7040
    %v7042 = vmul.f32 %v7027, %v7040
    %v7043 = vmul.f32 %v7033, %v7040
    %v7044 = vmul.f32 %v7039, %v7040
    %v7045 = vrot.slane %v6980, 4
    %v7046 = vmax.f32 %v6980, %v7045
    %v7047 = vrot.slane %v7046, 2
    %v7048 = vmax.f32 %v7046, %v7047
    %v7049 = vrot.slane %v7048, 1
    %v7050 = vmax.f32 %v7048, %v7049
    %v7051 = vrot.slane %v6981, 4
    %v7052 = vmax.f32 %v6981, %v7051
    %v7053 = vrot.slane %v7052, 2
    %v7054 = vmax.f32 %v7052, %v7053
    %v7055 = vrot.slane %v7054, 1
    %v7056 = vmax.f32 %v7054, %v7055
    %v7057 = vrot.slane %v6982, 4
    %v7058 = vmax.f32 %v6982, %v7057
    %v7059 = vrot.slane %v7058, 2
    %v7060 = vmax.f32 %v7058, %v7059
    %v7061 = vrot.slane %v7060, 1
    %v7062 = vmax.f32 %v7060, %v7061
    %v7063 = vrot.slane %v6983, 4
    %v7064 = vmax.f32 %v6983, %v7063
    %v7065 = vrot.slane %v7064, 2
    %v7066 = vmax.f32 %v7064, %v7065
    %v7067 = vrot.slane %v7066, 1
    %v7068 = vmax.f32 %v7066, %v7067
    %v7069 = vrot.slane %v6980, 4
    %v7070 = vadd.f32 %v6980, %v7069
    %v7071 = vrot.slane %v7070, 2
    %v7072 = vadd.f32 %v7070, %v7071
    %v7073 = vrot.slane %v7072, 1
    %v7074 = vadd.f32 %v7072, %v7073
    %v7075 = vrot.slane %v6981, 4
    %v7076 = vadd.f32 %v6981, %v7075
    %v7077 = vrot.slane %v7076, 2
    %v7078 = vadd.f32 %v7076, %v7077
    %v7079 = vrot.slane %v7078, 1
    %v7080 = vadd.f32 %v7078, %v7079
    %v7081 = vrot.slane %v6982, 4
    %v7082 = vadd.f32 %v6982, %v7081
    %v7083 = vrot.slane %v7082, 2
    %v7084 = vadd.f32 %v7082, %v7083
    %v7085 = vrot.slane %v7084, 1
    %v7086 = vadd.f32 %v7084, %v7085
    %v7087 = vrot.slane %v6983, 4
    %v7088 = vadd.f32 %v6983, %v7087
    %v7089 = vrot.slane %v7088, 2
    %v7090 = vadd.f32 %v7088, %v7089
    %v7091 = vrot.slane %v7090, 1
    %v7092 = vadd.f32 %v7090, %v7091
    %v7093 = vmul.f32 %v7074, %v7040
    %v7094 = vmul.f32 %v7080, %v7040
    %v7095 = vmul.f32 %v7086, %v7040
    %v7096 = vmul.f32 %v7092, %v7040
    %v7097 = vrot.slane %v6984, 4
    %v7098 = vmax.f32 %v6984, %v7097
    %v7099 = vrot.slane %v7098, 2
    %v7100 = vmax.f32 %v7098, %v7099
    %v7101 = vrot.slane %v7100, 1
    %v7102 = vmax.f32 %v7100, %v7101
    %v7103 = vrot.slane %v6985, 4
    %v7104 = vmax.f32 %v6985, %v7103
    %v7105 = vrot.slane %v7104, 2
    %v7106 = vmax.f32 %v7104, %v7105
    %v7107 = vrot.slane %v7106, 1
    %v7108 = vmax.f32 %v7106, %v7107
    %v7109 = vrot.slane %v6986, 4
    %v7110 = vmax.f32 %v6986, %v7109
    %v7111 = vrot.slane %v7110, 2
    %v7112 = vmax.f32 %v7110, %v7111
    %v7113 = vrot.slane %v7112, 1
    %v7114 = vmax.f32 %v7112, %v7113
    %v7115 = vrot.slane %v6987, 4
    %v7116 = vmax.f32 %v6987, %v7115
    %v7117 = vrot.slane %v7116, 2
    %v7118 = vmax.f32 %v7116, %v7117
    %v7119 = vrot.slane %v7118, 1
    %v7120 = vmax.f32 %v7118, %v7119
    %v7121 = vrot.slane %v6984, 4
    %v7122 = vadd.f32 %v6984, %v7121
    %v7123 = vrot.slane %v7122, 2
    %v7124 = vadd.f32 %v7122, %v7123
    %v7125 = vrot.slane %v7124, 1
    %v7126 = vadd.f32 %v7124, %v7125
    %v7127 = vrot.slane %v6985, 4
    %v7128 = vadd.f32 %v6985, %v7127
    %v7129 = vrot.slane %v7128, 2
    %v7130 = vadd.f32 %v7128, %v7129
    %v7131 = vrot.slane %v7130, 1
    %v7132 = vadd.f32 %v7130, %v7131
    %v7133 = vrot.slane %v6986, 4
    %v7134 = vadd.f32 %v6986, %v7133
    %v7135 = vrot.slane %v7134, 2
    %v7136 = vadd.f32 %v7134, %v7135
    %v7137 = vrot.slane %v7136, 1
    %v7138 = vadd.f32 %v7136, %v7137
    %v7139 = vrot.slane %v6987, 4
    %v7140 = vadd.f32 %v6987, %v7139
    %v7141 = vrot.slane %v7140, 2
    %v7142 = vadd.f32 %v7140, %v7141
    %v7143 = vrot.slane %v7142, 1
    %v7144 = vadd.f32 %v7142, %v7143
    %v7145 = vmul.f32 %v7126, %v7040
    %v7146 = vmul.f32 %v7132, %v7040
    %v7147 = vmul.f32 %v7138, %v7040
    %v7148 = vmul.f32 %v7144, %v7040
    %v7149 = vrot.slane %v6988, 4
    %v7150 = vmax.f32 %v6988, %v7149
    %v7151 = vrot.slane %v7150, 2
    %v7152 = vmax.f32 %v7150, %v7151
    %v7153 = vrot.slane %v7152, 1
    %v7154 = vmax.f32 %v7152, %v7153
    %v7155 = vrot.slane %v6989, 4
    %v7156 = vmax.f32 %v6989, %v7155
    %v7157 = vrot.slane %v7156, 2
    %v7158 = vmax.f32 %v7156, %v7157
    %v7159 = vrot.slane %v7158, 1
    %v7160 = vmax.f32 %v7158, %v7159
    %v7161 = vrot.slane %v6990, 4
    %v7162 = vmax.f32 %v6990, %v7161
    %v7163 = vrot.slane %v7162, 2
    %v7164 = vmax.f32 %v7162, %v7163
    %v7165 = vrot.slane %v7164, 1
    %v7166 = vmax.f32 %v7164, %v7165
    %v7167 = vrot.slane %v6991, 4
    %v7168 = vmax.f32 %v6991, %v7167
    %v7169 = vrot.slane %v7168, 2
    %v7170 = vmax.f32 %v7168, %v7169
    %v7171 = vrot.slane %v7170, 1
    %v7172 = vmax.f32 %v7170, %v7171
    %v7173 = vrot.slane %v6988, 4
    %v7174 = vadd.f32 %v6988, %v7173
    %v7175 = vrot.slane %v7174, 2
    %v7176 = vadd.f32 %v7174, %v7175
    %v7177 = vrot.slane %v7176, 1
    %v7178 = vadd.f32 %v7176, %v7177
    %v7179 = vrot.slane %v6989, 4
    %v7180 = vadd.f32 %v6989, %v7179
    %v7181 = vrot.slane %v7180, 2
    %v7182 = vadd.f32 %v7180, %v7181
    %v7183 = vrot.slane %v7182, 1
    %v7184 = vadd.f32 %v7182, %v7183
    %v7185 = vrot.slane %v6990, 4
    %v7186 = vadd.f32 %v6990, %v7185
    %v7187 = vrot.slane %v7186, 2
    %v7188 = vadd.f32 %v7186, %v7187
    %v7189 = vrot.slane %v7188, 1
    %v7190 = vadd.f32 %v7188, %v7189
    %v7191 = vrot.slane %v6991, 4
    %v7192 = vadd.f32 %v6991, %v7191
    %v7193 = vrot.slane %v7192, 2
    %v7194 = vadd.f32 %v7192, %v7193
    %v7195 = vrot.slane %v7194, 1
    %v7196 = vadd.f32 %v7194, %v7195
    %v7197 = vmul.f32 %v7178, %v7040
    %v7198 = vmul.f32 %v7184, %v7040
    %v7199 = vmul.f32 %v7190, %v7040
    %v7200 = vmul.f32 %v7196, %v7040
    %v7201 = vsel %vm2419, %v6997, %v7050
    %v7202 = vsel %vm2419, %v7003, %v7056
    %v7203 = vsel %vm2419, %v7009, %v7062
    %v7204 = vsel %vm2419, %v7015, %v7068
    %vm7205 = vcmask 1041408
    %v7206 = vsel %vm7205, %v7201, %v7102
    %v7207 = vsel %vm7205, %v7202, %v7108
    %v7208 = vsel %vm7205, %v7203, %v7114
    %v7209 = vsel %vm7205, %v7204, %v7120
    %vm7210 = vcmask 1042432
    %v7211 = vsel %vm7210, %v7206, %v7154
    %v7212 = vsel %vm7210, %v7207, %v7160
    %v7213 = vsel %vm7210, %v7208, %v7166
    %v7214 = vsel %vm7210, %v7209, %v7172
    %v7215 = vsel %vm2419, %v7041, %v7093
    %v7216 = vsel %vm2419, %v7042, %v7094
    %v7217 = vsel %vm2419, %v7043, %v7095
    %v7218 = vsel %vm2419, %v7044, %v7096
    %v7219 = vsel %vm7205, %v7215, %v7145
    %v7220 = vsel %vm7205, %v7216, %v7146
    %v7221 = vsel %vm7205, %v7217, %v7147
    %v7222 = vsel %vm7205, %v7218, %v7148
    %v7223 = vsel %vm7210, %v7219, %v7197
    %v7224 = vsel %vm7210, %v7220, %v7198
    %v7225 = vsel %vm7210, %v7221, %v7199
    %v7226 = vsel %vm7210, %v7222, %v7200
    %v7227 = vpack.c.bf16 %v7211, %v7211
    %v7228 = vpack.c.bf16 %v7212, %v7212
    %v7229 = vpack.c.bf16 %v7213, %v7213
    %v7230 = vpack.c.bf16 %v7214, %v7214
    %v7231 = vpack.c.bf16 %v7223, %v7223
    %v7232 = vpack.c.bf16 %v7224, %v7224
    %v7233 = vpack.c.bf16 %v7225, %v7225
    %v7234 = vpack.c.bf16 %v7226, %v7226
    %v7235 = vld [vmem:[#allocation13] sm:$0xff]
    %v7236 = vld [vmem:[#allocation13 + $0x8] sm:$0xff]
    %v7237 = vld [vmem:[#allocation13 + $0x10] sm:$0xff]
    %v7238 = vld [vmem:[#allocation13 + $0x18] sm:$0xff]
    %v7239 = vld [vmem:[#allocation13 + $0x20] sm:$0xff]
    %v7240 = vld [vmem:[#allocation13 + $0x28] sm:$0xff]
    %v7241 = vld [vmem:[#allocation13 + $0x30] sm:$0xff]
    %v7242 = vld [vmem:[#allocation13 + $0x38] sm:$0xff]
    %v7243 = vld [vmem:[#allocation13 + $0x40] sm:$0xff]
    %v7244 = vld [vmem:[#allocation13 + $0x48] sm:$0xff]
    %v7245 = vld [vmem:[#allocation13 + $0x50] sm:$0xff]
    %v7246 = vld [vmem:[#allocation13 + $0x58] sm:$0xff]
    %v7247 = vld [vmem:[#allocation13 + $0x60] sm:$0xff]
    %v7248 = vld [vmem:[#allocation13 + $0x68] sm:$0xff]
    %v7249 = vld [vmem:[#allocation13 + $0x70] sm:$0xff]
    %v7250 = vld [vmem:[#allocation13 + $0x78] sm:$0xff]
    %v7251 = vld [vmem:[#allocation13 + $0x80] sm:$0xff]
    %v7252 = vld [vmem:[#allocation13 + $0x88] sm:$0xff]
    %v7253 = vld [vmem:[#allocation13 + $0x90] sm:$0xff]
    %v7254 = vld [vmem:[#allocation13 + $0x98] sm:$0xff]
    %v7255 = vld [vmem:[#allocation13 + $0xa0] sm:$0xff]
    %v7256 = vld [vmem:[#allocation13 + $0xa8] sm:$0xff]
    %v7257 = vld [vmem:[#allocation13 + $0xb0] sm:$0xff]
    %v7258 = vld [vmem:[#allocation13 + $0xb8] sm:$0xff]
    %v7259 = vld [vmem:[#allocation13 + $0xc0] sm:$0xff]
    %v7260 = vld [vmem:[#allocation13 + $0xc8] sm:$0xff]
    %v7261 = vld [vmem:[#allocation13 + $0xd0] sm:$0xff]
    %v7262 = vld [vmem:[#allocation13 + $0xd8] sm:$0xff]
    %v7263 = vld [vmem:[#allocation13 + $0xe0] sm:$0xff]
    %v7264 = vld [vmem:[#allocation13 + $0xe8] sm:$0xff]
    %v7265 = vld [vmem:[#allocation13 + $0xf0] sm:$0xff]
    %v7266 = vld [vmem:[#allocation13 + $0xf8] sm:$0xff]
    %v7267 = vld [vmem:[#allocation13 + $0x100] sm:$0xff]
    %v7268 = vld [vmem:[#allocation13 + $0x108] sm:$0xff]
    %v7269 = vld [vmem:[#allocation13 + $0x110] sm:$0xff]
    %v7270 = vld [vmem:[#allocation13 + $0x118] sm:$0xff]
    %v7271 = vld [vmem:[#allocation13 + $0x120] sm:$0xff]
    %v7272 = vld [vmem:[#allocation13 + $0x128] sm:$0xff]
    %v7273 = vld [vmem:[#allocation13 + $0x130] sm:$0xff]
    %v7274 = vld [vmem:[#allocation13 + $0x138] sm:$0xff]
    %v7275 = vld [vmem:[#allocation13 + $0x140] sm:$0xff]
    %v7276 = vld [vmem:[#allocation13 + $0x148] sm:$0xff]
    %v7277 = vld [vmem:[#allocation13 + $0x150] sm:$0xff]
    %v7278 = vld [vmem:[#allocation13 + $0x158] sm:$0xff]
    %v7279 = vld [vmem:[#allocation13 + $0x160] sm:$0xff]
    %v7280 = vld [vmem:[#allocation13 + $0x168] sm:$0xff]
    %v7281 = vld [vmem:[#allocation13 + $0x170] sm:$0xff]
    %v7282 = vld [vmem:[#allocation13 + $0x178] sm:$0xff]
    %v7283 = vld [vmem:[#allocation13 + $0x180] sm:$0xff]
    %v7284 = vld [vmem:[#allocation13 + $0x188] sm:$0xff]
    %v7285 = vld [vmem:[#allocation13 + $0x190] sm:$0xff]
    %v7286 = vld [vmem:[#allocation13 + $0x198] sm:$0xff]
    %v7287 = vld [vmem:[#allocation13 + $0x1a0] sm:$0xff]
    %v7288 = vld [vmem:[#allocation13 + $0x1a8] sm:$0xff]
    %v7289 = vld [vmem:[#allocation13 + $0x1b0] sm:$0xff]
    %v7290 = vld [vmem:[#allocation13 + $0x1b8] sm:$0xff]
    %v7291 = vld [vmem:[#allocation13 + $0x1c0] sm:$0xff]
    %v7292 = vld [vmem:[#allocation13 + $0x1c8] sm:$0xff]
    %v7293 = vld [vmem:[#allocation13 + $0x1d0] sm:$0xff]
    %v7294 = vld [vmem:[#allocation13 + $0x1d8] sm:$0xff]
    %v7295 = vld [vmem:[#allocation13 + $0x1e0] sm:$0xff]
    %v7296 = vld [vmem:[#allocation13 + $0x1e8] sm:$0xff]
    %v7297 = vld [vmem:[#allocation13 + $0x1f0] sm:$0xff]
    %v7298 = vld [vmem:[#allocation13 + $0x1f8] sm:$0xff]
    %v7299 = vld [vmem:[#allocation13 + $0x200] sm:$0xff]
    %v7300 = vld [vmem:[#allocation13 + $0x208] sm:$0xff]
    %v7301 = vld [vmem:[#allocation13 + $0x210] sm:$0xff]
    %v7302 = vld [vmem:[#allocation13 + $0x218] sm:$0xff]
    %v7303 = vld [vmem:[#allocation13 + $0x220] sm:$0xff]
    %v7304 = vld [vmem:[#allocation13 + $0x228] sm:$0xff]
    %v7305 = vld [vmem:[#allocation13 + $0x230] sm:$0xff]
    %v7306 = vld [vmem:[#allocation13 + $0x238] sm:$0xff]
    %v7307 = vld [vmem:[#allocation13 + $0x240] sm:$0xff]
    %v7308 = vld [vmem:[#allocation13 + $0x248] sm:$0xff]
    %v7309 = vld [vmem:[#allocation13 + $0x250] sm:$0xff]
    %v7310 = vld [vmem:[#allocation13 + $0x258] sm:$0xff]
    %v7311 = vld [vmem:[#allocation13 + $0x260] sm:$0xff]
    %v7312 = vld [vmem:[#allocation13 + $0x268] sm:$0xff]
    %v7313 = vld [vmem:[#allocation13 + $0x270] sm:$0xff]
    %v7314 = vld [vmem:[#allocation13 + $0x278] sm:$0xff]
    %v7315 = vld [vmem:[#allocation13 + $0x280] sm:$0xff]
    %v7316 = vld [vmem:[#allocation13 + $0x288] sm:$0xff]
    %v7317 = vld [vmem:[#allocation13 + $0x290] sm:$0xff]
    %v7318 = vld [vmem:[#allocation13 + $0x298] sm:$0xff]
    %v7319 = vld [vmem:[#allocation13 + $0x2a0] sm:$0xff]
    %v7320 = vld [vmem:[#allocation13 + $0x2a8] sm:$0xff]
    %v7321 = vld [vmem:[#allocation13 + $0x2b0] sm:$0xff]
    %v7322 = vld [vmem:[#allocation13 + $0x2b8] sm:$0xff]
    %v7323 = vld [vmem:[#allocation13 + $0x2c0] sm:$0xff]
    %v7324 = vld [vmem:[#allocation13 + $0x2c8] sm:$0xff]
    %v7325 = vld [vmem:[#allocation13 + $0x2d0] sm:$0xff]
    %v7326 = vld [vmem:[#allocation13 + $0x2d8] sm:$0xff]
    %v7327 = vld [vmem:[#allocation13 + $0x2e0] sm:$0xff]
    %v7328 = vld [vmem:[#allocation13 + $0x2e8] sm:$0xff]
    %v7329 = vld [vmem:[#allocation13 + $0x2f0] sm:$0xff]
    %v7330 = vld [vmem:[#allocation13 + $0x2f8] sm:$0xff]
    %v7331 = vld [vmem:[#allocation13 + $0x300] sm:$0xff]
    %v7332 = vld [vmem:[#allocation13 + $0x308] sm:$0xff]
    %v7333 = vld [vmem:[#allocation13 + $0x310] sm:$0xff]
    %v7334 = vld [vmem:[#allocation13 + $0x318] sm:$0xff]
    %v7335 = vld [vmem:[#allocation13 + $0x320] sm:$0xff]
    %v7336 = vld [vmem:[#allocation13 + $0x328] sm:$0xff]
    %v7337 = vld [vmem:[#allocation13 + $0x330] sm:$0xff]
    %v7338 = vld [vmem:[#allocation13 + $0x338] sm:$0xff]
    %v7339 = vld [vmem:[#allocation13 + $0x340] sm:$0xff]
    %v7340 = vld [vmem:[#allocation13 + $0x348] sm:$0xff]
    %v7341 = vld [vmem:[#allocation13 + $0x350] sm:$0xff]
    %v7342 = vld [vmem:[#allocation13 + $0x358] sm:$0xff]
    %v7343 = vld [vmem:[#allocation13 + $0x360] sm:$0xff]
    %v7344 = vld [vmem:[#allocation13 + $0x368] sm:$0xff]
    %v7345 = vld [vmem:[#allocation13 + $0x370] sm:$0xff]
    %v7346 = vld [vmem:[#allocation13 + $0x378] sm:$0xff]
    %v7347 = vld [vmem:[#allocation13 + $0x380] sm:$0xff]
    %v7348 = vld [vmem:[#allocation13 + $0x388] sm:$0xff]
    %v7349 = vld [vmem:[#allocation13 + $0x390] sm:$0xff]
    %v7350 = vld [vmem:[#allocation13 + $0x398] sm:$0xff]
    %v7351 = vld [vmem:[#allocation13 + $0x3a0] sm:$0xff]
    %v7352 = vld [vmem:[#allocation13 + $0x3a8] sm:$0xff]
    %v7353 = vld [vmem:[#allocation13 + $0x3b0] sm:$0xff]
    %v7354 = vld [vmem:[#allocation13 + $0x3b8] sm:$0xff]
    %v7355 = vld [vmem:[#allocation13 + $0x3c0] sm:$0xff]
    %v7356 = vld [vmem:[#allocation13 + $0x3c8] sm:$0xff]
    %v7357 = vld [vmem:[#allocation13 + $0x3d0] sm:$0xff]
    %v7358 = vld [vmem:[#allocation13 + $0x3d8] sm:$0xff]
    %v7359 = vld [vmem:[#allocation13 + $0x3e0] sm:$0xff]
    %v7360 = vld [vmem:[#allocation13 + $0x3e8] sm:$0xff]
    %v7361 = vld [vmem:[#allocation13 + $0x3f0] sm:$0xff]
    %v7362 = vld [vmem:[#allocation13 + $0x3f8] sm:$0xff]
    %v7363 = vld [vmem:[#allocation13 + $0x400] sm:$0xff]
    %v7364 = vld [vmem:[#allocation13 + $0x408] sm:$0xff]
    %v7365 = vld [vmem:[#allocation13 + $0x410] sm:$0xff]
    %v7366 = vld [vmem:[#allocation13 + $0x418] sm:$0xff]
    %v7367 = vld [vmem:[#allocation13 + $0x420] sm:$0xff]
    %v7368 = vld [vmem:[#allocation13 + $0x428] sm:$0xff]
    %v7369 = vld [vmem:[#allocation13 + $0x430] sm:$0xff]
    %v7370 = vld [vmem:[#allocation13 + $0x438] sm:$0xff]
    %v7371 = vld [vmem:[#allocation13 + $0x440] sm:$0xff]
    %v7372 = vld [vmem:[#allocation13 + $0x448] sm:$0xff]
    %v7373 = vld [vmem:[#allocation13 + $0x450] sm:$0xff]
    %v7374 = vld [vmem:[#allocation13 + $0x458] sm:$0xff]
    %v7375 = vld [vmem:[#allocation13 + $0x460] sm:$0xff]
    %v7376 = vld [vmem:[#allocation13 + $0x468] sm:$0xff]
    %v7377 = vld [vmem:[#allocation13 + $0x470] sm:$0xff]
    %v7378 = vld [vmem:[#allocation13 + $0x478] sm:$0xff]
    %v7379 = vld [vmem:[#allocation13 + $0x480] sm:$0xff]
    %v7380 = vld [vmem:[#allocation13 + $0x488] sm:$0xff]
    %v7381 = vld [vmem:[#allocation13 + $0x490] sm:$0xff]
    %v7382 = vld [vmem:[#allocation13 + $0x498] sm:$0xff]
    %v7383 = vld [vmem:[#allocation13 + $0x4a0] sm:$0xff]
    %v7384 = vld [vmem:[#allocation13 + $0x4a8] sm:$0xff]
    %v7385 = vld [vmem:[#allocation13 + $0x4b0] sm:$0xff]
    %v7386 = vld [vmem:[#allocation13 + $0x4b8] sm:$0xff]
    %v7387 = vld [vmem:[#allocation13 + $0x4c0] sm:$0xff]
    %v7388 = vld [vmem:[#allocation13 + $0x4c8] sm:$0xff]
    %v7389 = vld [vmem:[#allocation13 + $0x4d0] sm:$0xff]
    %v7390 = vld [vmem:[#allocation13 + $0x4d8] sm:$0xff]
    %v7391 = vld [vmem:[#allocation13 + $0x4e0] sm:$0xff]
    %v7392 = vld [vmem:[#allocation13 + $0x4e8] sm:$0xff]
    %v7393 = vld [vmem:[#allocation13 + $0x4f0] sm:$0xff]
    %v7394 = vld [vmem:[#allocation13 + $0x4f8] sm:$0xff]
    %v7395 = vld [vmem:[#allocation13 + $0x500] sm:$0xff]
    %v7396 = vld [vmem:[#allocation13 + $0x508] sm:$0xff]
    %v7397 = vld [vmem:[#allocation13 + $0x510] sm:$0xff]
    %v7398 = vld [vmem:[#allocation13 + $0x518] sm:$0xff]
    %v7399 = vld [vmem:[#allocation13 + $0x520] sm:$0xff]
    %v7400 = vld [vmem:[#allocation13 + $0x528] sm:$0xff]
    %v7401 = vld [vmem:[#allocation13 + $0x530] sm:$0xff]
    %v7402 = vld [vmem:[#allocation13 + $0x538] sm:$0xff]
    %v7403 = vld [vmem:[#allocation13 + $0x540] sm:$0xff]
    %v7404 = vld [vmem:[#allocation13 + $0x548] sm:$0xff]
    %v7405 = vld [vmem:[#allocation13 + $0x550] sm:$0xff]
    %v7406 = vld [vmem:[#allocation13 + $0x558] sm:$0xff]
    %v7407 = vld [vmem:[#allocation13 + $0x560] sm:$0xff]
    %v7408 = vld [vmem:[#allocation13 + $0x568] sm:$0xff]
    %v7409 = vld [vmem:[#allocation13 + $0x570] sm:$0xff]
    %v7410 = vld [vmem:[#allocation13 + $0x578] sm:$0xff]
    %v7411 = vld [vmem:[#allocation13 + $0x580] sm:$0xff]
    %v7412 = vld [vmem:[#allocation13 + $0x588] sm:$0xff]
    %v7413 = vld [vmem:[#allocation13 + $0x590] sm:$0xff]
    %v7414 = vld [vmem:[#allocation13 + $0x598] sm:$0xff]
    %v7415 = vld [vmem:[#allocation13 + $0x5a0] sm:$0xff]
    %v7416 = vld [vmem:[#allocation13 + $0x5a8] sm:$0xff]
    %v7417 = vld [vmem:[#allocation13 + $0x5b0] sm:$0xff]
    %v7418 = vld [vmem:[#allocation13 + $0x5b8] sm:$0xff]
    %v7419 = vld [vmem:[#allocation13 + $0x5c0] sm:$0xff]
    %v7420 = vld [vmem:[#allocation13 + $0x5c8] sm:$0xff]
    %v7421 = vld [vmem:[#allocation13 + $0x5d0] sm:$0xff]
    %v7422 = vld [vmem:[#allocation13 + $0x5d8] sm:$0xff]
    %v7423 = vld [vmem:[#allocation13 + $0x5e0] sm:$0xff]
    %v7424 = vld [vmem:[#allocation13 + $0x5e8] sm:$0xff]
    %v7425 = vld [vmem:[#allocation13 + $0x5f0] sm:$0xff]
    %v7426 = vld [vmem:[#allocation13 + $0x5f8] sm:$0xff]
    %v7427 = vld [vmem:[#allocation13 + $0x600] sm:$0xff]
    %v7428 = vld [vmem:[#allocation13 + $0x608] sm:$0xff]
    %v7429 = vld [vmem:[#allocation13 + $0x610] sm:$0xff]
    %v7430 = vld [vmem:[#allocation13 + $0x618] sm:$0xff]
    %v7431 = vld [vmem:[#allocation13 + $0x620] sm:$0xff]
    %v7432 = vld [vmem:[#allocation13 + $0x628] sm:$0xff]
    %v7433 = vld [vmem:[#allocation13 + $0x630] sm:$0xff]
    %v7434 = vld [vmem:[#allocation13 + $0x638] sm:$0xff]
    %v7435 = vld [vmem:[#allocation13 + $0x640] sm:$0xff]
    %v7436 = vld [vmem:[#allocation13 + $0x648] sm:$0xff]
    %v7437 = vld [vmem:[#allocation13 + $0x650] sm:$0xff]
    %v7438 = vld [vmem:[#allocation13 + $0x658] sm:$0xff]
    %v7439 = vld [vmem:[#allocation13 + $0x660] sm:$0xff]
    %v7440 = vld [vmem:[#allocation13 + $0x668] sm:$0xff]
    %v7441 = vld [vmem:[#allocation13 + $0x670] sm:$0xff]
    %v7442 = vld [vmem:[#allocation13 + $0x678] sm:$0xff]
    %v7443 = vld [vmem:[#allocation13 + $0x680] sm:$0xff]
    %v7444 = vld [vmem:[#allocation13 + $0x688] sm:$0xff]
    %v7445 = vld [vmem:[#allocation13 + $0x690] sm:$0xff]
    %v7446 = vld [vmem:[#allocation13 + $0x698] sm:$0xff]
    %v7447 = vld [vmem:[#allocation13 + $0x6a0] sm:$0xff]
    %v7448 = vld [vmem:[#allocation13 + $0x6a8] sm:$0xff]
    %v7449 = vld [vmem:[#allocation13 + $0x6b0] sm:$0xff]
    %v7450 = vld [vmem:[#allocation13 + $0x6b8] sm:$0xff]
    %v7451 = vld [vmem:[#allocation13 + $0x6c0] sm:$0xff]
    %v7452 = vld [vmem:[#allocation13 + $0x6c8] sm:$0xff]
    %v7453 = vld [vmem:[#allocation13 + $0x6d0] sm:$0xff]
    %v7454 = vld [vmem:[#allocation13 + $0x6d8] sm:$0xff]
    %v7455 = vld [vmem:[#allocation13 + $0x6e0] sm:$0xff]
    %v7456 = vld [vmem:[#allocation13 + $0x6e8] sm:$0xff]
    %v7457 = vld [vmem:[#allocation13 + $0x6f0] sm:$0xff]
    %v7458 = vld [vmem:[#allocation13 + $0x6f8] sm:$0xff]
    %v7459 = vld [vmem:[#allocation13 + $0x700] sm:$0xff]
    %v7460 = vld [vmem:[#allocation13 + $0x708] sm:$0xff]
    %v7461 = vld [vmem:[#allocation13 + $0x710] sm:$0xff]
    %v7462 = vld [vmem:[#allocation13 + $0x718] sm:$0xff]
    %v7463 = vld [vmem:[#allocation13 + $0x720] sm:$0xff]
    %v7464 = vld [vmem:[#allocation13 + $0x728] sm:$0xff]
    %v7465 = vld [vmem:[#allocation13 + $0x730] sm:$0xff]
    %v7466 = vld [vmem:[#allocation13 + $0x738] sm:$0xff]
    %v7467 = vld [vmem:[#allocation13 + $0x740] sm:$0xff]
    %v7468 = vld [vmem:[#allocation13 + $0x748] sm:$0xff]
    %v7469 = vld [vmem:[#allocation13 + $0x750] sm:$0xff]
    %v7470 = vld [vmem:[#allocation13 + $0x758] sm:$0xff]
    %v7471 = vld [vmem:[#allocation13 + $0x760] sm:$0xff]
    %v7472 = vld [vmem:[#allocation13 + $0x768] sm:$0xff]
    %v7473 = vld [vmem:[#allocation13 + $0x770] sm:$0xff]
    %v7474 = vld [vmem:[#allocation13 + $0x778] sm:$0xff]
    %v7475 = vld [vmem:[#allocation13 + $0x780] sm:$0xff]
    %v7476 = vld [vmem:[#allocation13 + $0x788] sm:$0xff]
    %v7477 = vld [vmem:[#allocation13 + $0x790] sm:$0xff]
    %v7478 = vld [vmem:[#allocation13 + $0x798] sm:$0xff]
    %v7479 = vld [vmem:[#allocation13 + $0x7a0] sm:$0xff]
    %v7480 = vld [vmem:[#allocation13 + $0x7a8] sm:$0xff]
    %v7481 = vld [vmem:[#allocation13 + $0x7b0] sm:$0xff]
    %v7482 = vld [vmem:[#allocation13 + $0x7b8] sm:$0xff]
    %v7483 = vld [vmem:[#allocation13 + $0x7c0] sm:$0xff]
    %v7484 = vld [vmem:[#allocation13 + $0x7c8] sm:$0xff]
    %v7485 = vld [vmem:[#allocation13 + $0x7d0] sm:$0xff]
    %v7486 = vld [vmem:[#allocation13 + $0x7d8] sm:$0xff]
    %v7487 = vld [vmem:[#allocation13 + $0x7e0] sm:$0xff]
    %v7488 = vld [vmem:[#allocation13 + $0x7e8] sm:$0xff]
    %v7489 = vld [vmem:[#allocation13 + $0x7f0] sm:$0xff]
    %v7490 = vld [vmem:[#allocation13 + $0x7f8] sm:$0xff]
    %v7491 = vld [vmem:[#allocation14] sm:$0xf]
    %v7493 = vlaneseq
    %v7494 = vshrl.u32 %v7493, 7
    %v7495 = vsub.s32 0, %v7494
    %v7496 = vrot.slane %v7491, %v7495
    %v7497 = vlaneseq
    %v7498 = vshrl.u32 %v7497, 7
    %v7499 = vsub.s32 1, %v7498
    %v7500 = vrot.slane %v7491, %v7499
    %v7501 = vlaneseq
    %v7502 = vshrl.u32 %v7501, 7
    %v7503 = vsub.s32 2, %v7502
    %v7504 = vrot.slane %v7491, %v7503
    %v7505 = vlaneseq
    %v7506 = vshrl.u32 %v7505, 7
    %v7507 = vsub.s32 3, %v7506
    %v7508 = vrot.slane %v7491, %v7507
    %v7769 = vunpack.c.l.b16 %v7235
    %v7770 = vunpack.c.h.b16 %v7235
    %v7771 = vunpack.c.l.b16 %v7236
    %v7772 = vunpack.c.h.b16 %v7236
    %v7773 = vunpack.c.l.b16 %v7237
    %v7774 = vunpack.c.h.b16 %v7237
    %v7775 = vunpack.c.l.b16 %v7238
    %v7776 = vunpack.c.h.b16 %v7238
    %v7777 = vunpack.c.l.b16 %v7239
    %v7778 = vunpack.c.h.b16 %v7239
    %v7779 = vunpack.c.l.b16 %v7240
    %v7780 = vunpack.c.h.b16 %v7240
    %v7781 = vunpack.c.l.b16 %v7241
    %v7782 = vunpack.c.h.b16 %v7241
    %v7783 = vunpack.c.l.b16 %v7242
    %v7784 = vunpack.c.h.b16 %v7242
    %v7785 = vunpack.c.l.b16 %v7243
    %v7786 = vunpack.c.h.b16 %v7243
    %v7787 = vunpack.c.l.b16 %v7244
    %v7788 = vunpack.c.h.b16 %v7244
    %v7789 = vunpack.c.l.b16 %v7245
    %v7790 = vunpack.c.h.b16 %v7245
    %v7791 = vunpack.c.l.b16 %v7246
    %v7792 = vunpack.c.h.b16 %v7246
    %v7793 = vunpack.c.l.b16 %v7247
    %v7794 = vunpack.c.h.b16 %v7247
    %v7795 = vunpack.c.l.b16 %v7248
    %v7796 = vunpack.c.h.b16 %v7248
    %v7797 = vunpack.c.l.b16 %v7249
    %v7798 = vunpack.c.h.b16 %v7249
    %v7799 = vunpack.c.l.b16 %v7250
    %v7800 = vunpack.c.h.b16 %v7250
    %v7801 = vunpack.c.l.b16 %v7251
    %v7802 = vunpack.c.h.b16 %v7251
    %v7803 = vunpack.c.l.b16 %v7252
    %v7804 = vunpack.c.h.b16 %v7252
    %v7805 = vunpack.c.l.b16 %v7253
    %v7806 = vunpack.c.h.b16 %v7253
    %v7807 = vunpack.c.l.b16 %v7254
    %v7808 = vunpack.c.h.b16 %v7254
    %v7809 = vunpack.c.l.b16 %v7255
    %v7810 = vunpack.c.h.b16 %v7255
    %v7811 = vunpack.c.l.b16 %v7256
    %v7812 = vunpack.c.h.b16 %v7256
    %v7813 = vunpack.c.l.b16 %v7257
    %v7814 = vunpack.c.h.b16 %v7257
    %v7815 = vunpack.c.l.b16 %v7258
    %v7816 = vunpack.c.h.b16 %v7258
    %v7817 = vunpack.c.l.b16 %v7259
    %v7818 = vunpack.c.h.b16 %v7259
    %v7819 = vunpack.c.l.b16 %v7260
    %v7820 = vunpack.c.h.b16 %v7260
    %v7821 = vunpack.c.l.b16 %v7261
    %v7822 = vunpack.c.h.b16 %v7261
    %v7823 = vunpack.c.l.b16 %v7262
    %v7824 = vunpack.c.h.b16 %v7262
    %v7825 = vunpack.c.l.b16 %v7263
    %v7826 = vunpack.c.h.b16 %v7263
    %v7827 = vunpack.c.l.b16 %v7264
    %v7828 = vunpack.c.h.b16 %v7264
    %v7829 = vunpack.c.l.b16 %v7265
    %v7830 = vunpack.c.h.b16 %v7265
    %v7831 = vunpack.c.l.b16 %v7266
    %v7832 = vunpack.c.h.b16 %v7266
    %v7833 = vunpack.c.l.b16 %v7267
    %v7834 = vunpack.c.h.b16 %v7267
    %v7835 = vunpack.c.l.b16 %v7268
    %v7836 = vunpack.c.h.b16 %v7268
    %v7837 = vunpack.c.l.b16 %v7269
    %v7838 = vunpack.c.h.b16 %v7269
    %v7839 = vunpack.c.l.b16 %v7270
    %v7840 = vunpack.c.h.b16 %v7270
    %v7841 = vunpack.c.l.b16 %v7271
    %v7842 = vunpack.c.h.b16 %v7271
    %v7843 = vunpack.c.l.b16 %v7272
    %v7844 = vunpack.c.h.b16 %v7272
    %v7845 = vunpack.c.l.b16 %v7273
    %v7846 = vunpack.c.h.b16 %v7273
    %v7847 = vunpack.c.l.b16 %v7274
    %v7848 = vunpack.c.h.b16 %v7274
    %v7849 = vunpack.c.l.b16 %v7275
    %v7850 = vunpack.c.h.b16 %v7275
    %v7851 = vunpack.c.l.b16 %v7276
    %v7852 = vunpack.c.h.b16 %v7276
    %v7853 = vunpack.c.l.b16 %v7277
    %v7854 = vunpack.c.h.b16 %v7277
    %v7855 = vunpack.c.l.b16 %v7278
    %v7856 = vunpack.c.h.b16 %v7278
    %v7857 = vunpack.c.l.b16 %v7279
    %v7858 = vunpack.c.h.b16 %v7279
    %v7859 = vunpack.c.l.b16 %v7280
    %v7860 = vunpack.c.h.b16 %v7280
    %v7861 = vunpack.c.l.b16 %v7281
    %v7862 = vunpack.c.h.b16 %v7281
    %v7863 = vunpack.c.l.b16 %v7282
    %v7864 = vunpack.c.h.b16 %v7282
    %v7865 = vunpack.c.l.b16 %v7283
    %v7866 = vunpack.c.h.b16 %v7283
    %v7867 = vunpack.c.l.b16 %v7284
    %v7868 = vunpack.c.h.b16 %v7284
    %v7869 = vunpack.c.l.b16 %v7285
    %v7870 = vunpack.c.h.b16 %v7285
    %v7871 = vunpack.c.l.b16 %v7286
    %v7872 = vunpack.c.h.b16 %v7286
    %v7873 = vunpack.c.l.b16 %v7287
    %v7874 = vunpack.c.h.b16 %v7287
    %v7875 = vunpack.c.l.b16 %v7288
    %v7876 = vunpack.c.h.b16 %v7288
    %v7877 = vunpack.c.l.b16 %v7289
    %v7878 = vunpack.c.h.b16 %v7289
    %v7879 = vunpack.c.l.b16 %v7290
    %v7880 = vunpack.c.h.b16 %v7290
    %v7881 = vunpack.c.l.b16 %v7291
    %v7882 = vunpack.c.h.b16 %v7291
    %v7883 = vunpack.c.l.b16 %v7292
    %v7884 = vunpack.c.h.b16 %v7292
    %v7885 = vunpack.c.l.b16 %v7293
    %v7886 = vunpack.c.h.b16 %v7293
    %v7887 = vunpack.c.l.b16 %v7294
    %v7888 = vunpack.c.h.b16 %v7294
    %v7889 = vunpack.c.l.b16 %v7295
    %v7890 = vunpack.c.h.b16 %v7295
    %v7891 = vunpack.c.l.b16 %v7296
    %v7892 = vunpack.c.h.b16 %v7296
    %v7893 = vunpack.c.l.b16 %v7297
    %v7894 = vunpack.c.h.b16 %v7297
    %v7895 = vunpack.c.l.b16 %v7298
    %v7896 = vunpack.c.h.b16 %v7298
    %v7897 = vunpack.c.l.b16 %v7299
    %v7898 = vunpack.c.h.b16 %v7299
    %v7899 = vunpack.c.l.b16 %v7300
    %v7900 = vunpack.c.h.b16 %v7300
    %v7901 = vunpack.c.l.b16 %v7301
    %v7902 = vunpack.c.h.b16 %v7301
    %v7903 = vunpack.c.l.b16 %v7302
    %v7904 = vunpack.c.h.b16 %v7302
    %v7905 = vunpack.c.l.b16 %v7303
    %v7906 = vunpack.c.h.b16 %v7303
    %v7907 = vunpack.c.l.b16 %v7304
    %v7908 = vunpack.c.h.b16 %v7304
    %v7909 = vunpack.c.l.b16 %v7305
    %v7910 = vunpack.c.h.b16 %v7305
    %v7911 = vunpack.c.l.b16 %v7306
    %v7912 = vunpack.c.h.b16 %v7306
    %v7913 = vunpack.c.l.b16 %v7307
    %v7914 = vunpack.c.h.b16 %v7307
    %v7915 = vunpack.c.l.b16 %v7308
    %v7916 = vunpack.c.h.b16 %v7308
    %v7917 = vunpack.c.l.b16 %v7309
    %v7918 = vunpack.c.h.b16 %v7309
    %v7919 = vunpack.c.l.b16 %v7310
    %v7920 = vunpack.c.h.b16 %v7310
    %v7921 = vunpack.c.l.b16 %v7311
    %v7922 = vunpack.c.h.b16 %v7311
    %v7923 = vunpack.c.l.b16 %v7312
    %v7924 = vunpack.c.h.b16 %v7312
    %v7925 = vunpack.c.l.b16 %v7313
    %v7926 = vunpack.c.h.b16 %v7313
    %v7927 = vunpack.c.l.b16 %v7314
    %v7928 = vunpack.c.h.b16 %v7314
    %v7929 = vunpack.c.l.b16 %v7315
    %v7930 = vunpack.c.h.b16 %v7315
    %v7931 = vunpack.c.l.b16 %v7316
    %v7932 = vunpack.c.h.b16 %v7316
    %v7933 = vunpack.c.l.b16 %v7317
    %v7934 = vunpack.c.h.b16 %v7317
    %v7935 = vunpack.c.l.b16 %v7318
    %v7936 = vunpack.c.h.b16 %v7318
    %v7937 = vunpack.c.l.b16 %v7319
    %v7938 = vunpack.c.h.b16 %v7319
    %v7939 = vunpack.c.l.b16 %v7320
    %v7940 = vunpack.c.h.b16 %v7320
    %v7941 = vunpack.c.l.b16 %v7321
    %v7942 = vunpack.c.h.b16 %v7321
    %v7943 = vunpack.c.l.b16 %v7322
    %v7944 = vunpack.c.h.b16 %v7322
    %v7945 = vunpack.c.l.b16 %v7323
    %v7946 = vunpack.c.h.b16 %v7323
    %v7947 = vunpack.c.l.b16 %v7324
    %v7948 = vunpack.c.h.b16 %v7324
    %v7949 = vunpack.c.l.b16 %v7325
    %v7950 = vunpack.c.h.b16 %v7325
    %v7951 = vunpack.c.l.b16 %v7326
    %v7952 = vunpack.c.h.b16 %v7326
    %v7953 = vunpack.c.l.b16 %v7327
    %v7954 = vunpack.c.h.b16 %v7327
    %v7955 = vunpack.c.l.b16 %v7328
    %v7956 = vunpack.c.h.b16 %v7328
    %v7957 = vunpack.c.l.b16 %v7329
    %v7958 = vunpack.c.h.b16 %v7329
    %v7959 = vunpack.c.l.b16 %v7330
    %v7960 = vunpack.c.h.b16 %v7330
    %v7961 = vunpack.c.l.b16 %v7331
    %v7962 = vunpack.c.h.b16 %v7331
    %v7963 = vunpack.c.l.b16 %v7332
    %v7964 = vunpack.c.h.b16 %v7332
    %v7965 = vunpack.c.l.b16 %v7333
    %v7966 = vunpack.c.h.b16 %v7333
    %v7967 = vunpack.c.l.b16 %v7334
    %v7968 = vunpack.c.h.b16 %v7334
    %v7969 = vunpack.c.l.b16 %v7335
    %v7970 = vunpack.c.h.b16 %v7335
    %v7971 = vunpack.c.l.b16 %v7336
    %v7972 = vunpack.c.h.b16 %v7336
    %v7973 = vunpack.c.l.b16 %v7337
    %v7974 = vunpack.c.h.b16 %v7337
    %v7975 = vunpack.c.l.b16 %v7338
    %v7976 = vunpack.c.h.b16 %v7338
    %v7977 = vunpack.c.l.b16 %v7339
    %v7978 = vunpack.c.h.b16 %v7339
    %v7979 = vunpack.c.l.b16 %v7340
    %v7980 = vunpack.c.h.b16 %v7340
    %v7981 = vunpack.c.l.b16 %v7341
    %v7982 = vunpack.c.h.b16 %v7341
    %v7983 = vunpack.c.l.b16 %v7342
    %v7984 = vunpack.c.h.b16 %v7342
    %v7985 = vunpack.c.l.b16 %v7343
    %v7986 = vunpack.c.h.b16 %v7343
    %v7987 = vunpack.c.l.b16 %v7344
    %v7988 = vunpack.c.h.b16 %v7344
    %v7989 = vunpack.c.l.b16 %v7345
    %v7990 = vunpack.c.h.b16 %v7345
    %v7991 = vunpack.c.l.b16 %v7346
    %v7992 = vunpack.c.h.b16 %v7346
    %v7993 = vunpack.c.l.b16 %v7347
    %v7994 = vunpack.c.h.b16 %v7347
    %v7995 = vunpack.c.l.b16 %v7348
    %v7996 = vunpack.c.h.b16 %v7348
    %v7997 = vunpack.c.l.b16 %v7349
    %v7998 = vunpack.c.h.b16 %v7349
    %v7999 = vunpack.c.l.b16 %v7350
    %v8000 = vunpack.c.h.b16 %v7350
    %v8001 = vunpack.c.l.b16 %v7351
    %v8002 = vunpack.c.h.b16 %v7351
    %v8003 = vunpack.c.l.b16 %v7352
    %v8004 = vunpack.c.h.b16 %v7352
    %v8005 = vunpack.c.l.b16 %v7353
    %v8006 = vunpack.c.h.b16 %v7353
    %v8007 = vunpack.c.l.b16 %v7354
    %v8008 = vunpack.c.h.b16 %v7354
    %v8009 = vunpack.c.l.b16 %v7355
    %v8010 = vunpack.c.h.b16 %v7355
    %v8011 = vunpack.c.l.b16 %v7356
    %v8012 = vunpack.c.h.b16 %v7356
    %v8013 = vunpack.c.l.b16 %v7357
    %v8014 = vunpack.c.h.b16 %v7357
    %v8015 = vunpack.c.l.b16 %v7358
    %v8016 = vunpack.c.h.b16 %v7358
    %v8017 = vunpack.c.l.b16 %v7359
    %v8018 = vunpack.c.h.b16 %v7359
    %v8019 = vunpack.c.l.b16 %v7360
    %v8020 = vunpack.c.h.b16 %v7360
    %v8021 = vunpack.c.l.b16 %v7361
    %v8022 = vunpack.c.h.b16 %v7361
    %v8023 = vunpack.c.l.b16 %v7362
    %v8024 = vunpack.c.h.b16 %v7362
    %v8025 = vunpack.c.l.b16 %v7363
    %v8026 = vunpack.c.h.b16 %v7363
    %v8027 = vunpack.c.l.b16 %v7364
    %v8028 = vunpack.c.h.b16 %v7364
    %v8029 = vunpack.c.l.b16 %v7365
    %v8030 = vunpack.c.h.b16 %v7365
    %v8031 = vunpack.c.l.b16 %v7366
    %v8032 = vunpack.c.h.b16 %v7366
    %v8033 = vunpack.c.l.b16 %v7367
    %v8034 = vunpack.c.h.b16 %v7367
    %v8035 = vunpack.c.l.b16 %v7368
    %v8036 = vunpack.c.h.b16 %v7368
    %v8037 = vunpack.c.l.b16 %v7369
    %v8038 = vunpack.c.h.b16 %v7369
    %v8039 = vunpack.c.l.b16 %v7370
    %v8040 = vunpack.c.h.b16 %v7370
    %v8041 = vunpack.c.l.b16 %v7371
    %v8042 = vunpack.c.h.b16 %v7371
    %v8043 = vunpack.c.l.b16 %v7372
    %v8044 = vunpack.c.h.b16 %v7372
    %v8045 = vunpack.c.l.b16 %v7373
    %v8046 = vunpack.c.h.b16 %v7373
    %v8047 = vunpack.c.l.b16 %v7374
    %v8048 = vunpack.c.h.b16 %v7374
    %v8049 = vunpack.c.l.b16 %v7375
    %v8050 = vunpack.c.h.b16 %v7375
    %v8051 = vunpack.c.l.b16 %v7376
    %v8052 = vunpack.c.h.b16 %v7376
    %v8053 = vunpack.c.l.b16 %v7377
    %v8054 = vunpack.c.h.b16 %v7377
    %v8055 = vunpack.c.l.b16 %v7378
    %v8056 = vunpack.c.h.b16 %v7378
    %v8057 = vunpack.c.l.b16 %v7379
    %v8058 = vunpack.c.h.b16 %v7379
    %v8059 = vunpack.c.l.b16 %v7380
    %v8060 = vunpack.c.h.b16 %v7380
    %v8061 = vunpack.c.l.b16 %v7381
    %v8062 = vunpack.c.h.b16 %v7381
    %v8063 = vunpack.c.l.b16 %v7382
    %v8064 = vunpack.c.h.b16 %v7382
    %v8065 = vunpack.c.l.b16 %v7383
    %v8066 = vunpack.c.h.b16 %v7383
    %v8067 = vunpack.c.l.b16 %v7384
    %v8068 = vunpack.c.h.b16 %v7384
    %v8069 = vunpack.c.l.b16 %v7385
    %v8070 = vunpack.c.h.b16 %v7385
    %v8071 = vunpack.c.l.b16 %v7386
    %v8072 = vunpack.c.h.b16 %v7386
    %v8073 = vunpack.c.l.b16 %v7387
    %v8074 = vunpack.c.h.b16 %v7387
    %v8075 = vunpack.c.l.b16 %v7388
    %v8076 = vunpack.c.h.b16 %v7388
    %v8077 = vunpack.c.l.b16 %v7389
    %v8078 = vunpack.c.h.b16 %v7389
    %v8079 = vunpack.c.l.b16 %v7390
    %v8080 = vunpack.c.h.b16 %v7390
    %v8081 = vunpack.c.l.b16 %v7391
    %v8082 = vunpack.c.h.b16 %v7391
    %v8083 = vunpack.c.l.b16 %v7392
    %v8084 = vunpack.c.h.b16 %v7392
    %v8085 = vunpack.c.l.b16 %v7393
    %v8086 = vunpack.c.h.b16 %v7393
    %v8087 = vunpack.c.l.b16 %v7394
    %v8088 = vunpack.c.h.b16 %v7394
    %v8089 = vunpack.c.l.b16 %v7395
    %v8090 = vunpack.c.h.b16 %v7395
    %v8091 = vunpack.c.l.b16 %v7396
    %v8092 = vunpack.c.h.b16 %v7396
    %v8093 = vunpack.c.l.b16 %v7397
    %v8094 = vunpack.c.h.b16 %v7397
    %v8095 = vunpack.c.l.b16 %v7398
    %v8096 = vunpack.c.h.b16 %v7398
    %v8097 = vunpack.c.l.b16 %v7399
    %v8098 = vunpack.c.h.b16 %v7399
    %v8099 = vunpack.c.l.b16 %v7400
    %v8100 = vunpack.c.h.b16 %v7400
    %v8101 = vunpack.c.l.b16 %v7401
    %v8102 = vunpack.c.h.b16 %v7401
    %v8103 = vunpack.c.l.b16 %v7402
    %v8104 = vunpack.c.h.b16 %v7402
    %v8105 = vunpack.c.l.b16 %v7403
    %v8106 = vunpack.c.h.b16 %v7403
    %v8107 = vunpack.c.l.b16 %v7404
    %v8108 = vunpack.c.h.b16 %v7404
    %v8109 = vunpack.c.l.b16 %v7405
    %v8110 = vunpack.c.h.b16 %v7405
    %v8111 = vunpack.c.l.b16 %v7406
    %v8112 = vunpack.c.h.b16 %v7406
    %v8113 = vunpack.c.l.b16 %v7407
    %v8114 = vunpack.c.h.b16 %v7407
    %v8115 = vunpack.c.l.b16 %v7408
    %v8116 = vunpack.c.h.b16 %v7408
    %v8117 = vunpack.c.l.b16 %v7409
    %v8118 = vunpack.c.h.b16 %v7409
    %v8119 = vunpack.c.l.b16 %v7410
    %v8120 = vunpack.c.h.b16 %v7410
    %v8121 = vunpack.c.l.b16 %v7411
    %v8122 = vunpack.c.h.b16 %v7411
    %v8123 = vunpack.c.l.b16 %v7412
    %v8124 = vunpack.c.h.b16 %v7412
    %v8125 = vunpack.c.l.b16 %v7413
    %v8126 = vunpack.c.h.b16 %v7413
    %v8127 = vunpack.c.l.b16 %v7414
    %v8128 = vunpack.c.h.b16 %v7414
    %v8129 = vunpack.c.l.b16 %v7415
    %v8130 = vunpack.c.h.b16 %v7415
    %v8131 = vunpack.c.l.b16 %v7416
    %v8132 = vunpack.c.h.b16 %v7416
    %v8133 = vunpack.c.l.b16 %v7417
    %v8134 = vunpack.c.h.b16 %v7417
    %v8135 = vunpack.c.l.b16 %v7418
    %v8136 = vunpack.c.h.b16 %v7418
    %v8137 = vunpack.c.l.b16 %v7419
    %v8138 = vunpack.c.h.b16 %v7419
    %v8139 = vunpack.c.l.b16 %v7420
    %v8140 = vunpack.c.h.b16 %v7420
    %v8141 = vunpack.c.l.b16 %v7421
    %v8142 = vunpack.c.h.b16 %v7421
    %v8143 = vunpack.c.l.b16 %v7422
    %v8144 = vunpack.c.h.b16 %v7422
    %v8145 = vunpack.c.l.b16 %v7423
    %v8146 = vunpack.c.h.b16 %v7423
    %v8147 = vunpack.c.l.b16 %v7424
    %v8148 = vunpack.c.h.b16 %v7424
    %v8149 = vunpack.c.l.b16 %v7425
    %v8150 = vunpack.c.h.b16 %v7425
    %v8151 = vunpack.c.l.b16 %v7426
    %v8152 = vunpack.c.h.b16 %v7426
    %v8153 = vunpack.c.l.b16 %v7427
    %v8154 = vunpack.c.h.b16 %v7427
    %v8155 = vunpack.c.l.b16 %v7428
    %v8156 = vunpack.c.h.b16 %v7428
    %v8157 = vunpack.c.l.b16 %v7429
    %v8158 = vunpack.c.h.b16 %v7429
    %v8159 = vunpack.c.l.b16 %v7430
    %v8160 = vunpack.c.h.b16 %v7430
    %v8161 = vunpack.c.l.b16 %v7431
    %v8162 = vunpack.c.h.b16 %v7431
    %v8163 = vunpack.c.l.b16 %v7432
    %v8164 = vunpack.c.h.b16 %v7432
    %v8165 = vunpack.c.l.b16 %v7433
    %v8166 = vunpack.c.h.b16 %v7433
    %v8167 = vunpack.c.l.b16 %v7434
    %v8168 = vunpack.c.h.b16 %v7434
    %v8169 = vunpack.c.l.b16 %v7435
    %v8170 = vunpack.c.h.b16 %v7435
    %v8171 = vunpack.c.l.b16 %v7436
    %v8172 = vunpack.c.h.b16 %v7436
    %v8173 = vunpack.c.l.b16 %v7437
    %v8174 = vunpack.c.h.b16 %v7437
    %v8175 = vunpack.c.l.b16 %v7438
    %v8176 = vunpack.c.h.b16 %v7438
    %v8177 = vunpack.c.l.b16 %v7439
    %v8178 = vunpack.c.h.b16 %v7439
    %v8179 = vunpack.c.l.b16 %v7440
    %v8180 = vunpack.c.h.b16 %v7440
    %v8181 = vunpack.c.l.b16 %v7441
    %v8182 = vunpack.c.h.b16 %v7441
    %v8183 = vunpack.c.l.b16 %v7442
    %v8184 = vunpack.c.h.b16 %v7442
    %v8185 = vunpack.c.l.b16 %v7443
    %v8186 = vunpack.c.h.b16 %v7443
    %v8187 = vunpack.c.l.b16 %v7444
    %v8188 = vunpack.c.h.b16 %v7444
    %v8189 = vunpack.c.l.b16 %v7445
    %v8190 = vunpack.c.h.b16 %v7445
    %v8191 = vunpack.c.l.b16 %v7446
    %v8192 = vunpack.c.h.b16 %v7446
    %v8193 = vunpack.c.l.b16 %v7447
    %v8194 = vunpack.c.h.b16 %v7447
    %v8195 = vunpack.c.l.b16 %v7448
    %v8196 = vunpack.c.h.b16 %v7448
    %v8197 = vunpack.c.l.b16 %v7449
    %v8198 = vunpack.c.h.b16 %v7449
    %v8199 = vunpack.c.l.b16 %v7450
    %v8200 = vunpack.c.h.b16 %v7450
    %v8201 = vunpack.c.l.b16 %v7451
    %v8202 = vunpack.c.h.b16 %v7451
    %v8203 = vunpack.c.l.b16 %v7452
    %v8204 = vunpack.c.h.b16 %v7452
    %v8205 = vunpack.c.l.b16 %v7453
    %v8206 = vunpack.c.h.b16 %v7453
    %v8207 = vunpack.c.l.b16 %v7454
    %v8208 = vunpack.c.h.b16 %v7454
    %v8209 = vunpack.c.l.b16 %v7455
    %v8210 = vunpack.c.h.b16 %v7455
    %v8211 = vunpack.c.l.b16 %v7456
    %v8212 = vunpack.c.h.b16 %v7456
    %v8213 = vunpack.c.l.b16 %v7457
    %v8214 = vunpack.c.h.b16 %v7457
    %v8215 = vunpack.c.l.b16 %v7458
    %v8216 = vunpack.c.h.b16 %v7458
    %v8217 = vunpack.c.l.b16 %v7459
    %v8218 = vunpack.c.h.b16 %v7459
    %v8219 = vunpack.c.l.b16 %v7460
    %v8220 = vunpack.c.h.b16 %v7460
    %v8221 = vunpack.c.l.b16 %v7461
    %v8222 = vunpack.c.h.b16 %v7461
    %v8223 = vunpack.c.l.b16 %v7462
    %v8224 = vunpack.c.h.b16 %v7462
    %v8225 = vunpack.c.l.b16 %v7463
    %v8226 = vunpack.c.h.b16 %v7463
    %v8227 = vunpack.c.l.b16 %v7464
    %v8228 = vunpack.c.h.b16 %v7464
    %v8229 = vunpack.c.l.b16 %v7465
    %v8230 = vunpack.c.h.b16 %v7465
    %v8231 = vunpack.c.l.b16 %v7466
    %v8232 = vunpack.c.h.b16 %v7466
    %v8233 = vunpack.c.l.b16 %v7467
    %v8234 = vunpack.c.h.b16 %v7467
    %v8235 = vunpack.c.l.b16 %v7468
    %v8236 = vunpack.c.h.b16 %v7468
    %v8237 = vunpack.c.l.b16 %v7469
    %v8238 = vunpack.c.h.b16 %v7469
    %v8239 = vunpack.c.l.b16 %v7470
    %v8240 = vunpack.c.h.b16 %v7470
    %v8241 = vunpack.c.l.b16 %v7471
    %v8242 = vunpack.c.h.b16 %v7471
    %v8243 = vunpack.c.l.b16 %v7472
    %v8244 = vunpack.c.h.b16 %v7472
    %v8245 = vunpack.c.l.b16 %v7473
    %v8246 = vunpack.c.h.b16 %v7473
    %v8247 = vunpack.c.l.b16 %v7474
    %v8248 = vunpack.c.h.b16 %v7474
    %v8249 = vunpack.c.l.b16 %v7475
    %v8250 = vunpack.c.h.b16 %v7475
    %v8251 = vunpack.c.l.b16 %v7476
    %v8252 = vunpack.c.h.b16 %v7476
    %v8253 = vunpack.c.l.b16 %v7477
    %v8254 = vunpack.c.h.b16 %v7477
    %v8255 = vunpack.c.l.b16 %v7478
    %v8256 = vunpack.c.h.b16 %v7478
    %v8257 = vunpack.c.l.b16 %v7479
    %v8258 = vunpack.c.h.b16 %v7479
    %v8259 = vunpack.c.l.b16 %v7480
    %v8260 = vunpack.c.h.b16 %v7480
    %v8261 = vunpack.c.l.b16 %v7481
    %v8262 = vunpack.c.h.b16 %v7481
    %v8263 = vunpack.c.l.b16 %v7482
    %v8264 = vunpack.c.h.b16 %v7482
    %v8265 = vunpack.c.l.b16 %v7483
    %v8266 = vunpack.c.h.b16 %v7483
    %v8267 = vunpack.c.l.b16 %v7484
    %v8268 = vunpack.c.h.b16 %v7484
    %v8269 = vunpack.c.l.b16 %v7485
    %v8270 = vunpack.c.h.b16 %v7485
    %v8271 = vunpack.c.l.b16 %v7486
    %v8272 = vunpack.c.h.b16 %v7486
    %v8273 = vunpack.c.l.b16 %v7487
    %v8274 = vunpack.c.h.b16 %v7487
    %v8275 = vunpack.c.l.b16 %v7488
    %v8276 = vunpack.c.h.b16 %v7488
    %v8277 = vunpack.c.l.b16 %v7489
    %v8278 = vunpack.c.h.b16 %v7489
    %v8279 = vunpack.c.l.b16 %v7490
    %v8280 = vunpack.c.h.b16 %v7490
    %v8281 = vpack.c.b16 %v7773, %v7769
    %v8282 = vpack.c.b16 %v7774, %v7770
    %v8283 = vpack.c.b16 %v7775, %v7771
    %v8284 = vpack.c.b16 %v7776, %v7772
    %v8285 = vpack.c.b16 %v7781, %v7777
    %v8286 = vpack.c.b16 %v7782, %v7778
    %v8287 = vpack.c.b16 %v7783, %v7779
    %v8288 = vpack.c.b16 %v7784, %v7780
    %v8289 = vpack.c.b16 %v7789, %v7785
    %v8290 = vpack.c.b16 %v7790, %v7786
    %v8291 = vpack.c.b16 %v7791, %v7787
    %v8292 = vpack.c.b16 %v7792, %v7788
    %v8293 = vpack.c.b16 %v7797, %v7793
    %v8294 = vpack.c.b16 %v7798, %v7794
    %v8295 = vpack.c.b16 %v7799, %v7795
    %v8296 = vpack.c.b16 %v7800, %v7796
    %v8297 = vpack.c.b16 %v7805, %v7801
    %v8298 = vpack.c.b16 %v7806, %v7802
    %v8299 = vpack.c.b16 %v7807, %v7803
    %v8300 = vpack.c.b16 %v7808, %v7804
    %v8301 = vpack.c.b16 %v7813, %v7809
    %v8302 = vpack.c.b16 %v7814, %v7810
    %v8303 = vpack.c.b16 %v7815, %v7811
    %v8304 = vpack.c.b16 %v7816, %v7812
    %v8305 = vpack.c.b16 %v7821, %v7817
    %v8306 = vpack.c.b16 %v7822, %v7818
    %v8307 = vpack.c.b16 %v7823, %v7819
    %v8308 = vpack.c.b16 %v7824, %v7820
    %v8309 = vpack.c.b16 %v7829, %v7825
    %v8310 = vpack.c.b16 %v7830, %v7826
    %v8311 = vpack.c.b16 %v7831, %v7827
    %v8312 = vpack.c.b16 %v7832, %v7828
    %v8313 = vpack.c.b16 %v7837, %v7833
    %v8314 = vpack.c.b16 %v7838, %v7834
    %v8315 = vpack.c.b16 %v7839, %v7835
    %v8316 = vpack.c.b16 %v7840, %v7836
    %v8317 = vpack.c.b16 %v7845, %v7841
    %v8318 = vpack.c.b16 %v7846, %v7842
    %v8319 = vpack.c.b16 %v7847, %v7843
    %v8320 = vpack.c.b16 %v7848, %v7844
    %v8321 = vpack.c.b16 %v7853, %v7849
    %v8322 = vpack.c.b16 %v7854, %v7850
    %v8323 = vpack.c.b16 %v7855, %v7851
    %v8324 = vpack.c.b16 %v7856, %v7852
    %v8325 = vpack.c.b16 %v7861, %v7857
    %v8326 = vpack.c.b16 %v7862, %v7858
    %v8327 = vpack.c.b16 %v7863, %v7859
    %v8328 = vpack.c.b16 %v7864, %v7860
    %v8329 = vpack.c.b16 %v7869, %v7865
    %v8330 = vpack.c.b16 %v7870, %v7866
    %v8331 = vpack.c.b16 %v7871, %v7867
    %v8332 = vpack.c.b16 %v7872, %v7868
    %v8333 = vpack.c.b16 %v7877, %v7873
    %v8334 = vpack.c.b16 %v7878, %v7874
    %v8335 = vpack.c.b16 %v7879, %v7875
    %v8336 = vpack.c.b16 %v7880, %v7876
    %v8337 = vpack.c.b16 %v7885, %v7881
    %v8338 = vpack.c.b16 %v7886, %v7882
    %v8339 = vpack.c.b16 %v7887, %v7883
    %v8340 = vpack.c.b16 %v7888, %v7884
    %v8341 = vpack.c.b16 %v7893, %v7889
    %v8342 = vpack.c.b16 %v7894, %v7890
    %v8343 = vpack.c.b16 %v7895, %v7891
    %v8344 = vpack.c.b16 %v7896, %v7892
    %v8345 = vpack.c.b16 %v7901, %v7897
    %v8346 = vpack.c.b16 %v7902, %v7898
    %v8347 = vpack.c.b16 %v7903, %v7899
    %v8348 = vpack.c.b16 %v7904, %v7900
    %v8349 = vpack.c.b16 %v7909, %v7905
    %v8350 = vpack.c.b16 %v7910, %v7906
    %v8351 = vpack.c.b16 %v7911, %v7907
    %v8352 = vpack.c.b16 %v7912, %v7908
    %v8353 = vpack.c.b16 %v7917, %v7913
    %v8354 = vpack.c.b16 %v7918, %v7914
    %v8355 = vpack.c.b16 %v7919, %v7915
    %v8356 = vpack.c.b16 %v7920, %v7916
    %v8357 = vpack.c.b16 %v7925, %v7921
    %v8358 = vpack.c.b16 %v7926, %v7922
    %v8359 = vpack.c.b16 %v7927, %v7923
    %v8360 = vpack.c.b16 %v7928, %v7924
    %v8361 = vpack.c.b16 %v7933, %v7929
    %v8362 = vpack.c.b16 %v7934, %v7930
    %v8363 = vpack.c.b16 %v7935, %v7931
    %v8364 = vpack.c.b16 %v7936, %v7932
    %v8365 = vpack.c.b16 %v7941, %v7937
    %v8366 = vpack.c.b16 %v7942, %v7938
    %v8367 = vpack.c.b16 %v7943, %v7939
    %v8368 = vpack.c.b16 %v7944, %v7940
    %v8369 = vpack.c.b16 %v7949, %v7945
    %v8370 = vpack.c.b16 %v7950, %v7946
    %v8371 = vpack.c.b16 %v7951, %v7947
    %v8372 = vpack.c.b16 %v7952, %v7948
    %v8373 = vpack.c.b16 %v7957, %v7953
    %v8374 = vpack.c.b16 %v7958, %v7954
    %v8375 = vpack.c.b16 %v7959, %v7955
    %v8376 = vpack.c.b16 %v7960, %v7956
    %v8377 = vpack.c.b16 %v7965, %v7961
    %v8378 = vpack.c.b16 %v7966, %v7962
    %v8379 = vpack.c.b16 %v7967, %v7963
    %v8380 = vpack.c.b16 %v7968, %v7964
    %v8381 = vpack.c.b16 %v7973, %v7969
    %v8382 = vpack.c.b16 %v7974, %v7970
    %v8383 = vpack.c.b16 %v7975, %v7971
    %v8384 = vpack.c.b16 %v7976, %v7972
    %v8385 = vpack.c.b16 %v7981, %v7977
    %v8386 = vpack.c.b16 %v7982, %v7978
    %v8387 = vpack.c.b16 %v7983, %v7979
    %v8388 = vpack.c.b16 %v7984, %v7980
    %v8389 = vpack.c.b16 %v7989, %v7985
    %v8390 = vpack.c.b16 %v7990, %v7986
    %v8391 = vpack.c.b16 %v7991, %v7987
    %v8392 = vpack.c.b16 %v7992, %v7988
    %v8393 = vpack.c.b16 %v7997, %v7993
    %v8394 = vpack.c.b16 %v7998, %v7994
    %v8395 = vpack.c.b16 %v7999, %v7995
    %v8396 = vpack.c.b16 %v8000, %v7996
    %v8397 = vpack.c.b16 %v8005, %v8001
    %v8398 = vpack.c.b16 %v8006, %v8002
    %v8399 = vpack.c.b16 %v8007, %v8003
    %v8400 = vpack.c.b16 %v8008, %v8004
    %v8401 = vpack.c.b16 %v8013, %v8009
    %v8402 = vpack.c.b16 %v8014, %v8010
    %v8403 = vpack.c.b16 %v8015, %v8011
    %v8404 = vpack.c.b16 %v8016, %v8012
    %v8405 = vpack.c.b16 %v8021, %v8017
    %v8406 = vpack.c.b16 %v8022, %v8018
    %v8407 = vpack.c.b16 %v8023, %v8019
    %v8408 = vpack.c.b16 %v8024, %v8020
    %v8409 = vpack.c.b16 %v8029, %v8025
    %v8410 = vpack.c.b16 %v8030, %v8026
    %v8411 = vpack.c.b16 %v8031, %v8027
    %v8412 = vpack.c.b16 %v8032, %v8028
    %v8413 = vpack.c.b16 %v8037, %v8033
    %v8414 = vpack.c.b16 %v8038, %v8034
    %v8415 = vpack.c.b16 %v8039, %v8035
    %v8416 = vpack.c.b16 %v8040, %v8036
    %v8417 = vpack.c.b16 %v8045, %v8041
    %v8418 = vpack.c.b16 %v8046, %v8042
    %v8419 = vpack.c.b16 %v8047, %v8043
    %v8420 = vpack.c.b16 %v8048, %v8044
    %v8421 = vpack.c.b16 %v8053, %v8049
    %v8422 = vpack.c.b16 %v8054, %v8050
    %v8423 = vpack.c.b16 %v8055, %v8051
    %v8424 = vpack.c.b16 %v8056, %v8052
    %v8425 = vpack.c.b16 %v8061, %v8057
    %v8426 = vpack.c.b16 %v8062, %v8058
    %v8427 = vpack.c.b16 %v8063, %v8059
    %v8428 = vpack.c.b16 %v8064, %v8060
    %v8429 = vpack.c.b16 %v8069, %v8065
    %v8430 = vpack.c.b16 %v8070, %v8066
    %v8431 = vpack.c.b16 %v8071, %v8067
    %v8432 = vpack.c.b16 %v8072, %v8068
    %v8433 = vpack.c.b16 %v8077, %v8073
    %v8434 = vpack.c.b16 %v8078, %v8074
    %v8435 = vpack.c.b16 %v8079, %v8075
    %v8436 = vpack.c.b16 %v8080, %v8076
    %v8437 = vpack.c.b16 %v8085, %v8081
    %v8438 = vpack.c.b16 %v8086, %v8082
    %v8439 = vpack.c.b16 %v8087, %v8083
    %v8440 = vpack.c.b16 %v8088, %v8084
    %v8441 = vpack.c.b16 %v8093, %v8089
    %v8442 = vpack.c.b16 %v8094, %v8090
    %v8443 = vpack.c.b16 %v8095, %v8091
    %v8444 = vpack.c.b16 %v8096, %v8092
    %v8445 = vpack.c.b16 %v8101, %v8097
    %v8446 = vpack.c.b16 %v8102, %v8098
    %v8447 = vpack.c.b16 %v8103, %v8099
    %v8448 = vpack.c.b16 %v8104, %v8100
    %v8449 = vpack.c.b16 %v8109, %v8105
    %v8450 = vpack.c.b16 %v8110, %v8106
    %v8451 = vpack.c.b16 %v8111, %v8107
    %v8452 = vpack.c.b16 %v8112, %v8108
    %v8453 = vpack.c.b16 %v8117, %v8113
    %v8454 = vpack.c.b16 %v8118, %v8114
    %v8455 = vpack.c.b16 %v8119, %v8115
    %v8456 = vpack.c.b16 %v8120, %v8116
    %v8457 = vpack.c.b16 %v8125, %v8121
    %v8458 = vpack.c.b16 %v8126, %v8122
    %v8459 = vpack.c.b16 %v8127, %v8123
    %v8460 = vpack.c.b16 %v8128, %v8124
    %v8461 = vpack.c.b16 %v8133, %v8129
    %v8462 = vpack.c.b16 %v8134, %v8130
    %v8463 = vpack.c.b16 %v8135, %v8131
    %v8464 = vpack.c.b16 %v8136, %v8132
    %v8465 = vpack.c.b16 %v8141, %v8137
    %v8466 = vpack.c.b16 %v8142, %v8138
    %v8467 = vpack.c.b16 %v8143, %v8139
    %v8468 = vpack.c.b16 %v8144, %v8140
    %v8469 = vpack.c.b16 %v8149, %v8145
    %v8470 = vpack.c.b16 %v8150, %v8146
    %v8471 = vpack.c.b16 %v8151, %v8147
    %v8472 = vpack.c.b16 %v8152, %v8148
    %v8473 = vpack.c.b16 %v8157, %v8153
    %v8474 = vpack.c.b16 %v8158, %v8154
    %v8475 = vpack.c.b16 %v8159, %v8155
    %v8476 = vpack.c.b16 %v8160, %v8156
    %v8477 = vpack.c.b16 %v8165, %v8161
    %v8478 = vpack.c.b16 %v8166, %v8162
    %v8479 = vpack.c.b16 %v8167, %v8163
    %v8480 = vpack.c.b16 %v8168, %v8164
    %v8481 = vpack.c.b16 %v8173, %v8169
    %v8482 = vpack.c.b16 %v8174, %v8170
    %v8483 = vpack.c.b16 %v8175, %v8171
    %v8484 = vpack.c.b16 %v8176, %v8172
    %v8485 = vpack.c.b16 %v8181, %v8177
    %v8486 = vpack.c.b16 %v8182, %v8178
    %v8487 = vpack.c.b16 %v8183, %v8179
    %v8488 = vpack.c.b16 %v8184, %v8180
    %v8489 = vpack.c.b16 %v8189, %v8185
    %v8490 = vpack.c.b16 %v8190, %v8186
    %v8491 = vpack.c.b16 %v8191, %v8187
    %v8492 = vpack.c.b16 %v8192, %v8188
    %v8493 = vpack.c.b16 %v8197, %v8193
    %v8494 = vpack.c.b16 %v8198, %v8194
    %v8495 = vpack.c.b16 %v8199, %v8195
    %v8496 = vpack.c.b16 %v8200, %v8196
    %v8497 = vpack.c.b16 %v8205, %v8201
    %v8498 = vpack.c.b16 %v8206, %v8202
    %v8499 = vpack.c.b16 %v8207, %v8203
    %v8500 = vpack.c.b16 %v8208, %v8204
    %v8501 = vpack.c.b16 %v8213, %v8209
    %v8502 = vpack.c.b16 %v8214, %v8210
    %v8503 = vpack.c.b16 %v8215, %v8211
    %v8504 = vpack.c.b16 %v8216, %v8212
    %v8505 = vpack.c.b16 %v8221, %v8217
    %v8506 = vpack.c.b16 %v8222, %v8218
    %v8507 = vpack.c.b16 %v8223, %v8219
    %v8508 = vpack.c.b16 %v8224, %v8220
    %v8509 = vpack.c.b16 %v8229, %v8225
    %v8510 = vpack.c.b16 %v8230, %v8226
    %v8511 = vpack.c.b16 %v8231, %v8227
    %v8512 = vpack.c.b16 %v8232, %v8228
    %v8513 = vpack.c.b16 %v8237, %v8233
    %v8514 = vpack.c.b16 %v8238, %v8234
    %v8515 = vpack.c.b16 %v8239, %v8235
    %v8516 = vpack.c.b16 %v8240, %v8236
    %v8517 = vpack.c.b16 %v8245, %v8241
    %v8518 = vpack.c.b16 %v8246, %v8242
    %v8519 = vpack.c.b16 %v8247, %v8243
    %v8520 = vpack.c.b16 %v8248, %v8244
    %v8521 = vpack.c.b16 %v8253, %v8249
    %v8522 = vpack.c.b16 %v8254, %v8250
    %v8523 = vpack.c.b16 %v8255, %v8251
    %v8524 = vpack.c.b16 %v8256, %v8252
    %v8525 = vpack.c.b16 %v8261, %v8257
    %v8526 = vpack.c.b16 %v8262, %v8258
    %v8527 = vpack.c.b16 %v8263, %v8259
    %v8528 = vpack.c.b16 %v8264, %v8260
    %v8529 = vpack.c.b16 %v8269, %v8265
    %v8530 = vpack.c.b16 %v8270, %v8266
    %v8531 = vpack.c.b16 %v8271, %v8267
    %v8532 = vpack.c.b16 %v8272, %v8268
    %v8533 = vpack.c.b16 %v8277, %v8273
    %v8534 = vpack.c.b16 %v8278, %v8274
    %v8535 = vpack.c.b16 %v8279, %v8275
    %v8536 = vpack.c.b16 %v8280, %v8276
    %8793 = vmatprep.subr.bf16.mxu0 %v8310
    %8794 = vmatpush1.bf16.msra.mxu0 %v8309
    %8795 = vmatprep.subr.bf16.mxu0 %v8306
    %8796 = vmatpush1.bf16.msra.mxu0 %v8305
    %8797 = vmatprep.subr.bf16.mxu0 %v8302
    %8798 = vmatpush1.bf16.msra.mxu0 %v8301
    %8799 = vmatprep.subr.bf16.mxu0 %v8298
    %8800 = vmatpush1.bf16.msra.mxu0 %v8297
    %8801 = vmatprep.subr.bf16.mxu0 %v8294
    %8802 = vmatpush1.bf16.msra.mxu0 %v8293
    %8803 = vmatprep.subr.bf16.mxu0 %v8290
    %8804 = vmatpush1.bf16.msra.mxu0 %v8289
    %8805 = vmatprep.subr.bf16.mxu0 %v8286
    %8806 = vmatpush1.bf16.msra.mxu0 %v8285
    %8807 = vmatprep.subr.bf16.mxu0 %v8282
    %8808 = vmatpush1.bf16.msra.mxu0 %v8281
    %8809 = vmatprep.subr.bf16.mxu0 %v8342
    %8810 = vmatpush2.bf16.msra.mxu0 %v8341
    %8811 = vmatprep.subr.bf16.mxu0 %v8338
    %8812 = vmatpush2.bf16.msra.mxu0 %v8337
    %8813 = vmatprep.subr.bf16.mxu0 %v8334
    %8814 = vmatpush2.bf16.msra.mxu0 %v8333
    %8815 = vmatprep.subr.bf16.mxu0 %v8330
    %8816 = vmatpush2.bf16.msra.mxu0 %v8329
    %8817 = vmatprep.subr.bf16.mxu0 %v8326
    %8818 = vmatpush2.bf16.msra.mxu0 %v8325
    %8819 = vmatprep.subr.bf16.mxu0 %v8322
    %8820 = vmatpush2.bf16.msra.mxu0 %v8321
    %8821 = vmatprep.subr.bf16.mxu0 %v8318
    %8822 = vmatpush2.bf16.msra.mxu0 %v8317
    %8823 = vmatprep.subr.bf16.mxu0 %v8314
    %8824 = vmatpush2.bf16.msra.mxu0 %v8313
    %8825 = vmatprep.mubr.bf16.mxu0 %v7228
    %8826 = vmatmul.mubr.bf16.gmra.mxu0 %v7227
    %v8827 = vpop.f32.mrf.mxu0
    %v8828 = vadd.f32 %v7496, %v8827
    %v8829 = vpop.f32.mrf.mxu0
    %v8830 = vadd.f32 %v7500, %v8829
    %v8831 = vpop.f32.mrf.mxu0
    %v8832 = vpop.f32.mrf.mxu0
    %8833 = vdwg.mxu0
    %8834 = vmatprep.subr.bf16.mxu0 %v8374
    %8835 = vmatpush1.bf16.msra.mxu0 %v8373
    %8836 = vmatprep.subr.bf16.mxu0 %v8370
    %8837 = vmatpush1.bf16.msra.mxu0 %v8369
    %8838 = vmatprep.subr.bf16.mxu0 %v8366
    %8839 = vmatpush1.bf16.msra.mxu0 %v8365
    %8840 = vmatprep.subr.bf16.mxu0 %v8362
    %8841 = vmatpush1.bf16.msra.mxu0 %v8361
    %8842 = vmatprep.subr.bf16.mxu0 %v8358
    %8843 = vmatpush1.bf16.msra.mxu0 %v8357
    %8844 = vmatprep.subr.bf16.mxu0 %v8354
    %8845 = vmatpush1.bf16.msra.mxu0 %v8353
    %8846 = vmatprep.subr.bf16.mxu0 %v8350
    %8847 = vmatpush1.bf16.msra.mxu0 %v8349
    %8848 = vmatprep.subr.bf16.mxu0 %v8346
    %8849 = vmatpush1.bf16.msra.mxu0 %v8345
    %8850 = vmatprep.subr.bf16.mxu0 %v8406
    %8851 = vmatpush2.bf16.msra.mxu0 %v8405
    %8852 = vmatprep.subr.bf16.mxu0 %v8402
    %8853 = vmatpush2.bf16.msra.mxu0 %v8401
    %8854 = vmatprep.subr.bf16.mxu0 %v8398
    %8855 = vmatpush2.bf16.msra.mxu0 %v8397
    %8856 = vmatprep.subr.bf16.mxu0 %v8394
    %8857 = vmatpush2.bf16.msra.mxu0 %v8393
    %8858 = vmatprep.subr.bf16.mxu0 %v8390
    %8859 = vmatpush2.bf16.msra.mxu0 %v8389
    %8860 = vmatprep.subr.bf16.mxu0 %v8386
    %8861 = vmatpush2.bf16.msra.mxu0 %v8385
    %8862 = vmatprep.subr.bf16.mxu0 %v8382
    %8863 = vmatpush2.bf16.msra.mxu0 %v8381
    %8864 = vmatprep.subr.bf16.mxu0 %v8378
    %8865 = vmatpush2.bf16.msra.mxu0 %v8377
    %8866 = vmatprep.mubr.bf16.mxu0 %v7230
    %8867 = vmatmul.mubr.bf16.gmra.mxu0 %v7229
    %v8868 = vpop.f32.mrf.mxu0
    %v8869 = vadd.f32 %v8828, %v8868
    %v8870 = vpop.f32.mrf.mxu0
    %v8871 = vadd.f32 %v8830, %v8870
    %v8872 = vpop.f32.mrf.mxu0
    %v8873 = vpop.f32.mrf.mxu0
    %8874 = vdwg.mxu0
    %8875 = vmatprep.subr.bf16.mxu0 %v8438
    %8876 = vmatpush1.bf16.msra.mxu0 %v8437
    %8877 = vmatprep.subr.bf16.mxu0 %v8434
    %8878 = vmatpush1.bf16.msra.mxu0 %v8433
    %8879 = vmatprep.subr.bf16.mxu0 %v8430
    %8880 = vmatpush1.bf16.msra.mxu0 %v8429
    %8881 = vmatprep.subr.bf16.mxu0 %v8426
    %8882 = vmatpush1.bf16.msra.mxu0 %v8425
    %8883 = vmatprep.subr.bf16.mxu0 %v8422
    %8884 = vmatpush1.bf16.msra.mxu0 %v8421
    %8885 = vmatprep.subr.bf16.mxu0 %v8418
    %8886 = vmatpush1.bf16.msra.mxu0 %v8417
    %8887 = vmatprep.subr.bf16.mxu0 %v8414
    %8888 = vmatpush1.bf16.msra.mxu0 %v8413
    %8889 = vmatprep.subr.bf16.mxu0 %v8410
    %8890 = vmatpush1.bf16.msra.mxu0 %v8409
    %8891 = vmatprep.subr.bf16.mxu0 %v8470
    %8892 = vmatpush2.bf16.msra.mxu0 %v8469
    %8893 = vmatprep.subr.bf16.mxu0 %v8466
    %8894 = vmatpush2.bf16.msra.mxu0 %v8465
    %8895 = vmatprep.subr.bf16.mxu0 %v8462
    %8896 = vmatpush2.bf16.msra.mxu0 %v8461
    %8897 = vmatprep.subr.bf16.mxu0 %v8458
    %8898 = vmatpush2.bf16.msra.mxu0 %v8457
    %8899 = vmatprep.subr.bf16.mxu0 %v8454
    %8900 = vmatpush2.bf16.msra.mxu0 %v8453
    %8901 = vmatprep.subr.bf16.mxu0 %v8450
    %8902 = vmatpush2.bf16.msra.mxu0 %v8449
    %8903 = vmatprep.subr.bf16.mxu0 %v8446
    %8904 = vmatpush2.bf16.msra.mxu0 %v8445
    %8905 = vmatprep.subr.bf16.mxu0 %v8442
    %8906 = vmatpush2.bf16.msra.mxu0 %v8441
    %8907 = vmatprep.mubr.bf16.mxu0 %v7232
    %8908 = vmatmul.mubr.bf16.gmra.mxu0 %v7231
    %v8909 = vpop.f32.mrf.mxu0
    %v8910 = vadd.f32 %v8869, %v8909
    %v8911 = vpop.f32.mrf.mxu0
    %v8912 = vadd.f32 %v8871, %v8911
    %v8913 = vpop.f32.mrf.mxu0
    %v8914 = vpop.f32.mrf.mxu0
    %8915 = vdwg.mxu0
    %8916 = vmatprep.subr.bf16.mxu0 %v8502
    %8917 = vmatpush1.bf16.msra.mxu0 %v8501
    %8918 = vmatprep.subr.bf16.mxu0 %v8498
    %8919 = vmatpush1.bf16.msra.mxu0 %v8497
    %8920 = vmatprep.subr.bf16.mxu0 %v8494
    %8921 = vmatpush1.bf16.msra.mxu0 %v8493
    %8922 = vmatprep.subr.bf16.mxu0 %v8490
    %8923 = vmatpush1.bf16.msra.mxu0 %v8489
    %8924 = vmatprep.subr.bf16.mxu0 %v8486
    %8925 = vmatpush1.bf16.msra.mxu0 %v8485
    %8926 = vmatprep.subr.bf16.mxu0 %v8482
    %8927 = vmatpush1.bf16.msra.mxu0 %v8481
    %8928 = vmatprep.subr.bf16.mxu0 %v8478
    %8929 = vmatpush1.bf16.msra.mxu0 %v8477
    %8930 = vmatprep.subr.bf16.mxu0 %v8474
    %8931 = vmatpush1.bf16.msra.mxu0 %v8473
    %8932 = vmatprep.subr.bf16.mxu0 %v8534
    %8933 = vmatpush2.bf16.msra.mxu0 %v8533
    %8934 = vmatprep.subr.bf16.mxu0 %v8530
    %8935 = vmatpush2.bf16.msra.mxu0 %v8529
    %8936 = vmatprep.subr.bf16.mxu0 %v8526
    %8937 = vmatpush2.bf16.msra.mxu0 %v8525
    %8938 = vmatprep.subr.bf16.mxu0 %v8522
    %8939 = vmatpush2.bf16.msra.mxu0 %v8521
    %8940 = vmatprep.subr.bf16.mxu0 %v8518
    %8941 = vmatpush2.bf16.msra.mxu0 %v8517
    %8942 = vmatprep.subr.bf16.mxu0 %v8514
    %8943 = vmatpush2.bf16.msra.mxu0 %v8513
    %8944 = vmatprep.subr.bf16.mxu0 %v8510
    %8945 = vmatpush2.bf16.msra.mxu0 %v8509
    %8946 = vmatprep.subr.bf16.mxu0 %v8506
    %8947 = vmatpush2.bf16.msra.mxu0 %v8505
    %8948 = vmatprep.mubr.bf16.mxu0 %v7234
    %8949 = vmatmul.mubr.bf16.gmra.mxu0 %v7233
    %v8950 = vpop.f32.mrf.mxu0
    %v8951 = vadd.f32 %v8910, %v8950
    %v8952 = vpop.f32.mrf.mxu0
    %v8953 = vadd.f32 %v8912, %v8952
    %v8954 = vpop.f32.mrf.mxu0
    %v8955 = vpop.f32.mrf.mxu0
    %8956 = vdwg.mxu0
    %8957 = vmatprep.subr.bf16.mxu0 %v8312
    %8958 = vmatpush1.bf16.msra.mxu0 %v8311
    %8959 = vmatprep.subr.bf16.mxu0 %v8308
    %8960 = vmatpush1.bf16.msra.mxu0 %v8307
    %8961 = vmatprep.subr.bf16.mxu0 %v8304
    %8962 = vmatpush1.bf16.msra.mxu0 %v8303
    %8963 = vmatprep.subr.bf16.mxu0 %v8300
    %8964 = vmatpush1.bf16.msra.mxu0 %v8299
    %8965 = vmatprep.subr.bf16.mxu0 %v8296
    %8966 = vmatpush1.bf16.msra.mxu0 %v8295
    %8967 = vmatprep.subr.bf16.mxu0 %v8292
    %8968 = vmatpush1.bf16.msra.mxu0 %v8291
    %8969 = vmatprep.subr.bf16.mxu0 %v8288
    %8970 = vmatpush1.bf16.msra.mxu0 %v8287
    %8971 = vmatprep.subr.bf16.mxu0 %v8284
    %8972 = vmatpush1.bf16.msra.mxu0 %v8283
    %8973 = vmatprep.subr.bf16.mxu0 %v8344
    %8974 = vmatpush2.bf16.msra.mxu0 %v8343
    %8975 = vmatprep.subr.bf16.mxu0 %v8340
    %8976 = vmatpush2.bf16.msra.mxu0 %v8339
    %8977 = vmatprep.subr.bf16.mxu0 %v8336
    %8978 = vmatpush2.bf16.msra.mxu0 %v8335
    %8979 = vmatprep.subr.bf16.mxu0 %v8332
    %8980 = vmatpush2.bf16.msra.mxu0 %v8331
    %8981 = vmatprep.subr.bf16.mxu0 %v8328
    %8982 = vmatpush2.bf16.msra.mxu0 %v8327
    %8983 = vmatprep.subr.bf16.mxu0 %v8324
    %8984 = vmatpush2.bf16.msra.mxu0 %v8323
    %8985 = vmatprep.subr.bf16.mxu0 %v8320
    %8986 = vmatpush2.bf16.msra.mxu0 %v8319
    %8987 = vmatprep.subr.bf16.mxu0 %v8316
    %8988 = vmatpush2.bf16.msra.mxu0 %v8315
    %8989 = vmatprep.mubr.bf16.mxu0 %v7228
    %8990 = vmatmul.mubr.bf16.gmra.mxu0 %v7227
    %v8991 = vpop.f32.mrf.mxu0
    %v8992 = vadd.f32 %v7504, %v8991
    %v8993 = vpop.f32.mrf.mxu0
    %v8994 = vadd.f32 %v7508, %v8993
    %v8995 = vpop.f32.mrf.mxu0
    %v8996 = vpop.f32.mrf.mxu0
    %8997 = vdwg.mxu0
    %8998 = vmatprep.subr.bf16.mxu0 %v8376
    %8999 = vmatpush1.bf16.msra.mxu0 %v8375
    %9000 = vmatprep.subr.bf16.mxu0 %v8372
    %9001 = vmatpush1.bf16.msra.mxu0 %v8371
    %9002 = vmatprep.subr.bf16.mxu0 %v8368
    %9003 = vmatpush1.bf16.msra.mxu0 %v8367
    %9004 = vmatprep.subr.bf16.mxu0 %v8364
    %9005 = vmatpush1.bf16.msra.mxu0 %v8363
    %9006 = vmatprep.subr.bf16.mxu0 %v8360
    %9007 = vmatpush1.bf16.msra.mxu0 %v8359
    %9008 = vmatprep.subr.bf16.mxu0 %v8356
    %9009 = vmatpush1.bf16.msra.mxu0 %v8355
    %9010 = vmatprep.subr.bf16.mxu0 %v8352
    %9011 = vmatpush1.bf16.msra.mxu0 %v8351
    %9012 = vmatprep.subr.bf16.mxu0 %v8348
    %9013 = vmatpush1.bf16.msra.mxu0 %v8347
    %9014 = vmatprep.subr.bf16.mxu0 %v8408
    %9015 = vmatpush2.bf16.msra.mxu0 %v8407
    %9016 = vmatprep.subr.bf16.mxu0 %v8404
    %9017 = vmatpush2.bf16.msra.mxu0 %v8403
    %9018 = vmatprep.subr.bf16.mxu0 %v8400
    %9019 = vmatpush2.bf16.msra.mxu0 %v8399
    %9020 = vmatprep.subr.bf16.mxu0 %v8396
    %9021 = vmatpush2.bf16.msra.mxu0 %v8395
    %9022 = vmatprep.subr.bf16.mxu0 %v8392
    %9023 = vmatpush2.bf16.msra.mxu0 %v8391
    %9024 = vmatprep.subr.bf16.mxu0 %v8388
    %9025 = vmatpush2.bf16.msra.mxu0 %v8387
    %9026 = vmatprep.subr.bf16.mxu0 %v8384
    %9027 = vmatpush2.bf16.msra.mxu0 %v8383
    %9028 = vmatprep.subr.bf16.mxu0 %v8380
    %9029 = vmatpush2.bf16.msra.mxu0 %v8379
    %9030 = vmatprep.mubr.bf16.mxu0 %v7230
    %9031 = vmatmul.mubr.bf16.gmra.mxu0 %v7229
    %v9032 = vpop.f32.mrf.mxu0
    %v9033 = vadd.f32 %v8992, %v9032
    %v9034 = vpop.f32.mrf.mxu0
    %v9035 = vadd.f32 %v8994, %v9034
    %v9036 = vpop.f32.mrf.mxu0
    %v9037 = vpop.f32.mrf.mxu0
    %9038 = vdwg.mxu0
    %9039 = vmatprep.subr.bf16.mxu0 %v8440
    %9040 = vmatpush1.bf16.msra.mxu0 %v8439
    %9041 = vmatprep.subr.bf16.mxu0 %v8436
    %9042 = vmatpush1.bf16.msra.mxu0 %v8435
    %9043 = vmatprep.subr.bf16.mxu0 %v8432
    %9044 = vmatpush1.bf16.msra.mxu0 %v8431
    %9045 = vmatprep.subr.bf16.mxu0 %v8428
    %9046 = vmatpush1.bf16.msra.mxu0 %v8427
    %9047 = vmatprep.subr.bf16.mxu0 %v8424
    %9048 = vmatpush1.bf16.msra.mxu0 %v8423
    %9049 = vmatprep.subr.bf16.mxu0 %v8420
    %9050 = vmatpush1.bf16.msra.mxu0 %v8419
    %9051 = vmatprep.subr.bf16.mxu0 %v8416
    %9052 = vmatpush1.bf16.msra.mxu0 %v8415
    %9053 = vmatprep.subr.bf16.mxu0 %v8412
    %9054 = vmatpush1.bf16.msra.mxu0 %v8411
    %9055 = vmatprep.subr.bf16.mxu0 %v8472
    %9056 = vmatpush2.bf16.msra.mxu0 %v8471
    %9057 = vmatprep.subr.bf16.mxu0 %v8468
    %9058 = vmatpush2.bf16.msra.mxu0 %v8467
    %9059 = vmatprep.subr.bf16.mxu0 %v8464
    %9060 = vmatpush2.bf16.msra.mxu0 %v8463
    %9061 = vmatprep.subr.bf16.mxu0 %v8460
    %9062 = vmatpush2.bf16.msra.mxu0 %v8459
    %9063 = vmatprep.subr.bf16.mxu0 %v8456
    %9064 = vmatpush2.bf16.msra.mxu0 %v8455
    %9065 = vmatprep.subr.bf16.mxu0 %v8452
    %9066 = vmatpush2.bf16.msra.mxu0 %v8451
    %9067 = vmatprep.subr.bf16.mxu0 %v8448
    %9068 = vmatpush2.bf16.msra.mxu0 %v8447
    %9069 = vmatprep.subr.bf16.mxu0 %v8444
    %9070 = vmatpush2.bf16.msra.mxu0 %v8443
    %9071 = vmatprep.mubr.bf16.mxu0 %v7232
    %9072 = vmatmul.mubr.bf16.gmra.mxu0 %v7231
    %v9073 = vpop.f32.mrf.mxu0
    %v9074 = vadd.f32 %v9033, %v9073
    %v9075 = vpop.f32.mrf.mxu0
    %v9076 = vadd.f32 %v9035, %v9075
    %v9077 = vpop.f32.mrf.mxu0
    %v9078 = vpop.f32.mrf.mxu0
    %9079 = vdwg.mxu0
    %9080 = vmatprep.subr.bf16.mxu0 %v8504
    %9081 = vmatpush1.bf16.msra.mxu0 %v8503
    %9082 = vmatprep.subr.bf16.mxu0 %v8500
    %9083 = vmatpush1.bf16.msra.mxu0 %v8499
    %9084 = vmatprep.subr.bf16.mxu0 %v8496
    %9085 = vmatpush1.bf16.msra.mxu0 %v8495
    %9086 = vmatprep.subr.bf16.mxu0 %v8492
    %9087 = vmatpush1.bf16.msra.mxu0 %v8491
    %9088 = vmatprep.subr.bf16.mxu0 %v8488
    %9089 = vmatpush1.bf16.msra.mxu0 %v8487
    %9090 = vmatprep.subr.bf16.mxu0 %v8484
    %9091 = vmatpush1.bf16.msra.mxu0 %v8483
    %9092 = vmatprep.subr.bf16.mxu0 %v8480
    %9093 = vmatpush1.bf16.msra.mxu0 %v8479
    %9094 = vmatprep.subr.bf16.mxu0 %v8476
    %9095 = vmatpush1.bf16.msra.mxu0 %v8475
    %9096 = vmatprep.subr.bf16.mxu0 %v8536
    %9097 = vmatpush2.bf16.msra.mxu0 %v8535
    %9098 = vmatprep.subr.bf16.mxu0 %v8532
    %9099 = vmatpush2.bf16.msra.mxu0 %v8531
    %9100 = vmatprep.subr.bf16.mxu0 %v8528
    %9101 = vmatpush2.bf16.msra.mxu0 %v8527
    %9102 = vmatprep.subr.bf16.mxu0 %v8524
    %9103 = vmatpush2.bf16.msra.mxu0 %v8523
    %9104 = vmatprep.subr.bf16.mxu0 %v8520
    %9105 = vmatpush2.bf16.msra.mxu0 %v8519
    %9106 = vmatprep.subr.bf16.mxu0 %v8516
    %9107 = vmatpush2.bf16.msra.mxu0 %v8515
    %9108 = vmatprep.subr.bf16.mxu0 %v8512
    %9109 = vmatpush2.bf16.msra.mxu0 %v8511
    %9110 = vmatprep.subr.bf16.mxu0 %v8508
    %9111 = vmatpush2.bf16.msra.mxu0 %v8507
    %9112 = vmatprep.mubr.bf16.mxu0 %v7234
    %9113 = vmatmul.mubr.bf16.gmra.mxu0 %v7233
    %v9114 = vpop.f32.mrf.mxu0
    %v9115 = vadd.f32 %v9074, %v9114
    %v9116 = vpop.f32.mrf.mxu0
    %v9117 = vadd.f32 %v9076, %v9116
    %v9118 = vpop.f32.mrf.mxu0
    %v9119 = vpop.f32.mrf.mxu0
    %9120 = vdwg.mxu0
    %v9121 = vmax.f32 %v8951, 0.0
    %v9122 = vmax.f32 %v8953, 0.0
    %v9123 = vmax.f32 %v9115, 0.0
    %v9124 = vmax.f32 %v9117, 0.0
    %v9125 = vpack.c.bf16 %v9121, %v9121
    %v9126 = vpack.c.bf16 %v9122, %v9122
    %v9127 = vpack.c.bf16 %v9123, %v9123
    %v9128 = vpack.c.bf16 %v9124, %v9124
    %v9129 = vld [vmem:[#allocation16] sm:$0xff]
    %v9130 = vld [vmem:[#allocation16 + $0x8] sm:$0xff]
    %v9131 = vld [vmem:[#allocation16 + $0x10] sm:$0xff]
    %v9132 = vld [vmem:[#allocation16 + $0x18] sm:$0xff]
    %v9133 = vld [vmem:[#allocation16 + $0x20] sm:$0xff]
    %v9134 = vld [vmem:[#allocation16 + $0x28] sm:$0xff]
    %v9135 = vld [vmem:[#allocation16 + $0x30] sm:$0xff]
    %v9136 = vld [vmem:[#allocation16 + $0x38] sm:$0xff]
    %v9137 = vld [vmem:[#allocation16 + $0x40] sm:$0xff]
    %v9138 = vld [vmem:[#allocation16 + $0x48] sm:$0xff]
    %v9139 = vld [vmem:[#allocation16 + $0x50] sm:$0xff]
    %v9140 = vld [vmem:[#allocation16 + $0x58] sm:$0xff]
    %v9141 = vld [vmem:[#allocation16 + $0x60] sm:$0xff]
    %v9142 = vld [vmem:[#allocation16 + $0x68] sm:$0xff]
    %v9143 = vld [vmem:[#allocation16 + $0x70] sm:$0xff]
    %v9144 = vld [vmem:[#allocation16 + $0x78] sm:$0xff]
    %v9145 = vld [vmem:[#allocation16 + $0x80] sm:$0xff]
    %v9146 = vld [vmem:[#allocation16 + $0x88] sm:$0xff]
    %v9147 = vld [vmem:[#allocation16 + $0x90] sm:$0xff]
    %v9148 = vld [vmem:[#allocation16 + $0x98] sm:$0xff]
    %v9149 = vld [vmem:[#allocation16 + $0xa0] sm:$0xff]
    %v9150 = vld [vmem:[#allocation16 + $0xa8] sm:$0xff]
    %v9151 = vld [vmem:[#allocation16 + $0xb0] sm:$0xff]
    %v9152 = vld [vmem:[#allocation16 + $0xb8] sm:$0xff]
    %v9153 = vld [vmem:[#allocation16 + $0xc0] sm:$0xff]
    %v9154 = vld [vmem:[#allocation16 + $0xc8] sm:$0xff]
    %v9155 = vld [vmem:[#allocation16 + $0xd0] sm:$0xff]
    %v9156 = vld [vmem:[#allocation16 + $0xd8] sm:$0xff]
    %v9157 = vld [vmem:[#allocation16 + $0xe0] sm:$0xff]
    %v9158 = vld [vmem:[#allocation16 + $0xe8] sm:$0xff]
    %v9159 = vld [vmem:[#allocation16 + $0xf0] sm:$0xff]
    %v9160 = vld [vmem:[#allocation16 + $0xf8] sm:$0xff]
    %v9161 = vld [vmem:[#allocation16 + $0x100] sm:$0xff]
    %v9162 = vld [vmem:[#allocation16 + $0x108] sm:$0xff]
    %v9163 = vld [vmem:[#allocation16 + $0x110] sm:$0xff]
    %v9164 = vld [vmem:[#allocation16 + $0x118] sm:$0xff]
    %v9165 = vld [vmem:[#allocation16 + $0x120] sm:$0xff]
    %v9166 = vld [vmem:[#allocation16 + $0x128] sm:$0xff]
    %v9167 = vld [vmem:[#allocation16 + $0x130] sm:$0xff]
    %v9168 = vld [vmem:[#allocation16 + $0x138] sm:$0xff]
    %v9169 = vld [vmem:[#allocation16 + $0x140] sm:$0xff]
    %v9170 = vld [vmem:[#allocation16 + $0x148] sm:$0xff]
    %v9171 = vld [vmem:[#allocation16 + $0x150] sm:$0xff]
    %v9172 = vld [vmem:[#allocation16 + $0x158] sm:$0xff]
    %v9173 = vld [vmem:[#allocation16 + $0x160] sm:$0xff]
    %v9174 = vld [vmem:[#allocation16 + $0x168] sm:$0xff]
    %v9175 = vld [vmem:[#allocation16 + $0x170] sm:$0xff]
    %v9176 = vld [vmem:[#allocation16 + $0x178] sm:$0xff]
    %v9177 = vld [vmem:[#allocation16 + $0x180] sm:$0xff]
    %v9178 = vld [vmem:[#allocation16 + $0x188] sm:$0xff]
    %v9179 = vld [vmem:[#allocation16 + $0x190] sm:$0xff]
    %v9180 = vld [vmem:[#allocation16 + $0x198] sm:$0xff]
    %v9181 = vld [vmem:[#allocation16 + $0x1a0] sm:$0xff]
    %v9182 = vld [vmem:[#allocation16 + $0x1a8] sm:$0xff]
    %v9183 = vld [vmem:[#allocation16 + $0x1b0] sm:$0xff]
    %v9184 = vld [vmem:[#allocation16 + $0x1b8] sm:$0xff]
    %v9185 = vld [vmem:[#allocation16 + $0x1c0] sm:$0xff]
    %v9186 = vld [vmem:[#allocation16 + $0x1c8] sm:$0xff]
    %v9187 = vld [vmem:[#allocation16 + $0x1d0] sm:$0xff]
    %v9188 = vld [vmem:[#allocation16 + $0x1d8] sm:$0xff]
    %v9189 = vld [vmem:[#allocation16 + $0x1e0] sm:$0xff]
    %v9190 = vld [vmem:[#allocation16 + $0x1e8] sm:$0xff]
    %v9191 = vld [vmem:[#allocation16 + $0x1f0] sm:$0xff]
    %v9192 = vld [vmem:[#allocation16 + $0x1f8] sm:$0xff]
    %v9193 = vld [vmem:[#allocation17] sm:$0x3]
    %v9195 = vlaneseq
    %v9196 = vshrl.u32 %v9195, 7
    %v9197 = vsub.s32 0, %v9196
    %v9198 = vrot.slane %v9193, %v9197
    %v9199 = vlaneseq
    %v9200 = vshrl.u32 %v9199, 7
    %v9201 = vsub.s32 1, %v9200
    %v9202 = vrot.slane %v9193, %v9201
    %v9269 = vunpack.c.l.b16 %v9129
    %v9270 = vunpack.c.h.b16 %v9129
    %v9271 = vunpack.c.l.b16 %v9130
    %v9272 = vunpack.c.h.b16 %v9130
    %v9273 = vunpack.c.l.b16 %v9131
    %v9274 = vunpack.c.h.b16 %v9131
    %v9275 = vunpack.c.l.b16 %v9132
    %v9276 = vunpack.c.h.b16 %v9132
    %v9277 = vunpack.c.l.b16 %v9133
    %v9278 = vunpack.c.h.b16 %v9133
    %v9279 = vunpack.c.l.b16 %v9134
    %v9280 = vunpack.c.h.b16 %v9134
    %v9281 = vunpack.c.l.b16 %v9135
    %v9282 = vunpack.c.h.b16 %v9135
    %v9283 = vunpack.c.l.b16 %v9136
    %v9284 = vunpack.c.h.b16 %v9136
    %v9285 = vunpack.c.l.b16 %v9137
    %v9286 = vunpack.c.h.b16 %v9137
    %v9287 = vunpack.c.l.b16 %v9138
    %v9288 = vunpack.c.h.b16 %v9138
    %v9289 = vunpack.c.l.b16 %v9139
    %v9290 = vunpack.c.h.b16 %v9139
    %v9291 = vunpack.c.l.b16 %v9140
    %v9292 = vunpack.c.h.b16 %v9140
    %v9293 = vunpack.c.l.b16 %v9141
    %v9294 = vunpack.c.h.b16 %v9141
    %v9295 = vunpack.c.l.b16 %v9142
    %v9296 = vunpack.c.h.b16 %v9142
    %v9297 = vunpack.c.l.b16 %v9143
    %v9298 = vunpack.c.h.b16 %v9143
    %v9299 = vunpack.c.l.b16 %v9144
    %v9300 = vunpack.c.h.b16 %v9144
    %v9301 = vunpack.c.l.b16 %v9145
    %v9302 = vunpack.c.h.b16 %v9145
    %v9303 = vunpack.c.l.b16 %v9146
    %v9304 = vunpack.c.h.b16 %v9146
    %v9305 = vunpack.c.l.b16 %v9147
    %v9306 = vunpack.c.h.b16 %v9147
    %v9307 = vunpack.c.l.b16 %v9148
    %v9308 = vunpack.c.h.b16 %v9148
    %v9309 = vunpack.c.l.b16 %v9149
    %v9310 = vunpack.c.h.b16 %v9149
    %v9311 = vunpack.c.l.b16 %v9150
    %v9312 = vunpack.c.h.b16 %v9150
    %v9313 = vunpack.c.l.b16 %v9151
    %v9314 = vunpack.c.h.b16 %v9151
    %v9315 = vunpack.c.l.b16 %v9152
    %v9316 = vunpack.c.h.b16 %v9152
    %v9317 = vunpack.c.l.b16 %v9153
    %v9318 = vunpack.c.h.b16 %v9153
    %v9319 = vunpack.c.l.b16 %v9154
    %v9320 = vunpack.c.h.b16 %v9154
    %v9321 = vunpack.c.l.b16 %v9155
    %v9322 = vunpack.c.h.b16 %v9155
    %v9323 = vunpack.c.l.b16 %v9156
    %v9324 = vunpack.c.h.b16 %v9156
    %v9325 = vunpack.c.l.b16 %v9157
    %v9326 = vunpack.c.h.b16 %v9157
    %v9327 = vunpack.c.l.b16 %v9158
    %v9328 = vunpack.c.h.b16 %v9158
    %v9329 = vunpack.c.l.b16 %v9159
    %v9330 = vunpack.c.h.b16 %v9159
    %v9331 = vunpack.c.l.b16 %v9160
    %v9332 = vunpack.c.h.b16 %v9160
    %v9333 = vunpack.c.l.b16 %v9161
    %v9334 = vunpack.c.h.b16 %v9161
    %v9335 = vunpack.c.l.b16 %v9162
    %v9336 = vunpack.c.h.b16 %v9162
    %v9337 = vunpack.c.l.b16 %v9163
    %v9338 = vunpack.c.h.b16 %v9163
    %v9339 = vunpack.c.l.b16 %v9164
    %v9340 = vunpack.c.h.b16 %v9164
    %v9341 = vunpack.c.l.b16 %v9165
    %v9342 = vunpack.c.h.b16 %v9165
    %v9343 = vunpack.c.l.b16 %v9166
    %v9344 = vunpack.c.h.b16 %v9166
    %v9345 = vunpack.c.l.b16 %v9167
    %v9346 = vunpack.c.h.b16 %v9167
    %v9347 = vunpack.c.l.b16 %v9168
    %v9348 = vunpack.c.h.b16 %v9168
    %v9349 = vunpack.c.l.b16 %v9169
    %v9350 = vunpack.c.h.b16 %v9169
    %v9351 = vunpack.c.l.b16 %v9170
    %v9352 = vunpack.c.h.b16 %v9170
    %v9353 = vunpack.c.l.b16 %v9171
    %v9354 = vunpack.c.h.b16 %v9171
    %v9355 = vunpack.c.l.b16 %v9172
    %v9356 = vunpack.c.h.b16 %v9172
    %v9357 = vunpack.c.l.b16 %v9173
    %v9358 = vunpack.c.h.b16 %v9173
    %v9359 = vunpack.c.l.b16 %v9174
    %v9360 = vunpack.c.h.b16 %v9174
    %v9361 = vunpack.c.l.b16 %v9175
    %v9362 = vunpack.c.h.b16 %v9175
    %v9363 = vunpack.c.l.b16 %v9176
    %v9364 = vunpack.c.h.b16 %v9176
    %v9365 = vunpack.c.l.b16 %v9177
    %v9366 = vunpack.c.h.b16 %v9177
    %v9367 = vunpack.c.l.b16 %v9178
    %v9368 = vunpack.c.h.b16 %v9178
    %v9369 = vunpack.c.l.b16 %v9179
    %v9370 = vunpack.c.h.b16 %v9179
    %v9371 = vunpack.c.l.b16 %v9180
    %v9372 = vunpack.c.h.b16 %v9180
    %v9373 = vunpack.c.l.b16 %v9181
    %v9374 = vunpack.c.h.b16 %v9181
    %v9375 = vunpack.c.l.b16 %v9182
    %v9376 = vunpack.c.h.b16 %v9182
    %v9377 = vunpack.c.l.b16 %v9183
    %v9378 = vunpack.c.h.b16 %v9183
    %v9379 = vunpack.c.l.b16 %v9184
    %v9380 = vunpack.c.h.b16 %v9184
    %v9381 = vunpack.c.l.b16 %v9185
    %v9382 = vunpack.c.h.b16 %v9185
    %v9383 = vunpack.c.l.b16 %v9186
    %v9384 = vunpack.c.h.b16 %v9186
    %v9385 = vunpack.c.l.b16 %v9187
    %v9386 = vunpack.c.h.b16 %v9187
    %v9387 = vunpack.c.l.b16 %v9188
    %v9388 = vunpack.c.h.b16 %v9188
    %v9389 = vunpack.c.l.b16 %v9189
    %v9390 = vunpack.c.h.b16 %v9189
    %v9391 = vunpack.c.l.b16 %v9190
    %v9392 = vunpack.c.h.b16 %v9190
    %v9393 = vunpack.c.l.b16 %v9191
    %v9394 = vunpack.c.h.b16 %v9191
    %v9395 = vunpack.c.l.b16 %v9192
    %v9396 = vunpack.c.h.b16 %v9192
    %v9397 = vpack.c.b16 %v9271, %v9269
    %v9398 = vpack.c.b16 %v9272, %v9270
    %v9399 = vpack.c.b16 %v9275, %v9273
    %v9400 = vpack.c.b16 %v9276, %v9274
    %v9401 = vpack.c.b16 %v9279, %v9277
    %v9402 = vpack.c.b16 %v9280, %v9278
    %v9403 = vpack.c.b16 %v9283, %v9281
    %v9404 = vpack.c.b16 %v9284, %v9282
    %v9405 = vpack.c.b16 %v9287, %v9285
    %v9406 = vpack.c.b16 %v9288, %v9286
    %v9407 = vpack.c.b16 %v9291, %v9289
    %v9408 = vpack.c.b16 %v9292, %v9290
    %v9409 = vpack.c.b16 %v9295, %v9293
    %v9410 = vpack.c.b16 %v9296, %v9294
    %v9411 = vpack.c.b16 %v9299, %v9297
    %v9412 = vpack.c.b16 %v9300, %v9298
    %v9413 = vpack.c.b16 %v9303, %v9301
    %v9414 = vpack.c.b16 %v9304, %v9302
    %v9415 = vpack.c.b16 %v9307, %v9305
    %v9416 = vpack.c.b16 %v9308, %v9306
    %v9417 = vpack.c.b16 %v9311, %v9309
    %v9418 = vpack.c.b16 %v9312, %v9310
    %v9419 = vpack.c.b16 %v9315, %v9313
    %v9420 = vpack.c.b16 %v9316, %v9314
    %v9421 = vpack.c.b16 %v9319, %v9317
    %v9422 = vpack.c.b16 %v9320, %v9318
    %v9423 = vpack.c.b16 %v9323, %v9321
    %v9424 = vpack.c.b16 %v9324, %v9322
    %v9425 = vpack.c.b16 %v9327, %v9325
    %v9426 = vpack.c.b16 %v9328, %v9326
    %v9427 = vpack.c.b16 %v9331, %v9329
    %v9428 = vpack.c.b16 %v9332, %v9330
    %v9429 = vpack.c.b16 %v9335, %v9333
    %v9430 = vpack.c.b16 %v9336, %v9334
    %v9431 = vpack.c.b16 %v9339, %v9337
    %v9432 = vpack.c.b16 %v9340, %v9338
    %v9433 = vpack.c.b16 %v9343, %v9341
    %v9434 = vpack.c.b16 %v9344, %v9342
    %v9435 = vpack.c.b16 %v9347, %v9345
    %v9436 = vpack.c.b16 %v9348, %v9346
    %v9437 = vpack.c.b16 %v9351, %v9349
    %v9438 = vpack.c.b16 %v9352, %v9350
    %v9439 = vpack.c.b16 %v9355, %v9353
    %v9440 = vpack.c.b16 %v9356, %v9354
    %v9441 = vpack.c.b16 %v9359, %v9357
    %v9442 = vpack.c.b16 %v9360, %v9358
    %v9443 = vpack.c.b16 %v9363, %v9361
    %v9444 = vpack.c.b16 %v9364, %v9362
    %v9445 = vpack.c.b16 %v9367, %v9365
    %v9446 = vpack.c.b16 %v9368, %v9366
    %v9447 = vpack.c.b16 %v9371, %v9369
    %v9448 = vpack.c.b16 %v9372, %v9370
    %v9449 = vpack.c.b16 %v9375, %v9373
    %v9450 = vpack.c.b16 %v9376, %v9374
    %v9451 = vpack.c.b16 %v9379, %v9377
    %v9452 = vpack.c.b16 %v9380, %v9378
    %v9453 = vpack.c.b16 %v9383, %v9381
    %v9454 = vpack.c.b16 %v9384, %v9382
    %v9455 = vpack.c.b16 %v9387, %v9385
    %v9456 = vpack.c.b16 %v9388, %v9386
    %v9457 = vpack.c.b16 %v9391, %v9389
    %v9458 = vpack.c.b16 %v9392, %v9390
    %v9459 = vpack.c.b16 %v9395, %v9393
    %v9460 = vpack.c.b16 %v9396, %v9394
    %9525 = vmatprep.subr.bf16.mxu0 %v9412
    %9526 = vmatpush1.bf16.msra.mxu0 %v9411
    %9527 = vmatprep.subr.bf16.mxu0 %v9410
    %9528 = vmatpush1.bf16.msra.mxu0 %v9409
    %9529 = vmatprep.subr.bf16.mxu0 %v9408
    %9530 = vmatpush1.bf16.msra.mxu0 %v9407
    %9531 = vmatprep.subr.bf16.mxu0 %v9406
    %9532 = vmatpush1.bf16.msra.mxu0 %v9405
    %9533 = vmatprep.subr.bf16.mxu0 %v9404
    %9534 = vmatpush1.bf16.msra.mxu0 %v9403
    %9535 = vmatprep.subr.bf16.mxu0 %v9402
    %9536 = vmatpush1.bf16.msra.mxu0 %v9401
    %9537 = vmatprep.subr.bf16.mxu0 %v9400
    %9538 = vmatpush1.bf16.msra.mxu0 %v9399
    %9539 = vmatprep.subr.bf16.mxu0 %v9398
    %9540 = vmatpush1.bf16.msra.mxu0 %v9397
    %9541 = vmatprep.subr.bf16.mxu0 %v9428
    %9542 = vmatpush2.bf16.msra.mxu0 %v9427
    %9543 = vmatprep.subr.bf16.mxu0 %v9426
    %9544 = vmatpush2.bf16.msra.mxu0 %v9425
    %9545 = vmatprep.subr.bf16.mxu0 %v9424
    %9546 = vmatpush2.bf16.msra.mxu0 %v9423
    %9547 = vmatprep.subr.bf16.mxu0 %v9422
    %9548 = vmatpush2.bf16.msra.mxu0 %v9421
    %9549 = vmatprep.subr.bf16.mxu0 %v9420
    %9550 = vmatpush2.bf16.msra.mxu0 %v9419
    %9551 = vmatprep.subr.bf16.mxu0 %v9418
    %9552 = vmatpush2.bf16.msra.mxu0 %v9417
    %9553 = vmatprep.subr.bf16.mxu0 %v9416
    %9554 = vmatpush2.bf16.msra.mxu0 %v9415
    %9555 = vmatprep.subr.bf16.mxu0 %v9414
    %9556 = vmatpush2.bf16.msra.mxu0 %v9413
    %9557 = vmatprep.mubr.bf16.mxu0 %v9126
    %9558 = vmatmul.mubr.bf16.gmra.mxu0 %v9125
    %v9559 = vpop.f32.mrf.mxu0
    %v9560 = vadd.f32 %v9198, %v9559
    %v9561 = vpop.f32.mrf.mxu0
    %v9562 = vadd.f32 %v9202, %v9561
    %v9563 = vpop.f32.mrf.mxu0
    %v9564 = vpop.f32.mrf.mxu0
    %9565 = vdwg.mxu0
    %9566 = vmatprep.subr.bf16.mxu0 %v9444
    %9567 = vmatpush1.bf16.msra.mxu0 %v9443
    %9568 = vmatprep.subr.bf16.mxu0 %v9442
    %9569 = vmatpush1.bf16.msra.mxu0 %v9441
    %9570 = vmatprep.subr.bf16.mxu0 %v9440
    %9571 = vmatpush1.bf16.msra.mxu0 %v9439
    %9572 = vmatprep.subr.bf16.mxu0 %v9438
    %9573 = vmatpush1.bf16.msra.mxu0 %v9437
    %9574 = vmatprep.subr.bf16.mxu0 %v9436
    %9575 = vmatpush1.bf16.msra.mxu0 %v9435
    %9576 = vmatprep.subr.bf16.mxu0 %v9434
    %9577 = vmatpush1.bf16.msra.mxu0 %v9433
    %9578 = vmatprep.subr.bf16.mxu0 %v9432
    %9579 = vmatpush1.bf16.msra.mxu0 %v9431
    %9580 = vmatprep.subr.bf16.mxu0 %v9430
    %9581 = vmatpush1.bf16.msra.mxu0 %v9429
    %9582 = vmatprep.subr.bf16.mxu0 %v9460
    %9583 = vmatpush2.bf16.msra.mxu0 %v9459
    %9584 = vmatprep.subr.bf16.mxu0 %v9458
    %9585 = vmatpush2.bf16.msra.mxu0 %v9457
    %9586 = vmatprep.subr.bf16.mxu0 %v9456
    %9587 = vmatpush2.bf16.msra.mxu0 %v9455
    %9588 = vmatprep.subr.bf16.mxu0 %v9454
    %9589 = vmatpush2.bf16.msra.mxu0 %v9453
    %9590 = vmatprep.subr.bf16.mxu0 %v9452
    %9591 = vmatpush2.bf16.msra.mxu0 %v9451
    %9592 = vmatprep.subr.bf16.mxu0 %v9450
    %9593 = vmatpush2.bf16.msra.mxu0 %v9449
    %9594 = vmatprep.subr.bf16.mxu0 %v9448
    %9595 = vmatpush2.bf16.msra.mxu0 %v9447
    %9596 = vmatprep.subr.bf16.mxu0 %v9446
    %9597 = vmatpush2.bf16.msra.mxu0 %v9445
    %9598 = vmatprep.mubr.bf16.mxu0 %v9128
    %9599 = vmatmul.mubr.bf16.gmra.mxu0 %v9127
    %v9600 = vpop.f32.mrf.mxu0
    %v9601 = vadd.f32 %v9560, %v9600
    %v9602 = vpop.f32.mrf.mxu0
    %v9603 = vadd.f32 %v9562, %v9602
    %v9604 = vpop.f32.mrf.mxu0
    %v9605 = vpop.f32.mrf.mxu0
    %9606 = vdwg.mxu0
    %v9607 = vmax.f32 %v9601, 0.0
    %v9608 = vmax.f32 %v9603, 0.0
    %v9609 = vpack.c.bf16 %v9607, %v9607
    %v9610 = vpack.c.bf16 %v9608, %v9608
    %v9611 = vld [vmem:[%s12] sm:$0xf]
    %v9612 = vld [vmem:[%s12 + $0x4] sm:$0xf]
    %v9613 = vld [vmem:[%s12 + $0x8] sm:$0xf]
    %v9614 = vld [vmem:[%s12 + $0xc] sm:$0xf]
    %v9615 = vld [vmem:[%s12 + $0x10] sm:$0xf]
    %v9616 = vld [vmem:[%s12 + $0x14] sm:$0xf]
    %v9617 = vld [vmem:[%s12 + $0x18] sm:$0xf]
    %v9618 = vld [vmem:[%s12 + $0x1c] sm:$0xf]
    %v9619 = vld [vmem:[%s12 + $0x20] sm:$0xf]
    %v9620 = vld [vmem:[%s12 + $0x24] sm:$0xf]
    %v9621 = vld [vmem:[%s12 + $0x28] sm:$0xf]
    %v9622 = vld [vmem:[%s12 + $0x2c] sm:$0xf]
    %v9623 = vld [vmem:[%s12 + $0x30] sm:$0xf]
    %v9624 = vld [vmem:[%s12 + $0x34] sm:$0xf]
    %v9625 = vld [vmem:[%s12 + $0x38] sm:$0xf]
    %v9626 = vld [vmem:[%s12 + $0x3c] sm:$0xf]
    %v9627 = vld [vmem:[%s12 + $0x40] sm:$0xf]
    %v9628 = vld [vmem:[%s12 + $0x44] sm:$0xf]
    %v9629 = vld [vmem:[%s12 + $0x48] sm:$0xf]
    %v9630 = vld [vmem:[%s12 + $0x4c] sm:$0xf]
    %v9631 = vld [vmem:[%s12 + $0x50] sm:$0xf]
    %v9632 = vld [vmem:[%s12 + $0x54] sm:$0xf]
    %v9633 = vld [vmem:[%s12 + $0x58] sm:$0xf]
    %v9634 = vld [vmem:[%s12 + $0x5c] sm:$0xf]
    %v9635 = vld [vmem:[%s12 + $0x60] sm:$0xf]
    %v9636 = vld [vmem:[%s12 + $0x64] sm:$0xf]
    %v9637 = vld [vmem:[%s12 + $0x68] sm:$0xf]
    %v9638 = vld [vmem:[%s12 + $0x6c] sm:$0xf]
    %v9639 = vld [vmem:[%s12 + $0x70] sm:$0xf]
    %v9640 = vld [vmem:[%s12 + $0x74] sm:$0xf]
    %v9641 = vld [vmem:[%s12 + $0x78] sm:$0xf]
    %v9642 = vld [vmem:[%s12 + $0x7c] sm:$0xf]
    %v9643 = vld [vmem:[#allocation19] sm:$0x1]
    %v9645 = vlaneseq
    %v9646 = vshrl.u32 %v9645, 7
    %v9647 = vsub.s32 0, %v9646
    %v9648 = vrot.slane %v9643, %v9647
    %v9682 = vunpack.c.l.b16 %v9611
    %v9683 = vunpack.c.l.b16 %v9612
    %v9684 = vunpack.c.l.b16 %v9613
    %v9685 = vunpack.c.l.b16 %v9614
    %v9686 = vunpack.c.l.b16 %v9615
    %v9687 = vunpack.c.l.b16 %v9616
    %v9688 = vunpack.c.l.b16 %v9617
    %v9689 = vunpack.c.l.b16 %v9618
    %v9690 = vunpack.c.l.b16 %v9619
    %v9691 = vunpack.c.l.b16 %v9620
    %v9692 = vunpack.c.l.b16 %v9621
    %v9693 = vunpack.c.l.b16 %v9622
    %v9694 = vunpack.c.l.b16 %v9623
    %v9695 = vunpack.c.l.b16 %v9624
    %v9696 = vunpack.c.l.b16 %v9625
    %v9697 = vunpack.c.l.b16 %v9626
    %v9698 = vunpack.c.l.b16 %v9627
    %v9699 = vunpack.c.l.b16 %v9628
    %v9700 = vunpack.c.l.b16 %v9629
    %v9701 = vunpack.c.l.b16 %v9630
    %v9702 = vunpack.c.l.b16 %v9631
    %v9703 = vunpack.c.l.b16 %v9632
    %v9704 = vunpack.c.l.b16 %v9633
    %v9705 = vunpack.c.l.b16 %v9634
    %v9706 = vunpack.c.l.b16 %v9635
    %v9707 = vunpack.c.l.b16 %v9636
    %v9708 = vunpack.c.l.b16 %v9637
    %v9709 = vunpack.c.l.b16 %v9638
    %v9710 = vunpack.c.l.b16 %v9639
    %v9711 = vunpack.c.l.b16 %v9640
    %v9712 = vunpack.c.l.b16 %v9641
    %v9713 = vunpack.c.l.b16 %v9642
    %v9714 = vpack.c.b16 %v9683, %v9682
    %v9715 = vpack.c.b16 %v9685, %v9684
    %v9716 = vpack.c.b16 %v9687, %v9686
    %v9717 = vpack.c.b16 %v9689, %v9688
    %v9718 = vpack.c.b16 %v9691, %v9690
    %v9719 = vpack.c.b16 %v9693, %v9692
    %v9720 = vpack.c.b16 %v9695, %v9694
    %v9721 = vpack.c.b16 %v9697, %v9696
    %v9722 = vpack.c.b16 %v9699, %v9698
    %v9723 = vpack.c.b16 %v9701, %v9700
    %v9724 = vpack.c.b16 %v9703, %v9702
    %v9725 = vpack.c.b16 %v9705, %v9704
    %v9726 = vpack.c.b16 %v9707, %v9706
    %v9727 = vpack.c.b16 %v9709, %v9708
    %v9728 = vpack.c.b16 %v9711, %v9710
    %v9729 = vpack.c.b16 %v9713, %v9712
    %9746 = vmatprep.subr.bf16.mxu0 0
    %9747 = vmatpush1.bf16.msra.mxu0 %v9721
    %9748 = vmatprep.subr.bf16.mxu0 0
    %9749 = vmatpush1.bf16.msra.mxu0 %v9720
    %9750 = vmatprep.subr.bf16.mxu0 0
    %9751 = vmatpush1.bf16.msra.mxu0 %v9719
    %9752 = vmatprep.subr.bf16.mxu0 0
    %9753 = vmatpush1.bf16.msra.mxu0 %v9718
    %9754 = vmatprep.subr.bf16.mxu0 0
    %9755 = vmatpush1.bf16.msra.mxu0 %v9717
    %9756 = vmatprep.subr.bf16.mxu0 0
    %9757 = vmatpush1.bf16.msra.mxu0 %v9716
    %9758 = vmatprep.subr.bf16.mxu0 0
    %9759 = vmatpush1.bf16.msra.mxu0 %v9715
    %9760 = vmatprep.subr.bf16.mxu0 0
    %9761 = vmatpush1.bf16.msra.mxu0 %v9714
    %9762 = vmatprep.subr.bf16.mxu0 0
    %9763 = vmatpush2.bf16.msra.mxu0 %v9729
    %9764 = vmatprep.subr.bf16.mxu0 0
    %9765 = vmatpush2.bf16.msra.mxu0 %v9728
    %9766 = vmatprep.subr.bf16.mxu0 0
    %9767 = vmatpush2.bf16.msra.mxu0 %v9727
    %9768 = vmatprep.subr.bf16.mxu0 0
    %9769 = vmatpush2.bf16.msra.mxu0 %v9726
    %9770 = vmatprep.subr.bf16.mxu0 0
    %9771 = vmatpush2.bf16.msra.mxu0 %v9725
    %9772 = vmatprep.subr.bf16.mxu0 0
    %9773 = vmatpush2.bf16.msra.mxu0 %v9724
    %9774 = vmatprep.subr.bf16.mxu0 0
    %9775 = vmatpush2.bf16.msra.mxu0 %v9723
    %9776 = vmatprep.subr.bf16.mxu0 0
    %9777 = vmatpush2.bf16.msra.mxu0 %v9722
    %9778 = vmatprep.mubr.bf16.mxu0 %v9610
    %9779 = vmatmul.mubr.bf16.gmra.mxu0 %v9609
    %v9780 = vpop.f32.mrf.mxu0
    %v9781 = vadd.f32 %v9648, %v9780
    %v9782 = vpop.f32.mrf.mxu0
    %v9783 = vpop.f32.mrf.mxu0
    %v9784 = vpop.f32.mrf.mxu0
    %9785 = vdwg.mxu0
    %v9786 = vmax.f32 %v9781, 0.0
    %vm9787 = vcmask 25600
    %v9788 = vsel %vm9787, %v9786, -inf
    %9789 = vmax.xlane.f32.xlu0 %v9788
    %v9790 = vpop.xlane.xlu0 %9789
    %v9791 = vsub.f32 %v9786, %v9790
    %v9792 = vmul.f32 %v9791, 1.442695
    %v9793 = vpow.pop %v9792
    %v9794 = vsel %vm9787, %v9793, 0.0
    %9795 = vadd.xlane.f32.xlu0 %v9794
    %v9796 = vpop.xlane.xlu0 %9795
    %v9797 = vrcp.pop %v9796
    %v9798 = vmul.f32 %v9793, %v9797
    %9799 = vst.msk [vmem:[#allocation20] sm:$0x3] %vm9787, %v9798
    %vm9800 = vcmask 27650
    %v9801 = vsel %vm9800, %v9786, -inf
    %9802 = vmax.xlane.f32.xlu0 %v9801
    %v9803 = vpop.xlane.xlu0 %9802
    %v9804 = vsub.f32 %v9786, %v9803
    %v9805 = vmul.f32 %v9804, 1.442695
    %v9806 = vpow.pop %v9805
    %v9807 = vsel %vm9800, %v9806, 0.0
    %9808 = vadd.xlane.f32.xlu0 %v9807
    %v9809 = vpop.xlane.xlu0 %9808
    %v9810 = vrcp.pop %v9809
    %v9811 = vmul.f32 %v9806, %v9810
    %9812 = vst.msk [vmem:[#allocation21 - $0x2] sm:$0xc] %vm9800, %v9811
    %v9814 = vrot.slane %v9786, 2
    %v9816 = vadd.f32 %v9786, %v9814
    %v9817 = vmul.f32 %v9816, 0.5
    %v9818 = vsel %vm9787, %v9817, -inf
    %9819 = vmax.xlane.f32.xlu0 %v9818
    %v9820 = vpop.xlane.xlu0 %9819
    %v9821 = vsub.f32 %v9817, %v9820
    %v9822 = vmul.f32 %v9821, 1.442695
    %v9823 = vpow.pop %v9822
    %v9824 = vsel %vm9787, %v9823, 0.0
    %9825 = vadd.xlane.f32.xlu0 %v9824
    %v9826 = vpop.xlane.xlu0 %9825
    %v9827 = vrcp.pop %v9826
    %v9828 = vmul.f32 %v9823, %v9827
    %9829 = vst.msk [vmem:[#allocation23] sm:$0x3] %vm9787, %v9828
    %v9832 = vrot.slane %v9607, 2
    %v9833 = vrot.slane %v9608, 2
    %v9834 = vcombine.low %v9607, %v9608
    %v9835 = vcombine.low %v9832, %v9833
    %v9837 = vunpack.c.l.s4 1983009808
    %v9838 = vunpack.c.0.s8 %v9837
    %v9839 = vlaneseq
    %v9840 = vshrl.u32 %v9839, 7
    %v9841 = vsub.s32 %v9838, %v9840
    %v9842 = vrot.slane %v9834, %v9841
    %v9844 = vunpack.c.l.s4 1983009808
    %v9845 = vunpack.c.0.s8 %v9844
    %v9846 = vlaneseq
    %v9847 = vshrl.u32 %v9846, 7
    %v9848 = vsub.s32 %v9845, %v9847
    %v9849 = vrot.slane %v9835, %v9848
    %v9850 = vcombine.low %v9842, %v9849
    %9852 = vst [vmem:[#allocation24] sm:$0xff] %v9850
    // Predicated region
    $region102: #{net_forward.1} parent=1 // pred_check
      _
    $region103: #{net_forward.1} parent=1 // pred_check_branch
      %9854 = sbr.rel (0) target = $region105
    $region104: #{net_forward.1} parent=1 // pred_region
      %s9856 = ssub.s32 32, 32
      %9857 = vsyncadd [#allocation4], %s9856
      %s9859 = sshll.u32 [#allocation20], 4
      %s9860 = int_to_ptr.vmem [resolvable:$true] %s9859
      %9862 = dma.vmem_to_hbm [thread:$0]  %s9860, 32, %s14, [#allocation4]
    $region105: #{net_forward.1} parent=1 // pred_fallthru
      _
    // Predicated region
    $region106: #{net_forward.1} parent=1 // pred_check
      _
    $region107: #{net_forward.1} parent=1 // pred_check_branch
      %9864 = sbr.rel (0) target = $region109
    $region108: #{net_forward.1} parent=1 // pred_region
      %s9866 = ssub.s32 32, 32
      %9867 = vsyncadd [#allocation22], %s9866
      %s9869 = sshll.u32 [#allocation21], 4
      %s9870 = int_to_ptr.vmem [resolvable:$true] %s9869
      %9872 = dma.vmem_to_hbm [thread:$0]  %s9870, 32, %s15, [#allocation22]
    $region109: #{net_forward.1} parent=1 // pred_fallthru
      _
    // Predicated region
    $region110: #{net_forward.1} parent=1 // pred_check
      _
    $region111: #{net_forward.1} parent=1 // pred_check_branch
      %9874 = sbr.rel (0) target = $region113
    $region112: #{net_forward.1} parent=1 // pred_region
      %s9876 = ssub.s32 32, 32
      %9877 = vsyncadd [#allocation22], %s9876
      %s9879 = sshll.u32 [#allocation23], 4
      %s9880 = int_to_ptr.vmem [resolvable:$true] %s9879
      %9882 = dma.vmem_to_hbm [thread:$0]  %s9880, 32, %s16, [#allocation22]
    $region113: #{net_forward.1} parent=1 // pred_fallthru
      _
    // Predicated region
    $region114: #{net_forward.1} parent=1 // pred_check
      _
    $region115: #{net_forward.1} parent=1 // pred_check_branch
      %9884 = sbr.rel (0) target = $region117
    $region116: #{net_forward.1} parent=1 // pred_region
      %s9886 = ssub.s32 128, 128
      %9887 = vsyncadd [#allocation25], %s9886
      %s9889 = sshll.u32 [#allocation24], 4
      %s9890 = int_to_ptr.vmem [resolvable:$true] %s9889
      %9892 = dma.vmem_to_hbm [thread:$0]  %s9890, 128, %s17, [#allocation25]
    $region117: #{net_forward.1} parent=1 // pred_fallthru
      _
    // Predicated region
    $region118: #{net_forward.1} parent=1 // pred_check
      _
    $region119: #{net_forward.1} parent=1 // pred_check_branch
      %9894 = sbr.rel (0) target = $region121
    $region120: #{net_forward.1} parent=1 // pred_region
      %9895 = dma.done [#allocation4], 32
    $region121: #{net_forward.1} parent=1 // pred_fallthru
      _
    // Predicated region
    $region122: #{net_forward.1} parent=1 // pred_check
      _
    $region123: #{net_forward.1} parent=1 // pred_check_branch
      %9897 = sbr.rel (0) target = $region125
    $region124: #{net_forward.1} parent=1 // pred_region
      %9898 = dma.done [#allocation22], 32
    $region125: #{net_forward.1} parent=1 // pred_fallthru
      _
    // Predicated region
    $region126: #{net_forward.1} parent=1 // pred_check
      _
    $region127: #{net_forward.1} parent=1 // pred_check_branch
      %9900 = sbr.rel (0) target = $region129
    $region128: #{net_forward.1} parent=1 // pred_region
      %9901 = dma.done [#allocation22], 32
    $region129: #{net_forward.1} parent=1 // pred_fallthru
      _
    // Predicated region
    $region130: #{net_forward.1} parent=1 // pred_check
      _
    $region131: #{net_forward.1} parent=1 // pred_check_branch
      %9903 = sbr.rel (0) target = $region133
    $region132: #{net_forward.1} parent=1 // pred_region
      %9904 = dma.done [#allocation25], 128
    $region133: #{net_forward.1} parent=1 // pred_fallthru
      _
    %9905 = vsyncpa [#allocation3], 1
    %9906 = vsyncpa [#allocation6], 1
    %9907 = vsyncpa [#allocation9], 1
    %9908 = vsyncpa [#allocation12], 1
    %9909 = vsyncpa [#allocation15], 1
    %9910 = vsyncpa [#allocation18], 1
    %9911 = vsyncpa [#allocation4], 1
    %9912 = vsyncpa [#allocation22], 1
    %9913 = vsyncpa [#allocation25], 1

</llo_original>
